<compile_context>
chip_gen: v7x
topology: tpu7x:2x2x1
jax: 0.10.0
libtpu: 0.0.40
codegen_flags: <defaults>
</compile_context>

<pallas_src>
import numpy as np
import jax
import jax.numpy as jnp
from jax import lax
from jax.experimental import pallas as pl
from jax.experimental.pallas import tpu as pltpu

MEAN = 0.1307
STD = 0.3081
BN_EPS = 1e-5
PRE_SCALE = 1.0 / (100.0 * 255.0 * STD)   # avg_pool(10x10) + /255 + /STD
PRE_SHIFT = MEAN / STD

CW1 = 6 * 28     # conv1 output lanes (Cout * W)
CW2 = 16 * 14    # conv2 output lanes


def _vmem():
    return pl.BlockSpec(memory_space=pltpu.MemorySpace.VMEM)


# ------------------------------ fused kernel ------------------------------

def fused_cnn_kernel(
    x_ref, poolL_ref, poolR_ref,
    r1_ref, n1_ref, pmat1_ref, colsel1_ref, rowsel1_ref,
    r2_ref, n2_ref, pmat2_ref, colsel2_ref, rowsel2_ref,
    w1h_ref, w2t_ref, w3t_ref, misc_ref,
    o_ref,
):
    f32 = jnp.float32
    bf16 = jnp.bfloat16

    # --- preprocess: alpha-select + avg_pool2d(10) + /255 + (x-MEAN)/STD ----
    # Heavy matmul first (poolL @ X): M=28, K=280, N=1120 -> lane-dense.
    xb = x_ref[...].astype(bf16)                                     # (280, 1120)
    u = jnp.dot(poolL_ref[...], xb, preferred_element_type=f32)      # (28, 1120)
    z = jnp.dot(u.astype(bf16), poolR_ref[...],
                preferred_element_type=f32)                          # (28, 28)
    z = z * PRE_SCALE - PRE_SHIFT      # rows = H, lanes = (Cin=1)*W  -> conv1 input

    def conv_bn_relu_pool(a, r_ref, n_ref, pmat_ref, colsel_ref, rowsel_ref,
                          bias_row, gamma_row, beta_row, n_pix):
        # conv 5x5 pad 2 as  sum_kh  R[kh] @ A @ N[kh]  on the (H, Cin*W)
        # layout; R is a 0/1 H-shift (exact in bf16), N carries the weights and
        # produces the lane-dense (N = Cout*W) output.  f32 accumulation.
        ab = a.astype(bf16)
        acc = None
        for kh in range(5):
            sh = jnp.dot(r_ref[kh], ab, preferred_element_type=f32)   # exact shift
            part = jnp.dot(sh.astype(bf16), n_ref[kh],
                           preferred_element_type=f32)                # (H, Cout*W)
            acc = part if acc is None else acc + part
        acc = acc + bias_row        # conv bias (BN cancels it; kept for fidelity)

        # BatchNorm: training-mode batch stats (biased variance), all f32.
        # Sublane-reduce to per-lane column sums, then one matmul with the
        # channel-block all-ones matrix broadcasts each channel's sum back to
        # its W lanes, keeping rsqrt/scale/shift as lane-dense row vectors.
        s1 = jnp.sum(acc, axis=0, keepdims=True)                      # (1, C*W)
        s2 = jnp.sum(acc * acc, axis=0, keepdims=True)                # (1, C*W)
        cs1 = jnp.dot(s1, pmat_ref[...], preferred_element_type=f32)  # (1, C*W)
        cs2 = jnp.dot(s2, pmat_ref[...], preferred_element_type=f32)
        mean = cs1 * (1.0 / n_pix)
        var = cs2 * (1.0 / n_pix) - mean * mean
        scale = gamma_row * lax.rsqrt(var + BN_EPS)
        shift = beta_row - mean * scale
        y = jnp.maximum(acc * scale + shift, 0.0)                     # ReLU

        # 2x2 max-pool: even/odd lane-selection matmuls + VPU max (W axis),
        # then even/odd row-selection matmuls + VPU max (H axis).
        yb = y.astype(bf16)
        hm = jnp.maximum(
            jnp.dot(yb, colsel_ref[0], preferred_element_type=f32),
            jnp.dot(yb, colsel_ref[1], preferred_element_type=f32))   # (H, C*W/2)
        hmb = hm.astype(bf16)
        return jnp.maximum(
            jnp.dot(rowsel_ref[0], hmb, preferred_element_type=f32),
            jnp.dot(rowsel_ref[1], hmb, preferred_element_type=f32))  # (H/2, C*W/2)

    p1 = conv_bn_relu_pool(z, r1_ref, n1_ref, pmat1_ref, colsel1_ref, rowsel1_ref,
                           misc_ref[0:1, 0:CW1], misc_ref[1:2, 0:CW1],
                           misc_ref[2:3, 0:CW1], 28.0 * 28.0)         # (14, 84)
    p2 = conv_bn_relu_pool(p1, r2_ref, n2_ref, pmat2_ref, colsel2_ref, rowsel2_ref,
                           misc_ref[3:4, 0:CW2], misc_ref[4:5, 0:CW2],
                           misc_ref[5:6, 0:CW2], 14.0 * 14.0)         # (7, 112)

    # --- fused MLP head ------------------------------------------------------
    # fc1 consumes the (7, 16*7) layout directly: 7 independent lane-dense
    # (1,112)@(112,120) row-matmuls (flatten permutation pre-baked into w1h);
    # only the cheap VPU adds form a dependent chain.
    p2b = p2.astype(bf16)
    h = misc_ref[6:7, 0:120]
    for hr in range(7):
        h = h + jnp.dot(p2b[hr:hr + 1, :], w1h_ref[hr],
                        preferred_element_type=f32)
    h = jnp.maximum(h, 0.0)                                           # (1, 120)
    h = jnp.maximum(
        jnp.dot(h, w2t_ref[...], preferred_element_type=f32) + misc_ref[7:8, 0:84],
        0.0)                                                          # (1, 84)
    logits = (jnp.dot(h, w3t_ref[...], preferred_element_type=f32)
              + misc_ref[8:9, 0:10])                                  # (1, 10)

    mx = jnp.max(logits, axis=-1, keepdims=True)
    e = jnp.exp(logits - mx)
    o_ref[...] = e / jnp.sum(e, axis=-1, keepdims=True)


# ------------------------------ forward wrapper ------------------------------

@jax.jit
def cnn_forward(x, p):
    # (280, 280, 4) -> (280, 1120) is a contiguous (free) reshape; the alpha
    # channel selection / column pooling is folded into poolR.
    xf = x.reshape(280, 1120)
    return pl.pallas_call(
        fused_cnn_kernel,
        out_shape=jax.ShapeDtypeStruct((1, 10), jnp.float32),
        in_specs=[_vmem()] * 17,
        out_specs=_vmem(),
    )(
        xf, p["poolL"], p["poolR"],
        p["r1"], p["n1"], p["pmat1"], p["colsel1"], p["rowsel1"],
        p["r2"], p["n2"], p["pmat2"], p["colsel2"], p["rowsel2"],
        p["w1h"], p["w2t"], p["w3t"], p["misc"],
    )


# ------------------------- parameter init & packing -------------------------

def init_raw_params(key):
    ks = jax.random.split(key, 10)

    def u(k, shape, fan_in):
        bound = 1.0 / np.sqrt(fan_in)
        return jax.random.uniform(k, shape, jnp.float32, -bound, bound)

    return {
        "conv1_w": u(ks[0], (6, 1, 5, 5), 25),
        "conv1_b": u(ks[1], (6,), 25),
        "conv2_w": u(ks[2], (16, 6, 5, 5), 150),
        "conv2_b": u(ks[3], (16,), 150),
        "fc1_w": u(ks[4], (120, 784), 784),   # torch layout (out, in)
        "fc1_b": u(ks[5], (120,), 784),
        "fc2_w": u(ks[6], (84, 120), 120),
        "fc2_b": u(ks[7], (84,), 120),
        "fc3_w": u(ks[8], (10, 84), 84),
        "fc3_b": u(ks[9], (10,), 84),
        "bn1_gamma": jnp.ones((6,), jnp.float32),
        "bn1_beta": jnp.zeros((6,), jnp.float32),
        "bn2_gamma": jnp.ones((16,), jnp.float32),
        "bn2_beta": jnp.zeros((16,), jnp.float32),
    }


def _conv_pack(w_conv, h_in, w_in, pad=2):
    """Pack a KxK stride-1 conv so that, with activations in (H, Cin*W) layout,
       conv(x) == sum_kh  R[kh] @ A @ N[kh]:
         R[kh] (H, H)            : 0/1 row(H)-shift with zero padding baked in,
         N[kh] (Cin*W, Cout*W)   : lane(W)-mixing matrix carrying the weights."""
    w_conv = np.asarray(w_conv, np.float32)
    o, c, k, _ = w_conv.shape
    R = np.zeros((k, h_in, h_in), np.float32)
    N = np.zeros((k, c * w_in, o * w_in), np.float32)
    cc = np.arange(c)[:, None]
    oo = np.arange(o)[None, :]
    for kh in range(k):
        for h in range(h_in):
            hs = h + kh - pad
            if 0 <= hs < h_in:
                R[kh, h, hs] = 1.0
        for w in range(w_in):
            for kw in range(k):
                wi = w + kw - pad
                if 0 <= wi < w_in:
                    N[kh, cc * w_in + wi, oo * w_in + w] = w_conv[:, :, kh, kw].T
    return R, N


def _pool_pack(c, h, w):
    """2x2 max-pool selection matrices for the (H, C*W) layout."""
    rowsel = np.zeros((2, h // 2, h), np.float32)
    colsel = np.zeros((2, c * w, c * (w // 2)), np.float32)
    for e in range(2):
        for i in range(h // 2):
            rowsel[e, i, 2 * i + e] = 1.0
        for ci in range(c):
            for j in range(w // 2):
                colsel[e, ci * w + 2 * j + e, ci * (w // 2) + j] = 1.0
    return rowsel, colsel


def _chan_block(c, w):
    """All-ones channel-block matrix: (x @ P) broadcasts each channel's lane-sum
       back to that channel's W lanes."""
    p = np.zeros((c * w, c * w), np.float32)
    for ci in range(c):
        p[ci * w:(ci + 1) * w, ci * w:(ci + 1) * w] = 1.0
    return p


def prepare_params(raw):
    """One-time numpy packing of all weights/constants (nothing runs per forward)."""
    r = {k: np.asarray(v, np.float32) for k, v in raw.items()}

    # avg_pool2d(10) as poolL @ X @ poolR with PURE 0/1 operands (exact in
    # bf16); the 1/(100*255*STD) scale and -MEAN/STD shift applied in f32
    # inside the kernel.
    poolL = np.zeros((28, 280), np.float32)
    for i in range(28):
        poolL[i, 10 * i:10 * i + 10] = 1.0
    poolR = np.zeros((1120, 28), np.float32)
    for j in range(28):
        for col in range(10 * j, 10 * j + 10):
            poolR[4 * col + 3, j] = 1.0            # alpha-channel select

    r1, n1 = _conv_pack(r["conv1_w"], 28, 28)
    r2, n2 = _conv_pack(r["conv2_w"], 14, 14)
    rowsel1, colsel1 = _pool_pack(6, 28, 28)
    rowsel2, colsel2 = _pool_pack(16, 14, 14)
    pmat1 = _chan_block(6, 28)
    pmat2 = _chan_block(16, 14)

    # fc1: activation lanes are (c*7 + w) for row h; torch flat index is
    # c*49 + h*7 + w  ->  per-h (in, out)-ordered weight slabs.
    w1h = r["fc1_w"].reshape(120, 16, 7, 7).transpose(2, 1, 3, 0).reshape(7, 112, 120)

    # All small per-stage row vectors packed into one lane-dense array.
    misc = np.zeros((16, 256), np.float32)
    misc[0, :CW1] = np.repeat(r["conv1_b"], 28)
    misc[1, :CW1] = np.repeat(r["bn1_gamma"], 28)
    misc[2, :CW1] = np.repeat(r["bn1_beta"], 28)
    misc[3, :CW2] = np.repeat(r["conv2_b"], 14)
    misc[4, :CW2] = np.repeat(r["bn2_gamma"], 14)
    misc[5, :CW2] = np.repeat(r["bn2_beta"], 14)
    misc[6, :120] = r["fc1_b"]
    misc[7, :84] = r["fc2_b"]
    misc[8, :10] = r["fc3_b"]

    def b16(a):   # bf16 MXU operands: 0/1 mats exact, weights bf16-rounded
        return jnp.asarray(np.ascontiguousarray(a), dtype=jnp.bfloat16)

    return {
        "poolL": b16(poolL), "poolR": b16(poolR),
        "r1": b16(r1), "n1": b16(n1),
        "pmat1": jnp.asarray(pmat1),              # f32: BN stats stay f32
        "colsel1": b16(colsel1), "rowsel1": b16(rowsel1),
        "r2": b16(r2), "n2": b16(n2),
        "pmat2": jnp.asarray(pmat2),
        "colsel2": b16(colsel2), "rowsel2": b16(rowsel2),
        "w1h": b16(w1h),
        "w2t": jnp.asarray(np.ascontiguousarray(r["fc2_w"].T)),
        "w3t": jnp.asarray(np.ascontiguousarray(r["fc3_w"].T)),
        "misc": jnp.asarray(misc),
    }


if __name__ == "__main__":
    key = jax.random.PRNGKey(0)
    k_param, k_x = jax.random.split(key)
    params = prepare_params(init_raw_params(k_param))

    # Synthetic "RGBA screenshot": the module's reshape(280, 280, 4) fixes the
    # input size.
    x = jax.random.uniform(k_x, (280, 280, 4), jnp.float32, 0.0, 255.0)

    probs = jax.block_until_ready(cnn_forward(x, params))

    assert probs.shape == (1, 10)
    assert np.isfinite(np.asarray(probs)).all()
    assert abs(float(jnp.sum(probs)) - 1.0) < 1e-4
    print("KERNEL_OK")
</pallas_src>

<mosaic_0001>
module attributes {stable_mosaic.version = 11 : i64} {
  func.func @fused_cnn_kernel(%arg0: memref<280x1120xf32, #tpu.memory_space<vmem>>, %arg1: memref<28x280xbf16, #tpu.memory_space<vmem>>, %arg2: memref<1120x28xbf16, #tpu.memory_space<vmem>>, %arg3: memref<5x28x28xbf16, #tpu.memory_space<vmem>>, %arg4: memref<5x28x168xbf16, #tpu.memory_space<vmem>>, %arg5: memref<168x168xf32, #tpu.memory_space<vmem>>, %arg6: memref<2x168x84xbf16, #tpu.memory_space<vmem>>, %arg7: memref<2x14x28xbf16, #tpu.memory_space<vmem>>, %arg8: memref<5x14x14xbf16, #tpu.memory_space<vmem>>, %arg9: memref<5x84x224xbf16, #tpu.memory_space<vmem>>, %arg10: memref<224x224xf32, #tpu.memory_space<vmem>>, %arg11: memref<2x224x112xbf16, #tpu.memory_space<vmem>>, %arg12: memref<2x7x14xbf16, #tpu.memory_space<vmem>>, %arg13: memref<7x112x120xbf16, #tpu.memory_space<vmem>>, %arg14: memref<120x84xf32, #tpu.memory_space<vmem>>, %arg15: memref<84x10xf32, #tpu.memory_space<vmem>>, %arg16: memref<16x256xf32, #tpu.memory_space<vmem>>, %arg17: memref<1x10xf32, #tpu.memory_space<vmem>>) attributes {dimension_semantics = [], scalar_prefetch = 0 : i64, scratch_operands = 0 : i64, tpu.core_type = #tpu.core_type<tc>} {
    %c0 = arith.constant 0 : index
    %c0_0 = arith.constant 0 : index
    %0 = vector.load %arg0[%c0, %c0_0] : memref<280x1120xf32, #tpu.memory_space<vmem>>, vector<280x1120xf32>
    %1 = arith.truncf %0 : vector<280x1120xf32> to vector<280x1120xbf16>
    %c0_1 = arith.constant 0 : index
    %c0_2 = arith.constant 0 : index
    %2 = vector.load %arg1[%c0_1, %c0_2] : memref<28x280xbf16, #tpu.memory_space<vmem>>, vector<28x280xbf16>
    %cst = arith.constant dense<0.000000e+00> : vector<28x1120xf32>
    %3 = tpu.matmul %2, %1, %cst {dimension_numbers = #tpu.dot_dimension_numbers<[1], [0], [0], [1], [0, 0, 1, 1], [], []>} : vector<28x280xbf16>, vector<280x1120xbf16>, vector<28x1120xf32> -> vector<28x1120xf32>
    %4 = arith.truncf %3 : vector<28x1120xf32> to vector<28x1120xbf16>
    %c0_3 = arith.constant 0 : index
    %c0_4 = arith.constant 0 : index
    %5 = vector.load %arg2[%c0_3, %c0_4] : memref<1120x28xbf16, #tpu.memory_space<vmem>>, vector<1120x28xbf16>
    %cst_5 = arith.constant dense<0.000000e+00> : vector<28x28xf32>
    %6 = tpu.matmul %4, %5, %cst_5 {dimension_numbers = #tpu.dot_dimension_numbers<[1], [0], [0], [1], [0, 0, 1, 1], [], []>} : vector<28x1120xbf16>, vector<1120x28xbf16>, vector<28x28xf32> -> vector<28x28xf32>
    %cst_6 = arith.constant 1.27282328E-4 : f32
    %7 = vector.broadcast %cst_6 : f32 to vector<28x28xf32>
    %8 = arith.mulf %6, %7 : vector<28x28xf32>
    %cst_7 = arith.constant 0.424212933 : f32
    %9 = vector.broadcast %cst_7 : f32 to vector<28x28xf32>
    %10 = arith.subf %8, %9 : vector<28x28xf32>
    %c0_8 = arith.constant 0 : index
    %c0_9 = arith.constant 0 : index
    %11 = vector.load %arg16[%c0_8, %c0_9] : memref<16x256xf32, #tpu.memory_space<vmem>>, vector<1x168xf32>
    %c1 = arith.constant 1 : index
    %c0_10 = arith.constant 0 : index
    %12 = vector.load %arg16[%c1, %c0_10] : memref<16x256xf32, #tpu.memory_space<vmem>>, vector<1x168xf32>
    %c2 = arith.constant 2 : index
    %c0_11 = arith.constant 0 : index
    %13 = vector.load %arg16[%c2, %c0_11] : memref<16x256xf32, #tpu.memory_space<vmem>>, vector<1x168xf32>
    %14 = arith.truncf %10 : vector<28x28xf32> to vector<28x28xbf16>
    %c0_12 = arith.constant 0 : index
    %c0_13 = arith.constant 0 : index
    %c0_14 = arith.constant 0 : index
    %15 = vector.load %arg3[%c0_12, %c0_13, %c0_14] : memref<5x28x28xbf16, #tpu.memory_space<vmem>>, vector<1x28x28xbf16>
    %16 = vector.shape_cast %15 : vector<1x28x28xbf16> to vector<28x28xbf16>
    %cst_15 = arith.constant dense<0.000000e+00> : vector<28x28xf32>
    %17 = tpu.matmul %16, %14, %cst_15 {dimension_numbers = #tpu.dot_dimension_numbers<[1], [0], [0], [1], [0, 0, 1, 1], [], []>} : vector<28x28xbf16>, vector<28x28xbf16>, vector<28x28xf32> -> vector<28x28xf32>
    %18 = arith.truncf %17 : vector<28x28xf32> to vector<28x28xbf16>
    %c0_16 = arith.constant 0 : index
    %c0_17 = arith.constant 0 : index
    %c0_18 = arith.constant 0 : index
    %19 = vector.load %arg4[%c0_16, %c0_17, %c0_18] : memref<5x28x168xbf16, #tpu.memory_space<vmem>>, vector<1x28x168xbf16>
    %20 = vector.shape_cast %19 : vector<1x28x168xbf16> to vector<28x168xbf16>
    %cst_19 = arith.constant dense<0.000000e+00> : vector<28x168xf32>
    %21 = tpu.matmul %18, %20, %cst_19 {dimension_numbers = #tpu.dot_dimension_numbers<[1], [0], [0], [1], [0, 0, 1, 1], [], []>} : vector<28x28xbf16>, vector<28x168xbf16>, vector<28x168xf32> -> vector<28x168xf32>
    %c1_20 = arith.constant 1 : index
    %c0_21 = arith.constant 0 : index
    %c0_22 = arith.constant 0 : index
    %22 = vector.load %arg3[%c1_20, %c0_21, %c0_22] : memref<5x28x28xbf16, #tpu.memory_space<vmem>>, vector<1x28x28xbf16>
    %23 = vector.shape_cast %22 : vector<1x28x28xbf16> to vector<28x28xbf16>
    %cst_23 = arith.constant dense<0.000000e+00> : vector<28x28xf32>
    %24 = tpu.matmul %23, %14, %cst_23 {dimension_numbers = #tpu.dot_dimension_numbers<[1], [0], [0], [1], [0, 0, 1, 1], [], []>} : vector<28x28xbf16>, vector<28x28xbf16>, vector<28x28xf32> -> vector<28x28xf32>
    %25 = arith.truncf %24 : vector<28x28xf32> to vector<28x28xbf16>
    %c1_24 = arith.constant 1 : index
    %c0_25 = arith.constant 0 : index
    %c0_26 = arith.constant 0 : index
    %26 = vector.load %arg4[%c1_24, %c0_25, %c0_26] : memref<5x28x168xbf16, #tpu.memory_space<vmem>>, vector<1x28x168xbf16>
    %27 = vector.shape_cast %26 : vector<1x28x168xbf16> to vector<28x168xbf16>
    %cst_27 = arith.constant dense<0.000000e+00> : vector<28x168xf32>
    %28 = tpu.matmul %25, %27, %cst_27 {dimension_numbers = #tpu.dot_dimension_numbers<[1], [0], [0], [1], [0, 0, 1, 1], [], []>} : vector<28x28xbf16>, vector<28x168xbf16>, vector<28x168xf32> -> vector<28x168xf32>
    %29 = arith.addf %21, %28 : vector<28x168xf32>
    %c2_28 = arith.constant 2 : index
    %c0_29 = arith.constant 0 : index
    %c0_30 = arith.constant 0 : index
    %30 = vector.load %arg3[%c2_28, %c0_29, %c0_30] : memref<5x28x28xbf16, #tpu.memory_space<vmem>>, vector<1x28x28xbf16>
    %31 = vector.shape_cast %30 : vector<1x28x28xbf16> to vector<28x28xbf16>
    %cst_31 = arith.constant dense<0.000000e+00> : vector<28x28xf32>
    %32 = tpu.matmul %31, %14, %cst_31 {dimension_numbers = #tpu.dot_dimension_numbers<[1], [0], [0], [1], [0, 0, 1, 1], [], []>} : vector<28x28xbf16>, vector<28x28xbf16>, vector<28x28xf32> -> vector<28x28xf32>
    %33 = arith.truncf %32 : vector<28x28xf32> to vector<28x28xbf16>
    %c2_32 = arith.constant 2 : index
    %c0_33 = arith.constant 0 : index
    %c0_34 = arith.constant 0 : index
    %34 = vector.load %arg4[%c2_32, %c0_33, %c0_34] : memref<5x28x168xbf16, #tpu.memory_space<vmem>>, vector<1x28x168xbf16>
    %35 = vector.shape_cast %34 : vector<1x28x168xbf16> to vector<28x168xbf16>
    %cst_35 = arith.constant dense<0.000000e+00> : vector<28x168xf32>
    %36 = tpu.matmul %33, %35, %cst_35 {dimension_numbers = #tpu.dot_dimension_numbers<[1], [0], [0], [1], [0, 0, 1, 1], [], []>} : vector<28x28xbf16>, vector<28x168xbf16>, vector<28x168xf32> -> vector<28x168xf32>
    %37 = arith.addf %29, %36 : vector<28x168xf32>
    %c3 = arith.constant 3 : index
    %c0_36 = arith.constant 0 : index
    %c0_37 = arith.constant 0 : index
    %38 = vector.load %arg3[%c3, %c0_36, %c0_37] : memref<5x28x28xbf16, #tpu.memory_space<vmem>>, vector<1x28x28xbf16>
    %39 = vector.shape_cast %38 : vector<1x28x28xbf16> to vector<28x28xbf16>
    %cst_38 = arith.constant dense<0.000000e+00> : vector<28x28xf32>
    %40 = tpu.matmul %39, %14, %cst_38 {dimension_numbers = #tpu.dot_dimension_numbers<[1], [0], [0], [1], [0, 0, 1, 1], [], []>} : vector<28x28xbf16>, vector<28x28xbf16>, vector<28x28xf32> -> vector<28x28xf32>
    %41 = arith.truncf %40 : vector<28x28xf32> to vector<28x28xbf16>
    %c3_39 = arith.constant 3 : index
    %c0_40 = arith.constant 0 : index
    %c0_41 = arith.constant 0 : index
    %42 = vector.load %arg4[%c3_39, %c0_40, %c0_41] : memref<5x28x168xbf16, #tpu.memory_space<vmem>>, vector<1x28x168xbf16>
    %43 = vector.shape_cast %42 : vector<1x28x168xbf16> to vector<28x168xbf16>
    %cst_42 = arith.constant dense<0.000000e+00> : vector<28x168xf32>
    %44 = tpu.matmul %41, %43, %cst_42 {dimension_numbers = #tpu.dot_dimension_numbers<[1], [0], [0], [1], [0, 0, 1, 1], [], []>} : vector<28x28xbf16>, vector<28x168xbf16>, vector<28x168xf32> -> vector<28x168xf32>
    %45 = arith.addf %37, %44 : vector<28x168xf32>
    %c4 = arith.constant 4 : index
    %c0_43 = arith.constant 0 : index
    %c0_44 = arith.constant 0 : index
    %46 = vector.load %arg3[%c4, %c0_43, %c0_44] : memref<5x28x28xbf16, #tpu.memory_space<vmem>>, vector<1x28x28xbf16>
    %47 = vector.shape_cast %46 : vector<1x28x28xbf16> to vector<28x28xbf16>
    %cst_45 = arith.constant dense<0.000000e+00> : vector<28x28xf32>
    %48 = tpu.matmul %47, %14, %cst_45 {dimension_numbers = #tpu.dot_dimension_numbers<[1], [0], [0], [1], [0, 0, 1, 1], [], []>} : vector<28x28xbf16>, vector<28x28xbf16>, vector<28x28xf32> -> vector<28x28xf32>
    %49 = arith.truncf %48 : vector<28x28xf32> to vector<28x28xbf16>
    %c4_46 = arith.constant 4 : index
    %c0_47 = arith.constant 0 : index
    %c0_48 = arith.constant 0 : index
    %50 = vector.load %arg4[%c4_46, %c0_47, %c0_48] : memref<5x28x168xbf16, #tpu.memory_space<vmem>>, vector<1x28x168xbf16>
    %51 = vector.shape_cast %50 : vector<1x28x168xbf16> to vector<28x168xbf16>
    %cst_49 = arith.constant dense<0.000000e+00> : vector<28x168xf32>
    %52 = tpu.matmul %49, %51, %cst_49 {dimension_numbers = #tpu.dot_dimension_numbers<[1], [0], [0], [1], [0, 0, 1, 1], [], []>} : vector<28x28xbf16>, vector<28x168xbf16>, vector<28x168xf32> -> vector<28x168xf32>
    %53 = arith.addf %45, %52 : vector<28x168xf32>
    %54 = vector.broadcast %11 : vector<1x168xf32> to vector<28x168xf32>
    %55 = arith.addf %53, %54 : vector<28x168xf32>
    %cst_50 = arith.constant dense<0.000000e+00> : vector<168xf32>
    %56 = vector.multi_reduction <add>, %55, %cst_50 [0] : vector<28x168xf32> to vector<168xf32>
    %57 = vector.shape_cast %56 : vector<168xf32> to vector<1x168xf32>
    %58 = arith.mulf %55, %55 : vector<28x168xf32>
    %cst_51 = arith.constant dense<0.000000e+00> : vector<168xf32>
    %59 = vector.multi_reduction <add>, %58, %cst_51 [0] : vector<28x168xf32> to vector<168xf32>
    %60 = vector.shape_cast %59 : vector<168xf32> to vector<1x168xf32>
    %c0_52 = arith.constant 0 : index
    %c0_53 = arith.constant 0 : index
    %61 = vector.load %arg5[%c0_52, %c0_53] : memref<168x168xf32, #tpu.memory_space<vmem>>, vector<168x168xf32>
    %cst_54 = arith.constant dense<0.000000e+00> : vector<1x168xf32>
    %62 = tpu.matmul %57, %61, %cst_54 {dimension_numbers = #tpu.dot_dimension_numbers<[1], [0], [0], [1], [0, 0, 1, 1], [], []>} : vector<1x168xf32>, vector<168x168xf32>, vector<1x168xf32> -> vector<1x168xf32>
    %c0_55 = arith.constant 0 : index
    %c0_56 = arith.constant 0 : index
    %63 = vector.load %arg5[%c0_55, %c0_56] : memref<168x168xf32, #tpu.memory_space<vmem>>, vector<168x168xf32>
    %cst_57 = arith.constant dense<0.000000e+00> : vector<1x168xf32>
    %64 = tpu.matmul %60, %63, %cst_57 {dimension_numbers = #tpu.dot_dimension_numbers<[1], [0], [0], [1], [0, 0, 1, 1], [], []>} : vector<1x168xf32>, vector<168x168xf32>, vector<1x168xf32> -> vector<1x168xf32>
    %cst_58 = arith.constant 0.00127551018 : f32
    %65 = vector.broadcast %cst_58 : f32 to vector<1x168xf32>
    %66 = arith.mulf %62, %65 : vector<1x168xf32>
    %cst_59 = arith.constant 0.00127551018 : f32
    %67 = vector.broadcast %cst_59 : f32 to vector<1x168xf32>
    %68 = arith.mulf %64, %67 : vector<1x168xf32>
    %69 = arith.mulf %66, %66 : vector<1x168xf32>
    %70 = arith.subf %68, %69 : vector<1x168xf32>
    %cst_60 = arith.constant 9.99999974E-6 : f32
    %71 = vector.broadcast %cst_60 : f32 to vector<1x168xf32>
    %72 = arith.addf %70, %71 : vector<1x168xf32>
    %73 = math.rsqrt %72 : vector<1x168xf32>
    %74 = arith.mulf %12, %73 : vector<1x168xf32>
    %75 = arith.mulf %66, %74 : vector<1x168xf32>
    %76 = arith.subf %13, %75 : vector<1x168xf32>
    %77 = vector.broadcast %74 : vector<1x168xf32> to vector<28x168xf32>
    %78 = arith.mulf %55, %77 : vector<28x168xf32>
    %79 = vector.broadcast %76 : vector<1x168xf32> to vector<28x168xf32>
    %80 = arith.addf %78, %79 : vector<28x168xf32>
    %cst_61 = arith.constant 0.000000e+00 : f32
    %81 = vector.broadcast %cst_61 : f32 to vector<28x168xf32>
    %82 = arith.maximumf %80, %81 : vector<28x168xf32>
    %83 = arith.truncf %82 : vector<28x168xf32> to vector<28x168xbf16>
    %c0_62 = arith.constant 0 : index
    %c0_63 = arith.constant 0 : index
    %c0_64 = arith.constant 0 : index
    %84 = vector.load %arg6[%c0_62, %c0_63, %c0_64] : memref<2x168x84xbf16, #tpu.memory_space<vmem>>, vector<1x168x84xbf16>
    %85 = vector.shape_cast %84 : vector<1x168x84xbf16> to vector<168x84xbf16>
    %cst_65 = arith.constant dense<0.000000e+00> : vector<28x84xf32>
    %86 = tpu.matmul %83, %85, %cst_65 {dimension_numbers = #tpu.dot_dimension_numbers<[1], [0], [0], [1], [0, 0, 1, 1], [], []>} : vector<28x168xbf16>, vector<168x84xbf16>, vector<28x84xf32> -> vector<28x84xf32>
    %c1_66 = arith.constant 1 : index
    %c0_67 = arith.constant 0 : index
    %c0_68 = arith.constant 0 : index
    %87 = vector.load %arg6[%c1_66, %c0_67, %c0_68] : memref<2x168x84xbf16, #tpu.memory_space<vmem>>, vector<1x168x84xbf16>
    %88 = vector.shape_cast %87 : vector<1x168x84xbf16> to vector<168x84xbf16>
    %cst_69 = arith.constant dense<0.000000e+00> : vector<28x84xf32>
    %89 = tpu.matmul %83, %88, %cst_69 {dimension_numbers = #tpu.dot_dimension_numbers<[1], [0], [0], [1], [0, 0, 1, 1], [], []>} : vector<28x168xbf16>, vector<168x84xbf16>, vector<28x84xf32> -> vector<28x84xf32>
    %90 = arith.maximumf %86, %89 : vector<28x84xf32>
    %91 = arith.truncf %90 : vector<28x84xf32> to vector<28x84xbf16>
    %c0_70 = arith.constant 0 : index
    %c0_71 = arith.constant 0 : index
    %c0_72 = arith.constant 0 : index
    %92 = vector.load %arg7[%c0_70, %c0_71, %c0_72] : memref<2x14x28xbf16, #tpu.memory_space<vmem>>, vector<1x14x28xbf16>
    %93 = vector.shape_cast %92 : vector<1x14x28xbf16> to vector<14x28xbf16>
    %cst_73 = arith.constant dense<0.000000e+00> : vector<14x84xf32>
    %94 = tpu.matmul %93, %91, %cst_73 {dimension_numbers = #tpu.dot_dimension_numbers<[1], [0], [0], [1], [0, 0, 1, 1], [], []>} : vector<14x28xbf16>, vector<28x84xbf16>, vector<14x84xf32> -> vector<14x84xf32>
    %c1_74 = arith.constant 1 : index
    %c0_75 = arith.constant 0 : index
    %c0_76 = arith.constant 0 : index
    %95 = vector.load %arg7[%c1_74, %c0_75, %c0_76] : memref<2x14x28xbf16, #tpu.memory_space<vmem>>, vector<1x14x28xbf16>
    %96 = vector.shape_cast %95 : vector<1x14x28xbf16> to vector<14x28xbf16>
    %cst_77 = arith.constant dense<0.000000e+00> : vector<14x84xf32>
    %97 = tpu.matmul %96, %91, %cst_77 {dimension_numbers = #tpu.dot_dimension_numbers<[1], [0], [0], [1], [0, 0, 1, 1], [], []>} : vector<14x28xbf16>, vector<28x84xbf16>, vector<14x84xf32> -> vector<14x84xf32>
    %98 = arith.maximumf %94, %97 : vector<14x84xf32>
    %c3_78 = arith.constant 3 : index
    %c0_79 = arith.constant 0 : index
    %99 = vector.load %arg16[%c3_78, %c0_79] : memref<16x256xf32, #tpu.memory_space<vmem>>, vector<1x224xf32>
    %c4_80 = arith.constant 4 : index
    %c0_81 = arith.constant 0 : index
    %100 = vector.load %arg16[%c4_80, %c0_81] : memref<16x256xf32, #tpu.memory_space<vmem>>, vector<1x224xf32>
    %c5 = arith.constant 5 : index
    %c0_82 = arith.constant 0 : index
    %101 = vector.load %arg16[%c5, %c0_82] : memref<16x256xf32, #tpu.memory_space<vmem>>, vector<1x224xf32>
    %102 = arith.truncf %98 : vector<14x84xf32> to vector<14x84xbf16>
    %c0_83 = arith.constant 0 : index
    %c0_84 = arith.constant 0 : index
    %c0_85 = arith.constant 0 : index
    %103 = vector.load %arg8[%c0_83, %c0_84, %c0_85] : memref<5x14x14xbf16, #tpu.memory_space<vmem>>, vector<1x14x14xbf16>
    %104 = vector.shape_cast %103 : vector<1x14x14xbf16> to vector<14x14xbf16>
    %cst_86 = arith.constant dense<0.000000e+00> : vector<14x84xf32>
    %105 = tpu.matmul %104, %102, %cst_86 {dimension_numbers = #tpu.dot_dimension_numbers<[1], [0], [0], [1], [0, 0, 1, 1], [], []>} : vector<14x14xbf16>, vector<14x84xbf16>, vector<14x84xf32> -> vector<14x84xf32>
    %106 = arith.truncf %105 : vector<14x84xf32> to vector<14x84xbf16>
    %c0_87 = arith.constant 0 : index
    %c0_88 = arith.constant 0 : index
    %c0_89 = arith.constant 0 : index
    %107 = vector.load %arg9[%c0_87, %c0_88, %c0_89] : memref<5x84x224xbf16, #tpu.memory_space<vmem>>, vector<1x84x224xbf16>
    %108 = vector.shape_cast %107 : vector<1x84x224xbf16> to vector<84x224xbf16>
    %cst_90 = arith.constant dense<0.000000e+00> : vector<14x224xf32>
    %109 = tpu.matmul %106, %108, %cst_90 {dimension_numbers = #tpu.dot_dimension_numbers<[1], [0], [0], [1], [0, 0, 1, 1], [], []>} : vector<14x84xbf16>, vector<84x224xbf16>, vector<14x224xf32> -> vector<14x224xf32>
    %c1_91 = arith.constant 1 : index
    %c0_92 = arith.constant 0 : index
    %c0_93 = arith.constant 0 : index
    %110 = vector.load %arg8[%c1_91, %c0_92, %c0_93] : memref<5x14x14xbf16, #tpu.memory_space<vmem>>, vector<1x14x14xbf16>
    %111 = vector.shape_cast %110 : vector<1x14x14xbf16> to vector<14x14xbf16>
    %cst_94 = arith.constant dense<0.000000e+00> : vector<14x84xf32>
    %112 = tpu.matmul %111, %102, %cst_94 {dimension_numbers = #tpu.dot_dimension_numbers<[1], [0], [0], [1], [0, 0, 1, 1], [], []>} : vector<14x14xbf16>, vector<14x84xbf16>, vector<14x84xf32> -> vector<14x84xf32>
    %113 = arith.truncf %112 : vector<14x84xf32> to vector<14x84xbf16>
    %c1_95 = arith.constant 1 : index
    %c0_96 = arith.constant 0 : index
    %c0_97 = arith.constant 0 : index
    %114 = vector.load %arg9[%c1_95, %c0_96, %c0_97] : memref<5x84x224xbf16, #tpu.memory_space<vmem>>, vector<1x84x224xbf16>
    %115 = vector.shape_cast %114 : vector<1x84x224xbf16> to vector<84x224xbf16>
    %cst_98 = arith.constant dense<0.000000e+00> : vector<14x224xf32>
    %116 = tpu.matmul %113, %115, %cst_98 {dimension_numbers = #tpu.dot_dimension_numbers<[1], [0], [0], [1], [0, 0, 1, 1], [], []>} : vector<14x84xbf16>, vector<84x224xbf16>, vector<14x224xf32> -> vector<14x224xf32>
    %117 = arith.addf %109, %116 : vector<14x224xf32>
    %c2_99 = arith.constant 2 : index
    %c0_100 = arith.constant 0 : index
    %c0_101 = arith.constant 0 : index
    %118 = vector.load %arg8[%c2_99, %c0_100, %c0_101] : memref<5x14x14xbf16, #tpu.memory_space<vmem>>, vector<1x14x14xbf16>
    %119 = vector.shape_cast %118 : vector<1x14x14xbf16> to vector<14x14xbf16>
    %cst_102 = arith.constant dense<0.000000e+00> : vector<14x84xf32>
    %120 = tpu.matmul %119, %102, %cst_102 {dimension_numbers = #tpu.dot_dimension_numbers<[1], [0], [0], [1], [0, 0, 1, 1], [], []>} : vector<14x14xbf16>, vector<14x84xbf16>, vector<14x84xf32> -> vector<14x84xf32>
    %121 = arith.truncf %120 : vector<14x84xf32> to vector<14x84xbf16>
    %c2_103 = arith.constant 2 : index
    %c0_104 = arith.constant 0 : index
    %c0_105 = arith.constant 0 : index
    %122 = vector.load %arg9[%c2_103, %c0_104, %c0_105] : memref<5x84x224xbf16, #tpu.memory_space<vmem>>, vector<1x84x224xbf16>
    %123 = vector.shape_cast %122 : vector<1x84x224xbf16> to vector<84x224xbf16>
    %cst_106 = arith.constant dense<0.000000e+00> : vector<14x224xf32>
    %124 = tpu.matmul %121, %123, %cst_106 {dimension_numbers = #tpu.dot_dimension_numbers<[1], [0], [0], [1], [0, 0, 1, 1], [], []>} : vector<14x84xbf16>, vector<84x224xbf16>, vector<14x224xf32> -> vector<14x224xf32>
    %125 = arith.addf %117, %124 : vector<14x224xf32>
    %c3_107 = arith.constant 3 : index
    %c0_108 = arith.constant 0 : index
    %c0_109 = arith.constant 0 : index
    %126 = vector.load %arg8[%c3_107, %c0_108, %c0_109] : memref<5x14x14xbf16, #tpu.memory_space<vmem>>, vector<1x14x14xbf16>
    %127 = vector.shape_cast %126 : vector<1x14x14xbf16> to vector<14x14xbf16>
    %cst_110 = arith.constant dense<0.000000e+00> : vector<14x84xf32>
    %128 = tpu.matmul %127, %102, %cst_110 {dimension_numbers = #tpu.dot_dimension_numbers<[1], [0], [0], [1], [0, 0, 1, 1], [], []>} : vector<14x14xbf16>, vector<14x84xbf16>, vector<14x84xf32> -> vector<14x84xf32>
    %129 = arith.truncf %128 : vector<14x84xf32> to vector<14x84xbf16>
    %c3_111 = arith.constant 3 : index
    %c0_112 = arith.constant 0 : index
    %c0_113 = arith.constant 0 : index
    %130 = vector.load %arg9[%c3_111, %c0_112, %c0_113] : memref<5x84x224xbf16, #tpu.memory_space<vmem>>, vector<1x84x224xbf16>
    %131 = vector.shape_cast %130 : vector<1x84x224xbf16> to vector<84x224xbf16>
    %cst_114 = arith.constant dense<0.000000e+00> : vector<14x224xf32>
    %132 = tpu.matmul %129, %131, %cst_114 {dimension_numbers = #tpu.dot_dimension_numbers<[1], [0], [0], [1], [0, 0, 1, 1], [], []>} : vector<14x84xbf16>, vector<84x224xbf16>, vector<14x224xf32> -> vector<14x224xf32>
    %133 = arith.addf %125, %132 : vector<14x224xf32>
    %c4_115 = arith.constant 4 : index
    %c0_116 = arith.constant 0 : index
    %c0_117 = arith.constant 0 : index
    %134 = vector.load %arg8[%c4_115, %c0_116, %c0_117] : memref<5x14x14xbf16, #tpu.memory_space<vmem>>, vector<1x14x14xbf16>
    %135 = vector.shape_cast %134 : vector<1x14x14xbf16> to vector<14x14xbf16>
    %cst_118 = arith.constant dense<0.000000e+00> : vector<14x84xf32>
    %136 = tpu.matmul %135, %102, %cst_118 {dimension_numbers = #tpu.dot_dimension_numbers<[1], [0], [0], [1], [0, 0, 1, 1], [], []>} : vector<14x14xbf16>, vector<14x84xbf16>, vector<14x84xf32> -> vector<14x84xf32>
    %137 = arith.truncf %136 : vector<14x84xf32> to vector<14x84xbf16>
    %c4_119 = arith.constant 4 : index
    %c0_120 = arith.constant 0 : index
    %c0_121 = arith.constant 0 : index
    %138 = vector.load %arg9[%c4_119, %c0_120, %c0_121] : memref<5x84x224xbf16, #tpu.memory_space<vmem>>, vector<1x84x224xbf16>
    %139 = vector.shape_cast %138 : vector<1x84x224xbf16> to vector<84x224xbf16>
    %cst_122 = arith.constant dense<0.000000e+00> : vector<14x224xf32>
    %140 = tpu.matmul %137, %139, %cst_122 {dimension_numbers = #tpu.dot_dimension_numbers<[1], [0], [0], [1], [0, 0, 1, 1], [], []>} : vector<14x84xbf16>, vector<84x224xbf16>, vector<14x224xf32> -> vector<14x224xf32>
    %141 = arith.addf %133, %140 : vector<14x224xf32>
    %142 = vector.broadcast %99 : vector<1x224xf32> to vector<14x224xf32>
    %143 = arith.addf %141, %142 : vector<14x224xf32>
    %cst_123 = arith.constant dense<0.000000e+00> : vector<224xf32>
    %144 = vector.multi_reduction <add>, %143, %cst_123 [0] : vector<14x224xf32> to vector<224xf32>
    %145 = vector.shape_cast %144 : vector<224xf32> to vector<1x224xf32>
    %146 = arith.mulf %143, %143 : vector<14x224xf32>
    %cst_124 = arith.constant dense<0.000000e+00> : vector<224xf32>
    %147 = vector.multi_reduction <add>, %146, %cst_124 [0] : vector<14x224xf32> to vector<224xf32>
    %148 = vector.shape_cast %147 : vector<224xf32> to vector<1x224xf32>
    %c0_125 = arith.constant 0 : index
    %c0_126 = arith.constant 0 : index
    %149 = vector.load %arg10[%c0_125, %c0_126] : memref<224x224xf32, #tpu.memory_space<vmem>>, vector<224x224xf32>
    %cst_127 = arith.constant dense<0.000000e+00> : vector<1x224xf32>
    %150 = tpu.matmul %145, %149, %cst_127 {dimension_numbers = #tpu.dot_dimension_numbers<[1], [0], [0], [1], [0, 0, 1, 1], [], []>} : vector<1x224xf32>, vector<224x224xf32>, vector<1x224xf32> -> vector<1x224xf32>
    %c0_128 = arith.constant 0 : index
    %c0_129 = arith.constant 0 : index
    %151 = vector.load %arg10[%c0_128, %c0_129] : memref<224x224xf32, #tpu.memory_space<vmem>>, vector<224x224xf32>
    %cst_130 = arith.constant dense<0.000000e+00> : vector<1x224xf32>
    %152 = tpu.matmul %148, %151, %cst_130 {dimension_numbers = #tpu.dot_dimension_numbers<[1], [0], [0], [1], [0, 0, 1, 1], [], []>} : vector<1x224xf32>, vector<224x224xf32>, vector<1x224xf32> -> vector<1x224xf32>
    %cst_131 = arith.constant 0.00510204071 : f32
    %153 = vector.broadcast %cst_131 : f32 to vector<1x224xf32>
    %154 = arith.mulf %150, %153 : vector<1x224xf32>
    %cst_132 = arith.constant 0.00510204071 : f32
    %155 = vector.broadcast %cst_132 : f32 to vector<1x224xf32>
    %156 = arith.mulf %152, %155 : vector<1x224xf32>
    %157 = arith.mulf %154, %154 : vector<1x224xf32>
    %158 = arith.subf %156, %157 : vector<1x224xf32>
    %cst_133 = arith.constant 9.99999974E-6 : f32
    %159 = vector.broadcast %cst_133 : f32 to vector<1x224xf32>
    %160 = arith.addf %158, %159 : vector<1x224xf32>
    %161 = math.rsqrt %160 : vector<1x224xf32>
    %162 = arith.mulf %100, %161 : vector<1x224xf32>
    %163 = arith.mulf %154, %162 : vector<1x224xf32>
    %164 = arith.subf %101, %163 : vector<1x224xf32>
    %165 = vector.broadcast %162 : vector<1x224xf32> to vector<14x224xf32>
    %166 = arith.mulf %143, %165 : vector<14x224xf32>
    %167 = vector.broadcast %164 : vector<1x224xf32> to vector<14x224xf32>
    %168 = arith.addf %166, %167 : vector<14x224xf32>
    %cst_134 = arith.constant 0.000000e+00 : f32
    %169 = vector.broadcast %cst_134 : f32 to vector<14x224xf32>
    %170 = arith.maximumf %168, %169 : vector<14x224xf32>
    %171 = arith.truncf %170 : vector<14x224xf32> to vector<14x224xbf16>
    %c0_135 = arith.constant 0 : index
    %c0_136 = arith.constant 0 : index
    %c0_137 = arith.constant 0 : index
    %172 = vector.load %arg11[%c0_135, %c0_136, %c0_137] : memref<2x224x112xbf16, #tpu.memory_space<vmem>>, vector<1x224x112xbf16>
    %173 = vector.shape_cast %172 : vector<1x224x112xbf16> to vector<224x112xbf16>
    %cst_138 = arith.constant dense<0.000000e+00> : vector<14x112xf32>
    %174 = tpu.matmul %171, %173, %cst_138 {dimension_numbers = #tpu.dot_dimension_numbers<[1], [0], [0], [1], [0, 0, 1, 1], [], []>} : vector<14x224xbf16>, vector<224x112xbf16>, vector<14x112xf32> -> vector<14x112xf32>
    %c1_139 = arith.constant 1 : index
    %c0_140 = arith.constant 0 : index
    %c0_141 = arith.constant 0 : index
    %175 = vector.load %arg11[%c1_139, %c0_140, %c0_141] : memref<2x224x112xbf16, #tpu.memory_space<vmem>>, vector<1x224x112xbf16>
    %176 = vector.shape_cast %175 : vector<1x224x112xbf16> to vector<224x112xbf16>
    %cst_142 = arith.constant dense<0.000000e+00> : vector<14x112xf32>
    %177 = tpu.matmul %171, %176, %cst_142 {dimension_numbers = #tpu.dot_dimension_numbers<[1], [0], [0], [1], [0, 0, 1, 1], [], []>} : vector<14x224xbf16>, vector<224x112xbf16>, vector<14x112xf32> -> vector<14x112xf32>
    %178 = arith.maximumf %174, %177 : vector<14x112xf32>
    %179 = arith.truncf %178 : vector<14x112xf32> to vector<14x112xbf16>
    %c0_143 = arith.constant 0 : index
    %c0_144 = arith.constant 0 : index
    %c0_145 = arith.constant 0 : index
    %180 = vector.load %arg12[%c0_143, %c0_144, %c0_145] : memref<2x7x14xbf16, #tpu.memory_space<vmem>>, vector<1x7x14xbf16>
    %181 = vector.shape_cast %180 : vector<1x7x14xbf16> to vector<7x14xbf16>
    %cst_146 = arith.constant dense<0.000000e+00> : vector<7x112xf32>
    %182 = tpu.matmul %181, %179, %cst_146 {dimension_numbers = #tpu.dot_dimension_numbers<[1], [0], [0], [1], [0, 0, 1, 1], [], []>} : vector<7x14xbf16>, vector<14x112xbf16>, vector<7x112xf32> -> vector<7x112xf32>
    %c1_147 = arith.constant 1 : index
    %c0_148 = arith.constant 0 : index
    %c0_149 = arith.constant 0 : index
    %183 = vector.load %arg12[%c1_147, %c0_148, %c0_149] : memref<2x7x14xbf16, #tpu.memory_space<vmem>>, vector<1x7x14xbf16>
    %184 = vector.shape_cast %183 : vector<1x7x14xbf16> to vector<7x14xbf16>
    %cst_150 = arith.constant dense<0.000000e+00> : vector<7x112xf32>
    %185 = tpu.matmul %184, %179, %cst_150 {dimension_numbers = #tpu.dot_dimension_numbers<[1], [0], [0], [1], [0, 0, 1, 1], [], []>} : vector<7x14xbf16>, vector<14x112xbf16>, vector<7x112xf32> -> vector<7x112xf32>
    %186 = arith.maximumf %182, %185 : vector<7x112xf32>
    %187 = arith.truncf %186 : vector<7x112xf32> to vector<7x112xbf16>
    %c6 = arith.constant 6 : index
    %c0_151 = arith.constant 0 : index
    %188 = vector.load %arg16[%c6, %c0_151] : memref<16x256xf32, #tpu.memory_space<vmem>>, vector<1x120xf32>
    %189 = vector.extract_strided_slice %187 {offsets = [0, 0], sizes = [1, 112], strides = [1, 1]} : vector<7x112xbf16> to vector<1x112xbf16>
    %c0_152 = arith.constant 0 : index
    %c0_153 = arith.constant 0 : index
    %c0_154 = arith.constant 0 : index
    %190 = vector.load %arg13[%c0_152, %c0_153, %c0_154] : memref<7x112x120xbf16, #tpu.memory_space<vmem>>, vector<1x112x120xbf16>
    %191 = vector.shape_cast %190 : vector<1x112x120xbf16> to vector<112x120xbf16>
    %cst_155 = arith.constant dense<0.000000e+00> : vector<1x120xf32>
    %192 = tpu.matmul %189, %191, %cst_155 {dimension_numbers = #tpu.dot_dimension_numbers<[1], [0], [0], [1], [0, 0, 1, 1], [], []>} : vector<1x112xbf16>, vector<112x120xbf16>, vector<1x120xf32> -> vector<1x120xf32>
    %193 = arith.addf %188, %192 : vector<1x120xf32>
    %194 = vector.extract_strided_slice %187 {offsets = [1, 0], sizes = [1, 112], strides = [1, 1]} : vector<7x112xbf16> to vector<1x112xbf16>
    %c1_156 = arith.constant 1 : index
    %c0_157 = arith.constant 0 : index
    %c0_158 = arith.constant 0 : index
    %195 = vector.load %arg13[%c1_156, %c0_157, %c0_158] : memref<7x112x120xbf16, #tpu.memory_space<vmem>>, vector<1x112x120xbf16>
    %196 = vector.shape_cast %195 : vector<1x112x120xbf16> to vector<112x120xbf16>
    %cst_159 = arith.constant dense<0.000000e+00> : vector<1x120xf32>
    %197 = tpu.matmul %194, %196, %cst_159 {dimension_numbers = #tpu.dot_dimension_numbers<[1], [0], [0], [1], [0, 0, 1, 1], [], []>} : vector<1x112xbf16>, vector<112x120xbf16>, vector<1x120xf32> -> vector<1x120xf32>
    %198 = arith.addf %193, %197 : vector<1x120xf32>
    %199 = vector.extract_strided_slice %187 {offsets = [2, 0], sizes = [1, 112], strides = [1, 1]} : vector<7x112xbf16> to vector<1x112xbf16>
    %c2_160 = arith.constant 2 : index
    %c0_161 = arith.constant 0 : index
    %c0_162 = arith.constant 0 : index
    %200 = vector.load %arg13[%c2_160, %c0_161, %c0_162] : memref<7x112x120xbf16, #tpu.memory_space<vmem>>, vector<1x112x120xbf16>
    %201 = vector.shape_cast %200 : vector<1x112x120xbf16> to vector<112x120xbf16>
    %cst_163 = arith.constant dense<0.000000e+00> : vector<1x120xf32>
    %202 = tpu.matmul %199, %201, %cst_163 {dimension_numbers = #tpu.dot_dimension_numbers<[1], [0], [0], [1], [0, 0, 1, 1], [], []>} : vector<1x112xbf16>, vector<112x120xbf16>, vector<1x120xf32> -> vector<1x120xf32>
    %203 = arith.addf %198, %202 : vector<1x120xf32>
    %204 = vector.extract_strided_slice %187 {offsets = [3, 0], sizes = [1, 112], strides = [1, 1]} : vector<7x112xbf16> to vector<1x112xbf16>
    %c3_164 = arith.constant 3 : index
    %c0_165 = arith.constant 0 : index
    %c0_166 = arith.constant 0 : index
    %205 = vector.load %arg13[%c3_164, %c0_165, %c0_166] : memref<7x112x120xbf16, #tpu.memory_space<vmem>>, vector<1x112x120xbf16>
    %206 = vector.shape_cast %205 : vector<1x112x120xbf16> to vector<112x120xbf16>
    %cst_167 = arith.constant dense<0.000000e+00> : vector<1x120xf32>
    %207 = tpu.matmul %204, %206, %cst_167 {dimension_numbers = #tpu.dot_dimension_numbers<[1], [0], [0], [1], [0, 0, 1, 1], [], []>} : vector<1x112xbf16>, vector<112x120xbf16>, vector<1x120xf32> -> vector<1x120xf32>
    %208 = arith.addf %203, %207 : vector<1x120xf32>
    %209 = vector.extract_strided_slice %187 {offsets = [4, 0], sizes = [1, 112], strides = [1, 1]} : vector<7x112xbf16> to vector<1x112xbf16>
    %c4_168 = arith.constant 4 : index
    %c0_169 = arith.constant 0 : index
    %c0_170 = arith.constant 0 : index
    %210 = vector.load %arg13[%c4_168, %c0_169, %c0_170] : memref<7x112x120xbf16, #tpu.memory_space<vmem>>, vector<1x112x120xbf16>
    %211 = vector.shape_cast %210 : vector<1x112x120xbf16> to vector<112x120xbf16>
    %cst_171 = arith.constant dense<0.000000e+00> : vector<1x120xf32>
    %212 = tpu.matmul %209, %211, %cst_171 {dimension_numbers = #tpu.dot_dimension_numbers<[1], [0], [0], [1], [0, 0, 1, 1], [], []>} : vector<1x112xbf16>, vector<112x120xbf16>, vector<1x120xf32> -> vector<1x120xf32>
    %213 = arith.addf %208, %212 : vector<1x120xf32>
    %214 = vector.extract_strided_slice %187 {offsets = [5, 0], sizes = [1, 112], strides = [1, 1]} : vector<7x112xbf16> to vector<1x112xbf16>
    %c5_172 = arith.constant 5 : index
    %c0_173 = arith.constant 0 : index
    %c0_174 = arith.constant 0 : index
    %215 = vector.load %arg13[%c5_172, %c0_173, %c0_174] : memref<7x112x120xbf16, #tpu.memory_space<vmem>>, vector<1x112x120xbf16>
    %216 = vector.shape_cast %215 : vector<1x112x120xbf16> to vector<112x120xbf16>
    %cst_175 = arith.constant dense<0.000000e+00> : vector<1x120xf32>
    %217 = tpu.matmul %214, %216, %cst_175 {dimension_numbers = #tpu.dot_dimension_numbers<[1], [0], [0], [1], [0, 0, 1, 1], [], []>} : vector<1x112xbf16>, vector<112x120xbf16>, vector<1x120xf32> -> vector<1x120xf32>
    %218 = arith.addf %213, %217 : vector<1x120xf32>
    %219 = vector.extract_strided_slice %187 {offsets = [6, 0], sizes = [1, 112], strides = [1, 1]} : vector<7x112xbf16> to vector<1x112xbf16>
    %c6_176 = arith.constant 6 : index
    %c0_177 = arith.constant 0 : index
    %c0_178 = arith.constant 0 : index
    %220 = vector.load %arg13[%c6_176, %c0_177, %c0_178] : memref<7x112x120xbf16, #tpu.memory_space<vmem>>, vector<1x112x120xbf16>
    %221 = vector.shape_cast %220 : vector<1x112x120xbf16> to vector<112x120xbf16>
    %cst_179 = arith.constant dense<0.000000e+00> : vector<1x120xf32>
    %222 = tpu.matmul %219, %221, %cst_179 {dimension_numbers = #tpu.dot_dimension_numbers<[1], [0], [0], [1], [0, 0, 1, 1], [], []>} : vector<1x112xbf16>, vector<112x120xbf16>, vector<1x120xf32> -> vector<1x120xf32>
    %223 = arith.addf %218, %222 : vector<1x120xf32>
    %cst_180 = arith.constant 0.000000e+00 : f32
    %224 = vector.broadcast %cst_180 : f32 to vector<1x120xf32>
    %225 = arith.maximumf %223, %224 : vector<1x120xf32>
    %c0_181 = arith.constant 0 : index
    %c0_182 = arith.constant 0 : index
    %226 = vector.load %arg14[%c0_181, %c0_182] : memref<120x84xf32, #tpu.memory_space<vmem>>, vector<120x84xf32>
    %cst_183 = arith.constant dense<0.000000e+00> : vector<1x84xf32>
    %227 = tpu.matmul %225, %226, %cst_183 {dimension_numbers = #tpu.dot_dimension_numbers<[1], [0], [0], [1], [0, 0, 1, 1], [], []>} : vector<1x120xf32>, vector<120x84xf32>, vector<1x84xf32> -> vector<1x84xf32>
    %c7 = arith.constant 7 : index
    %c0_184 = arith.constant 0 : index
    %228 = vector.load %arg16[%c7, %c0_184] : memref<16x256xf32, #tpu.memory_space<vmem>>, vector<1x84xf32>
    %229 = arith.addf %227, %228 : vector<1x84xf32>
    %cst_185 = arith.constant 0.000000e+00 : f32
    %230 = vector.broadcast %cst_185 : f32 to vector<1x84xf32>
    %231 = arith.maximumf %229, %230 : vector<1x84xf32>
    %c0_186 = arith.constant 0 : index
    %c0_187 = arith.constant 0 : index
    %232 = vector.load %arg15[%c0_186, %c0_187] : memref<84x10xf32, #tpu.memory_space<vmem>>, vector<84x10xf32>
    %cst_188 = arith.constant dense<0.000000e+00> : vector<1x10xf32>
    %233 = tpu.matmul %231, %232, %cst_188 {dimension_numbers = #tpu.dot_dimension_numbers<[1], [0], [0], [1], [0, 0, 1, 1], [], []>} : vector<1x84xf32>, vector<84x10xf32>, vector<1x10xf32> -> vector<1x10xf32>
    %c8 = arith.constant 8 : index
    %c0_189 = arith.constant 0 : index
    %234 = vector.load %arg16[%c8, %c0_189] : memref<16x256xf32, #tpu.memory_space<vmem>>, vector<1x10xf32>
    %235 = arith.addf %233, %234 : vector<1x10xf32>
    %cst_190 = arith.constant dense<0xFF800000> : vector<1xf32>
    %236 = vector.multi_reduction <maximumf>, %235, %cst_190 [1] : vector<1x10xf32> to vector<1xf32>
    %237 = vector.shape_cast %236 : vector<1xf32> to vector<1x1xf32>
    %238 = vector.broadcast %237 : vector<1x1xf32> to vector<1x10xf32>
    %239 = arith.subf %235, %238 : vector<1x10xf32>
    %240 = math.exp %239 : vector<1x10xf32>
    %cst_191 = arith.constant dense<0.000000e+00> : vector<1xf32>
    %241 = vector.multi_reduction <add>, %240, %cst_191 [1] : vector<1x10xf32> to vector<1xf32>
    %242 = vector.shape_cast %241 : vector<1xf32> to vector<1x1xf32>
    %243 = vector.broadcast %242 : vector<1x1xf32> to vector<1x10xf32>
    %244 = arith.divf %240, %243 : vector<1x10xf32>
    %c0_192 = arith.constant 0 : index
    %c0_193 = arith.constant 0 : index
    %245 = vector.load %arg17[%c0_192, %c0_193] : memref<1x10xf32, #tpu.memory_space<vmem>>, vector<1x10xf32>
    tpu.vector_store %arg17[%c0_192, %c0_193], %244 {strides = array<i32>} : memref<1x10xf32, #tpu.memory_space<vmem>>, vector<1x10xf32>,
    return
  }
}

</mosaic_0001>

<llo_original>
// kernel: cnn_forward.1
$region0: #{cnn_forward.1}
  #allocation0 [shape = 'u32[]', space=smem, size = 0x4, offset = 0x4, fixed_abs, tag = 'smem constant byte address 0x4 - core index']
  #allocation1 [shape = 'u32[144,128]{1,0:T(1,128)}', space=vmem, size = 0x12000, scoped, tag = 'internal scratch']
  %s0 = inlined_call_operand.vmem [shape: f32[280,1120], index: 0, kind: input, shape index: {}]
  %s1 = inlined_call_operand.vmem [shape: bf16[28,280], index: 1, kind: input, shape index: {}]
  %s2 = inlined_call_operand.vmem [shape: bf16[1120,28], index: 2, kind: input, shape index: {}]
  %s3 = inlined_call_operand.vmem [shape: bf16[5,28,28], index: 3, kind: input, shape index: {}]
  %s4 = inlined_call_operand.vmem [shape: bf16[5,28,168], index: 4, kind: input, shape index: {}]
  %s5 = inlined_call_operand.vmem [shape: f32[168,168], index: 5, kind: input, shape index: {}]
  %s6 = inlined_call_operand.vmem [shape: bf16[2,168,84], index: 6, kind: input, shape index: {}]
  %s7 = inlined_call_operand.vmem [shape: bf16[2,14,28], index: 7, kind: input, shape index: {}]
  %s8 = inlined_call_operand.vmem [shape: bf16[5,14,14], index: 8, kind: input, shape index: {}]
  %s9 = inlined_call_operand.vmem [shape: bf16[5,84,224], index: 9, kind: input, shape index: {}]
  %s10 = inlined_call_operand.vmem [shape: f32[224,224], index: 10, kind: input, shape index: {}]
  %s11 = inlined_call_operand.vmem [shape: bf16[2,224,112], index: 11, kind: input, shape index: {}]
  %s12 = inlined_call_operand.vmem [shape: bf16[2,7,14], index: 12, kind: input, shape index: {}]
  %s13 = inlined_call_operand.vmem [shape: bf16[7,112,120], index: 13, kind: input, shape index: {}]
  %s14 = inlined_call_operand.vmem [shape: f32[120,84], index: 14, kind: input, shape index: {}]
  %s15 = inlined_call_operand.vmem [shape: f32[84,10], index: 15, kind: input, shape index: {}]
  %s16 = inlined_call_operand.vmem [shape: f32[16,256], index: 16, kind: input, shape index: {}]
  %s17 = inlined_call_operand.hbm [shape: f32[1,10], index: 17, kind: output, shape index: {}]
  %s18 = sld [smem:[#allocation0]]
  $region78: #{cnn_forward.1} parent=0
    _
  %s20 = ssub.s32 1, %s18
  %s21 = scalar_select 0, %s20, %s18
  $region1: #{cnn_forward.1} parent=0
    #allocation2 [shape = 'u8[512]{0}', space=vmem, size = 0x400, scoped, tag = 'output window, operand 0, single buffered']
    #allocation3 [shape = 's32[1]{0}', space=sflag, size = 0x4, scoped, tag = 'scoped memory for cnn_forward.1']
    %22 = vsyncpa [#allocation3], 0
    // Predicated region
    $region2: #{cnn_forward.1} parent=1 // pred_check
      _
    $region3: #{cnn_forward.1} parent=1 // pred_check_branch
      %24 = sbr.rel (0) target = $region5
    $region4: #{cnn_forward.1} parent=1 // pred_region
      _
    $region5: #{cnn_forward.1} parent=1 // pred_fallthru
      _
    // Predicated region
    $region6: #{cnn_forward.1} parent=1 // pred_check
      _
    $region7: #{cnn_forward.1} parent=1 // pred_check_branch
      %26 = sbr.rel (0) target = $region9
    $region8: #{cnn_forward.1} parent=1 // pred_region
      _
    $region9: #{cnn_forward.1} parent=1 // pred_fallthru
      _
    // Predicated region
    $region10: #{cnn_forward.1} parent=1 // pred_check
      _
    $region11: #{cnn_forward.1} parent=1 // pred_check_branch
      %28 = sbr.rel (0) target = $region13
    $region12: #{cnn_forward.1} parent=1 // pred_region
      _
    $region13: #{cnn_forward.1} parent=1 // pred_fallthru
      _
    // Predicated region
    $region14: #{cnn_forward.1} parent=1 // pred_check
      _
    $region15: #{cnn_forward.1} parent=1 // pred_check_branch
      %30 = sbr.rel (0) target = $region17
    $region16: #{cnn_forward.1} parent=1 // pred_region
      _
    $region17: #{cnn_forward.1} parent=1 // pred_fallthru
      _
    // Predicated region
    $region18: #{cnn_forward.1} parent=1 // pred_check
      _
    $region19: #{cnn_forward.1} parent=1 // pred_check_branch
      %32 = sbr.rel (0) target = $region21
    $region20: #{cnn_forward.1} parent=1 // pred_region
      _
    $region21: #{cnn_forward.1} parent=1 // pred_fallthru
      _
    // Predicated region
    $region22: #{cnn_forward.1} parent=1 // pred_check
      _
    $region23: #{cnn_forward.1} parent=1 // pred_check_branch
      %34 = sbr.rel (0) target = $region25
    $region24: #{cnn_forward.1} parent=1 // pred_region
      _
    $region25: #{cnn_forward.1} parent=1 // pred_fallthru
      _
    // Predicated region
    $region26: #{cnn_forward.1} parent=1 // pred_check
      _
    $region27: #{cnn_forward.1} parent=1 // pred_check_branch
      %36 = sbr.rel (0) target = $region29
    $region28: #{cnn_forward.1} parent=1 // pred_region
      _
    $region29: #{cnn_forward.1} parent=1 // pred_fallthru
      _
    // Predicated region
    $region30: #{cnn_forward.1} parent=1 // pred_check
      _
    $region31: #{cnn_forward.1} parent=1 // pred_check_branch
      %38 = sbr.rel (0) target = $region33
    $region32: #{cnn_forward.1} parent=1 // pred_region
      _
    $region33: #{cnn_forward.1} parent=1 // pred_fallthru
      _
    // Predicated region
    $region34: #{cnn_forward.1} parent=1 // pred_check
      _
    $region35: #{cnn_forward.1} parent=1 // pred_check_branch
      %40 = sbr.rel (0) target = $region37
    $region36: #{cnn_forward.1} parent=1 // pred_region
      _
    $region37: #{cnn_forward.1} parent=1 // pred_fallthru
      _
    // Predicated region
    $region38: #{cnn_forward.1} parent=1 // pred_check
      _
    $region39: #{cnn_forward.1} parent=1 // pred_check_branch
      %42 = sbr.rel (0) target = $region41
    $region40: #{cnn_forward.1} parent=1 // pred_region
      _
    $region41: #{cnn_forward.1} parent=1 // pred_fallthru
      _
    // Predicated region
    $region42: #{cnn_forward.1} parent=1 // pred_check
      _
    $region43: #{cnn_forward.1} parent=1 // pred_check_branch
      %44 = sbr.rel (0) target = $region45
    $region44: #{cnn_forward.1} parent=1 // pred_region
      _
    $region45: #{cnn_forward.1} parent=1 // pred_fallthru
      _
    // Predicated region
    $region46: #{cnn_forward.1} parent=1 // pred_check
      _
    $region47: #{cnn_forward.1} parent=1 // pred_check_branch
      %46 = sbr.rel (0) target = $region49
    $region48: #{cnn_forward.1} parent=1 // pred_region
      _
    $region49: #{cnn_forward.1} parent=1 // pred_fallthru
      _
    // Predicated region
    $region50: #{cnn_forward.1} parent=1 // pred_check
      _
    $region51: #{cnn_forward.1} parent=1 // pred_check_branch
      %48 = sbr.rel (0) target = $region53
    $region52: #{cnn_forward.1} parent=1 // pred_region
      _
    $region53: #{cnn_forward.1} parent=1 // pred_fallthru
      _
    // Predicated region
    $region54: #{cnn_forward.1} parent=1 // pred_check
      _
    $region55: #{cnn_forward.1} parent=1 // pred_check_branch
      %50 = sbr.rel (0) target = $region57
    $region56: #{cnn_forward.1} parent=1 // pred_region
      _
    $region57: #{cnn_forward.1} parent=1 // pred_fallthru
      _
    // Predicated region
    $region58: #{cnn_forward.1} parent=1 // pred_check
      _
    $region59: #{cnn_forward.1} parent=1 // pred_check_branch
      %52 = sbr.rel (0) target = $region61
    $region60: #{cnn_forward.1} parent=1 // pred_region
      _
    $region61: #{cnn_forward.1} parent=1 // pred_fallthru
      _
    // Predicated region
    $region62: #{cnn_forward.1} parent=1 // pred_check
      _
    $region63: #{cnn_forward.1} parent=1 // pred_check_branch
      %54 = sbr.rel (0) target = $region65
    $region64: #{cnn_forward.1} parent=1 // pred_region
      _
    $region65: #{cnn_forward.1} parent=1 // pred_fallthru
      _
    // Predicated region
    $region66: #{cnn_forward.1} parent=1 // pred_check
      _
    $region67: #{cnn_forward.1} parent=1 // pred_check_branch
      %56 = sbr.rel (0) target = $region69
    $region68: #{cnn_forward.1} parent=1 // pred_region
      _
    $region69: #{cnn_forward.1} parent=1 // pred_fallthru
      _
    %v58 = vld [vmem:[%s0] sm:$0xff]
    %v59 = vld [vmem:[%s0 + $0x8] sm:$0xff]
    %v60 = vld [vmem:[%s0 + $0x10] sm:$0xff]
    %v61 = vld [vmem:[%s0 + $0x18] sm:$0xff]
    %v62 = vld [vmem:[%s0 + $0x20] sm:$0xff]
    %v63 = vld [vmem:[%s0 + $0x28] sm:$0xff]
    %v64 = vld [vmem:[%s0 + $0x30] sm:$0xff]
    %v65 = vld [vmem:[%s0 + $0x38] sm:$0xff]
    %v66 = vld [vmem:[%s0 + $0x40] sm:$0xff]
    %v67 = vld [vmem:[%s0 + $0x48] sm:$0xff]
    %v68 = vld [vmem:[%s0 + $0x50] sm:$0xff]
    %v69 = vld [vmem:[%s0 + $0x58] sm:$0xff]
    %v70 = vld [vmem:[%s0 + $0x60] sm:$0xff]
    %v71 = vld [vmem:[%s0 + $0x68] sm:$0xff]
    %v72 = vld [vmem:[%s0 + $0x70] sm:$0xff]
    %v73 = vld [vmem:[%s0 + $0x78] sm:$0xff]
    %v74 = vld [vmem:[%s0 + $0x80] sm:$0xff]
    %v75 = vld [vmem:[%s0 + $0x88] sm:$0xff]
    %v76 = vld [vmem:[%s0 + $0x90] sm:$0xff]
    %v77 = vld [vmem:[%s0 + $0x98] sm:$0xff]
    %v78 = vld [vmem:[%s0 + $0xa0] sm:$0xff]
    %v79 = vld [vmem:[%s0 + $0xa8] sm:$0xff]
    %v80 = vld [vmem:[%s0 + $0xb0] sm:$0xff]
    %v81 = vld [vmem:[%s0 + $0xb8] sm:$0xff]
    %v82 = vld [vmem:[%s0 + $0xc0] sm:$0xff]
    %v83 = vld [vmem:[%s0 + $0xc8] sm:$0xff]
    %v84 = vld [vmem:[%s0 + $0xd0] sm:$0xff]
    %v85 = vld [vmem:[%s0 + $0xd8] sm:$0xff]
    %v86 = vld [vmem:[%s0 + $0xe0] sm:$0xff]
    %v87 = vld [vmem:[%s0 + $0xe8] sm:$0xff]
    %v88 = vld [vmem:[%s0 + $0xf0] sm:$0xff]
    %v89 = vld [vmem:[%s0 + $0xf8] sm:$0xff]
    %v90 = vld [vmem:[%s0 + $0x100] sm:$0xff]
    %v91 = vld [vmem:[%s0 + $0x108] sm:$0xff]
    %v92 = vld [vmem:[%s0 + $0x110] sm:$0xff]
    %v93 = vld [vmem:[%s0 + $0x118] sm:$0xff]
    %v94 = vld [vmem:[%s0 + $0x120] sm:$0xff]
    %v95 = vld [vmem:[%s0 + $0x128] sm:$0xff]
    %v96 = vld [vmem:[%s0 + $0x130] sm:$0xff]
    %v97 = vld [vmem:[%s0 + $0x138] sm:$0xff]
    %v98 = vld [vmem:[%s0 + $0x140] sm:$0xff]
    %v99 = vld [vmem:[%s0 + $0x148] sm:$0xff]
    %v100 = vld [vmem:[%s0 + $0x150] sm:$0xff]
    %v101 = vld [vmem:[%s0 + $0x158] sm:$0xff]
    %v102 = vld [vmem:[%s0 + $0x160] sm:$0xff]
    %v103 = vld [vmem:[%s0 + $0x168] sm:$0xff]
    %v104 = vld [vmem:[%s0 + $0x170] sm:$0xff]
    %v105 = vld [vmem:[%s0 + $0x178] sm:$0xff]
    %v106 = vld [vmem:[%s0 + $0x180] sm:$0xff]
    %v107 = vld [vmem:[%s0 + $0x188] sm:$0xff]
    %v108 = vld [vmem:[%s0 + $0x190] sm:$0xff]
    %v109 = vld [vmem:[%s0 + $0x198] sm:$0xff]
    %v110 = vld [vmem:[%s0 + $0x1a0] sm:$0xff]
    %v111 = vld [vmem:[%s0 + $0x1a8] sm:$0xff]
    %v112 = vld [vmem:[%s0 + $0x1b0] sm:$0xff]
    %v113 = vld [vmem:[%s0 + $0x1b8] sm:$0xff]
    %v114 = vld [vmem:[%s0 + $0x1c0] sm:$0xff]
    %v115 = vld [vmem:[%s0 + $0x1c8] sm:$0xff]
    %v116 = vld [vmem:[%s0 + $0x1d0] sm:$0xff]
    %v117 = vld [vmem:[%s0 + $0x1d8] sm:$0xff]
    %v118 = vld [vmem:[%s0 + $0x1e0] sm:$0xff]
    %v119 = vld [vmem:[%s0 + $0x1e8] sm:$0xff]
    %v120 = vld [vmem:[%s0 + $0x1f0] sm:$0xff]
    %v121 = vld [vmem:[%s0 + $0x1f8] sm:$0xff]
    %v122 = vld [vmem:[%s0 + $0x200] sm:$0xff]
    %v123 = vld [vmem:[%s0 + $0x208] sm:$0xff]
    %v124 = vld [vmem:[%s0 + $0x210] sm:$0xff]
    %v125 = vld [vmem:[%s0 + $0x218] sm:$0xff]
    %v126 = vld [vmem:[%s0 + $0x220] sm:$0xff]
    %v127 = vld [vmem:[%s0 + $0x228] sm:$0xff]
    %v128 = vld [vmem:[%s0 + $0x230] sm:$0xff]
    %v129 = vld [vmem:[%s0 + $0x238] sm:$0xff]
    %v130 = vld [vmem:[%s0 + $0x240] sm:$0xff]
    %v131 = vld [vmem:[%s0 + $0x248] sm:$0xff]
    %v132 = vld [vmem:[%s0 + $0x250] sm:$0xff]
    %v133 = vld [vmem:[%s0 + $0x258] sm:$0xff]
    %v134 = vld [vmem:[%s0 + $0x260] sm:$0xff]
    %v135 = vld [vmem:[%s0 + $0x268] sm:$0xff]
    %v136 = vld [vmem:[%s0 + $0x270] sm:$0xff]
    %v137 = vld [vmem:[%s0 + $0x278] sm:$0xff]
    %v138 = vld [vmem:[%s0 + $0x280] sm:$0xff]
    %v139 = vld [vmem:[%s0 + $0x288] sm:$0xff]
    %v140 = vld [vmem:[%s0 + $0x290] sm:$0xff]
    %v141 = vld [vmem:[%s0 + $0x298] sm:$0xff]
    %v142 = vld [vmem:[%s0 + $0x2a0] sm:$0xff]
    %v143 = vld [vmem:[%s0 + $0x2a8] sm:$0xff]
    %v144 = vld [vmem:[%s0 + $0x2b0] sm:$0xff]
    %v145 = vld [vmem:[%s0 + $0x2b8] sm:$0xff]
    %v146 = vld [vmem:[%s0 + $0x2c0] sm:$0xff]
    %v147 = vld [vmem:[%s0 + $0x2c8] sm:$0xff]
    %v148 = vld [vmem:[%s0 + $0x2d0] sm:$0xff]
    %v149 = vld [vmem:[%s0 + $0x2d8] sm:$0xff]
    %v150 = vld [vmem:[%s0 + $0x2e0] sm:$0xff]
    %v151 = vld [vmem:[%s0 + $0x2e8] sm:$0xff]
    %v152 = vld [vmem:[%s0 + $0x2f0] sm:$0xff]
    %v153 = vld [vmem:[%s0 + $0x2f8] sm:$0xff]
    %v154 = vld [vmem:[%s0 + $0x300] sm:$0xff]
    %v155 = vld [vmem:[%s0 + $0x308] sm:$0xff]
    %v156 = vld [vmem:[%s0 + $0x310] sm:$0xff]
    %v157 = vld [vmem:[%s0 + $0x318] sm:$0xff]
    %v158 = vld [vmem:[%s0 + $0x320] sm:$0xff]
    %v159 = vld [vmem:[%s0 + $0x328] sm:$0xff]
    %v160 = vld [vmem:[%s0 + $0x330] sm:$0xff]
    %v161 = vld [vmem:[%s0 + $0x338] sm:$0xff]
    %v162 = vld [vmem:[%s0 + $0x340] sm:$0xff]
    %v163 = vld [vmem:[%s0 + $0x348] sm:$0xff]
    %v164 = vld [vmem:[%s0 + $0x350] sm:$0xff]
    %v165 = vld [vmem:[%s0 + $0x358] sm:$0xff]
    %v166 = vld [vmem:[%s0 + $0x360] sm:$0xff]
    %v167 = vld [vmem:[%s0 + $0x368] sm:$0xff]
    %v168 = vld [vmem:[%s0 + $0x370] sm:$0xff]
    %v169 = vld [vmem:[%s0 + $0x378] sm:$0xff]
    %v170 = vld [vmem:[%s0 + $0x380] sm:$0xff]
    %v171 = vld [vmem:[%s0 + $0x388] sm:$0xff]
    %v172 = vld [vmem:[%s0 + $0x390] sm:$0xff]
    %v173 = vld [vmem:[%s0 + $0x398] sm:$0xff]
    %v174 = vld [vmem:[%s0 + $0x3a0] sm:$0xff]
    %v175 = vld [vmem:[%s0 + $0x3a8] sm:$0xff]
    %v176 = vld [vmem:[%s0 + $0x3b0] sm:$0xff]
    %v177 = vld [vmem:[%s0 + $0x3b8] sm:$0xff]
    %v178 = vld [vmem:[%s0 + $0x3c0] sm:$0xff]
    %v179 = vld [vmem:[%s0 + $0x3c8] sm:$0xff]
    %v180 = vld [vmem:[%s0 + $0x3d0] sm:$0xff]
    %v181 = vld [vmem:[%s0 + $0x3d8] sm:$0xff]
    %v182 = vld [vmem:[%s0 + $0x3e0] sm:$0xff]
    %v183 = vld [vmem:[%s0 + $0x3e8] sm:$0xff]
    %v184 = vld [vmem:[%s0 + $0x3f0] sm:$0xff]
    %v185 = vld [vmem:[%s0 + $0x3f8] sm:$0xff]
    %v186 = vld [vmem:[%s0 + $0x400] sm:$0xff]
    %v187 = vld [vmem:[%s0 + $0x408] sm:$0xff]
    %v188 = vld [vmem:[%s0 + $0x410] sm:$0xff]
    %v189 = vld [vmem:[%s0 + $0x418] sm:$0xff]
    %v190 = vld [vmem:[%s0 + $0x420] sm:$0xff]
    %v191 = vld [vmem:[%s0 + $0x428] sm:$0xff]
    %v192 = vld [vmem:[%s0 + $0x430] sm:$0xff]
    %v193 = vld [vmem:[%s0 + $0x438] sm:$0xff]
    %v194 = vld [vmem:[%s0 + $0x440] sm:$0xff]
    %v195 = vld [vmem:[%s0 + $0x448] sm:$0xff]
    %v196 = vld [vmem:[%s0 + $0x450] sm:$0xff]
    %v197 = vld [vmem:[%s0 + $0x458] sm:$0xff]
    %v198 = vld [vmem:[%s0 + $0x460] sm:$0xff]
    %v199 = vld [vmem:[%s0 + $0x468] sm:$0xff]
    %v200 = vld [vmem:[%s0 + $0x470] sm:$0xff]
    %v201 = vld [vmem:[%s0 + $0x478] sm:$0xff]
    %v202 = vld [vmem:[%s0 + $0x480] sm:$0xff]
    %v203 = vld [vmem:[%s0 + $0x488] sm:$0xff]
    %v204 = vld [vmem:[%s0 + $0x490] sm:$0xff]
    %v205 = vld [vmem:[%s0 + $0x498] sm:$0xff]
    %v206 = vld [vmem:[%s0 + $0x4a0] sm:$0xff]
    %v207 = vld [vmem:[%s0 + $0x4a8] sm:$0xff]
    %v208 = vld [vmem:[%s0 + $0x4b0] sm:$0xff]
    %v209 = vld [vmem:[%s0 + $0x4b8] sm:$0xff]
    %v210 = vld [vmem:[%s0 + $0x4c0] sm:$0xff]
    %v211 = vld [vmem:[%s0 + $0x4c8] sm:$0xff]
    %v212 = vld [vmem:[%s0 + $0x4d0] sm:$0xff]
    %v213 = vld [vmem:[%s0 + $0x4d8] sm:$0xff]
    %v214 = vld [vmem:[%s0 + $0x4e0] sm:$0xff]
    %v215 = vld [vmem:[%s0 + $0x4e8] sm:$0xff]
    %v216 = vld [vmem:[%s0 + $0x4f0] sm:$0xff]
    %v217 = vld [vmem:[%s0 + $0x4f8] sm:$0xff]
    %v218 = vld [vmem:[%s0 + $0x500] sm:$0xff]
    %v219 = vld [vmem:[%s0 + $0x508] sm:$0xff]
    %v220 = vld [vmem:[%s0 + $0x510] sm:$0xff]
    %v221 = vld [vmem:[%s0 + $0x518] sm:$0xff]
    %v222 = vld [vmem:[%s0 + $0x520] sm:$0xff]
    %v223 = vld [vmem:[%s0 + $0x528] sm:$0xff]
    %v224 = vld [vmem:[%s0 + $0x530] sm:$0xff]
    %v225 = vld [vmem:[%s0 + $0x538] sm:$0xff]
    %v226 = vld [vmem:[%s0 + $0x540] sm:$0xff]
    %v227 = vld [vmem:[%s0 + $0x548] sm:$0xff]
    %v228 = vld [vmem:[%s0 + $0x550] sm:$0xff]
    %v229 = vld [vmem:[%s0 + $0x558] sm:$0xff]
    %v230 = vld [vmem:[%s0 + $0x560] sm:$0xff]
    %v231 = vld [vmem:[%s0 + $0x568] sm:$0xff]
    %v232 = vld [vmem:[%s0 + $0x570] sm:$0xff]
    %v233 = vld [vmem:[%s0 + $0x578] sm:$0xff]
    %v234 = vld [vmem:[%s0 + $0x580] sm:$0xff]
    %v235 = vld [vmem:[%s0 + $0x588] sm:$0xff]
    %v236 = vld [vmem:[%s0 + $0x590] sm:$0xff]
    %v237 = vld [vmem:[%s0 + $0x598] sm:$0xff]
    %v238 = vld [vmem:[%s0 + $0x5a0] sm:$0xff]
    %v239 = vld [vmem:[%s0 + $0x5a8] sm:$0xff]
    %v240 = vld [vmem:[%s0 + $0x5b0] sm:$0xff]
    %v241 = vld [vmem:[%s0 + $0x5b8] sm:$0xff]
    %v242 = vld [vmem:[%s0 + $0x5c0] sm:$0xff]
    %v243 = vld [vmem:[%s0 + $0x5c8] sm:$0xff]
    %v244 = vld [vmem:[%s0 + $0x5d0] sm:$0xff]
    %v245 = vld [vmem:[%s0 + $0x5d8] sm:$0xff]
    %v246 = vld [vmem:[%s0 + $0x5e0] sm:$0xff]
    %v247 = vld [vmem:[%s0 + $0x5e8] sm:$0xff]
    %v248 = vld [vmem:[%s0 + $0x5f0] sm:$0xff]
    %v249 = vld [vmem:[%s0 + $0x5f8] sm:$0xff]
    %v250 = vld [vmem:[%s0 + $0x600] sm:$0xff]
    %v251 = vld [vmem:[%s0 + $0x608] sm:$0xff]
    %v252 = vld [vmem:[%s0 + $0x610] sm:$0xff]
    %v253 = vld [vmem:[%s0 + $0x618] sm:$0xff]
    %v254 = vld [vmem:[%s0 + $0x620] sm:$0xff]
    %v255 = vld [vmem:[%s0 + $0x628] sm:$0xff]
    %v256 = vld [vmem:[%s0 + $0x630] sm:$0xff]
    %v257 = vld [vmem:[%s0 + $0x638] sm:$0xff]
    %v258 = vld [vmem:[%s0 + $0x640] sm:$0xff]
    %v259 = vld [vmem:[%s0 + $0x648] sm:$0xff]
    %v260 = vld [vmem:[%s0 + $0x650] sm:$0xff]
    %v261 = vld [vmem:[%s0 + $0x658] sm:$0xff]
    %v262 = vld [vmem:[%s0 + $0x660] sm:$0xff]
    %v263 = vld [vmem:[%s0 + $0x668] sm:$0xff]
    %v264 = vld [vmem:[%s0 + $0x670] sm:$0xff]
    %v265 = vld [vmem:[%s0 + $0x678] sm:$0xff]
    %v266 = vld [vmem:[%s0 + $0x680] sm:$0xff]
    %v267 = vld [vmem:[%s0 + $0x688] sm:$0xff]
    %v268 = vld [vmem:[%s0 + $0x690] sm:$0xff]
    %v269 = vld [vmem:[%s0 + $0x698] sm:$0xff]
    %v270 = vld [vmem:[%s0 + $0x6a0] sm:$0xff]
    %v271 = vld [vmem:[%s0 + $0x6a8] sm:$0xff]
    %v272 = vld [vmem:[%s0 + $0x6b0] sm:$0xff]
    %v273 = vld [vmem:[%s0 + $0x6b8] sm:$0xff]
    %v274 = vld [vmem:[%s0 + $0x6c0] sm:$0xff]
    %v275 = vld [vmem:[%s0 + $0x6c8] sm:$0xff]
    %v276 = vld [vmem:[%s0 + $0x6d0] sm:$0xff]
    %v277 = vld [vmem:[%s0 + $0x6d8] sm:$0xff]
    %v278 = vld [vmem:[%s0 + $0x6e0] sm:$0xff]
    %v279 = vld [vmem:[%s0 + $0x6e8] sm:$0xff]
    %v280 = vld [vmem:[%s0 + $0x6f0] sm:$0xff]
    %v281 = vld [vmem:[%s0 + $0x6f8] sm:$0xff]
    %v282 = vld [vmem:[%s0 + $0x700] sm:$0xff]
    %v283 = vld [vmem:[%s0 + $0x708] sm:$0xff]
    %v284 = vld [vmem:[%s0 + $0x710] sm:$0xff]
    %v285 = vld [vmem:[%s0 + $0x718] sm:$0xff]
    %v286 = vld [vmem:[%s0 + $0x720] sm:$0xff]
    %v287 = vld [vmem:[%s0 + $0x728] sm:$0xff]
    %v288 = vld [vmem:[%s0 + $0x730] sm:$0xff]
    %v289 = vld [vmem:[%s0 + $0x738] sm:$0xff]
    %v290 = vld [vmem:[%s0 + $0x740] sm:$0xff]
    %v291 = vld [vmem:[%s0 + $0x748] sm:$0xff]
    %v292 = vld [vmem:[%s0 + $0x750] sm:$0xff]
    %v293 = vld [vmem:[%s0 + $0x758] sm:$0xff]
    %v294 = vld [vmem:[%s0 + $0x760] sm:$0xff]
    %v295 = vld [vmem:[%s0 + $0x768] sm:$0xff]
    %v296 = vld [vmem:[%s0 + $0x770] sm:$0xff]
    %v297 = vld [vmem:[%s0 + $0x778] sm:$0xff]
    %v298 = vld [vmem:[%s0 + $0x780] sm:$0xff]
    %v299 = vld [vmem:[%s0 + $0x788] sm:$0xff]
    %v300 = vld [vmem:[%s0 + $0x790] sm:$0xff]
    %v301 = vld [vmem:[%s0 + $0x798] sm:$0xff]
    %v302 = vld [vmem:[%s0 + $0x7a0] sm:$0xff]
    %v303 = vld [vmem:[%s0 + $0x7a8] sm:$0xff]
    %v304 = vld [vmem:[%s0 + $0x7b0] sm:$0xff]
    %v305 = vld [vmem:[%s0 + $0x7b8] sm:$0xff]
    %v306 = vld [vmem:[%s0 + $0x7c0] sm:$0xff]
    %v307 = vld [vmem:[%s0 + $0x7c8] sm:$0xff]
    %v308 = vld [vmem:[%s0 + $0x7d0] sm:$0xff]
    %v309 = vld [vmem:[%s0 + $0x7d8] sm:$0xff]
    %v310 = vld [vmem:[%s0 + $0x7e0] sm:$0xff]
    %v311 = vld [vmem:[%s0 + $0x7e8] sm:$0xff]
    %v312 = vld [vmem:[%s0 + $0x7f0] sm:$0xff]
    %v313 = vld [vmem:[%s0 + $0x7f8] sm:$0xff]
    %v314 = vld [vmem:[%s0 + $0x800] sm:$0xff]
    %v315 = vld [vmem:[%s0 + $0x808] sm:$0xff]
    %v316 = vld [vmem:[%s0 + $0x810] sm:$0xff]
    %v317 = vld [vmem:[%s0 + $0x818] sm:$0xff]
    %v318 = vld [vmem:[%s0 + $0x820] sm:$0xff]
    %v319 = vld [vmem:[%s0 + $0x828] sm:$0xff]
    %v320 = vld [vmem:[%s0 + $0x830] sm:$0xff]
    %v321 = vld [vmem:[%s0 + $0x838] sm:$0xff]
    %v322 = vld [vmem:[%s0 + $0x840] sm:$0xff]
    %v323 = vld [vmem:[%s0 + $0x848] sm:$0xff]
    %v324 = vld [vmem:[%s0 + $0x850] sm:$0xff]
    %v325 = vld [vmem:[%s0 + $0x858] sm:$0xff]
    %v326 = vld [vmem:[%s0 + $0x860] sm:$0xff]
    %v327 = vld [vmem:[%s0 + $0x868] sm:$0xff]
    %v328 = vld [vmem:[%s0 + $0x870] sm:$0xff]
    %v329 = vld [vmem:[%s0 + $0x878] sm:$0xff]
    %v330 = vld [vmem:[%s0 + $0x880] sm:$0xff]
    %v331 = vld [vmem:[%s0 + $0x888] sm:$0xff]
    %v332 = vld [vmem:[%s0 + $0x890] sm:$0xff]
    %v333 = vld [vmem:[%s0 + $0x898] sm:$0xff]
    %v334 = vld [vmem:[%s0 + $0x8a0] sm:$0xff]
    %v335 = vld [vmem:[%s0 + $0x8a8] sm:$0xff]
    %v336 = vld [vmem:[%s0 + $0x8b0] sm:$0xff]
    %v337 = vld [vmem:[%s0 + $0x8b8] sm:$0xff]
    %v338 = vld [vmem:[%s0 + $0x8c0] sm:$0xff]
    %v339 = vld [vmem:[%s0 + $0x8c8] sm:$0xff]
    %v340 = vld [vmem:[%s0 + $0x8d0] sm:$0xff]
    %v341 = vld [vmem:[%s0 + $0x8d8] sm:$0xff]
    %v342 = vld [vmem:[%s0 + $0x8e0] sm:$0xff]
    %v343 = vld [vmem:[%s0 + $0x8e8] sm:$0xff]
    %v344 = vld [vmem:[%s0 + $0x8f0] sm:$0xff]
    %v345 = vld [vmem:[%s0 + $0x8f8] sm:$0xff]
    %v346 = vld [vmem:[%s0 + $0x900] sm:$0xff]
    %v347 = vld [vmem:[%s0 + $0x908] sm:$0xff]
    %v348 = vld [vmem:[%s0 + $0x910] sm:$0xff]
    %v349 = vld [vmem:[%s0 + $0x918] sm:$0xff]
    %v350 = vld [vmem:[%s0 + $0x920] sm:$0xff]
    %v351 = vld [vmem:[%s0 + $0x928] sm:$0xff]
    %v352 = vld [vmem:[%s0 + $0x930] sm:$0xff]
    %v353 = vld [vmem:[%s0 + $0x938] sm:$0xff]
    %v354 = vld [vmem:[%s0 + $0x940] sm:$0xff]
    %v355 = vld [vmem:[%s0 + $0x948] sm:$0xff]
    %v356 = vld [vmem:[%s0 + $0x950] sm:$0xff]
    %v357 = vld [vmem:[%s0 + $0x958] sm:$0xff]
    %v358 = vld [vmem:[%s0 + $0x960] sm:$0xff]
    %v359 = vld [vmem:[%s0 + $0x968] sm:$0xff]
    %v360 = vld [vmem:[%s0 + $0x970] sm:$0xff]
    %v361 = vld [vmem:[%s0 + $0x978] sm:$0xff]
    %v362 = vld [vmem:[%s0 + $0x980] sm:$0xff]
    %v363 = vld [vmem:[%s0 + $0x988] sm:$0xff]
    %v364 = vld [vmem:[%s0 + $0x990] sm:$0xff]
    %v365 = vld [vmem:[%s0 + $0x998] sm:$0xff]
    %v366 = vld [vmem:[%s0 + $0x9a0] sm:$0xff]
    %v367 = vld [vmem:[%s0 + $0x9a8] sm:$0xff]
    %v368 = vld [vmem:[%s0 + $0x9b0] sm:$0xff]
    %v369 = vld [vmem:[%s0 + $0x9b8] sm:$0xff]
    %v370 = vld [vmem:[%s0 + $0x9c0] sm:$0xff]
    %v371 = vld [vmem:[%s0 + $0x9c8] sm:$0xff]
    %v372 = vld [vmem:[%s0 + $0x9d0] sm:$0xff]
    %v373 = vpack.c.bf16 %v67, %v58
    %v374 = vpack.c.bf16 %v68, %v59
    %v375 = vpack.c.bf16 %v69, %v60
    %v376 = vpack.c.bf16 %v70, %v61
    %v377 = vpack.c.bf16 %v71, %v62
    %v378 = vpack.c.bf16 %v72, %v63
    %v379 = vpack.c.bf16 %v73, %v64
    %v380 = vpack.c.bf16 %v74, %v65
    %v381 = vpack.c.bf16 %v75, %v66
    %v382 = vpack.c.bf16 %v85, %v76
    %v383 = vpack.c.bf16 %v86, %v77
    %v384 = vpack.c.bf16 %v87, %v78
    %v385 = vpack.c.bf16 %v88, %v79
    %v386 = vpack.c.bf16 %v89, %v80
    %v387 = vpack.c.bf16 %v90, %v81
    %v388 = vpack.c.bf16 %v91, %v82
    %v389 = vpack.c.bf16 %v92, %v83
    %v390 = vpack.c.bf16 %v93, %v84
    %v391 = vpack.c.bf16 %v103, %v94
    %v392 = vpack.c.bf16 %v104, %v95
    %v393 = vpack.c.bf16 %v105, %v96
    %v394 = vpack.c.bf16 %v106, %v97
    %v395 = vpack.c.bf16 %v107, %v98
    %v396 = vpack.c.bf16 %v108, %v99
    %v397 = vpack.c.bf16 %v109, %v100
    %v398 = vpack.c.bf16 %v110, %v101
    %v399 = vpack.c.bf16 %v111, %v102
    %v400 = vpack.c.bf16 %v121, %v112
    %v401 = vpack.c.bf16 %v122, %v113
    %v402 = vpack.c.bf16 %v123, %v114
    %v403 = vpack.c.bf16 %v124, %v115
    %v404 = vpack.c.bf16 %v125, %v116
    %v405 = vpack.c.bf16 %v126, %v117
    %v406 = vpack.c.bf16 %v127, %v118
    %v407 = vpack.c.bf16 %v128, %v119
    %v408 = vpack.c.bf16 %v129, %v120
    %v409 = vpack.c.bf16 %v139, %v130
    %v410 = vpack.c.bf16 %v140, %v131
    %v411 = vpack.c.bf16 %v141, %v132
    %v412 = vpack.c.bf16 %v142, %v133
    %v413 = vpack.c.bf16 %v143, %v134
    %v414 = vpack.c.bf16 %v144, %v135
    %v415 = vpack.c.bf16 %v145, %v136
    %v416 = vpack.c.bf16 %v146, %v137
    %v417 = vpack.c.bf16 %v147, %v138
    %v418 = vpack.c.bf16 %v157, %v148
    %v419 = vpack.c.bf16 %v158, %v149
    %v420 = vpack.c.bf16 %v159, %v150
    %v421 = vpack.c.bf16 %v160, %v151
    %v422 = vpack.c.bf16 %v161, %v152
    %v423 = vpack.c.bf16 %v162, %v153
    %v424 = vpack.c.bf16 %v163, %v154
    %v425 = vpack.c.bf16 %v164, %v155
    %v426 = vpack.c.bf16 %v165, %v156
    %v427 = vpack.c.bf16 %v175, %v166
    %v428 = vpack.c.bf16 %v176, %v167
    %v429 = vpack.c.bf16 %v177, %v168
    %v430 = vpack.c.bf16 %v178, %v169
    %v431 = vpack.c.bf16 %v179, %v170
    %v432 = vpack.c.bf16 %v180, %v171
    %v433 = vpack.c.bf16 %v181, %v172
    %v434 = vpack.c.bf16 %v182, %v173
    %v435 = vpack.c.bf16 %v183, %v174
    %v436 = vpack.c.bf16 %v193, %v184
    %v437 = vpack.c.bf16 %v194, %v185
    %v438 = vpack.c.bf16 %v195, %v186
    %v439 = vpack.c.bf16 %v196, %v187
    %v440 = vpack.c.bf16 %v197, %v188
    %v441 = vpack.c.bf16 %v198, %v189
    %v442 = vpack.c.bf16 %v199, %v190
    %v443 = vpack.c.bf16 %v200, %v191
    %v444 = vpack.c.bf16 %v201, %v192
    %v445 = vpack.c.bf16 %v211, %v202
    %v446 = vpack.c.bf16 %v212, %v203
    %v447 = vpack.c.bf16 %v213, %v204
    %v448 = vpack.c.bf16 %v214, %v205
    %v449 = vpack.c.bf16 %v215, %v206
    %v450 = vpack.c.bf16 %v216, %v207
    %v451 = vpack.c.bf16 %v217, %v208
    %v452 = vpack.c.bf16 %v218, %v209
    %v453 = vpack.c.bf16 %v219, %v210
    %v454 = vpack.c.bf16 %v229, %v220
    %v455 = vpack.c.bf16 %v230, %v221
    %v456 = vpack.c.bf16 %v231, %v222
    %v457 = vpack.c.bf16 %v232, %v223
    %v458 = vpack.c.bf16 %v233, %v224
    %v459 = vpack.c.bf16 %v234, %v225
    %v460 = vpack.c.bf16 %v235, %v226
    %v461 = vpack.c.bf16 %v236, %v227
    %v462 = vpack.c.bf16 %v237, %v228
    %v463 = vpack.c.bf16 %v247, %v238
    %v464 = vpack.c.bf16 %v248, %v239
    %v465 = vpack.c.bf16 %v249, %v240
    %v466 = vpack.c.bf16 %v250, %v241
    %v467 = vpack.c.bf16 %v251, %v242
    %v468 = vpack.c.bf16 %v252, %v243
    %v469 = vpack.c.bf16 %v253, %v244
    %v470 = vpack.c.bf16 %v254, %v245
    %v471 = vpack.c.bf16 %v255, %v246
    %v472 = vpack.c.bf16 %v265, %v256
    %v473 = vpack.c.bf16 %v266, %v257
    %v474 = vpack.c.bf16 %v267, %v258
    %v475 = vpack.c.bf16 %v268, %v259
    %v476 = vpack.c.bf16 %v269, %v260
    %v477 = vpack.c.bf16 %v270, %v261
    %v478 = vpack.c.bf16 %v271, %v262
    %v479 = vpack.c.bf16 %v272, %v263
    %v480 = vpack.c.bf16 %v273, %v264
    %v481 = vpack.c.bf16 %v283, %v274
    %v482 = vpack.c.bf16 %v284, %v275
    %v483 = vpack.c.bf16 %v285, %v276
    %v484 = vpack.c.bf16 %v286, %v277
    %v485 = vpack.c.bf16 %v287, %v278
    %v486 = vpack.c.bf16 %v288, %v279
    %v487 = vpack.c.bf16 %v289, %v280
    %v488 = vpack.c.bf16 %v290, %v281
    %v489 = vpack.c.bf16 %v291, %v282
    %v490 = vpack.c.bf16 %v301, %v292
    %v491 = vpack.c.bf16 %v302, %v293
    %v492 = vpack.c.bf16 %v303, %v294
    %v493 = vpack.c.bf16 %v304, %v295
    %v494 = vpack.c.bf16 %v305, %v296
    %v495 = vpack.c.bf16 %v306, %v297
    %v496 = vpack.c.bf16 %v307, %v298
    %v497 = vpack.c.bf16 %v308, %v299
    %v498 = vpack.c.bf16 %v309, %v300
    %v499 = vpack.c.bf16 %v319, %v310
    %v500 = vpack.c.bf16 %v320, %v311
    %v501 = vpack.c.bf16 %v321, %v312
    %v502 = vpack.c.bf16 %v322, %v313
    %v503 = vpack.c.bf16 %v323, %v314
    %v504 = vpack.c.bf16 %v324, %v315
    %v505 = vpack.c.bf16 %v325, %v316
    %v506 = vpack.c.bf16 %v326, %v317
    %v507 = vpack.c.bf16 %v327, %v318
    %v508 = vpack.c.bf16 %v337, %v328
    %v509 = vpack.c.bf16 %v338, %v329
    %v510 = vpack.c.bf16 %v339, %v330
    %v511 = vpack.c.bf16 %v340, %v331
    %v512 = vpack.c.bf16 %v341, %v332
    %v513 = vpack.c.bf16 %v342, %v333
    %v514 = vpack.c.bf16 %v343, %v334
    %v515 = vpack.c.bf16 %v344, %v335
    %v516 = vpack.c.bf16 %v345, %v336
    %v517 = vpack.c.bf16 %v355, %v346
    %v518 = vpack.c.bf16 %v356, %v347
    %v519 = vpack.c.bf16 %v357, %v348
    %v520 = vpack.c.bf16 %v358, %v349
    %v521 = vpack.c.bf16 %v359, %v350
    %v522 = vpack.c.bf16 %v360, %v351
    %v523 = vpack.c.bf16 %v361, %v352
    %v524 = vpack.c.bf16 %v362, %v353
    %v525 = vpack.c.bf16 %v363, %v354
    %v526 = vpack.c.bf16 %v364, %v364
    %v527 = vpack.c.bf16 %v365, %v365
    %v528 = vpack.c.bf16 %v366, %v366
    %v529 = vpack.c.bf16 %v367, %v367
    %v530 = vpack.c.bf16 %v368, %v368
    %v531 = vpack.c.bf16 %v369, %v369
    %v532 = vpack.c.bf16 %v370, %v370
    %v533 = vpack.c.bf16 %v371, %v371
    %v534 = vpack.c.bf16 %v372, %v372
    %v535 = vld [vmem:[%s1] sm:$0xff]
    %v536 = vld [vmem:[%s1 + $0x8] sm:$0xf]
    %v537 = vld [vmem:[%s1 + $0xc] sm:$0xff]
    %v538 = vld [vmem:[%s1 + $0x14] sm:$0xf]
    %v539 = vld [vmem:[%s1 + $0x18] sm:$0xff]
    %v540 = vld [vmem:[%s1 + $0x20] sm:$0xf]
    %v541 = vld [vmem:[%s1 + $0x24] sm:$0x33]
    %v542 = vld [vmem:[%s1 + $0x2c] sm:$0x3]
    %v551 = vunpack.c.l.b16 %v535
    %v552 = vunpack.c.h.b16 %v535
    %v553 = vunpack.c.l.b16 %v536
    %v554 = vunpack.c.l.b16 %v537
    %v555 = vunpack.c.h.b16 %v537
    %v556 = vunpack.c.l.b16 %v538
    %v557 = vunpack.c.l.b16 %v539
    %v558 = vunpack.c.h.b16 %v539
    %v559 = vunpack.c.l.b16 %v540
    %v560 = vunpack.c.l.b16 %v541
    %v561 = vunpack.c.h.b16 %v541
    %v562 = vunpack.c.l.b16 %v542
    %v563 = vpack.c.b16 %v554, %v551
    %v564 = vpack.c.b16 %v555, %v552
    %v565 = vpack.c.b16 %v556, %v553
    %v566 = vpack.c.b16 %v560, %v557
    %v567 = vpack.c.b16 %v561, %v558
    %v568 = vpack.c.b16 %v562, %v559
    %vm573 = vcmask 195584
    %v575 = vsel %vm573, %v565, 0
    %v578 = vsel %vm573, %v568, 0
    %vm580 = vcmask 1043456
    %v582 = vsel %vm580, %v526, 0
    %v585 = vsel %vm580, %v527, 0
    %v588 = vsel %vm580, %v528, 0
    %v591 = vsel %vm580, %v529, 0
    %v594 = vsel %vm580, %v530, 0
    %v597 = vsel %vm580, %v531, 0
    %v600 = vsel %vm580, %v532, 0
    %v603 = vsel %vm580, %v533, 0
    %v606 = vsel %vm580, %v534, 0
    %608 = vmatprep.subr.bf16.mxu0 %v374
    %609 = vmatpush1.bf16.msra.mxu0 %v373
    %610 = vmatprep.subr.bf16.mxu0 %v383
    %611 = vmatpush1.bf16.msra.mxu0 %v382
    %612 = vmatprep.subr.bf16.mxu0 %v392
    %613 = vmatpush1.bf16.msra.mxu0 %v391
    %614 = vmatprep.subr.bf16.mxu0 %v401
    %615 = vmatpush1.bf16.msra.mxu0 %v400
    %616 = vmatprep.subr.bf16.mxu0 %v410
    %617 = vmatpush1.bf16.msra.mxu0 %v409
    %618 = vmatprep.subr.bf16.mxu0 %v419
    %619 = vmatpush1.bf16.msra.mxu0 %v418
    %620 = vmatprep.subr.bf16.mxu0 %v428
    %621 = vmatpush1.bf16.msra.mxu0 %v427
    %622 = vmatprep.subr.bf16.mxu0 %v437
    %623 = vmatpush1.bf16.msra.mxu0 %v436
    %624 = vmatprep.subr.bf16.mxu0 %v446
    %625 = vmatpush1.bf16.msra.mxu0 %v445
    %626 = vmatprep.subr.bf16.mxu0 %v455
    %627 = vmatpush1.bf16.msra.mxu0 %v454
    %628 = vmatprep.subr.bf16.mxu0 %v464
    %629 = vmatpush1.bf16.msra.mxu0 %v463
    %630 = vmatprep.subr.bf16.mxu0 %v473
    %631 = vmatpush1.bf16.msra.mxu0 %v472
    %632 = vmatprep.subr.bf16.mxu0 %v482
    %633 = vmatpush1.bf16.msra.mxu0 %v481
    %634 = vmatprep.subr.bf16.mxu0 %v491
    %635 = vmatpush1.bf16.msra.mxu0 %v490
    %636 = vmatprep.subr.bf16.mxu0 %v500
    %637 = vmatpush1.bf16.msra.mxu0 %v499
    %638 = vmatprep.subr.bf16.mxu0 %v509
    %639 = vmatpush1.bf16.msra.mxu0 %v508
    %640 = vmatprep.mubr.bf16.mxu0 %v564
    %641 = vmatmul.mubr.bf16.gmra.mrb[0].mxu0 %v563
    %v642 = vpop.f32.mrb[0].mxu0
    %v643 = vadd.f32 0.0, %v642
    %v644 = vpop.f32.mrb[0].mxu0
    %v645 = vadd.f32 0.0, %v644
    %v646 = vpop.f32.mrb[0].mxu0
    %v647 = vadd.f32 0.0, %v646
    %v648 = vpop.f32.mrb[0].mxu0
    %v649 = vadd.f32 0.0, %v648
    %650 = vmatprep.mubr.bf16.mxu0 %v567
    %651 = vmatmul.mubr.bf16.gmra.mrb[0].mxu0 %v566
    %v652 = vpop.f32.mrb[0].mxu0
    %v653 = vadd.f32 0.0, %v652
    %v654 = vpop.f32.mrb[0].mxu0
    %v655 = vadd.f32 0.0, %v654
    %v656 = vpop.f32.mrb[0].mxu0
    %v657 = vadd.f32 0.0, %v656
    %v658 = vpop.f32.mrb[0].mxu0
    %v659 = vadd.f32 0.0, %v658
    %660 = vdwg.mxu0
    %661 = vmatprep.subr.bf16.mxu0 %v518
    %662 = vmatpush1.bf16.msra.mxu0 %v517
    %663 = vmatprep.subr.bf16.mxu0 %v585
    %664 = vmatpush1.bf16.msra.mxu0 %v582
    %665 = vmatprep.subr.bf16.mxu0 0
    %666 = vmatpush1.bf16.msra.mxu0 0
    %667 = vmatprep.subr.bf16.mxu0 0
    %668 = vmatpush1.bf16.msra.mxu0 0
    %669 = vmatprep.subr.bf16.mxu0 0
    %670 = vmatpush1.bf16.msra.mxu0 0
    %671 = vmatprep.subr.bf16.mxu0 0
    %672 = vmatpush1.bf16.msra.mxu0 0
    %673 = vmatprep.subr.bf16.mxu0 0
    %674 = vmatpush1.bf16.msra.mxu0 0
    %675 = vmatprep.subr.bf16.mxu0 0
    %676 = vmatpush1.bf16.msra.mxu0 0
    %677 = vmatprep.subr.bf16.mxu0 0
    %678 = vmatpush1.bf16.msra.mxu0 0
    %679 = vmatprep.subr.bf16.mxu0 0
    %680 = vmatpush1.bf16.msra.mxu0 0
    %681 = vmatprep.subr.bf16.mxu0 0
    %682 = vmatpush1.bf16.msra.mxu0 0
    %683 = vmatprep.subr.bf16.mxu0 0
    %684 = vmatpush1.bf16.msra.mxu0 0
    %685 = vmatprep.subr.bf16.mxu0 0
    %686 = vmatpush1.bf16.msra.mxu0 0
    %687 = vmatprep.subr.bf16.mxu0 0
    %688 = vmatpush1.bf16.msra.mxu0 0
    %689 = vmatprep.subr.bf16.mxu0 0
    %690 = vmatpush1.bf16.msra.mxu0 0
    %691 = vmatprep.subr.bf16.mxu0 0
    %692 = vmatpush1.bf16.msra.mxu0 0
    %693 = vmatprep.mubr.bf16.mxu0 0
    %694 = vmatmul.mubr.bf16.gmra.mrb[0].mxu0 %v575
    %v695 = vpop.f32.mrb[0].mxu0
    %v696 = vadd.f32 %v643, %v695
    %v697 = vpop.f32.mrb[0].mxu0
    %v698 = vadd.f32 %v645, %v697
    %v699 = vpop.f32.mrb[0].mxu0
    %v700 = vadd.f32 %v647, %v699
    %v701 = vpop.f32.mrb[0].mxu0
    %v702 = vadd.f32 %v649, %v701
    %703 = vmatprep.mubr.bf16.mxu0 0
    %704 = vmatmul.mubr.bf16.gmra.mrb[0].mxu0 %v578
    %v705 = vpop.f32.mrb[0].mxu0
    %v706 = vadd.f32 %v653, %v705
    %v707 = vpop.f32.mrb[0].mxu0
    %v708 = vadd.f32 %v655, %v707
    %v709 = vpop.f32.mrb[0].mxu0
    %v710 = vadd.f32 %v657, %v709
    %v711 = vpop.f32.mrb[0].mxu0
    %v712 = vadd.f32 %v659, %v711
    %713 = vdwg.mxu0
    %714 = vmatprep.subr.bf16.mxu0 %v376
    %715 = vmatpush1.bf16.msra.mxu0 %v375
    %716 = vmatprep.subr.bf16.mxu0 %v385
    %717 = vmatpush1.bf16.msra.mxu0 %v384
    %718 = vmatprep.subr.bf16.mxu0 %v394
    %719 = vmatpush1.bf16.msra.mxu0 %v393
    %720 = vmatprep.subr.bf16.mxu0 %v403
    %721 = vmatpush1.bf16.msra.mxu0 %v402
    %722 = vmatprep.subr.bf16.mxu0 %v412
    %723 = vmatpush1.bf16.msra.mxu0 %v411
    %724 = vmatprep.subr.bf16.mxu0 %v421
    %725 = vmatpush1.bf16.msra.mxu0 %v420
    %726 = vmatprep.subr.bf16.mxu0 %v430
    %727 = vmatpush1.bf16.msra.mxu0 %v429
    %728 = vmatprep.subr.bf16.mxu0 %v439
    %729 = vmatpush1.bf16.msra.mxu0 %v438
    %730 = vmatprep.subr.bf16.mxu0 %v448
    %731 = vmatpush1.bf16.msra.mxu0 %v447
    %732 = vmatprep.subr.bf16.mxu0 %v457
    %733 = vmatpush1.bf16.msra.mxu0 %v456
    %734 = vmatprep.subr.bf16.mxu0 %v466
    %735 = vmatpush1.bf16.msra.mxu0 %v465
    %736 = vmatprep.subr.bf16.mxu0 %v475
    %737 = vmatpush1.bf16.msra.mxu0 %v474
    %738 = vmatprep.subr.bf16.mxu0 %v484
    %739 = vmatpush1.bf16.msra.mxu0 %v483
    %740 = vmatprep.subr.bf16.mxu0 %v493
    %741 = vmatpush1.bf16.msra.mxu0 %v492
    %742 = vmatprep.subr.bf16.mxu0 %v502
    %743 = vmatpush1.bf16.msra.mxu0 %v501
    %744 = vmatprep.subr.bf16.mxu0 %v511
    %745 = vmatpush1.bf16.msra.mxu0 %v510
    %746 = vmatprep.mubr.bf16.mxu0 %v564
    %747 = vmatmul.mubr.bf16.gmra.mrb[0].mxu0 %v563
    %v748 = vpop.f32.mrb[0].mxu0
    %v749 = vadd.f32 0.0, %v748
    %v750 = vpop.f32.mrb[0].mxu0
    %v751 = vadd.f32 0.0, %v750
    %v752 = vpop.f32.mrb[0].mxu0
    %v753 = vadd.f32 0.0, %v752
    %v754 = vpop.f32.mrb[0].mxu0
    %v755 = vadd.f32 0.0, %v754
    %756 = vmatprep.mubr.bf16.mxu0 %v567
    %757 = vmatmul.mubr.bf16.gmra.mrb[0].mxu0 %v566
    %v758 = vpop.f32.mrb[0].mxu0
    %v759 = vadd.f32 0.0, %v758
    %v760 = vpop.f32.mrb[0].mxu0
    %v761 = vadd.f32 0.0, %v760
    %v762 = vpop.f32.mrb[0].mxu0
    %v763 = vadd.f32 0.0, %v762
    %v764 = vpop.f32.mrb[0].mxu0
    %v765 = vadd.f32 0.0, %v764
    %766 = vdwg.mxu0
    %767 = vmatprep.subr.bf16.mxu0 %v520
    %768 = vmatpush1.bf16.msra.mxu0 %v519
    %769 = vmatprep.subr.bf16.mxu0 %v591
    %770 = vmatpush1.bf16.msra.mxu0 %v588
    %771 = vmatprep.subr.bf16.mxu0 0
    %772 = vmatpush1.bf16.msra.mxu0 0
    %773 = vmatprep.subr.bf16.mxu0 0
    %774 = vmatpush1.bf16.msra.mxu0 0
    %775 = vmatprep.subr.bf16.mxu0 0
    %776 = vmatpush1.bf16.msra.mxu0 0
    %777 = vmatprep.subr.bf16.mxu0 0
    %778 = vmatpush1.bf16.msra.mxu0 0
    %779 = vmatprep.subr.bf16.mxu0 0
    %780 = vmatpush1.bf16.msra.mxu0 0
    %781 = vmatprep.subr.bf16.mxu0 0
    %782 = vmatpush1.bf16.msra.mxu0 0
    %783 = vmatprep.subr.bf16.mxu0 0
    %784 = vmatpush1.bf16.msra.mxu0 0
    %785 = vmatprep.subr.bf16.mxu0 0
    %786 = vmatpush1.bf16.msra.mxu0 0
    %787 = vmatprep.subr.bf16.mxu0 0
    %788 = vmatpush1.bf16.msra.mxu0 0
    %789 = vmatprep.subr.bf16.mxu0 0
    %790 = vmatpush1.bf16.msra.mxu0 0
    %791 = vmatprep.subr.bf16.mxu0 0
    %792 = vmatpush1.bf16.msra.mxu0 0
    %793 = vmatprep.subr.bf16.mxu0 0
    %794 = vmatpush1.bf16.msra.mxu0 0
    %795 = vmatprep.subr.bf16.mxu0 0
    %796 = vmatpush1.bf16.msra.mxu0 0
    %797 = vmatprep.subr.bf16.mxu0 0
    %798 = vmatpush1.bf16.msra.mxu0 0
    %799 = vmatprep.mubr.bf16.mxu0 0
    %800 = vmatmul.mubr.bf16.gmra.mrb[0].mxu0 %v575
    %v801 = vpop.f32.mrb[0].mxu0
    %v802 = vadd.f32 %v749, %v801
    %v803 = vpop.f32.mrb[0].mxu0
    %v804 = vadd.f32 %v751, %v803
    %v805 = vpop.f32.mrb[0].mxu0
    %v806 = vadd.f32 %v753, %v805
    %v807 = vpop.f32.mrb[0].mxu0
    %v808 = vadd.f32 %v755, %v807
    %809 = vmatprep.mubr.bf16.mxu0 0
    %810 = vmatmul.mubr.bf16.gmra.mrb[0].mxu0 %v578
    %v811 = vpop.f32.mrb[0].mxu0
    %v812 = vadd.f32 %v759, %v811
    %v813 = vpop.f32.mrb[0].mxu0
    %v814 = vadd.f32 %v761, %v813
    %v815 = vpop.f32.mrb[0].mxu0
    %v816 = vadd.f32 %v763, %v815
    %v817 = vpop.f32.mrb[0].mxu0
    %v818 = vadd.f32 %v765, %v817
    %819 = vdwg.mxu0
    %820 = vmatprep.subr.bf16.mxu0 %v378
    %821 = vmatpush1.bf16.msra.mxu0 %v377
    %822 = vmatprep.subr.bf16.mxu0 %v387
    %823 = vmatpush1.bf16.msra.mxu0 %v386
    %824 = vmatprep.subr.bf16.mxu0 %v396
    %825 = vmatpush1.bf16.msra.mxu0 %v395
    %826 = vmatprep.subr.bf16.mxu0 %v405
    %827 = vmatpush1.bf16.msra.mxu0 %v404
    %828 = vmatprep.subr.bf16.mxu0 %v414
    %829 = vmatpush1.bf16.msra.mxu0 %v413
    %830 = vmatprep.subr.bf16.mxu0 %v423
    %831 = vmatpush1.bf16.msra.mxu0 %v422
    %832 = vmatprep.subr.bf16.mxu0 %v432
    %833 = vmatpush1.bf16.msra.mxu0 %v431
    %834 = vmatprep.subr.bf16.mxu0 %v441
    %835 = vmatpush1.bf16.msra.mxu0 %v440
    %836 = vmatprep.subr.bf16.mxu0 %v450
    %837 = vmatpush1.bf16.msra.mxu0 %v449
    %838 = vmatprep.subr.bf16.mxu0 %v459
    %839 = vmatpush1.bf16.msra.mxu0 %v458
    %840 = vmatprep.subr.bf16.mxu0 %v468
    %841 = vmatpush1.bf16.msra.mxu0 %v467
    %842 = vmatprep.subr.bf16.mxu0 %v477
    %843 = vmatpush1.bf16.msra.mxu0 %v476
    %844 = vmatprep.subr.bf16.mxu0 %v486
    %845 = vmatpush1.bf16.msra.mxu0 %v485
    %846 = vmatprep.subr.bf16.mxu0 %v495
    %847 = vmatpush1.bf16.msra.mxu0 %v494
    %848 = vmatprep.subr.bf16.mxu0 %v504
    %849 = vmatpush1.bf16.msra.mxu0 %v503
    %850 = vmatprep.subr.bf16.mxu0 %v513
    %851 = vmatpush1.bf16.msra.mxu0 %v512
    %852 = vmatprep.mubr.bf16.mxu0 %v564
    %853 = vmatmul.mubr.bf16.gmra.mrb[0].mxu0 %v563
    %v854 = vpop.f32.mrb[0].mxu0
    %v855 = vadd.f32 0.0, %v854
    %v856 = vpop.f32.mrb[0].mxu0
    %v857 = vadd.f32 0.0, %v856
    %v858 = vpop.f32.mrb[0].mxu0
    %v859 = vadd.f32 0.0, %v858
    %v860 = vpop.f32.mrb[0].mxu0
    %v861 = vadd.f32 0.0, %v860
    %862 = vmatprep.mubr.bf16.mxu0 %v567
    %863 = vmatmul.mubr.bf16.gmra.mrb[0].mxu0 %v566
    %v864 = vpop.f32.mrb[0].mxu0
    %v865 = vadd.f32 0.0, %v864
    %v866 = vpop.f32.mrb[0].mxu0
    %v867 = vadd.f32 0.0, %v866
    %v868 = vpop.f32.mrb[0].mxu0
    %v869 = vadd.f32 0.0, %v868
    %v870 = vpop.f32.mrb[0].mxu0
    %v871 = vadd.f32 0.0, %v870
    %872 = vdwg.mxu0
    %873 = vmatprep.subr.bf16.mxu0 %v522
    %874 = vmatpush1.bf16.msra.mxu0 %v521
    %875 = vmatprep.subr.bf16.mxu0 %v597
    %876 = vmatpush1.bf16.msra.mxu0 %v594
    %877 = vmatprep.subr.bf16.mxu0 0
    %878 = vmatpush1.bf16.msra.mxu0 0
    %879 = vmatprep.subr.bf16.mxu0 0
    %880 = vmatpush1.bf16.msra.mxu0 0
    %881 = vmatprep.subr.bf16.mxu0 0
    %882 = vmatpush1.bf16.msra.mxu0 0
    %883 = vmatprep.subr.bf16.mxu0 0
    %884 = vmatpush1.bf16.msra.mxu0 0
    %885 = vmatprep.subr.bf16.mxu0 0
    %886 = vmatpush1.bf16.msra.mxu0 0
    %887 = vmatprep.subr.bf16.mxu0 0
    %888 = vmatpush1.bf16.msra.mxu0 0
    %889 = vmatprep.subr.bf16.mxu0 0
    %890 = vmatpush1.bf16.msra.mxu0 0
    %891 = vmatprep.subr.bf16.mxu0 0
    %892 = vmatpush1.bf16.msra.mxu0 0
    %893 = vmatprep.subr.bf16.mxu0 0
    %894 = vmatpush1.bf16.msra.mxu0 0
    %895 = vmatprep.subr.bf16.mxu0 0
    %896 = vmatpush1.bf16.msra.mxu0 0
    %897 = vmatprep.subr.bf16.mxu0 0
    %898 = vmatpush1.bf16.msra.mxu0 0
    %899 = vmatprep.subr.bf16.mxu0 0
    %900 = vmatpush1.bf16.msra.mxu0 0
    %901 = vmatprep.subr.bf16.mxu0 0
    %902 = vmatpush1.bf16.msra.mxu0 0
    %903 = vmatprep.subr.bf16.mxu0 0
    %904 = vmatpush1.bf16.msra.mxu0 0
    %905 = vmatprep.mubr.bf16.mxu0 0
    %906 = vmatmul.mubr.bf16.gmra.mrb[0].mxu0 %v575
    %v907 = vpop.f32.mrb[0].mxu0
    %v908 = vadd.f32 %v855, %v907
    %v909 = vpop.f32.mrb[0].mxu0
    %v910 = vadd.f32 %v857, %v909
    %v911 = vpop.f32.mrb[0].mxu0
    %v912 = vadd.f32 %v859, %v911
    %v913 = vpop.f32.mrb[0].mxu0
    %v914 = vadd.f32 %v861, %v913
    %915 = vmatprep.mubr.bf16.mxu0 0
    %916 = vmatmul.mubr.bf16.gmra.mrb[0].mxu0 %v578
    %v917 = vpop.f32.mrb[0].mxu0
    %v918 = vadd.f32 %v865, %v917
    %v919 = vpop.f32.mrb[0].mxu0
    %v920 = vadd.f32 %v867, %v919
    %v921 = vpop.f32.mrb[0].mxu0
    %v922 = vadd.f32 %v869, %v921
    %v923 = vpop.f32.mrb[0].mxu0
    %v924 = vadd.f32 %v871, %v923
    %925 = vdwg.mxu0
    %926 = vmatprep.subr.bf16.mxu0 %v380
    %927 = vmatpush1.bf16.msra.mxu0 %v379
    %928 = vmatprep.subr.bf16.mxu0 %v389
    %929 = vmatpush1.bf16.msra.mxu0 %v388
    %930 = vmatprep.subr.bf16.mxu0 %v398
    %931 = vmatpush1.bf16.msra.mxu0 %v397
    %932 = vmatprep.subr.bf16.mxu0 %v407
    %933 = vmatpush1.bf16.msra.mxu0 %v406
    %934 = vmatprep.subr.bf16.mxu0 %v416
    %935 = vmatpush1.bf16.msra.mxu0 %v415
    %936 = vmatprep.subr.bf16.mxu0 %v425
    %937 = vmatpush1.bf16.msra.mxu0 %v424
    %938 = vmatprep.subr.bf16.mxu0 %v434
    %939 = vmatpush1.bf16.msra.mxu0 %v433
    %940 = vmatprep.subr.bf16.mxu0 %v443
    %941 = vmatpush1.bf16.msra.mxu0 %v442
    %942 = vmatprep.subr.bf16.mxu0 %v452
    %943 = vmatpush1.bf16.msra.mxu0 %v451
    %944 = vmatprep.subr.bf16.mxu0 %v461
    %945 = vmatpush1.bf16.msra.mxu0 %v460
    %946 = vmatprep.subr.bf16.mxu0 %v470
    %947 = vmatpush1.bf16.msra.mxu0 %v469
    %948 = vmatprep.subr.bf16.mxu0 %v479
    %949 = vmatpush1.bf16.msra.mxu0 %v478
    %950 = vmatprep.subr.bf16.mxu0 %v488
    %951 = vmatpush1.bf16.msra.mxu0 %v487
    %952 = vmatprep.subr.bf16.mxu0 %v497
    %953 = vmatpush1.bf16.msra.mxu0 %v496
    %954 = vmatprep.subr.bf16.mxu0 %v506
    %955 = vmatpush1.bf16.msra.mxu0 %v505
    %956 = vmatprep.subr.bf16.mxu0 %v515
    %957 = vmatpush1.bf16.msra.mxu0 %v514
    %958 = vmatprep.mubr.bf16.mxu0 %v564
    %959 = vmatmul.mubr.bf16.gmra.mrb[0].mxu0 %v563
    %v960 = vpop.f32.mrb[0].mxu0
    %v961 = vadd.f32 0.0, %v960
    %v962 = vpop.f32.mrb[0].mxu0
    %v963 = vadd.f32 0.0, %v962
    %v964 = vpop.f32.mrb[0].mxu0
    %v965 = vadd.f32 0.0, %v964
    %v966 = vpop.f32.mrb[0].mxu0
    %v967 = vadd.f32 0.0, %v966
    %968 = vmatprep.mubr.bf16.mxu0 %v567
    %969 = vmatmul.mubr.bf16.gmra.mrb[0].mxu0 %v566
    %v970 = vpop.f32.mrb[0].mxu0
    %v971 = vadd.f32 0.0, %v970
    %v972 = vpop.f32.mrb[0].mxu0
    %v973 = vadd.f32 0.0, %v972
    %v974 = vpop.f32.mrb[0].mxu0
    %v975 = vadd.f32 0.0, %v974
    %v976 = vpop.f32.mrb[0].mxu0
    %v977 = vadd.f32 0.0, %v976
    %978 = vdwg.mxu0
    %979 = vmatprep.subr.bf16.mxu0 %v524
    %980 = vmatpush1.bf16.msra.mxu0 %v523
    %981 = vmatprep.subr.bf16.mxu0 %v603
    %982 = vmatpush1.bf16.msra.mxu0 %v600
    %983 = vmatprep.subr.bf16.mxu0 0
    %984 = vmatpush1.bf16.msra.mxu0 0
    %985 = vmatprep.subr.bf16.mxu0 0
    %986 = vmatpush1.bf16.msra.mxu0 0
    %987 = vmatprep.subr.bf16.mxu0 0
    %988 = vmatpush1.bf16.msra.mxu0 0
    %989 = vmatprep.subr.bf16.mxu0 0
    %990 = vmatpush1.bf16.msra.mxu0 0
    %991 = vmatprep.subr.bf16.mxu0 0
    %992 = vmatpush1.bf16.msra.mxu0 0
    %993 = vmatprep.subr.bf16.mxu0 0
    %994 = vmatpush1.bf16.msra.mxu0 0
    %995 = vmatprep.subr.bf16.mxu0 0
    %996 = vmatpush1.bf16.msra.mxu0 0
    %997 = vmatprep.subr.bf16.mxu0 0
    %998 = vmatpush1.bf16.msra.mxu0 0
    %999 = vmatprep.subr.bf16.mxu0 0
    %1000 = vmatpush1.bf16.msra.mxu0 0
    %1001 = vmatprep.subr.bf16.mxu0 0
    %1002 = vmatpush1.bf16.msra.mxu0 0
    %1003 = vmatprep.subr.bf16.mxu0 0
    %1004 = vmatpush1.bf16.msra.mxu0 0
    %1005 = vmatprep.subr.bf16.mxu0 0
    %1006 = vmatpush1.bf16.msra.mxu0 0
    %1007 = vmatprep.subr.bf16.mxu0 0
    %1008 = vmatpush1.bf16.msra.mxu0 0
    %1009 = vmatprep.subr.bf16.mxu0 0
    %1010 = vmatpush1.bf16.msra.mxu0 0
    %1011 = vmatprep.mubr.bf16.mxu0 0
    %1012 = vmatmul.mubr.bf16.gmra.mrb[0].mxu0 %v575
    %v1013 = vpop.f32.mrb[0].mxu0
    %v1014 = vadd.f32 %v961, %v1013
    %v1015 = vpop.f32.mrb[0].mxu0
    %v1016 = vadd.f32 %v963, %v1015
    %v1017 = vpop.f32.mrb[0].mxu0
    %v1018 = vadd.f32 %v965, %v1017
    %v1019 = vpop.f32.mrb[0].mxu0
    %v1020 = vadd.f32 %v967, %v1019
    %1021 = vmatprep.mubr.bf16.mxu0 0
    %1022 = vmatmul.mubr.bf16.gmra.mrb[0].mxu0 %v578
    %v1023 = vpop.f32.mrb[0].mxu0
    %v1024 = vadd.f32 %v971, %v1023
    %v1025 = vpop.f32.mrb[0].mxu0
    %v1026 = vadd.f32 %v973, %v1025
    %v1027 = vpop.f32.mrb[0].mxu0
    %v1028 = vadd.f32 %v975, %v1027
    %v1029 = vpop.f32.mrb[0].mxu0
    %v1030 = vadd.f32 %v977, %v1029
    %1031 = vdwg.mxu0
    %1032 = vmatprep.subr.bf16.mxu0 0
    %1033 = vmatpush1.bf16.msra.mxu0 %v381
    %1034 = vmatprep.subr.bf16.mxu0 0
    %1035 = vmatpush1.bf16.msra.mxu0 %v390
    %1036 = vmatprep.subr.bf16.mxu0 0
    %1037 = vmatpush1.bf16.msra.mxu0 %v399
    %1038 = vmatprep.subr.bf16.mxu0 0
    %1039 = vmatpush1.bf16.msra.mxu0 %v408
    %1040 = vmatprep.subr.bf16.mxu0 0
    %1041 = vmatpush1.bf16.msra.mxu0 %v417
    %1042 = vmatprep.subr.bf16.mxu0 0
    %1043 = vmatpush1.bf16.msra.mxu0 %v426
    %1044 = vmatprep.subr.bf16.mxu0 0
    %1045 = vmatpush1.bf16.msra.mxu0 %v435
    %1046 = vmatprep.subr.bf16.mxu0 0
    %1047 = vmatpush1.bf16.msra.mxu0 %v444
    %1048 = vmatprep.subr.bf16.mxu0 0
    %1049 = vmatpush1.bf16.msra.mxu0 %v453
    %1050 = vmatprep.subr.bf16.mxu0 0
    %1051 = vmatpush1.bf16.msra.mxu0 %v462
    %1052 = vmatprep.subr.bf16.mxu0 0
    %1053 = vmatpush1.bf16.msra.mxu0 %v471
    %1054 = vmatprep.subr.bf16.mxu0 0
    %1055 = vmatpush1.bf16.msra.mxu0 %v480
    %1056 = vmatprep.subr.bf16.mxu0 0
    %1057 = vmatpush1.bf16.msra.mxu0 %v489
    %1058 = vmatprep.subr.bf16.mxu0 0
    %1059 = vmatpush1.bf16.msra.mxu0 %v498
    %1060 = vmatprep.subr.bf16.mxu0 0
    %1061 = vmatpush1.bf16.msra.mxu0 %v507
    %1062 = vmatprep.subr.bf16.mxu0 0
    %1063 = vmatpush1.bf16.msra.mxu0 %v516
    %1064 = vmatprep.mubr.bf16.mxu0 %v564
    %1065 = vmatmul.mubr.bf16.gmra.mrb[0].mxu0 %v563
    %v1066 = vpop.f32.mrb[0].mxu0
    %v1067 = vadd.f32 0.0, %v1066
    %v1068 = vpop.f32.mrb[0].mxu0
    %v1069 = vpop.f32.mrb[0].mxu0
    %v1070 = vadd.f32 0.0, %v1069
    %v1071 = vpop.f32.mrb[0].mxu0
    %1072 = vmatprep.mubr.bf16.mxu0 %v567
    %1073 = vmatmul.mubr.bf16.gmra.mrb[0].mxu0 %v566
    %v1074 = vpop.f32.mrb[0].mxu0
    %v1075 = vadd.f32 0.0, %v1074
    %v1076 = vpop.f32.mrb[0].mxu0
    %v1077 = vpop.f32.mrb[0].mxu0
    %v1078 = vadd.f32 0.0, %v1077
    %v1079 = vpop.f32.mrb[0].mxu0
    %1080 = vdwg.mxu0
    %1081 = vmatprep.subr.bf16.mxu0 0
    %1082 = vmatpush1.bf16.msra.mxu0 %v525
    %1083 = vmatprep.subr.bf16.mxu0 0
    %1084 = vmatpush1.bf16.msra.mxu0 %v606
    %1085 = vmatprep.subr.bf16.mxu0 0
    %1086 = vmatpush1.bf16.msra.mxu0 0
    %1087 = vmatprep.subr.bf16.mxu0 0
    %1088 = vmatpush1.bf16.msra.mxu0 0
    %1089 = vmatprep.subr.bf16.mxu0 0
    %1090 = vmatpush1.bf16.msra.mxu0 0
    %1091 = vmatprep.subr.bf16.mxu0 0
    %1092 = vmatpush1.bf16.msra.mxu0 0
    %1093 = vmatprep.subr.bf16.mxu0 0
    %1094 = vmatpush1.bf16.msra.mxu0 0
    %1095 = vmatprep.subr.bf16.mxu0 0
    %1096 = vmatpush1.bf16.msra.mxu0 0
    %1097 = vmatprep.subr.bf16.mxu0 0
    %1098 = vmatpush1.bf16.msra.mxu0 0
    %1099 = vmatprep.subr.bf16.mxu0 0
    %1100 = vmatpush1.bf16.msra.mxu0 0
    %1101 = vmatprep.subr.bf16.mxu0 0
    %1102 = vmatpush1.bf16.msra.mxu0 0
    %1103 = vmatprep.subr.bf16.mxu0 0
    %1104 = vmatpush1.bf16.msra.mxu0 0
    %1105 = vmatprep.subr.bf16.mxu0 0
    %1106 = vmatpush1.bf16.msra.mxu0 0
    %1107 = vmatprep.subr.bf16.mxu0 0
    %1108 = vmatpush1.bf16.msra.mxu0 0
    %1109 = vmatprep.subr.bf16.mxu0 0
    %1110 = vmatpush1.bf16.msra.mxu0 0
    %1111 = vmatprep.subr.bf16.mxu0 0
    %1112 = vmatpush1.bf16.msra.mxu0 0
    %1113 = vmatprep.mubr.bf16.mxu0 0
    %1114 = vmatmul.mubr.bf16.gmra.mrb[0].mxu0 %v575
    %v1115 = vpop.f32.mrb[0].mxu0
    %v1116 = vadd.f32 %v1067, %v1115
    %v1117 = vpop.f32.mrb[0].mxu0
    %v1118 = vpop.f32.mrb[0].mxu0
    %v1119 = vadd.f32 %v1070, %v1118
    %v1120 = vpop.f32.mrb[0].mxu0
    %1121 = vmatprep.mubr.bf16.mxu0 0
    %1122 = vmatmul.mubr.bf16.gmra.mrb[0].mxu0 %v578
    %v1123 = vpop.f32.mrb[0].mxu0
    %v1124 = vadd.f32 %v1075, %v1123
    %v1125 = vpop.f32.mrb[0].mxu0
    %v1126 = vpop.f32.mrb[0].mxu0
    %v1127 = vadd.f32 %v1078, %v1126
    %v1128 = vpop.f32.mrb[0].mxu0
    %1129 = vdwg.mxu0
    %v1130 = vpack.c.bf16 %v700, %v696
    %v1131 = vpack.c.bf16 %v702, %v698
    %v1132 = vpack.c.bf16 %v806, %v802
    %v1133 = vpack.c.bf16 %v808, %v804
    %v1134 = vpack.c.bf16 %v912, %v908
    %v1135 = vpack.c.bf16 %v914, %v910
    %v1136 = vpack.c.bf16 %v1018, %v1014
    %v1137 = vpack.c.bf16 %v1020, %v1016
    %v1138 = vpack.c.bf16 %v1119, %v1116
    %v1139 = vpack.c.bf16 %v710, %v706
    %v1140 = vpack.c.bf16 %v712, %v708
    %v1141 = vpack.c.bf16 %v816, %v812
    %v1142 = vpack.c.bf16 %v818, %v814
    %v1143 = vpack.c.bf16 %v922, %v918
    %v1144 = vpack.c.bf16 %v924, %v920
    %v1145 = vpack.c.bf16 %v1028, %v1024
    %v1146 = vpack.c.bf16 %v1030, %v1026
    %v1147 = vpack.c.bf16 %v1127, %v1124
    %v1148 = vld [vmem:[%s2] sm:$0xf]
    %v1149 = vld [vmem:[%s2 + $0x4] sm:$0xf]
    %v1150 = vld [vmem:[%s2 + $0x8] sm:$0xf]
    %v1151 = vld [vmem:[%s2 + $0xc] sm:$0xf]
    %v1152 = vld [vmem:[%s2 + $0x10] sm:$0xf]
    %v1153 = vld [vmem:[%s2 + $0x14] sm:$0xf]
    %v1154 = vld [vmem:[%s2 + $0x18] sm:$0xf]
    %v1155 = vld [vmem:[%s2 + $0x1c] sm:$0xf]
    %v1156 = vld [vmem:[%s2 + $0x20] sm:$0xf]
    %v1157 = vld [vmem:[%s2 + $0x24] sm:$0xf]
    %v1158 = vld [vmem:[%s2 + $0x28] sm:$0xf]
    %v1159 = vld [vmem:[%s2 + $0x2c] sm:$0xf]
    %v1160 = vld [vmem:[%s2 + $0x30] sm:$0xf]
    %v1161 = vld [vmem:[%s2 + $0x34] sm:$0xf]
    %v1162 = vld [vmem:[%s2 + $0x38] sm:$0xf]
    %v1163 = vld [vmem:[%s2 + $0x3c] sm:$0xf]
    %v1164 = vld [vmem:[%s2 + $0x40] sm:$0xf]
    %v1165 = vld [vmem:[%s2 + $0x44] sm:$0xf]
    %v1166 = vld [vmem:[%s2 + $0x48] sm:$0xf]
    %v1167 = vld [vmem:[%s2 + $0x4c] sm:$0xf]
    %v1168 = vld [vmem:[%s2 + $0x50] sm:$0xf]
    %v1169 = vld [vmem:[%s2 + $0x54] sm:$0xf]
    %v1170 = vld [vmem:[%s2 + $0x58] sm:$0xf]
    %v1171 = vld [vmem:[%s2 + $0x5c] sm:$0xf]
    %v1172 = vld [vmem:[%s2 + $0x60] sm:$0xf]
    %v1173 = vld [vmem:[%s2 + $0x64] sm:$0xf]
    %v1174 = vld [vmem:[%s2 + $0x68] sm:$0xf]
    %v1175 = vld [vmem:[%s2 + $0x6c] sm:$0xf]
    %v1176 = vld [vmem:[%s2 + $0x70] sm:$0xf]
    %v1177 = vld [vmem:[%s2 + $0x74] sm:$0xf]
    %v1178 = vld [vmem:[%s2 + $0x78] sm:$0xf]
    %v1179 = vld [vmem:[%s2 + $0x7c] sm:$0xf]
    %v1180 = vld [vmem:[%s2 + $0x80] sm:$0xf]
    %v1181 = vld [vmem:[%s2 + $0x84] sm:$0xf]
    %v1182 = vld [vmem:[%s2 + $0x88] sm:$0xf]
    %v1183 = vld [vmem:[%s2 + $0x8c] sm:$0xf]
    %v1184 = vld [vmem:[%s2 + $0x90] sm:$0xf]
    %v1185 = vld [vmem:[%s2 + $0x94] sm:$0xf]
    %v1186 = vld [vmem:[%s2 + $0x98] sm:$0xf]
    %v1187 = vld [vmem:[%s2 + $0x9c] sm:$0xf]
    %v1188 = vld [vmem:[%s2 + $0xa0] sm:$0xf]
    %v1189 = vld [vmem:[%s2 + $0xa4] sm:$0xf]
    %v1190 = vld [vmem:[%s2 + $0xa8] sm:$0xf]
    %v1191 = vld [vmem:[%s2 + $0xac] sm:$0xf]
    %v1192 = vld [vmem:[%s2 + $0xb0] sm:$0xf]
    %v1193 = vld [vmem:[%s2 + $0xb4] sm:$0xf]
    %v1194 = vld [vmem:[%s2 + $0xb8] sm:$0xf]
    %v1195 = vld [vmem:[%s2 + $0xbc] sm:$0xf]
    %v1196 = vld [vmem:[%s2 + $0xc0] sm:$0xf]
    %v1197 = vld [vmem:[%s2 + $0xc4] sm:$0xf]
    %v1198 = vld [vmem:[%s2 + $0xc8] sm:$0xf]
    %v1199 = vld [vmem:[%s2 + $0xcc] sm:$0xf]
    %v1200 = vld [vmem:[%s2 + $0xd0] sm:$0xf]
    %v1201 = vld [vmem:[%s2 + $0xd4] sm:$0xf]
    %v1202 = vld [vmem:[%s2 + $0xd8] sm:$0xf]
    %v1203 = vld [vmem:[%s2 + $0xdc] sm:$0xf]
    %v1204 = vld [vmem:[%s2 + $0xe0] sm:$0xf]
    %v1205 = vld [vmem:[%s2 + $0xe4] sm:$0xf]
    %v1206 = vld [vmem:[%s2 + $0xe8] sm:$0xf]
    %v1207 = vld [vmem:[%s2 + $0xec] sm:$0xf]
    %v1208 = vld [vmem:[%s2 + $0xf0] sm:$0xf]
    %v1209 = vld [vmem:[%s2 + $0xf4] sm:$0xf]
    %v1210 = vld [vmem:[%s2 + $0xf8] sm:$0xf]
    %v1211 = vld [vmem:[%s2 + $0xfc] sm:$0xf]
    %v1212 = vld [vmem:[%s2 + $0x100] sm:$0xf]
    %v1213 = vld [vmem:[%s2 + $0x104] sm:$0xf]
    %v1214 = vld [vmem:[%s2 + $0x108] sm:$0xf]
    %v1215 = vld [vmem:[%s2 + $0x10c] sm:$0xf]
    %v1216 = vld [vmem:[%s2 + $0x110] sm:$0xf]
    %v1217 = vld [vmem:[%s2 + $0x114] sm:$0xf]
    %v1218 = vld [vmem:[%s2 + $0x118] sm:$0xf]
    %v1219 = vld [vmem:[%s2 + $0x11c] sm:$0xf]
    %v1220 = vld [vmem:[%s2 + $0x120] sm:$0xf]
    %v1221 = vld [vmem:[%s2 + $0x124] sm:$0xf]
    %v1222 = vld [vmem:[%s2 + $0x128] sm:$0xf]
    %v1223 = vld [vmem:[%s2 + $0x12c] sm:$0xf]
    %v1224 = vld [vmem:[%s2 + $0x130] sm:$0xf]
    %v1225 = vld [vmem:[%s2 + $0x134] sm:$0xf]
    %v1226 = vld [vmem:[%s2 + $0x138] sm:$0xf]
    %v1227 = vld [vmem:[%s2 + $0x13c] sm:$0xf]
    %v1228 = vld [vmem:[%s2 + $0x140] sm:$0xf]
    %v1229 = vld [vmem:[%s2 + $0x144] sm:$0xf]
    %v1230 = vld [vmem:[%s2 + $0x148] sm:$0xf]
    %v1231 = vld [vmem:[%s2 + $0x14c] sm:$0xf]
    %v1232 = vld [vmem:[%s2 + $0x150] sm:$0xf]
    %v1233 = vld [vmem:[%s2 + $0x154] sm:$0xf]
    %v1234 = vld [vmem:[%s2 + $0x158] sm:$0xf]
    %v1235 = vld [vmem:[%s2 + $0x15c] sm:$0xf]
    %v1236 = vld [vmem:[%s2 + $0x160] sm:$0xf]
    %v1237 = vld [vmem:[%s2 + $0x164] sm:$0xf]
    %v1238 = vld [vmem:[%s2 + $0x168] sm:$0xf]
    %v1239 = vld [vmem:[%s2 + $0x16c] sm:$0xf]
    %v1240 = vld [vmem:[%s2 + $0x170] sm:$0xf]
    %v1241 = vld [vmem:[%s2 + $0x174] sm:$0xf]
    %v1242 = vld [vmem:[%s2 + $0x178] sm:$0xf]
    %v1243 = vld [vmem:[%s2 + $0x17c] sm:$0xf]
    %v1244 = vld [vmem:[%s2 + $0x180] sm:$0xf]
    %v1245 = vld [vmem:[%s2 + $0x184] sm:$0xf]
    %v1246 = vld [vmem:[%s2 + $0x188] sm:$0xf]
    %v1247 = vld [vmem:[%s2 + $0x18c] sm:$0xf]
    %v1248 = vld [vmem:[%s2 + $0x190] sm:$0xf]
    %v1249 = vld [vmem:[%s2 + $0x194] sm:$0xf]
    %v1250 = vld [vmem:[%s2 + $0x198] sm:$0xf]
    %v1251 = vld [vmem:[%s2 + $0x19c] sm:$0xf]
    %v1252 = vld [vmem:[%s2 + $0x1a0] sm:$0xf]
    %v1253 = vld [vmem:[%s2 + $0x1a4] sm:$0xf]
    %v1254 = vld [vmem:[%s2 + $0x1a8] sm:$0xf]
    %v1255 = vld [vmem:[%s2 + $0x1ac] sm:$0xf]
    %v1256 = vld [vmem:[%s2 + $0x1b0] sm:$0xf]
    %v1257 = vld [vmem:[%s2 + $0x1b4] sm:$0xf]
    %v1258 = vld [vmem:[%s2 + $0x1b8] sm:$0xf]
    %v1259 = vld [vmem:[%s2 + $0x1bc] sm:$0xf]
    %v1260 = vld [vmem:[%s2 + $0x1c0] sm:$0xf]
    %v1261 = vld [vmem:[%s2 + $0x1c4] sm:$0xf]
    %v1262 = vld [vmem:[%s2 + $0x1c8] sm:$0xf]
    %v1263 = vld [vmem:[%s2 + $0x1cc] sm:$0xf]
    %v1264 = vld [vmem:[%s2 + $0x1d0] sm:$0xf]
    %v1265 = vld [vmem:[%s2 + $0x1d4] sm:$0xf]
    %v1266 = vld [vmem:[%s2 + $0x1d8] sm:$0xf]
    %v1267 = vld [vmem:[%s2 + $0x1dc] sm:$0xf]
    %v1268 = vld [vmem:[%s2 + $0x1e0] sm:$0xf]
    %v1269 = vld [vmem:[%s2 + $0x1e4] sm:$0xf]
    %v1270 = vld [vmem:[%s2 + $0x1e8] sm:$0xf]
    %v1271 = vld [vmem:[%s2 + $0x1ec] sm:$0xf]
    %v1272 = vld [vmem:[%s2 + $0x1f0] sm:$0xf]
    %v1273 = vld [vmem:[%s2 + $0x1f4] sm:$0xf]
    %v1274 = vld [vmem:[%s2 + $0x1f8] sm:$0xf]
    %v1275 = vld [vmem:[%s2 + $0x1fc] sm:$0xf]
    %v1276 = vld [vmem:[%s2 + $0x200] sm:$0xf]
    %v1277 = vld [vmem:[%s2 + $0x204] sm:$0xf]
    %v1278 = vld [vmem:[%s2 + $0x208] sm:$0xf]
    %v1279 = vld [vmem:[%s2 + $0x20c] sm:$0xf]
    %v1280 = vld [vmem:[%s2 + $0x210] sm:$0xf]
    %v1281 = vld [vmem:[%s2 + $0x214] sm:$0xf]
    %v1282 = vld [vmem:[%s2 + $0x218] sm:$0xf]
    %v1283 = vld [vmem:[%s2 + $0x21c] sm:$0xf]
    %v1284 = vld [vmem:[%s2 + $0x220] sm:$0xf]
    %v1285 = vld [vmem:[%s2 + $0x224] sm:$0xf]
    %v1286 = vld [vmem:[%s2 + $0x228] sm:$0xf]
    %v1287 = vld [vmem:[%s2 + $0x22c] sm:$0xf]
    %v1428 = vunpack.c.l.b16 %v1148
    %v1429 = vunpack.c.l.b16 %v1149
    %v1430 = vunpack.c.l.b16 %v1150
    %v1431 = vunpack.c.l.b16 %v1151
    %v1432 = vunpack.c.l.b16 %v1152
    %v1433 = vunpack.c.l.b16 %v1153
    %v1434 = vunpack.c.l.b16 %v1154
    %v1435 = vunpack.c.l.b16 %v1155
    %v1436 = vunpack.c.l.b16 %v1156
    %v1437 = vunpack.c.l.b16 %v1157
    %v1438 = vunpack.c.l.b16 %v1158
    %v1439 = vunpack.c.l.b16 %v1159
    %v1440 = vunpack.c.l.b16 %v1160
    %v1441 = vunpack.c.l.b16 %v1161
    %v1442 = vunpack.c.l.b16 %v1162
    %v1443 = vunpack.c.l.b16 %v1163
    %v1444 = vunpack.c.l.b16 %v1164
    %v1445 = vunpack.c.l.b16 %v1165
    %v1446 = vunpack.c.l.b16 %v1166
    %v1447 = vunpack.c.l.b16 %v1167
    %v1448 = vunpack.c.l.b16 %v1168
    %v1449 = vunpack.c.l.b16 %v1169
    %v1450 = vunpack.c.l.b16 %v1170
    %v1451 = vunpack.c.l.b16 %v1171
    %v1452 = vunpack.c.l.b16 %v1172
    %v1453 = vunpack.c.l.b16 %v1173
    %v1454 = vunpack.c.l.b16 %v1174
    %v1455 = vunpack.c.l.b16 %v1175
    %v1456 = vunpack.c.l.b16 %v1176
    %v1457 = vunpack.c.l.b16 %v1177
    %v1458 = vunpack.c.l.b16 %v1178
    %v1459 = vunpack.c.l.b16 %v1179
    %v1460 = vunpack.c.l.b16 %v1180
    %v1461 = vunpack.c.l.b16 %v1181
    %v1462 = vunpack.c.l.b16 %v1182
    %v1463 = vunpack.c.l.b16 %v1183
    %v1464 = vunpack.c.l.b16 %v1184
    %v1465 = vunpack.c.l.b16 %v1185
    %v1466 = vunpack.c.l.b16 %v1186
    %v1467 = vunpack.c.l.b16 %v1187
    %v1468 = vunpack.c.l.b16 %v1188
    %v1469 = vunpack.c.l.b16 %v1189
    %v1470 = vunpack.c.l.b16 %v1190
    %v1471 = vunpack.c.l.b16 %v1191
    %v1472 = vunpack.c.l.b16 %v1192
    %v1473 = vunpack.c.l.b16 %v1193
    %v1474 = vunpack.c.l.b16 %v1194
    %v1475 = vunpack.c.l.b16 %v1195
    %v1476 = vunpack.c.l.b16 %v1196
    %v1477 = vunpack.c.l.b16 %v1197
    %v1478 = vunpack.c.l.b16 %v1198
    %v1479 = vunpack.c.l.b16 %v1199
    %v1480 = vunpack.c.l.b16 %v1200
    %v1481 = vunpack.c.l.b16 %v1201
    %v1482 = vunpack.c.l.b16 %v1202
    %v1483 = vunpack.c.l.b16 %v1203
    %v1484 = vunpack.c.l.b16 %v1204
    %v1485 = vunpack.c.l.b16 %v1205
    %v1486 = vunpack.c.l.b16 %v1206
    %v1487 = vunpack.c.l.b16 %v1207
    %v1488 = vunpack.c.l.b16 %v1208
    %v1489 = vunpack.c.l.b16 %v1209
    %v1490 = vunpack.c.l.b16 %v1210
    %v1491 = vunpack.c.l.b16 %v1211
    %v1492 = vunpack.c.l.b16 %v1212
    %v1493 = vunpack.c.l.b16 %v1213
    %v1494 = vunpack.c.l.b16 %v1214
    %v1495 = vunpack.c.l.b16 %v1215
    %v1496 = vunpack.c.l.b16 %v1216
    %v1497 = vunpack.c.l.b16 %v1217
    %v1498 = vunpack.c.l.b16 %v1218
    %v1499 = vunpack.c.l.b16 %v1219
    %v1500 = vunpack.c.l.b16 %v1220
    %v1501 = vunpack.c.l.b16 %v1221
    %v1502 = vunpack.c.l.b16 %v1222
    %v1503 = vunpack.c.l.b16 %v1223
    %v1504 = vunpack.c.l.b16 %v1224
    %v1505 = vunpack.c.l.b16 %v1225
    %v1506 = vunpack.c.l.b16 %v1226
    %v1507 = vunpack.c.l.b16 %v1227
    %v1508 = vunpack.c.l.b16 %v1228
    %v1509 = vunpack.c.l.b16 %v1229
    %v1510 = vunpack.c.l.b16 %v1230
    %v1511 = vunpack.c.l.b16 %v1231
    %v1512 = vunpack.c.l.b16 %v1232
    %v1513 = vunpack.c.l.b16 %v1233
    %v1514 = vunpack.c.l.b16 %v1234
    %v1515 = vunpack.c.l.b16 %v1235
    %v1516 = vunpack.c.l.b16 %v1236
    %v1517 = vunpack.c.l.b16 %v1237
    %v1518 = vunpack.c.l.b16 %v1238
    %v1519 = vunpack.c.l.b16 %v1239
    %v1520 = vunpack.c.l.b16 %v1240
    %v1521 = vunpack.c.l.b16 %v1241
    %v1522 = vunpack.c.l.b16 %v1242
    %v1523 = vunpack.c.l.b16 %v1243
    %v1524 = vunpack.c.l.b16 %v1244
    %v1525 = vunpack.c.l.b16 %v1245
    %v1526 = vunpack.c.l.b16 %v1246
    %v1527 = vunpack.c.l.b16 %v1247
    %v1528 = vunpack.c.l.b16 %v1248
    %v1529 = vunpack.c.l.b16 %v1249
    %v1530 = vunpack.c.l.b16 %v1250
    %v1531 = vunpack.c.l.b16 %v1251
    %v1532 = vunpack.c.l.b16 %v1252
    %v1533 = vunpack.c.l.b16 %v1253
    %v1534 = vunpack.c.l.b16 %v1254
    %v1535 = vunpack.c.l.b16 %v1255
    %v1536 = vunpack.c.l.b16 %v1256
    %v1537 = vunpack.c.l.b16 %v1257
    %v1538 = vunpack.c.l.b16 %v1258
    %v1539 = vunpack.c.l.b16 %v1259
    %v1540 = vunpack.c.l.b16 %v1260
    %v1541 = vunpack.c.l.b16 %v1261
    %v1542 = vunpack.c.l.b16 %v1262
    %v1543 = vunpack.c.l.b16 %v1263
    %v1544 = vunpack.c.l.b16 %v1264
    %v1545 = vunpack.c.l.b16 %v1265
    %v1546 = vunpack.c.l.b16 %v1266
    %v1547 = vunpack.c.l.b16 %v1267
    %v1548 = vunpack.c.l.b16 %v1268
    %v1549 = vunpack.c.l.b16 %v1269
    %v1550 = vunpack.c.l.b16 %v1270
    %v1551 = vunpack.c.l.b16 %v1271
    %v1552 = vunpack.c.l.b16 %v1272
    %v1553 = vunpack.c.l.b16 %v1273
    %v1554 = vunpack.c.l.b16 %v1274
    %v1555 = vunpack.c.l.b16 %v1275
    %v1556 = vunpack.c.l.b16 %v1276
    %v1557 = vunpack.c.l.b16 %v1277
    %v1558 = vunpack.c.l.b16 %v1278
    %v1559 = vunpack.c.l.b16 %v1279
    %v1560 = vunpack.c.l.b16 %v1280
    %v1561 = vunpack.c.l.b16 %v1281
    %v1562 = vunpack.c.l.b16 %v1282
    %v1563 = vunpack.c.l.b16 %v1283
    %v1564 = vunpack.c.l.b16 %v1284
    %v1565 = vunpack.c.l.b16 %v1285
    %v1566 = vunpack.c.l.b16 %v1286
    %v1567 = vunpack.c.l.b16 %v1287
    %v1568 = vpack.c.b16 %v1429, %v1428
    %v1569 = vpack.c.b16 %v1431, %v1430
    %v1570 = vpack.c.b16 %v1433, %v1432
    %v1571 = vpack.c.b16 %v1435, %v1434
    %v1572 = vpack.c.b16 %v1437, %v1436
    %v1573 = vpack.c.b16 %v1439, %v1438
    %v1574 = vpack.c.b16 %v1441, %v1440
    %v1575 = vpack.c.b16 %v1443, %v1442
    %v1576 = vpack.c.b16 %v1445, %v1444
    %v1577 = vpack.c.b16 %v1447, %v1446
    %v1578 = vpack.c.b16 %v1449, %v1448
    %v1579 = vpack.c.b16 %v1451, %v1450
    %v1580 = vpack.c.b16 %v1453, %v1452
    %v1581 = vpack.c.b16 %v1455, %v1454
    %v1582 = vpack.c.b16 %v1457, %v1456
    %v1583 = vpack.c.b16 %v1459, %v1458
    %v1584 = vpack.c.b16 %v1461, %v1460
    %v1585 = vpack.c.b16 %v1463, %v1462
    %v1586 = vpack.c.b16 %v1465, %v1464
    %v1587 = vpack.c.b16 %v1467, %v1466
    %v1588 = vpack.c.b16 %v1469, %v1468
    %v1589 = vpack.c.b16 %v1471, %v1470
    %v1590 = vpack.c.b16 %v1473, %v1472
    %v1591 = vpack.c.b16 %v1475, %v1474
    %v1592 = vpack.c.b16 %v1477, %v1476
    %v1593 = vpack.c.b16 %v1479, %v1478
    %v1594 = vpack.c.b16 %v1481, %v1480
    %v1595 = vpack.c.b16 %v1483, %v1482
    %v1596 = vpack.c.b16 %v1485, %v1484
    %v1597 = vpack.c.b16 %v1487, %v1486
    %v1598 = vpack.c.b16 %v1489, %v1488
    %v1599 = vpack.c.b16 %v1491, %v1490
    %v1600 = vpack.c.b16 %v1493, %v1492
    %v1601 = vpack.c.b16 %v1495, %v1494
    %v1602 = vpack.c.b16 %v1497, %v1496
    %v1603 = vpack.c.b16 %v1499, %v1498
    %v1604 = vpack.c.b16 %v1501, %v1500
    %v1605 = vpack.c.b16 %v1503, %v1502
    %v1606 = vpack.c.b16 %v1505, %v1504
    %v1607 = vpack.c.b16 %v1507, %v1506
    %v1608 = vpack.c.b16 %v1509, %v1508
    %v1609 = vpack.c.b16 %v1511, %v1510
    %v1610 = vpack.c.b16 %v1513, %v1512
    %v1611 = vpack.c.b16 %v1515, %v1514
    %v1612 = vpack.c.b16 %v1517, %v1516
    %v1613 = vpack.c.b16 %v1519, %v1518
    %v1614 = vpack.c.b16 %v1521, %v1520
    %v1615 = vpack.c.b16 %v1523, %v1522
    %v1616 = vpack.c.b16 %v1525, %v1524
    %v1617 = vpack.c.b16 %v1527, %v1526
    %v1618 = vpack.c.b16 %v1529, %v1528
    %v1619 = vpack.c.b16 %v1531, %v1530
    %v1620 = vpack.c.b16 %v1533, %v1532
    %v1621 = vpack.c.b16 %v1535, %v1534
    %v1622 = vpack.c.b16 %v1537, %v1536
    %v1623 = vpack.c.b16 %v1539, %v1538
    %v1624 = vpack.c.b16 %v1541, %v1540
    %v1625 = vpack.c.b16 %v1543, %v1542
    %v1626 = vpack.c.b16 %v1545, %v1544
    %v1627 = vpack.c.b16 %v1547, %v1546
    %v1628 = vpack.c.b16 %v1549, %v1548
    %v1629 = vpack.c.b16 %v1551, %v1550
    %v1630 = vpack.c.b16 %v1553, %v1552
    %v1631 = vpack.c.b16 %v1555, %v1554
    %v1632 = vpack.c.b16 %v1557, %v1556
    %v1633 = vpack.c.b16 %v1559, %v1558
    %v1634 = vpack.c.b16 %v1561, %v1560
    %v1635 = vpack.c.b16 %v1563, %v1562
    %v1636 = vpack.c.b16 %v1565, %v1564
    %v1637 = vpack.c.b16 %v1567, %v1566
    %vm1708 = vcmask 785408
    %v1710 = vsel %vm1708, %v1138, 0
    %v1713 = vsel %vm1708, %v1147, 0
    %1715 = vmatprep.subr.bf16.mxu0 0
    %1716 = vmatpush1.bf16.msra.mxu0 %v1568
    %1717 = vmatprep.subr.bf16.mxu0 0
    %1718 = vmatpush1.bf16.msra.mxu0 %v1569
    %1719 = vmatprep.subr.bf16.mxu0 0
    %1720 = vmatpush1.bf16.msra.mxu0 %v1570
    %1721 = vmatprep.subr.bf16.mxu0 0
    %1722 = vmatpush1.bf16.msra.mxu0 %v1571
    %1723 = vmatprep.subr.bf16.mxu0 0
    %1724 = vmatpush1.bf16.msra.mxu0 %v1572
    %1725 = vmatprep.subr.bf16.mxu0 0
    %1726 = vmatpush1.bf16.msra.mxu0 %v1573
    %1727 = vmatprep.subr.bf16.mxu0 0
    %1728 = vmatpush1.bf16.msra.mxu0 %v1574
    %1729 = vmatprep.subr.bf16.mxu0 0
    %1730 = vmatpush1.bf16.msra.mxu0 %v1575
    %1731 = vmatprep.subr.bf16.mxu0 0
    %1732 = vmatpush1.bf16.msra.mxu0 %v1576
    %1733 = vmatprep.subr.bf16.mxu0 0
    %1734 = vmatpush1.bf16.msra.mxu0 %v1577
    %1735 = vmatprep.subr.bf16.mxu0 0
    %1736 = vmatpush1.bf16.msra.mxu0 %v1578
    %1737 = vmatprep.subr.bf16.mxu0 0
    %1738 = vmatpush1.bf16.msra.mxu0 %v1579
    %1739 = vmatprep.subr.bf16.mxu0 0
    %1740 = vmatpush1.bf16.msra.mxu0 %v1580
    %1741 = vmatprep.subr.bf16.mxu0 0
    %1742 = vmatpush1.bf16.msra.mxu0 %v1581
    %1743 = vmatprep.subr.bf16.mxu0 0
    %1744 = vmatpush1.bf16.msra.mxu0 %v1582
    %1745 = vmatprep.subr.bf16.mxu0 0
    %1746 = vmatpush1.bf16.msra.mxu0 %v1583
    %1747 = vmatprep.mubr.bf16.mxu0 %v1131
    %1748 = vmatmul.mubr.bf16.gmra.mrb[0].mxu0 %v1130
    %v1749 = vpop.f32.mrb[0].mxu0
    %v1750 = vadd.f32 0.0, %v1749
    %v1751 = vpop.f32.mrb[0].mxu0
    %v1752 = vpop.f32.mrb[0].mxu0
    %v1753 = vadd.f32 0.0, %v1752
    %v1754 = vpop.f32.mrb[0].mxu0
    %1755 = vmatprep.mubr.bf16.mxu0 %v1140
    %1756 = vmatmul.mubr.bf16.gmra.mrb[0].mxu0 %v1139
    %v1757 = vpop.f32.mrb[0].mxu0
    %v1758 = vadd.f32 0.0, %v1757
    %v1759 = vpop.f32.mrb[0].mxu0
    %v1760 = vpop.f32.mrb[0].mxu0
    %v1761 = vadd.f32 0.0, %v1760
    %v1762 = vpop.f32.mrb[0].mxu0
    %1763 = vdwg.mxu0
    %1764 = vmatprep.subr.bf16.mxu0 0
    %1765 = vmatpush1.bf16.msra.mxu0 %v1584
    %1766 = vmatprep.subr.bf16.mxu0 0
    %1767 = vmatpush1.bf16.msra.mxu0 %v1585
    %1768 = vmatprep.subr.bf16.mxu0 0
    %1769 = vmatpush1.bf16.msra.mxu0 %v1586
    %1770 = vmatprep.subr.bf16.mxu0 0
    %1771 = vmatpush1.bf16.msra.mxu0 %v1587
    %1772 = vmatprep.subr.bf16.mxu0 0
    %1773 = vmatpush1.bf16.msra.mxu0 %v1588
    %1774 = vmatprep.subr.bf16.mxu0 0
    %1775 = vmatpush1.bf16.msra.mxu0 %v1589
    %1776 = vmatprep.subr.bf16.mxu0 0
    %1777 = vmatpush1.bf16.msra.mxu0 %v1590
    %1778 = vmatprep.subr.bf16.mxu0 0
    %1779 = vmatpush1.bf16.msra.mxu0 %v1591
    %1780 = vmatprep.subr.bf16.mxu0 0
    %1781 = vmatpush1.bf16.msra.mxu0 %v1592
    %1782 = vmatprep.subr.bf16.mxu0 0
    %1783 = vmatpush1.bf16.msra.mxu0 %v1593
    %1784 = vmatprep.subr.bf16.mxu0 0
    %1785 = vmatpush1.bf16.msra.mxu0 %v1594
    %1786 = vmatprep.subr.bf16.mxu0 0
    %1787 = vmatpush1.bf16.msra.mxu0 %v1595
    %1788 = vmatprep.subr.bf16.mxu0 0
    %1789 = vmatpush1.bf16.msra.mxu0 %v1596
    %1790 = vmatprep.subr.bf16.mxu0 0
    %1791 = vmatpush1.bf16.msra.mxu0 %v1597
    %1792 = vmatprep.subr.bf16.mxu0 0
    %1793 = vmatpush1.bf16.msra.mxu0 %v1598
    %1794 = vmatprep.subr.bf16.mxu0 0
    %1795 = vmatpush1.bf16.msra.mxu0 %v1599
    %1796 = vmatprep.mubr.bf16.mxu0 %v1133
    %1797 = vmatmul.mubr.bf16.gmra.mrb[0].mxu0 %v1132
    %v1798 = vpop.f32.mrb[0].mxu0
    %v1799 = vadd.f32 %v1750, %v1798
    %v1800 = vpop.f32.mrb[0].mxu0
    %v1801 = vpop.f32.mrb[0].mxu0
    %v1802 = vadd.f32 %v1753, %v1801
    %v1803 = vpop.f32.mrb[0].mxu0
    %1804 = vmatprep.mubr.bf16.mxu0 %v1142
    %1805 = vmatmul.mubr.bf16.gmra.mrb[0].mxu0 %v1141
    %v1806 = vpop.f32.mrb[0].mxu0
    %v1807 = vadd.f32 %v1758, %v1806
    %v1808 = vpop.f32.mrb[0].mxu0
    %v1809 = vpop.f32.mrb[0].mxu0
    %v1810 = vadd.f32 %v1761, %v1809
    %v1811 = vpop.f32.mrb[0].mxu0
    %1812 = vdwg.mxu0
    %1813 = vmatprep.subr.bf16.mxu0 0
    %1814 = vmatpush1.bf16.msra.mxu0 %v1600
    %1815 = vmatprep.subr.bf16.mxu0 0
    %1816 = vmatpush1.bf16.msra.mxu0 %v1601
    %1817 = vmatprep.subr.bf16.mxu0 0
    %1818 = vmatpush1.bf16.msra.mxu0 %v1602
    %1819 = vmatprep.subr.bf16.mxu0 0
    %1820 = vmatpush1.bf16.msra.mxu0 %v1603
    %1821 = vmatprep.subr.bf16.mxu0 0
    %1822 = vmatpush1.bf16.msra.mxu0 %v1604
    %1823 = vmatprep.subr.bf16.mxu0 0
    %1824 = vmatpush1.bf16.msra.mxu0 %v1605
    %1825 = vmatprep.subr.bf16.mxu0 0
    %1826 = vmatpush1.bf16.msra.mxu0 %v1606
    %1827 = vmatprep.subr.bf16.mxu0 0
    %1828 = vmatpush1.bf16.msra.mxu0 %v1607
    %1829 = vmatprep.subr.bf16.mxu0 0
    %1830 = vmatpush1.bf16.msra.mxu0 %v1608
    %1831 = vmatprep.subr.bf16.mxu0 0
    %1832 = vmatpush1.bf16.msra.mxu0 %v1609
    %1833 = vmatprep.subr.bf16.mxu0 0
    %1834 = vmatpush1.bf16.msra.mxu0 %v1610
    %1835 = vmatprep.subr.bf16.mxu0 0
    %1836 = vmatpush1.bf16.msra.mxu0 %v1611
    %1837 = vmatprep.subr.bf16.mxu0 0
    %1838 = vmatpush1.bf16.msra.mxu0 %v1612
    %1839 = vmatprep.subr.bf16.mxu0 0
    %1840 = vmatpush1.bf16.msra.mxu0 %v1613
    %1841 = vmatprep.subr.bf16.mxu0 0
    %1842 = vmatpush1.bf16.msra.mxu0 %v1614
    %1843 = vmatprep.subr.bf16.mxu0 0
    %1844 = vmatpush1.bf16.msra.mxu0 %v1615
    %1845 = vmatprep.mubr.bf16.mxu0 %v1135
    %1846 = vmatmul.mubr.bf16.gmra.mrb[0].mxu0 %v1134
    %v1847 = vpop.f32.mrb[0].mxu0
    %v1848 = vadd.f32 %v1799, %v1847
    %v1849 = vpop.f32.mrb[0].mxu0
    %v1850 = vpop.f32.mrb[0].mxu0
    %v1851 = vadd.f32 %v1802, %v1850
    %v1852 = vpop.f32.mrb[0].mxu0
    %1853 = vmatprep.mubr.bf16.mxu0 %v1144
    %1854 = vmatmul.mubr.bf16.gmra.mrb[0].mxu0 %v1143
    %v1855 = vpop.f32.mrb[0].mxu0
    %v1856 = vadd.f32 %v1807, %v1855
    %v1857 = vpop.f32.mrb[0].mxu0
    %v1858 = vpop.f32.mrb[0].mxu0
    %v1859 = vadd.f32 %v1810, %v1858
    %v1860 = vpop.f32.mrb[0].mxu0
    %1861 = vdwg.mxu0
    %1862 = vmatprep.subr.bf16.mxu0 0
    %1863 = vmatpush1.bf16.msra.mxu0 %v1616
    %1864 = vmatprep.subr.bf16.mxu0 0
    %1865 = vmatpush1.bf16.msra.mxu0 %v1617
    %1866 = vmatprep.subr.bf16.mxu0 0
    %1867 = vmatpush1.bf16.msra.mxu0 %v1618
    %1868 = vmatprep.subr.bf16.mxu0 0
    %1869 = vmatpush1.bf16.msra.mxu0 %v1619
    %1870 = vmatprep.subr.bf16.mxu0 0
    %1871 = vmatpush1.bf16.msra.mxu0 %v1620
    %1872 = vmatprep.subr.bf16.mxu0 0
    %1873 = vmatpush1.bf16.msra.mxu0 %v1621
    %1874 = vmatprep.subr.bf16.mxu0 0
    %1875 = vmatpush1.bf16.msra.mxu0 %v1622
    %1876 = vmatprep.subr.bf16.mxu0 0
    %1877 = vmatpush1.bf16.msra.mxu0 %v1623
    %1878 = vmatprep.subr.bf16.mxu0 0
    %1879 = vmatpush1.bf16.msra.mxu0 %v1624
    %1880 = vmatprep.subr.bf16.mxu0 0
    %1881 = vmatpush1.bf16.msra.mxu0 %v1625
    %1882 = vmatprep.subr.bf16.mxu0 0
    %1883 = vmatpush1.bf16.msra.mxu0 %v1626
    %1884 = vmatprep.subr.bf16.mxu0 0
    %1885 = vmatpush1.bf16.msra.mxu0 %v1627
    %1886 = vmatprep.subr.bf16.mxu0 0
    %1887 = vmatpush1.bf16.msra.mxu0 %v1628
    %1888 = vmatprep.subr.bf16.mxu0 0
    %1889 = vmatpush1.bf16.msra.mxu0 %v1629
    %1890 = vmatprep.subr.bf16.mxu0 0
    %1891 = vmatpush1.bf16.msra.mxu0 %v1630
    %1892 = vmatprep.subr.bf16.mxu0 0
    %1893 = vmatpush1.bf16.msra.mxu0 %v1631
    %1894 = vmatprep.mubr.bf16.mxu0 %v1137
    %1895 = vmatmul.mubr.bf16.gmra.mrb[0].mxu0 %v1136
    %v1896 = vpop.f32.mrb[0].mxu0
    %v1897 = vadd.f32 %v1848, %v1896
    %v1898 = vpop.f32.mrb[0].mxu0
    %v1899 = vpop.f32.mrb[0].mxu0
    %v1900 = vadd.f32 %v1851, %v1899
    %v1901 = vpop.f32.mrb[0].mxu0
    %1902 = vmatprep.mubr.bf16.mxu0 %v1146
    %1903 = vmatmul.mubr.bf16.gmra.mrb[0].mxu0 %v1145
    %v1904 = vpop.f32.mrb[0].mxu0
    %v1905 = vadd.f32 %v1856, %v1904
    %v1906 = vpop.f32.mrb[0].mxu0
    %v1907 = vpop.f32.mrb[0].mxu0
    %v1908 = vadd.f32 %v1859, %v1907
    %v1909 = vpop.f32.mrb[0].mxu0
    %1910 = vdwg.mxu0
    %1911 = vmatprep.subr.bf16.mxu0 0
    %1912 = vmatpush1.bf16.msra.mxu0 %v1632
    %1913 = vmatprep.subr.bf16.mxu0 0
    %1914 = vmatpush1.bf16.msra.mxu0 %v1633
    %1915 = vmatprep.subr.bf16.mxu0 0
    %1916 = vmatpush1.bf16.msra.mxu0 %v1634
    %1917 = vmatprep.subr.bf16.mxu0 0
    %1918 = vmatpush1.bf16.msra.mxu0 %v1635
    %1919 = vmatprep.subr.bf16.mxu0 0
    %1920 = vmatpush1.bf16.msra.mxu0 %v1636
    %1921 = vmatprep.subr.bf16.mxu0 0
    %1922 = vmatpush1.bf16.msra.mxu0 %v1637
    %1923 = vmatprep.subr.bf16.mxu0 0
    %1924 = vmatpush1.bf16.msra.mxu0 0
    %1925 = vmatprep.subr.bf16.mxu0 0
    %1926 = vmatpush1.bf16.msra.mxu0 0
    %1927 = vmatprep.subr.bf16.mxu0 0
    %1928 = vmatpush1.bf16.msra.mxu0 0
    %1929 = vmatprep.subr.bf16.mxu0 0
    %1930 = vmatpush1.bf16.msra.mxu0 0
    %1931 = vmatprep.subr.bf16.mxu0 0
    %1932 = vmatpush1.bf16.msra.mxu0 0
    %1933 = vmatprep.subr.bf16.mxu0 0
    %1934 = vmatpush1.bf16.msra.mxu0 0
    %1935 = vmatprep.subr.bf16.mxu0 0
    %1936 = vmatpush1.bf16.msra.mxu0 0
    %1937 = vmatprep.subr.bf16.mxu0 0
    %1938 = vmatpush1.bf16.msra.mxu0 0
    %1939 = vmatprep.subr.bf16.mxu0 0
    %1940 = vmatpush1.bf16.msra.mxu0 0
    %1941 = vmatprep.subr.bf16.mxu0 0
    %1942 = vmatpush1.bf16.msra.mxu0 0
    %1943 = vmatprep.mubr.bf16.mxu0 0
    %1944 = vmatmul.mubr.bf16.gmra.mrb[0].mxu0 %v1710
    %v1945 = vpop.f32.mrb[0].mxu0
    %v1946 = vadd.f32 %v1897, %v1945
    %v1947 = vpop.f32.mrb[0].mxu0
    %v1948 = vpop.f32.mrb[0].mxu0
    %v1949 = vadd.f32 %v1900, %v1948
    %v1950 = vpop.f32.mrb[0].mxu0
    %1951 = vmatprep.mubr.bf16.mxu0 0
    %1952 = vmatmul.mubr.bf16.gmra.mrb[0].mxu0 %v1713
    %v1953 = vpop.f32.mrb[0].mxu0
    %v1954 = vadd.f32 %v1905, %v1953
    %v1955 = vpop.f32.mrb[0].mxu0
    %v1956 = vpop.f32.mrb[0].mxu0
    %v1957 = vadd.f32 %v1908, %v1956
    %v1958 = vpop.f32.mrb[0].mxu0
    %1959 = vdwg.mxu0
    %v1960 = vmul.f32 %v1946, 0.00012728233
    %v1961 = vmul.f32 %v1949, 0.00012728233
    %v1962 = vmul.f32 %v1954, 0.00012728233
    %v1963 = vmul.f32 %v1957, 0.00012728233
    %v1964 = vsub.f32 %v1960, 0.42421293
    %v1965 = vsub.f32 %v1961, 0.42421293
    %v1966 = vsub.f32 %v1962, 0.42421293
    %v1967 = vsub.f32 %v1963, 0.42421293
    %v1968 = vld [vmem:[%s16] ss:$8 sm:$0x3]
    %s1969 = scalar_lea.vmem %s16, 1
    %v1970 = vld [vmem:[%s1969] ss:$8 sm:$0x3]
    %s1971 = scalar_lea.vmem %s16, 2
    %v1972 = vld [vmem:[%s1971] ss:$8 sm:$0x3]
    %v1973 = vpack.c.bf16 %v1965, %v1964
    %v1974 = vpack.c.bf16 %v1967, %v1966
    %v1975 = vld [vmem:[%s3] sm:$0xf]
    %v1976 = vld [vmem:[%s3 + $0x4] sm:$0xf]
    %v1977 = vld [vmem:[%s3 + $0x8] sm:$0xf]
    %v1978 = vld [vmem:[%s3 + $0xc] sm:$0x3]
    %v1983 = vunpack.c.l.b16 %v1975
    %v1984 = vunpack.c.l.b16 %v1976
    %v1985 = vunpack.c.l.b16 %v1977
    %v1986 = vunpack.c.l.b16 %v1978
    %v1987 = vpack.c.b16 %v1984, %v1983
    %v1988 = vpack.c.b16 %v1986, %v1985
    %vm1989 = vcmask 228352
    %v1991 = vsel %vm1989, %v1987, 0
    %v1994 = vsel %vm1989, %v1988, 0
    %vm1996 = vcmask 1045504
    %v1998 = vsel %vm1996, %v1974, 0
    %2000 = vmatprep.subr.bf16.mxu0 0
    %2001 = vmatpush1.bf16.msra.mxu0 %v1973
    %2002 = vmatprep.subr.bf16.mxu0 0
    %2003 = vmatpush1.bf16.msra.mxu0 %v1998
    %2004 = vmatprep.subr.bf16.mxu0 0
    %2005 = vmatpush1.bf16.msra.mxu0 0
    %2006 = vmatprep.subr.bf16.mxu0 0
    %2007 = vmatpush1.bf16.msra.mxu0 0
    %2008 = vmatprep.subr.bf16.mxu0 0
    %2009 = vmatpush1.bf16.msra.mxu0 0
    %2010 = vmatprep.subr.bf16.mxu0 0
    %2011 = vmatpush1.bf16.msra.mxu0 0
    %2012 = vmatprep.subr.bf16.mxu0 0
    %2013 = vmatpush1.bf16.msra.mxu0 0
    %2014 = vmatprep.subr.bf16.mxu0 0
    %2015 = vmatpush1.bf16.msra.mxu0 0
    %2016 = vmatprep.subr.bf16.mxu0 0
    %2017 = vmatpush1.bf16.msra.mxu0 0
    %2018 = vmatprep.subr.bf16.mxu0 0
    %2019 = vmatpush1.bf16.msra.mxu0 0
    %2020 = vmatprep.subr.bf16.mxu0 0
    %2021 = vmatpush1.bf16.msra.mxu0 0
    %2022 = vmatprep.subr.bf16.mxu0 0
    %2023 = vmatpush1.bf16.msra.mxu0 0
    %2024 = vmatprep.subr.bf16.mxu0 0
    %2025 = vmatpush1.bf16.msra.mxu0 0
    %2026 = vmatprep.subr.bf16.mxu0 0
    %2027 = vmatpush1.bf16.msra.mxu0 0
    %2028 = vmatprep.subr.bf16.mxu0 0
    %2029 = vmatpush1.bf16.msra.mxu0 0
    %2030 = vmatprep.subr.bf16.mxu0 0
    %2031 = vmatpush1.bf16.msra.mxu0 0
    %2032 = vmatprep.mubr.bf16.mxu0 0
    %2033 = vmatmul.mubr.bf16.gmra.mrb[0].mxu0 %v1991
    %v2034 = vpop.f32.mrb[0].mxu0
    %v2035 = vadd.f32 0.0, %v2034
    %v2036 = vpop.f32.mrb[0].mxu0
    %v2037 = vpop.f32.mrb[0].mxu0
    %v2038 = vadd.f32 0.0, %v2037
    %v2039 = vpop.f32.mrb[0].mxu0
    %2040 = vmatprep.mubr.bf16.mxu0 0
    %2041 = vmatmul.mubr.bf16.gmra.mrb[0].mxu0 %v1994
    %v2042 = vpop.f32.mrb[0].mxu0
    %v2043 = vadd.f32 0.0, %v2042
    %v2044 = vpop.f32.mrb[0].mxu0
    %v2045 = vpop.f32.mrb[0].mxu0
    %v2046 = vadd.f32 0.0, %v2045
    %v2047 = vpop.f32.mrb[0].mxu0
    %2048 = vdwg.mxu0
    %v2049 = vpack.c.bf16 %v2038, %v2035
    %v2050 = vpack.c.bf16 %v2046, %v2043
    %v2051 = vld [vmem:[%s4] sm:$0xff]
    %v2052 = vld [vmem:[%s4 + $0x8] sm:$0xff]
    %v2053 = vld [vmem:[%s4 + $0x10] sm:$0xff]
    %v2054 = vld [vmem:[%s4 + $0x18] sm:$0x33]
    %s2055 = scalar_lea.vmem %s3, 16
    %v2056 = vld [vmem:[%s2055] sm:$0xf]
    %v2057 = vld [vmem:[%s2055 + $0x4] sm:$0xf]
    %v2058 = vld [vmem:[%s2055 + $0x8] sm:$0xf]
    %v2059 = vld [vmem:[%s2055 + $0xc] sm:$0x3]
    %v2064 = vunpack.c.l.b16 %v2056
    %v2065 = vunpack.c.l.b16 %v2057
    %v2066 = vunpack.c.l.b16 %v2058
    %v2067 = vunpack.c.l.b16 %v2059
    %v2068 = vpack.c.b16 %v2065, %v2064
    %v2069 = vpack.c.b16 %v2067, %v2066
    %v2071 = vsel %vm1989, %v2068, 0
    %v2074 = vsel %vm1989, %v2069, 0
    %2076 = vmatprep.subr.bf16.mxu0 0
    %2077 = vmatpush1.bf16.msra.mxu0 %v1973
    %2078 = vmatprep.subr.bf16.mxu0 0
    %2079 = vmatpush1.bf16.msra.mxu0 %v1998
    %2080 = vmatprep.subr.bf16.mxu0 0
    %2081 = vmatpush1.bf16.msra.mxu0 0
    %2082 = vmatprep.subr.bf16.mxu0 0
    %2083 = vmatpush1.bf16.msra.mxu0 0
    %2084 = vmatprep.subr.bf16.mxu0 0
    %2085 = vmatpush1.bf16.msra.mxu0 0
    %2086 = vmatprep.subr.bf16.mxu0 0
    %2087 = vmatpush1.bf16.msra.mxu0 0
    %2088 = vmatprep.subr.bf16.mxu0 0
    %2089 = vmatpush1.bf16.msra.mxu0 0
    %2090 = vmatprep.subr.bf16.mxu0 0
    %2091 = vmatpush1.bf16.msra.mxu0 0
    %2092 = vmatprep.subr.bf16.mxu0 0
    %2093 = vmatpush1.bf16.msra.mxu0 0
    %2094 = vmatprep.subr.bf16.mxu0 0
    %2095 = vmatpush1.bf16.msra.mxu0 0
    %2096 = vmatprep.subr.bf16.mxu0 0
    %2097 = vmatpush1.bf16.msra.mxu0 0
    %2098 = vmatprep.subr.bf16.mxu0 0
    %2099 = vmatpush1.bf16.msra.mxu0 0
    %2100 = vmatprep.subr.bf16.mxu0 0
    %2101 = vmatpush1.bf16.msra.mxu0 0
    %2102 = vmatprep.subr.bf16.mxu0 0
    %2103 = vmatpush1.bf16.msra.mxu0 0
    %2104 = vmatprep.subr.bf16.mxu0 0
    %2105 = vmatpush1.bf16.msra.mxu0 0
    %2106 = vmatprep.subr.bf16.mxu0 0
    %2107 = vmatpush1.bf16.msra.mxu0 0
    %2108 = vmatprep.mubr.bf16.mxu0 0
    %2109 = vmatmul.mubr.bf16.gmra.mrb[0].mxu0 %v2071
    %v2110 = vpop.f32.mrb[0].mxu0
    %v2111 = vadd.f32 0.0, %v2110
    %v2112 = vpop.f32.mrb[0].mxu0
    %v2113 = vpop.f32.mrb[0].mxu0
    %v2114 = vadd.f32 0.0, %v2113
    %v2115 = vpop.f32.mrb[0].mxu0
    %2116 = vmatprep.mubr.bf16.mxu0 0
    %2117 = vmatmul.mubr.bf16.gmra.mrb[0].mxu0 %v2074
    %v2118 = vpop.f32.mrb[0].mxu0
    %v2119 = vadd.f32 0.0, %v2118
    %v2120 = vpop.f32.mrb[0].mxu0
    %v2121 = vpop.f32.mrb[0].mxu0
    %v2122 = vadd.f32 0.0, %v2121
    %v2123 = vpop.f32.mrb[0].mxu0
    %2124 = vdwg.mxu0
    %v2125 = vpack.c.bf16 %v2114, %v2111
    %v2126 = vpack.c.bf16 %v2122, %v2119
    %s2127 = scalar_lea.vmem %s4, 32
    %v2128 = vld [vmem:[%s2127] sm:$0xff]
    %v2129 = vld [vmem:[%s2127 + $0x8] sm:$0xff]
    %v2130 = vld [vmem:[%s2127 + $0x10] sm:$0xff]
    %v2131 = vld [vmem:[%s2127 + $0x18] sm:$0x33]
    %v2136 = vunpack.c.l.b16 %v2128
    %v2137 = vunpack.c.h.b16 %v2128
    %v2138 = vunpack.c.l.b16 %v2129
    %v2139 = vunpack.c.h.b16 %v2129
    %v2140 = vunpack.c.l.b16 %v2130
    %v2141 = vunpack.c.h.b16 %v2130
    %v2142 = vunpack.c.l.b16 %v2131
    %v2143 = vunpack.c.h.b16 %v2131
    %v2144 = vpack.c.b16 %v2138, %v2136
    %v2145 = vpack.c.b16 %v2139, %v2137
    %v2146 = vpack.c.b16 %v2142, %v2140
    %v2147 = vpack.c.b16 %v2143, %v2141
    %v2151 = vsel %vm1989, %v2125, 0
    %v2154 = vsel %vm1989, %v2126, 0
    %v2157 = vsel %vm1996, %v2146, 0
    %v2160 = vsel %vm1996, %v2147, 0
    %2162 = vmatprep.subr.bf16.mxu0 %v2145
    %2163 = vmatpush1.bf16.msra.mxu0 %v2144
    %2164 = vmatprep.subr.bf16.mxu0 %v2160
    %2165 = vmatpush1.bf16.msra.mxu0 %v2157
    %2166 = vmatprep.subr.bf16.mxu0 0
    %2167 = vmatpush1.bf16.msra.mxu0 0
    %2168 = vmatprep.subr.bf16.mxu0 0
    %2169 = vmatpush1.bf16.msra.mxu0 0
    %2170 = vmatprep.subr.bf16.mxu0 0
    %2171 = vmatpush1.bf16.msra.mxu0 0
    %2172 = vmatprep.subr.bf16.mxu0 0
    %2173 = vmatpush1.bf16.msra.mxu0 0
    %2174 = vmatprep.subr.bf16.mxu0 0
    %2175 = vmatpush1.bf16.msra.mxu0 0
    %2176 = vmatprep.subr.bf16.mxu0 0
    %2177 = vmatpush1.bf16.msra.mxu0 0
    %2178 = vmatprep.subr.bf16.mxu0 0
    %2179 = vmatpush1.bf16.msra.mxu0 0
    %2180 = vmatprep.subr.bf16.mxu0 0
    %2181 = vmatpush1.bf16.msra.mxu0 0
    %2182 = vmatprep.subr.bf16.mxu0 0
    %2183 = vmatpush1.bf16.msra.mxu0 0
    %2184 = vmatprep.subr.bf16.mxu0 0
    %2185 = vmatpush1.bf16.msra.mxu0 0
    %2186 = vmatprep.subr.bf16.mxu0 0
    %2187 = vmatpush1.bf16.msra.mxu0 0
    %2188 = vmatprep.subr.bf16.mxu0 0
    %2189 = vmatpush1.bf16.msra.mxu0 0
    %2190 = vmatprep.subr.bf16.mxu0 0
    %2191 = vmatpush1.bf16.msra.mxu0 0
    %2192 = vmatprep.subr.bf16.mxu0 0
    %2193 = vmatpush1.bf16.msra.mxu0 0
    %2194 = vmatprep.mubr.bf16.mxu0 0
    %2195 = vmatmul.mubr.bf16.gmra.mrb[0].mxu0 %v2151
    %v2196 = vpop.f32.mrb[0].mxu0
    %v2197 = vadd.f32 0.0, %v2196
    %v2198 = vpop.f32.mrb[0].mxu0
    %v2199 = vadd.f32 0.0, %v2198
    %v2200 = vpop.f32.mrb[0].mxu0
    %v2201 = vadd.f32 0.0, %v2200
    %v2202 = vpop.f32.mrb[0].mxu0
    %v2203 = vadd.f32 0.0, %v2202
    %2204 = vmatprep.mubr.bf16.mxu0 0
    %2205 = vmatmul.mubr.bf16.gmra.mrb[0].mxu0 %v2154
    %v2206 = vpop.f32.mrb[0].mxu0
    %v2207 = vadd.f32 0.0, %v2206
    %v2208 = vpop.f32.mrb[0].mxu0
    %v2209 = vadd.f32 0.0, %v2208
    %v2210 = vpop.f32.mrb[0].mxu0
    %v2211 = vadd.f32 0.0, %v2210
    %v2212 = vpop.f32.mrb[0].mxu0
    %v2213 = vadd.f32 0.0, %v2212
    %2214 = vdwg.mxu0
    %v2219 = vunpack.c.l.b16 %v2051
    %v2220 = vunpack.c.h.b16 %v2051
    %v2221 = vunpack.c.l.b16 %v2052
    %v2222 = vunpack.c.h.b16 %v2052
    %v2223 = vunpack.c.l.b16 %v2053
    %v2224 = vunpack.c.h.b16 %v2053
    %v2225 = vunpack.c.l.b16 %v2054
    %v2226 = vunpack.c.h.b16 %v2054
    %v2227 = vpack.c.b16 %v2221, %v2219
    %v2228 = vpack.c.b16 %v2222, %v2220
    %v2229 = vpack.c.b16 %v2225, %v2223
    %v2230 = vpack.c.b16 %v2226, %v2224
    %v2234 = vsel %vm1989, %v2049, 0
    %v2237 = vsel %vm1989, %v2050, 0
    %v2240 = vsel %vm1996, %v2229, 0
    %v2243 = vsel %vm1996, %v2230, 0
    %2245 = vmatprep.subr.bf16.mxu0 %v2228
    %2246 = vmatpush1.bf16.msra.mxu0 %v2227
    %2247 = vmatprep.subr.bf16.mxu0 %v2243
    %2248 = vmatpush1.bf16.msra.mxu0 %v2240
    %2249 = vmatprep.subr.bf16.mxu0 0
    %2250 = vmatpush1.bf16.msra.mxu0 0
    %2251 = vmatprep.subr.bf16.mxu0 0
    %2252 = vmatpush1.bf16.msra.mxu0 0
    %2253 = vmatprep.subr.bf16.mxu0 0
    %2254 = vmatpush1.bf16.msra.mxu0 0
    %2255 = vmatprep.subr.bf16.mxu0 0
    %2256 = vmatpush1.bf16.msra.mxu0 0
    %2257 = vmatprep.subr.bf16.mxu0 0
    %2258 = vmatpush1.bf16.msra.mxu0 0
    %2259 = vmatprep.subr.bf16.mxu0 0
    %2260 = vmatpush1.bf16.msra.mxu0 0
    %2261 = vmatprep.subr.bf16.mxu0 0
    %2262 = vmatpush1.bf16.msra.mxu0 0
    %2263 = vmatprep.subr.bf16.mxu0 0
    %2264 = vmatpush1.bf16.msra.mxu0 0
    %2265 = vmatprep.subr.bf16.mxu0 0
    %2266 = vmatpush1.bf16.msra.mxu0 0
    %2267 = vmatprep.subr.bf16.mxu0 0
    %2268 = vmatpush1.bf16.msra.mxu0 0
    %2269 = vmatprep.subr.bf16.mxu0 0
    %2270 = vmatpush1.bf16.msra.mxu0 0
    %2271 = vmatprep.subr.bf16.mxu0 0
    %2272 = vmatpush1.bf16.msra.mxu0 0
    %2273 = vmatprep.subr.bf16.mxu0 0
    %2274 = vmatpush1.bf16.msra.mxu0 0
    %2275 = vmatprep.subr.bf16.mxu0 0
    %2276 = vmatpush1.bf16.msra.mxu0 0
    %2277 = vmatprep.mubr.bf16.mxu0 0
    %2278 = vmatmul.mubr.bf16.gmra.mrb[0].mxu0 %v2234
    %v2279 = vpop.f32.mrb[0].mxu0
    %v2280 = vadd.f32 %v2197, %v2279
    %v2281 = vpop.f32.mrb[0].mxu0
    %v2282 = vadd.f32 %v2199, %v2281
    %v2283 = vpop.f32.mrb[0].mxu0
    %v2284 = vadd.f32 %v2201, %v2283
    %v2285 = vpop.f32.mrb[0].mxu0
    %v2286 = vadd.f32 %v2203, %v2285
    %2287 = vmatprep.mubr.bf16.mxu0 0
    %2288 = vmatmul.mubr.bf16.gmra.mrb[0].mxu0 %v2237
    %v2289 = vpop.f32.mrb[0].mxu0
    %v2290 = vadd.f32 %v2207, %v2289
    %v2291 = vpop.f32.mrb[0].mxu0
    %v2292 = vadd.f32 %v2209, %v2291
    %v2293 = vpop.f32.mrb[0].mxu0
    %v2294 = vadd.f32 %v2211, %v2293
    %v2295 = vpop.f32.mrb[0].mxu0
    %v2296 = vadd.f32 %v2213, %v2295
    %2297 = vdwg.mxu0
    %s2298 = scalar_lea.vmem %s3, 32
    %v2299 = vld [vmem:[%s2298] sm:$0xf]
    %v2300 = vld [vmem:[%s2298 + $0x4] sm:$0xf]
    %v2301 = vld [vmem:[%s2298 + $0x8] sm:$0xf]
    %v2302 = vld [vmem:[%s2298 + $0xc] sm:$0x3]
    %v2307 = vunpack.c.l.b16 %v2299
    %v2308 = vunpack.c.l.b16 %v2300
    %v2309 = vunpack.c.l.b16 %v2301
    %v2310 = vunpack.c.l.b16 %v2302
    %v2311 = vpack.c.b16 %v2308, %v2307
    %v2312 = vpack.c.b16 %v2310, %v2309
    %v2314 = vsel %vm1989, %v2311, 0
    %v2317 = vsel %vm1989, %v2312, 0
    %2319 = vmatprep.subr.bf16.mxu0 0
    %2320 = vmatpush1.bf16.msra.mxu0 %v1973
    %2321 = vmatprep.subr.bf16.mxu0 0
    %2322 = vmatpush1.bf16.msra.mxu0 %v1998
    %2323 = vmatprep.subr.bf16.mxu0 0
    %2324 = vmatpush1.bf16.msra.mxu0 0
    %2325 = vmatprep.subr.bf16.mxu0 0
    %2326 = vmatpush1.bf16.msra.mxu0 0
    %2327 = vmatprep.subr.bf16.mxu0 0
    %2328 = vmatpush1.bf16.msra.mxu0 0
    %2329 = vmatprep.subr.bf16.mxu0 0
    %2330 = vmatpush1.bf16.msra.mxu0 0
    %2331 = vmatprep.subr.bf16.mxu0 0
    %2332 = vmatpush1.bf16.msra.mxu0 0
    %2333 = vmatprep.subr.bf16.mxu0 0
    %2334 = vmatpush1.bf16.msra.mxu0 0
    %2335 = vmatprep.subr.bf16.mxu0 0
    %2336 = vmatpush1.bf16.msra.mxu0 0
    %2337 = vmatprep.subr.bf16.mxu0 0
    %2338 = vmatpush1.bf16.msra.mxu0 0
    %2339 = vmatprep.subr.bf16.mxu0 0
    %2340 = vmatpush1.bf16.msra.mxu0 0
    %2341 = vmatprep.subr.bf16.mxu0 0
    %2342 = vmatpush1.bf16.msra.mxu0 0
    %2343 = vmatprep.subr.bf16.mxu0 0
    %2344 = vmatpush1.bf16.msra.mxu0 0
    %2345 = vmatprep.subr.bf16.mxu0 0
    %2346 = vmatpush1.bf16.msra.mxu0 0
    %2347 = vmatprep.subr.bf16.mxu0 0
    %2348 = vmatpush1.bf16.msra.mxu0 0
    %2349 = vmatprep.subr.bf16.mxu0 0
    %2350 = vmatpush1.bf16.msra.mxu0 0
    %2351 = vmatprep.mubr.bf16.mxu0 0
    %2352 = vmatmul.mubr.bf16.gmra.mrb[0].mxu0 %v2314
    %v2353 = vpop.f32.mrb[0].mxu0
    %v2354 = vadd.f32 0.0, %v2353
    %v2355 = vpop.f32.mrb[0].mxu0
    %v2356 = vpop.f32.mrb[0].mxu0
    %v2357 = vadd.f32 0.0, %v2356
    %v2358 = vpop.f32.mrb[0].mxu0
    %2359 = vmatprep.mubr.bf16.mxu0 0
    %2360 = vmatmul.mubr.bf16.gmra.mrb[0].mxu0 %v2317
    %v2361 = vpop.f32.mrb[0].mxu0
    %v2362 = vadd.f32 0.0, %v2361
    %v2363 = vpop.f32.mrb[0].mxu0
    %v2364 = vpop.f32.mrb[0].mxu0
    %v2365 = vadd.f32 0.0, %v2364
    %v2366 = vpop.f32.mrb[0].mxu0
    %2367 = vdwg.mxu0
    %v2368 = vpack.c.bf16 %v2357, %v2354
    %v2369 = vpack.c.bf16 %v2365, %v2362
    %s2370 = scalar_lea.vmem %s4, 64
    %v2371 = vld [vmem:[%s2370] sm:$0xff]
    %v2372 = vld [vmem:[%s2370 + $0x8] sm:$0xff]
    %v2373 = vld [vmem:[%s2370 + $0x10] sm:$0xff]
    %v2374 = vld [vmem:[%s2370 + $0x18] sm:$0x33]
    %v2379 = vunpack.c.l.b16 %v2371
    %v2380 = vunpack.c.h.b16 %v2371
    %v2381 = vunpack.c.l.b16 %v2372
    %v2382 = vunpack.c.h.b16 %v2372
    %v2383 = vunpack.c.l.b16 %v2373
    %v2384 = vunpack.c.h.b16 %v2373
    %v2385 = vunpack.c.l.b16 %v2374
    %v2386 = vunpack.c.h.b16 %v2374
    %v2387 = vpack.c.b16 %v2381, %v2379
    %v2388 = vpack.c.b16 %v2382, %v2380
    %v2389 = vpack.c.b16 %v2385, %v2383
    %v2390 = vpack.c.b16 %v2386, %v2384
    %v2394 = vsel %vm1989, %v2368, 0
    %v2397 = vsel %vm1989, %v2369, 0
    %v2400 = vsel %vm1996, %v2389, 0
    %v2403 = vsel %vm1996, %v2390, 0
    %2405 = vmatprep.subr.bf16.mxu0 %v2388
    %2406 = vmatpush1.bf16.msra.mxu0 %v2387
    %2407 = vmatprep.subr.bf16.mxu0 %v2403
    %2408 = vmatpush1.bf16.msra.mxu0 %v2400
    %2409 = vmatprep.subr.bf16.mxu0 0
    %2410 = vmatpush1.bf16.msra.mxu0 0
    %2411 = vmatprep.subr.bf16.mxu0 0
    %2412 = vmatpush1.bf16.msra.mxu0 0
    %2413 = vmatprep.subr.bf16.mxu0 0
    %2414 = vmatpush1.bf16.msra.mxu0 0
    %2415 = vmatprep.subr.bf16.mxu0 0
    %2416 = vmatpush1.bf16.msra.mxu0 0
    %2417 = vmatprep.subr.bf16.mxu0 0
    %2418 = vmatpush1.bf16.msra.mxu0 0
    %2419 = vmatprep.subr.bf16.mxu0 0
    %2420 = vmatpush1.bf16.msra.mxu0 0
    %2421 = vmatprep.subr.bf16.mxu0 0
    %2422 = vmatpush1.bf16.msra.mxu0 0
    %2423 = vmatprep.subr.bf16.mxu0 0
    %2424 = vmatpush1.bf16.msra.mxu0 0
    %2425 = vmatprep.subr.bf16.mxu0 0
    %2426 = vmatpush1.bf16.msra.mxu0 0
    %2427 = vmatprep.subr.bf16.mxu0 0
    %2428 = vmatpush1.bf16.msra.mxu0 0
    %2429 = vmatprep.subr.bf16.mxu0 0
    %2430 = vmatpush1.bf16.msra.mxu0 0
    %2431 = vmatprep.subr.bf16.mxu0 0
    %2432 = vmatpush1.bf16.msra.mxu0 0
    %2433 = vmatprep.subr.bf16.mxu0 0
    %2434 = vmatpush1.bf16.msra.mxu0 0
    %2435 = vmatprep.subr.bf16.mxu0 0
    %2436 = vmatpush1.bf16.msra.mxu0 0
    %2437 = vmatprep.mubr.bf16.mxu0 0
    %2438 = vmatmul.mubr.bf16.gmra.mrb[0].mxu0 %v2394
    %v2439 = vpop.f32.mrb[0].mxu0
    %v2440 = vadd.f32 0.0, %v2439
    %v2441 = vpop.f32.mrb[0].mxu0
    %v2442 = vadd.f32 0.0, %v2441
    %v2443 = vpop.f32.mrb[0].mxu0
    %v2444 = vadd.f32 0.0, %v2443
    %v2445 = vpop.f32.mrb[0].mxu0
    %v2446 = vadd.f32 0.0, %v2445
    %2447 = vmatprep.mubr.bf16.mxu0 0
    %2448 = vmatmul.mubr.bf16.gmra.mrb[0].mxu0 %v2397
    %v2449 = vpop.f32.mrb[0].mxu0
    %v2450 = vadd.f32 0.0, %v2449
    %v2451 = vpop.f32.mrb[0].mxu0
    %v2452 = vadd.f32 0.0, %v2451
    %v2453 = vpop.f32.mrb[0].mxu0
    %v2454 = vadd.f32 0.0, %v2453
    %v2455 = vpop.f32.mrb[0].mxu0
    %v2456 = vadd.f32 0.0, %v2455
    %2457 = vdwg.mxu0
    %v2458 = vadd.f32 %v2280, %v2440
    %v2459 = vadd.f32 %v2282, %v2442
    %v2460 = vadd.f32 %v2284, %v2444
    %v2461 = vadd.f32 %v2286, %v2446
    %v2462 = vadd.f32 %v2290, %v2450
    %v2463 = vadd.f32 %v2292, %v2452
    %v2464 = vadd.f32 %v2294, %v2454
    %v2465 = vadd.f32 %v2296, %v2456
    %s2466 = scalar_lea.vmem %s3, 48
    %v2467 = vld [vmem:[%s2466] sm:$0xf]
    %v2468 = vld [vmem:[%s2466 + $0x4] sm:$0xf]
    %v2469 = vld [vmem:[%s2466 + $0x8] sm:$0xf]
    %v2470 = vld [vmem:[%s2466 + $0xc] sm:$0x3]
    %v2475 = vunpack.c.l.b16 %v2467
    %v2476 = vunpack.c.l.b16 %v2468
    %v2477 = vunpack.c.l.b16 %v2469
    %v2478 = vunpack.c.l.b16 %v2470
    %v2479 = vpack.c.b16 %v2476, %v2475
    %v2480 = vpack.c.b16 %v2478, %v2477
    %v2482 = vsel %vm1989, %v2479, 0
    %v2485 = vsel %vm1989, %v2480, 0
    %2487 = vmatprep.subr.bf16.mxu0 0
    %2488 = vmatpush1.bf16.msra.mxu0 %v1973
    %2489 = vmatprep.subr.bf16.mxu0 0
    %2490 = vmatpush1.bf16.msra.mxu0 %v1998
    %2491 = vmatprep.subr.bf16.mxu0 0
    %2492 = vmatpush1.bf16.msra.mxu0 0
    %2493 = vmatprep.subr.bf16.mxu0 0
    %2494 = vmatpush1.bf16.msra.mxu0 0
    %2495 = vmatprep.subr.bf16.mxu0 0
    %2496 = vmatpush1.bf16.msra.mxu0 0
    %2497 = vmatprep.subr.bf16.mxu0 0
    %2498 = vmatpush1.bf16.msra.mxu0 0
    %2499 = vmatprep.subr.bf16.mxu0 0
    %2500 = vmatpush1.bf16.msra.mxu0 0
    %2501 = vmatprep.subr.bf16.mxu0 0
    %2502 = vmatpush1.bf16.msra.mxu0 0
    %2503 = vmatprep.subr.bf16.mxu0 0
    %2504 = vmatpush1.bf16.msra.mxu0 0
    %2505 = vmatprep.subr.bf16.mxu0 0
    %2506 = vmatpush1.bf16.msra.mxu0 0
    %2507 = vmatprep.subr.bf16.mxu0 0
    %2508 = vmatpush1.bf16.msra.mxu0 0
    %2509 = vmatprep.subr.bf16.mxu0 0
    %2510 = vmatpush1.bf16.msra.mxu0 0
    %2511 = vmatprep.subr.bf16.mxu0 0
    %2512 = vmatpush1.bf16.msra.mxu0 0
    %2513 = vmatprep.subr.bf16.mxu0 0
    %2514 = vmatpush1.bf16.msra.mxu0 0
    %2515 = vmatprep.subr.bf16.mxu0 0
    %2516 = vmatpush1.bf16.msra.mxu0 0
    %2517 = vmatprep.subr.bf16.mxu0 0
    %2518 = vmatpush1.bf16.msra.mxu0 0
    %2519 = vmatprep.mubr.bf16.mxu0 0
    %2520 = vmatmul.mubr.bf16.gmra.mrb[0].mxu0 %v2482
    %v2521 = vpop.f32.mrb[0].mxu0
    %v2522 = vadd.f32 0.0, %v2521
    %v2523 = vpop.f32.mrb[0].mxu0
    %v2524 = vpop.f32.mrb[0].mxu0
    %v2525 = vadd.f32 0.0, %v2524
    %v2526 = vpop.f32.mrb[0].mxu0
    %2527 = vmatprep.mubr.bf16.mxu0 0
    %2528 = vmatmul.mubr.bf16.gmra.mrb[0].mxu0 %v2485
    %v2529 = vpop.f32.mrb[0].mxu0
    %v2530 = vadd.f32 0.0, %v2529
    %v2531 = vpop.f32.mrb[0].mxu0
    %v2532 = vpop.f32.mrb[0].mxu0
    %v2533 = vadd.f32 0.0, %v2532
    %v2534 = vpop.f32.mrb[0].mxu0
    %2535 = vdwg.mxu0
    %v2536 = vpack.c.bf16 %v2525, %v2522
    %v2537 = vpack.c.bf16 %v2533, %v2530
    %s2538 = scalar_lea.vmem %s4, 96
    %v2539 = vld [vmem:[%s2538] sm:$0xff]
    %v2540 = vld [vmem:[%s2538 + $0x8] sm:$0xff]
    %v2541 = vld [vmem:[%s2538 + $0x10] sm:$0xff]
    %v2542 = vld [vmem:[%s2538 + $0x18] sm:$0x33]
    %v2547 = vunpack.c.l.b16 %v2539
    %v2548 = vunpack.c.h.b16 %v2539
    %v2549 = vunpack.c.l.b16 %v2540
    %v2550 = vunpack.c.h.b16 %v2540
    %v2551 = vunpack.c.l.b16 %v2541
    %v2552 = vunpack.c.h.b16 %v2541
    %v2553 = vunpack.c.l.b16 %v2542
    %v2554 = vunpack.c.h.b16 %v2542
    %v2555 = vpack.c.b16 %v2549, %v2547
    %v2556 = vpack.c.b16 %v2550, %v2548
    %v2557 = vpack.c.b16 %v2553, %v2551
    %v2558 = vpack.c.b16 %v2554, %v2552
    %v2562 = vsel %vm1989, %v2536, 0
    %v2565 = vsel %vm1989, %v2537, 0
    %v2568 = vsel %vm1996, %v2557, 0
    %v2571 = vsel %vm1996, %v2558, 0
    %2573 = vmatprep.subr.bf16.mxu0 %v2556
    %2574 = vmatpush1.bf16.msra.mxu0 %v2555
    %2575 = vmatprep.subr.bf16.mxu0 %v2571
    %2576 = vmatpush1.bf16.msra.mxu0 %v2568
    %2577 = vmatprep.subr.bf16.mxu0 0
    %2578 = vmatpush1.bf16.msra.mxu0 0
    %2579 = vmatprep.subr.bf16.mxu0 0
    %2580 = vmatpush1.bf16.msra.mxu0 0
    %2581 = vmatprep.subr.bf16.mxu0 0
    %2582 = vmatpush1.bf16.msra.mxu0 0
    %2583 = vmatprep.subr.bf16.mxu0 0
    %2584 = vmatpush1.bf16.msra.mxu0 0
    %2585 = vmatprep.subr.bf16.mxu0 0
    %2586 = vmatpush1.bf16.msra.mxu0 0
    %2587 = vmatprep.subr.bf16.mxu0 0
    %2588 = vmatpush1.bf16.msra.mxu0 0
    %2589 = vmatprep.subr.bf16.mxu0 0
    %2590 = vmatpush1.bf16.msra.mxu0 0
    %2591 = vmatprep.subr.bf16.mxu0 0
    %2592 = vmatpush1.bf16.msra.mxu0 0
    %2593 = vmatprep.subr.bf16.mxu0 0
    %2594 = vmatpush1.bf16.msra.mxu0 0
    %2595 = vmatprep.subr.bf16.mxu0 0
    %2596 = vmatpush1.bf16.msra.mxu0 0
    %2597 = vmatprep.subr.bf16.mxu0 0
    %2598 = vmatpush1.bf16.msra.mxu0 0
    %2599 = vmatprep.subr.bf16.mxu0 0
    %2600 = vmatpush1.bf16.msra.mxu0 0
    %2601 = vmatprep.subr.bf16.mxu0 0
    %2602 = vmatpush1.bf16.msra.mxu0 0
    %2603 = vmatprep.subr.bf16.mxu0 0
    %2604 = vmatpush1.bf16.msra.mxu0 0
    %2605 = vmatprep.mubr.bf16.mxu0 0
    %2606 = vmatmul.mubr.bf16.gmra.mrb[0].mxu0 %v2562
    %v2607 = vpop.f32.mrb[0].mxu0
    %v2608 = vadd.f32 0.0, %v2607
    %v2609 = vpop.f32.mrb[0].mxu0
    %v2610 = vadd.f32 0.0, %v2609
    %v2611 = vpop.f32.mrb[0].mxu0
    %v2612 = vadd.f32 0.0, %v2611
    %v2613 = vpop.f32.mrb[0].mxu0
    %v2614 = vadd.f32 0.0, %v2613
    %2615 = vmatprep.mubr.bf16.mxu0 0
    %2616 = vmatmul.mubr.bf16.gmra.mrb[0].mxu0 %v2565
    %v2617 = vpop.f32.mrb[0].mxu0
    %v2618 = vadd.f32 0.0, %v2617
    %v2619 = vpop.f32.mrb[0].mxu0
    %v2620 = vadd.f32 0.0, %v2619
    %v2621 = vpop.f32.mrb[0].mxu0
    %v2622 = vadd.f32 0.0, %v2621
    %v2623 = vpop.f32.mrb[0].mxu0
    %v2624 = vadd.f32 0.0, %v2623
    %2625 = vdwg.mxu0
    %v2626 = vadd.f32 %v2458, %v2608
    %v2627 = vadd.f32 %v2459, %v2610
    %v2628 = vadd.f32 %v2460, %v2612
    %v2629 = vadd.f32 %v2461, %v2614
    %v2630 = vadd.f32 %v2462, %v2618
    %v2631 = vadd.f32 %v2463, %v2620
    %v2632 = vadd.f32 %v2464, %v2622
    %v2633 = vadd.f32 %v2465, %v2624
    %s2634 = scalar_lea.vmem %s3, 64
    %v2635 = vld [vmem:[%s2634] sm:$0xf]
    %v2636 = vld [vmem:[%s2634 + $0x4] sm:$0xf]
    %v2637 = vld [vmem:[%s2634 + $0x8] sm:$0xf]
    %v2638 = vld [vmem:[%s2634 + $0xc] sm:$0x3]
    %v2643 = vunpack.c.l.b16 %v2635
    %v2644 = vunpack.c.l.b16 %v2636
    %v2645 = vunpack.c.l.b16 %v2637
    %v2646 = vunpack.c.l.b16 %v2638
    %v2647 = vpack.c.b16 %v2644, %v2643
    %v2648 = vpack.c.b16 %v2646, %v2645
    %v2650 = vsel %vm1989, %v2647, 0
    %v2653 = vsel %vm1989, %v2648, 0
    %2655 = vmatprep.subr.bf16.mxu0 0
    %2656 = vmatpush1.bf16.msra.mxu0 %v1973
    %2657 = vmatprep.subr.bf16.mxu0 0
    %2658 = vmatpush1.bf16.msra.mxu0 %v1998
    %2659 = vmatprep.subr.bf16.mxu0 0
    %2660 = vmatpush1.bf16.msra.mxu0 0
    %2661 = vmatprep.subr.bf16.mxu0 0
    %2662 = vmatpush1.bf16.msra.mxu0 0
    %2663 = vmatprep.subr.bf16.mxu0 0
    %2664 = vmatpush1.bf16.msra.mxu0 0
    %2665 = vmatprep.subr.bf16.mxu0 0
    %2666 = vmatpush1.bf16.msra.mxu0 0
    %2667 = vmatprep.subr.bf16.mxu0 0
    %2668 = vmatpush1.bf16.msra.mxu0 0
    %2669 = vmatprep.subr.bf16.mxu0 0
    %2670 = vmatpush1.bf16.msra.mxu0 0
    %2671 = vmatprep.subr.bf16.mxu0 0
    %2672 = vmatpush1.bf16.msra.mxu0 0
    %2673 = vmatprep.subr.bf16.mxu0 0
    %2674 = vmatpush1.bf16.msra.mxu0 0
    %2675 = vmatprep.subr.bf16.mxu0 0
    %2676 = vmatpush1.bf16.msra.mxu0 0
    %2677 = vmatprep.subr.bf16.mxu0 0
    %2678 = vmatpush1.bf16.msra.mxu0 0
    %2679 = vmatprep.subr.bf16.mxu0 0
    %2680 = vmatpush1.bf16.msra.mxu0 0
    %2681 = vmatprep.subr.bf16.mxu0 0
    %2682 = vmatpush1.bf16.msra.mxu0 0
    %2683 = vmatprep.subr.bf16.mxu0 0
    %2684 = vmatpush1.bf16.msra.mxu0 0
    %2685 = vmatprep.subr.bf16.mxu0 0
    %2686 = vmatpush1.bf16.msra.mxu0 0
    %2687 = vmatprep.mubr.bf16.mxu0 0
    %2688 = vmatmul.mubr.bf16.gmra.mrb[0].mxu0 %v2650
    %v2689 = vpop.f32.mrb[0].mxu0
    %v2690 = vadd.f32 0.0, %v2689
    %v2691 = vpop.f32.mrb[0].mxu0
    %v2692 = vpop.f32.mrb[0].mxu0
    %v2693 = vadd.f32 0.0, %v2692
    %v2694 = vpop.f32.mrb[0].mxu0
    %2695 = vmatprep.mubr.bf16.mxu0 0
    %2696 = vmatmul.mubr.bf16.gmra.mrb[0].mxu0 %v2653
    %v2697 = vpop.f32.mrb[0].mxu0
    %v2698 = vadd.f32 0.0, %v2697
    %v2699 = vpop.f32.mrb[0].mxu0
    %v2700 = vpop.f32.mrb[0].mxu0
    %v2701 = vadd.f32 0.0, %v2700
    %v2702 = vpop.f32.mrb[0].mxu0
    %2703 = vdwg.mxu0
    %v2704 = vpack.c.bf16 %v2693, %v2690
    %v2705 = vpack.c.bf16 %v2701, %v2698
    %s2706 = scalar_lea.vmem %s4, 128
    %v2707 = vld [vmem:[%s2706] sm:$0xff]
    %v2708 = vld [vmem:[%s2706 + $0x8] sm:$0xff]
    %v2709 = vld [vmem:[%s2706 + $0x10] sm:$0xff]
    %v2710 = vld [vmem:[%s2706 + $0x18] sm:$0x33]
    %v2715 = vunpack.c.l.b16 %v2707
    %v2716 = vunpack.c.h.b16 %v2707
    %v2717 = vunpack.c.l.b16 %v2708
    %v2718 = vunpack.c.h.b16 %v2708
    %v2719 = vunpack.c.l.b16 %v2709
    %v2720 = vunpack.c.h.b16 %v2709
    %v2721 = vunpack.c.l.b16 %v2710
    %v2722 = vunpack.c.h.b16 %v2710
    %v2723 = vpack.c.b16 %v2717, %v2715
    %v2724 = vpack.c.b16 %v2718, %v2716
    %v2725 = vpack.c.b16 %v2721, %v2719
    %v2726 = vpack.c.b16 %v2722, %v2720
    %v2730 = vsel %vm1989, %v2704, 0
    %v2733 = vsel %vm1989, %v2705, 0
    %v2736 = vsel %vm1996, %v2725, 0
    %v2739 = vsel %vm1996, %v2726, 0
    %2741 = vmatprep.subr.bf16.mxu0 %v2724
    %2742 = vmatpush1.bf16.msra.mxu0 %v2723
    %2743 = vmatprep.subr.bf16.mxu0 %v2739
    %2744 = vmatpush1.bf16.msra.mxu0 %v2736
    %2745 = vmatprep.subr.bf16.mxu0 0
    %2746 = vmatpush1.bf16.msra.mxu0 0
    %2747 = vmatprep.subr.bf16.mxu0 0
    %2748 = vmatpush1.bf16.msra.mxu0 0
    %2749 = vmatprep.subr.bf16.mxu0 0
    %2750 = vmatpush1.bf16.msra.mxu0 0
    %2751 = vmatprep.subr.bf16.mxu0 0
    %2752 = vmatpush1.bf16.msra.mxu0 0
    %2753 = vmatprep.subr.bf16.mxu0 0
    %2754 = vmatpush1.bf16.msra.mxu0 0
    %2755 = vmatprep.subr.bf16.mxu0 0
    %2756 = vmatpush1.bf16.msra.mxu0 0
    %2757 = vmatprep.subr.bf16.mxu0 0
    %2758 = vmatpush1.bf16.msra.mxu0 0
    %2759 = vmatprep.subr.bf16.mxu0 0
    %2760 = vmatpush1.bf16.msra.mxu0 0
    %2761 = vmatprep.subr.bf16.mxu0 0
    %2762 = vmatpush1.bf16.msra.mxu0 0
    %2763 = vmatprep.subr.bf16.mxu0 0
    %2764 = vmatpush1.bf16.msra.mxu0 0
    %2765 = vmatprep.subr.bf16.mxu0 0
    %2766 = vmatpush1.bf16.msra.mxu0 0
    %2767 = vmatprep.subr.bf16.mxu0 0
    %2768 = vmatpush1.bf16.msra.mxu0 0
    %2769 = vmatprep.subr.bf16.mxu0 0
    %2770 = vmatpush1.bf16.msra.mxu0 0
    %2771 = vmatprep.subr.bf16.mxu0 0
    %2772 = vmatpush1.bf16.msra.mxu0 0
    %2773 = vmatprep.mubr.bf16.mxu0 0
    %2774 = vmatmul.mubr.bf16.gmra.mrb[0].mxu0 %v2730
    %v2775 = vpop.f32.mrb[0].mxu0
    %v2776 = vadd.f32 0.0, %v2775
    %v2777 = vpop.f32.mrb[0].mxu0
    %v2778 = vadd.f32 0.0, %v2777
    %v2779 = vpop.f32.mrb[0].mxu0
    %v2780 = vadd.f32 0.0, %v2779
    %v2781 = vpop.f32.mrb[0].mxu0
    %v2782 = vadd.f32 0.0, %v2781
    %2783 = vmatprep.mubr.bf16.mxu0 0
    %2784 = vmatmul.mubr.bf16.gmra.mrb[0].mxu0 %v2733
    %v2785 = vpop.f32.mrb[0].mxu0
    %v2786 = vadd.f32 0.0, %v2785
    %v2787 = vpop.f32.mrb[0].mxu0
    %v2788 = vadd.f32 0.0, %v2787
    %v2789 = vpop.f32.mrb[0].mxu0
    %v2790 = vadd.f32 0.0, %v2789
    %v2791 = vpop.f32.mrb[0].mxu0
    %v2792 = vadd.f32 0.0, %v2791
    %2793 = vdwg.mxu0
    %v2794 = vadd.f32 %v2626, %v2776
    %v2795 = vadd.f32 %v2627, %v2778
    %v2796 = vadd.f32 %v2628, %v2780
    %v2797 = vadd.f32 %v2629, %v2782
    %v2798 = vadd.f32 %v2630, %v2786
    %v2799 = vadd.f32 %v2631, %v2788
    %v2800 = vadd.f32 %v2632, %v2790
    %v2801 = vadd.f32 %v2633, %v2792
    %v2803 = vlaneseq
    %v2804 = vshrl.u32 %v2803, 7
    %v2805 = vsub.s32 0, %v2804
    %v2806 = vrot.slane %v1968, %v2805
    %v2807 = vlaneseq
    %v2808 = vshrl.u32 %v2807, 7
    %v2809 = vsub.s32 1, %v2808
    %v2810 = vrot.slane %v1968, %v2809
    %v2813 = vadd.f32 %v2794, %v2806
    %v2814 = vadd.f32 %v2795, %v2810
    %v2815 = vadd.f32 %v2796, %v2806
    %v2816 = vadd.f32 %v2797, %v2810
    %v2817 = vadd.f32 %v2798, %v2806
    %v2818 = vadd.f32 %v2799, %v2810
    %v2819 = vadd.f32 %v2800, %v2806
    %v2820 = vadd.f32 %v2801, %v2810
    %v2821 = vadd.f32 %v2813, %v2815
    %v2822 = vadd.f32 %v2821, %v2817
    %v2823 = vsel %vm580, %v2819, 0.0
    %v2824 = vadd.f32 %v2822, %v2823
    %v2825 = vrot.slane %v2824, 4
    %v2826 = vadd.f32 %v2824, %v2825
    %v2827 = vrot.slane %v2826, 2
    %v2828 = vadd.f32 %v2826, %v2827
    %v2829 = vrot.slane %v2828, 1
    %v2830 = vadd.f32 %v2828, %v2829
    %vm2831 = vcmask 326656
    %v2832 = vsel %vm2831, %v2814, 0.0
    %v2833 = vsel %vm2831, %v2816, 0.0
    %v2834 = vadd.f32 %v2832, %v2833
    %v2835 = vsel %vm2831, %v2818, 0.0
    %v2836 = vadd.f32 %v2834, %v2835
    %vm2837 = vcmask 322560
    %v2838 = vsel %vm2837, %v2820, 0.0
    %v2839 = vadd.f32 %v2836, %v2838
    %v2840 = vrot.slane %v2839, 4
    %v2841 = vadd.f32 %v2839, %v2840
    %v2842 = vrot.slane %v2841, 2
    %v2843 = vadd.f32 %v2841, %v2842
    %v2844 = vrot.slane %v2843, 1
    %v2845 = vadd.f32 %v2843, %v2844
    %v2846 = vmul.f32 %v2813, %v2813
    %v2847 = vmul.f32 %v2814, %v2814
    %v2848 = vmul.f32 %v2815, %v2815
    %v2849 = vmul.f32 %v2816, %v2816
    %v2850 = vmul.f32 %v2817, %v2817
    %v2851 = vmul.f32 %v2818, %v2818
    %v2852 = vmul.f32 %v2819, %v2819
    %v2853 = vmul.f32 %v2820, %v2820
    %v2854 = vadd.f32 %v2846, %v2848
    %v2855 = vadd.f32 %v2854, %v2850
    %v2856 = vsel %vm580, %v2852, 0.0
    %v2857 = vadd.f32 %v2855, %v2856
    %v2858 = vrot.slane %v2857, 4
    %v2859 = vadd.f32 %v2857, %v2858
    %v2860 = vrot.slane %v2859, 2
    %v2861 = vadd.f32 %v2859, %v2860
    %v2862 = vrot.slane %v2861, 1
    %v2863 = vadd.f32 %v2861, %v2862
    %v2864 = vsel %vm2831, %v2847, 0.0
    %v2865 = vsel %vm2831, %v2849, 0.0
    %v2866 = vadd.f32 %v2864, %v2865
    %v2867 = vsel %vm2831, %v2851, 0.0
    %v2868 = vadd.f32 %v2866, %v2867
    %v2869 = vsel %vm2837, %v2853, 0.0
    %v2870 = vadd.f32 %v2868, %v2869
    %v2871 = vrot.slane %v2870, 4
    %v2872 = vadd.f32 %v2870, %v2871
    %v2873 = vrot.slane %v2872, 2
    %v2874 = vadd.f32 %v2872, %v2873
    %v2875 = vrot.slane %v2874, 1
    %v2876 = vadd.f32 %v2874, %v2875
    %v2877 = vld [vmem:[%s5] sm:$0xff]
    %v2878 = vld [vmem:[%s5 + $0x8] sm:$0xff]
    %v2879 = vld [vmem:[%s5 + $0x10] sm:$0xff]
    %v2880 = vld [vmem:[%s5 + $0x18] sm:$0xff]
    %v2881 = vld [vmem:[%s5 + $0x20] sm:$0xff]
    %v2882 = vld [vmem:[%s5 + $0x28] sm:$0xff]
    %v2883 = vld [vmem:[%s5 + $0x30] sm:$0xff]
    %v2884 = vld [vmem:[%s5 + $0x38] sm:$0xff]
    %v2885 = vld [vmem:[%s5 + $0x40] sm:$0xff]
    %v2886 = vld [vmem:[%s5 + $0x48] sm:$0xff]
    %v2887 = vld [vmem:[%s5 + $0x50] sm:$0xff]
    %v2888 = vld [vmem:[%s5 + $0x58] sm:$0xff]
    %v2889 = vld [vmem:[%s5 + $0x60] sm:$0xff]
    %v2890 = vld [vmem:[%s5 + $0x68] sm:$0xff]
    %v2891 = vld [vmem:[%s5 + $0x70] sm:$0xff]
    %v2892 = vld [vmem:[%s5 + $0x78] sm:$0xff]
    %v2893 = vld [vmem:[%s5 + $0x80] sm:$0xff]
    %v2894 = vld [vmem:[%s5 + $0x88] sm:$0xff]
    %v2895 = vld [vmem:[%s5 + $0x90] sm:$0xff]
    %v2896 = vld [vmem:[%s5 + $0x98] sm:$0xff]
    %v2897 = vld [vmem:[%s5 + $0xa0] sm:$0xff]
    %v2898 = vld [vmem:[%s5 + $0xa8] sm:$0xff]
    %v2899 = vld [vmem:[%s5 + $0xb0] sm:$0xff]
    %v2900 = vld [vmem:[%s5 + $0xb8] sm:$0xff]
    %v2901 = vld [vmem:[%s5 + $0xc0] sm:$0xff]
    %v2902 = vld [vmem:[%s5 + $0xc8] sm:$0xff]
    %v2903 = vld [vmem:[%s5 + $0xd0] sm:$0xff]
    %v2904 = vld [vmem:[%s5 + $0xd8] sm:$0xff]
    %v2905 = vld [vmem:[%s5 + $0xe0] sm:$0xff]
    %v2906 = vld [vmem:[%s5 + $0xe8] sm:$0xff]
    %v2907 = vld [vmem:[%s5 + $0xf0] sm:$0xff]
    %v2908 = vld [vmem:[%s5 + $0xf8] sm:$0xff]
    %v2909 = vld [vmem:[%s5 + $0x100] sm:$0xff]
    %v2910 = vld [vmem:[%s5 + $0x108] sm:$0xff]
    %v2911 = vld [vmem:[%s5 + $0x110] sm:$0xff]
    %v2912 = vld [vmem:[%s5 + $0x118] sm:$0xff]
    %v2913 = vld [vmem:[%s5 + $0x120] sm:$0xff]
    %v2914 = vld [vmem:[%s5 + $0x128] sm:$0xff]
    %v2915 = vld [vmem:[%s5 + $0x130] sm:$0xff]
    %v2916 = vld [vmem:[%s5 + $0x138] sm:$0xff]
    %v2917 = vld [vmem:[%s5 + $0x140] sm:$0xff]
    %v2918 = vld [vmem:[%s5 + $0x148] sm:$0xff]
    %v2920 = vsel %vm2831, %v2845, 0
    %2922 = vmatprep.subr.mxu0 %v2878
    %2923 = vmatpush1.msra.mxu0 %v2877
    %2924 = vmatprep.subr.mxu0 %v2880
    %2925 = vmatpush1.msra.mxu0 %v2879
    %2926 = vmatprep.subr.mxu0 %v2882
    %2927 = vmatpush1.msra.mxu0 %v2881
    %2928 = vmatprep.subr.mxu0 %v2884
    %2929 = vmatpush1.msra.mxu0 %v2883
    %2930 = vmatprep.subr.mxu0 %v2886
    %2931 = vmatpush1.msra.mxu0 %v2885
    %2932 = vmatprep.subr.mxu0 %v2888
    %2933 = vmatpush1.msra.mxu0 %v2887
    %2934 = vmatprep.subr.mxu0 %v2890
    %2935 = vmatpush1.msra.mxu0 %v2889
    %2936 = vmatprep.subr.mxu0 %v2892
    %2937 = vmatpush1.msra.mxu0 %v2891
    %2938 = vmatprep.subr.mxu0 %v2894
    %2939 = vmatpush1.msra.mxu0 %v2893
    %2940 = vmatprep.subr.mxu0 %v2896
    %2941 = vmatpush1.msra.mxu0 %v2895
    %2942 = vmatprep.subr.mxu0 %v2898
    %2943 = vmatpush1.msra.mxu0 %v2897
    %2944 = vmatprep.subr.mxu0 %v2900
    %2945 = vmatpush1.msra.mxu0 %v2899
    %2946 = vmatprep.subr.mxu0 %v2902
    %2947 = vmatpush1.msra.mxu0 %v2901
    %2948 = vmatprep.subr.mxu0 %v2904
    %2949 = vmatpush1.msra.mxu0 %v2903
    %2950 = vmatprep.subr.mxu0 %v2906
    %2951 = vmatpush1.msra.mxu0 %v2905
    %2952 = vmatprep.subr.mxu0 %v2908
    %2953 = vmatpush1.msra.mxu0 %v2907
    %2954 = vmatprep.subr.mxu0 %v2910
    %2955 = vmatpush1.msra.mxu0 %v2909
    %2956 = vmatprep.subr.mxu0 %v2912
    %2957 = vmatpush1.msra.mxu0 %v2911
    %2958 = vmatprep.subr.mxu0 %v2914
    %2959 = vmatpush1.msra.mxu0 %v2913
    %2960 = vmatprep.subr.mxu0 %v2916
    %2961 = vmatpush1.msra.mxu0 %v2915
    %2962 = vmatprep.subr.mxu0 %v2918
    %2963 = vmatpush1.msra.mxu0 %v2917
    %2964 = vmatprep.subr.mxu0 0.0
    %2965 = vmatpush1.msra.mxu0 0.0
    %2966 = vmatprep.subr.mxu0 0.0
    %2967 = vmatpush1.msra.mxu0 0.0
    %2968 = vmatprep.subr.mxu0 0.0
    %2969 = vmatpush1.msra.mxu0 0.0
    %2970 = vmatprep.subr.mxu0 0.0
    %2971 = vmatpush1.msra.mxu0 0.0
    %2972 = vmatprep.subr.mxu0 0.0
    %2973 = vmatpush1.msra.mxu0 0.0
    %2974 = vmatprep.subr.mxu0 0.0
    %2975 = vmatpush1.msra.mxu0 0.0
    %2976 = vmatprep.subr.mxu0 0.0
    %2977 = vmatpush1.msra.mxu0 0.0
    %2978 = vmatprep.subr.mxu0 0.0
    %2979 = vmatpush1.msra.mxu0 0.0
    %2980 = vmatprep.subr.mxu0 0.0
    %2981 = vmatpush1.msra.mxu0 0.0
    %2982 = vmatprep.subr.mxu0 0.0
    %2983 = vmatpush1.msra.mxu0 0.0
    %2984 = vmatprep.subr.mxu0 0.0
    %2985 = vmatpush1.msra.mxu0 0.0
    %2986 = vmatprep.mubr.f32.mxu0 %v2920
    %2987 = vmatmul.mubr.f32.gmra.mrb[0].mxu0 %v2830
    %v2988 = vpop.f32.mrb[0].mxu0
    %v2989 = vadd.f32 0.0, %v2988
    %v2990 = vpop.f32.mrb[0].mxu0
    %v2991 = vadd.f32 0.0, %v2990
    %2992 = vdwg.mxu0
    %v2994 = vsel %vm2831, %v2876, 0
    %2996 = vmatprep.subr.mxu0 %v2878
    %2997 = vmatpush1.msra.mxu0 %v2877
    %2998 = vmatprep.subr.mxu0 %v2880
    %2999 = vmatpush1.msra.mxu0 %v2879
    %3000 = vmatprep.subr.mxu0 %v2882
    %3001 = vmatpush1.msra.mxu0 %v2881
    %3002 = vmatprep.subr.mxu0 %v2884
    %3003 = vmatpush1.msra.mxu0 %v2883
    %3004 = vmatprep.subr.mxu0 %v2886
    %3005 = vmatpush1.msra.mxu0 %v2885
    %3006 = vmatprep.subr.mxu0 %v2888
    %3007 = vmatpush1.msra.mxu0 %v2887
    %3008 = vmatprep.subr.mxu0 %v2890
    %3009 = vmatpush1.msra.mxu0 %v2889
    %3010 = vmatprep.subr.mxu0 %v2892
    %3011 = vmatpush1.msra.mxu0 %v2891
    %3012 = vmatprep.subr.mxu0 %v2894
    %3013 = vmatpush1.msra.mxu0 %v2893
    %3014 = vmatprep.subr.mxu0 %v2896
    %3015 = vmatpush1.msra.mxu0 %v2895
    %3016 = vmatprep.subr.mxu0 %v2898
    %3017 = vmatpush1.msra.mxu0 %v2897
    %3018 = vmatprep.subr.mxu0 %v2900
    %3019 = vmatpush1.msra.mxu0 %v2899
    %3020 = vmatprep.subr.mxu0 %v2902
    %3021 = vmatpush1.msra.mxu0 %v2901
    %3022 = vmatprep.subr.mxu0 %v2904
    %3023 = vmatpush1.msra.mxu0 %v2903
    %3024 = vmatprep.subr.mxu0 %v2906
    %3025 = vmatpush1.msra.mxu0 %v2905
    %3026 = vmatprep.subr.mxu0 %v2908
    %3027 = vmatpush1.msra.mxu0 %v2907
    %3028 = vmatprep.subr.mxu0 %v2910
    %3029 = vmatpush1.msra.mxu0 %v2909
    %3030 = vmatprep.subr.mxu0 %v2912
    %3031 = vmatpush1.msra.mxu0 %v2911
    %3032 = vmatprep.subr.mxu0 %v2914
    %3033 = vmatpush1.msra.mxu0 %v2913
    %3034 = vmatprep.subr.mxu0 %v2916
    %3035 = vmatpush1.msra.mxu0 %v2915
    %3036 = vmatprep.subr.mxu0 %v2918
    %3037 = vmatpush1.msra.mxu0 %v2917
    %3038 = vmatprep.subr.mxu0 0.0
    %3039 = vmatpush1.msra.mxu0 0.0
    %3040 = vmatprep.subr.mxu0 0.0
    %3041 = vmatpush1.msra.mxu0 0.0
    %3042 = vmatprep.subr.mxu0 0.0
    %3043 = vmatpush1.msra.mxu0 0.0
    %3044 = vmatprep.subr.mxu0 0.0
    %3045 = vmatpush1.msra.mxu0 0.0
    %3046 = vmatprep.subr.mxu0 0.0
    %3047 = vmatpush1.msra.mxu0 0.0
    %3048 = vmatprep.subr.mxu0 0.0
    %3049 = vmatpush1.msra.mxu0 0.0
    %3050 = vmatprep.subr.mxu0 0.0
    %3051 = vmatpush1.msra.mxu0 0.0
    %3052 = vmatprep.subr.mxu0 0.0
    %3053 = vmatpush1.msra.mxu0 0.0
    %3054 = vmatprep.subr.mxu0 0.0
    %3055 = vmatpush1.msra.mxu0 0.0
    %3056 = vmatprep.subr.mxu0 0.0
    %3057 = vmatpush1.msra.mxu0 0.0
    %3058 = vmatprep.subr.mxu0 0.0
    %3059 = vmatpush1.msra.mxu0 0.0
    %3060 = vmatprep.mubr.f32.mxu0 %v2994
    %3061 = vmatmul.mubr.f32.gmra.mrb[0].mxu0 %v2863
    %v3062 = vpop.f32.mrb[0].mxu0
    %v3063 = vadd.f32 0.0, %v3062
    %v3064 = vpop.f32.mrb[0].mxu0
    %v3065 = vadd.f32 0.0, %v3064
    %3066 = vdwg.mxu0
    %v3067 = vmul.f32 %v2989, 0.0012755102
    %v3068 = vmul.f32 %v2991, 0.0012755102
    %v3069 = vmul.f32 %v3063, 0.0012755102
    %v3070 = vmul.f32 %v3065, 0.0012755102
    %v3071 = vmul.f32 %v3067, %v3067
    %v3072 = vmul.f32 %v3068, %v3068
    %v3073 = vsub.f32 %v3069, %v3071
    %v3074 = vsub.f32 %v3070, %v3072
    %v3075 = vadd.f32 %v3073, 1e-05
    %v3076 = vadd.f32 %v3074, 1e-05
    %v3077 = vrsqrt.pop %v3075
    %v3078 = vrsqrt.pop %v3076
    %v3081 = vcombine.low %v3077, %v3078
    %v3083 = vunpack.c.l.s4 1966171168
    %v3084 = vunpack.c.0.s8 %v3083
    %v3085 = vlaneseq
    %v3086 = vshrl.u32 %v3085, 7
    %v3087 = vsub.s32 %v3084, %v3086
    %v3088 = vrot.slane %v3081, %v3087
    %v3090 = vunpack.c.l.s4 1966171168
    %v3091 = vunpack.c.0.s8 %v3090
    %v3092 = vlaneseq
    %v3093 = vshrl.u32 %v3092, 7
    %v3094 = vsub.s32 %v3091, %v3093
    %v3095 = vrot.slane %v3088, %v3094
    %v3097 = vmul.f32 %v1970, %v3095
    %v3099 = vlaneseq
    %v3100 = vshrl.u32 %v3099, 7
    %v3101 = vsub.s32 0, %v3100
    %v3102 = vrot.slane %v3097, %v3101
    %v3103 = vlaneseq
    %v3104 = vshrl.u32 %v3103, 7
    %v3105 = vsub.s32 1, %v3104
    %v3106 = vrot.slane %v3097, %v3105
    %v3109 = vmul.f32 %v3067, %v3102
    %v3110 = vmul.f32 %v3068, %v3106
    %v3113 = vcombine.low %v3109, %v3110
    %v3115 = vunpack.c.l.s4 1966171168
    %v3116 = vunpack.c.0.s8 %v3115
    %v3117 = vlaneseq
    %v3118 = vshrl.u32 %v3117, 7
    %v3119 = vsub.s32 %v3116, %v3118
    %v3120 = vrot.slane %v3113, %v3119
    %v3122 = vunpack.c.l.s4 1966171168
    %v3123 = vunpack.c.0.s8 %v3122
    %v3124 = vlaneseq
    %v3125 = vshrl.u32 %v3124, 7
    %v3126 = vsub.s32 %v3123, %v3125
    %v3127 = vrot.slane %v3120, %v3126
    %v3129 = vsub.f32 %v1972, %v3127
    %v3130 = vmul.f32 %v2813, %v3102
    %v3131 = vmul.f32 %v2814, %v3106
    %v3132 = vmul.f32 %v2815, %v3102
    %v3133 = vmul.f32 %v2816, %v3106
    %v3134 = vmul.f32 %v2817, %v3102
    %v3135 = vmul.f32 %v2818, %v3106
    %v3136 = vmul.f32 %v2819, %v3102
    %v3137 = vmul.f32 %v2820, %v3106
    %v3139 = vlaneseq
    %v3140 = vshrl.u32 %v3139, 7
    %v3141 = vsub.s32 0, %v3140
    %v3142 = vrot.slane %v3129, %v3141
    %v3143 = vlaneseq
    %v3144 = vshrl.u32 %v3143, 7
    %v3145 = vsub.s32 1, %v3144
    %v3146 = vrot.slane %v3129, %v3145
    %v3149 = vadd.f32 %v3130, %v3142
    %v3150 = vadd.f32 %v3131, %v3146
    %v3151 = vadd.f32 %v3132, %v3142
    %v3152 = vadd.f32 %v3133, %v3146
    %v3153 = vadd.f32 %v3134, %v3142
    %v3154 = vadd.f32 %v3135, %v3146
    %v3155 = vadd.f32 %v3136, %v3142
    %v3156 = vadd.f32 %v3137, %v3146
    %v3157 = vmax.f32 %v3149, 0.0
    %v3158 = vmax.f32 %v3150, 0.0
    %v3159 = vmax.f32 %v3151, 0.0
    %v3160 = vmax.f32 %v3152, 0.0
    %v3161 = vmax.f32 %v3153, 0.0
    %v3162 = vmax.f32 %v3154, 0.0
    %v3163 = vmax.f32 %v3155, 0.0
    %v3164 = vmax.f32 %v3156, 0.0
    %v3165 = vpack.c.bf16 %v3159, %v3157
    %v3166 = vpack.c.bf16 %v3160, %v3158
    %v3167 = vpack.c.bf16 %v3163, %v3161
    %v3168 = vpack.c.bf16 %v3164, %v3162
    %v3169 = vld [vmem:[%s6] sm:$0xf]
    %v3170 = vld [vmem:[%s6 + $0x4] sm:$0xf]
    %v3171 = vld [vmem:[%s6 + $0x8] sm:$0xf]
    %v3172 = vld [vmem:[%s6 + $0xc] sm:$0xf]
    %v3173 = vld [vmem:[%s6 + $0x10] sm:$0xf]
    %v3174 = vld [vmem:[%s6 + $0x14] sm:$0xf]
    %v3175 = vld [vmem:[%s6 + $0x18] sm:$0xf]
    %v3176 = vld [vmem:[%s6 + $0x1c] sm:$0xf]
    %v3177 = vld [vmem:[%s6 + $0x20] sm:$0xf]
    %v3178 = vld [vmem:[%s6 + $0x24] sm:$0xf]
    %v3179 = vld [vmem:[%s6 + $0x28] sm:$0xf]
    %v3180 = vld [vmem:[%s6 + $0x2c] sm:$0xf]
    %v3181 = vld [vmem:[%s6 + $0x30] sm:$0xf]
    %v3182 = vld [vmem:[%s6 + $0x34] sm:$0xf]
    %v3183 = vld [vmem:[%s6 + $0x38] sm:$0xf]
    %v3184 = vld [vmem:[%s6 + $0x3c] sm:$0xf]
    %v3185 = vld [vmem:[%s6 + $0x40] sm:$0xf]
    %v3186 = vld [vmem:[%s6 + $0x44] sm:$0xf]
    %v3187 = vld [vmem:[%s6 + $0x48] sm:$0xf]
    %v3188 = vld [vmem:[%s6 + $0x4c] sm:$0xf]
    %v3189 = vld [vmem:[%s6 + $0x50] sm:$0xf]
    %v3211 = vunpack.c.l.b16 %v3169
    %v3212 = vunpack.c.l.b16 %v3170
    %v3213 = vunpack.c.l.b16 %v3171
    %v3214 = vunpack.c.l.b16 %v3172
    %v3215 = vunpack.c.l.b16 %v3173
    %v3216 = vunpack.c.l.b16 %v3174
    %v3217 = vunpack.c.l.b16 %v3175
    %v3218 = vunpack.c.l.b16 %v3176
    %v3219 = vunpack.c.l.b16 %v3177
    %v3220 = vunpack.c.l.b16 %v3178
    %v3221 = vunpack.c.l.b16 %v3179
    %v3222 = vunpack.c.l.b16 %v3180
    %v3223 = vunpack.c.l.b16 %v3181
    %v3224 = vunpack.c.l.b16 %v3182
    %v3225 = vunpack.c.l.b16 %v3183
    %v3226 = vunpack.c.l.b16 %v3184
    %v3227 = vunpack.c.l.b16 %v3185
    %v3228 = vunpack.c.l.b16 %v3186
    %v3229 = vunpack.c.l.b16 %v3187
    %v3230 = vunpack.c.l.b16 %v3188
    %v3231 = vunpack.c.l.b16 %v3189
    %v3232 = vpack.c.b16 %v3212, %v3211
    %v3233 = vpack.c.b16 %v3214, %v3213
    %v3234 = vpack.c.b16 %v3216, %v3215
    %v3235 = vpack.c.b16 %v3218, %v3217
    %v3236 = vpack.c.b16 %v3220, %v3219
    %v3237 = vpack.c.b16 %v3222, %v3221
    %v3238 = vpack.c.b16 %v3224, %v3223
    %v3239 = vpack.c.b16 %v3226, %v3225
    %v3240 = vpack.c.b16 %v3228, %v3227
    %v3241 = vpack.c.b16 %v3230, %v3229
    %v3242 = vpack.c.b16 %v3231, %v3231
    %v3254 = vsel %vm2831, %v3166, 0
    %v3257 = vsel %vm2831, %v3168, 0
    %v3260 = vsel %vm580, %v3242, 0
    %3262 = vmatprep.subr.bf16.mxu0 0
    %3263 = vmatpush1.bf16.msra.mxu0 %v3232
    %3264 = vmatprep.subr.bf16.mxu0 0
    %3265 = vmatpush1.bf16.msra.mxu0 %v3233
    %3266 = vmatprep.subr.bf16.mxu0 0
    %3267 = vmatpush1.bf16.msra.mxu0 %v3234
    %3268 = vmatprep.subr.bf16.mxu0 0
    %3269 = vmatpush1.bf16.msra.mxu0 %v3235
    %3270 = vmatprep.subr.bf16.mxu0 0
    %3271 = vmatpush1.bf16.msra.mxu0 %v3236
    %3272 = vmatprep.subr.bf16.mxu0 0
    %3273 = vmatpush1.bf16.msra.mxu0 %v3237
    %3274 = vmatprep.subr.bf16.mxu0 0
    %3275 = vmatpush1.bf16.msra.mxu0 %v3238
    %3276 = vmatprep.subr.bf16.mxu0 0
    %3277 = vmatpush1.bf16.msra.mxu0 %v3239
    %3278 = vmatprep.subr.bf16.mxu0 0
    %3279 = vmatpush1.bf16.msra.mxu0 %v3240
    %3280 = vmatprep.subr.bf16.mxu0 0
    %3281 = vmatpush1.bf16.msra.mxu0 %v3241
    %3282 = vmatprep.subr.bf16.mxu0 0
    %3283 = vmatpush1.bf16.msra.mxu0 %v3260
    %3284 = vmatprep.subr.bf16.mxu0 0
    %3285 = vmatpush1.bf16.msra.mxu0 0
    %3286 = vmatprep.subr.bf16.mxu0 0
    %3287 = vmatpush1.bf16.msra.mxu0 0
    %3288 = vmatprep.subr.bf16.mxu0 0
    %3289 = vmatpush1.bf16.msra.mxu0 0
    %3290 = vmatprep.subr.bf16.mxu0 0
    %3291 = vmatpush1.bf16.msra.mxu0 0
    %3292 = vmatprep.subr.bf16.mxu0 0
    %3293 = vmatpush1.bf16.msra.mxu0 0
    %3294 = vmatprep.mubr.bf16.mxu0 %v3254
    %3295 = vmatmul.mubr.bf16.gmra.mrb[0].mxu0 %v3165
    %v3296 = vpop.f32.mrb[0].mxu0
    %v3297 = vadd.f32 0.0, %v3296
    %v3298 = vpop.f32.mrb[0].mxu0
    %v3299 = vpop.f32.mrb[0].mxu0
    %v3300 = vadd.f32 0.0, %v3299
    %v3301 = vpop.f32.mrb[0].mxu0
    %3302 = vmatprep.mubr.bf16.mxu0 %v3257
    %3303 = vmatmul.mubr.bf16.gmra.mrb[0].mxu0 %v3167
    %v3304 = vpop.f32.mrb[0].mxu0
    %v3305 = vadd.f32 0.0, %v3304
    %v3306 = vpop.f32.mrb[0].mxu0
    %v3307 = vpop.f32.mrb[0].mxu0
    %v3308 = vadd.f32 0.0, %v3307
    %v3309 = vpop.f32.mrb[0].mxu0
    %3310 = vdwg.mxu0
    %s3311 = scalar_lea.vmem %s6, 84
    %v3312 = vld [vmem:[%s3311] sm:$0xf]
    %v3313 = vld [vmem:[%s3311 + $0x4] sm:$0xf]
    %v3314 = vld [vmem:[%s3311 + $0x8] sm:$0xf]
    %v3315 = vld [vmem:[%s3311 + $0xc] sm:$0xf]
    %v3316 = vld [vmem:[%s3311 + $0x10] sm:$0xf]
    %v3317 = vld [vmem:[%s3311 + $0x14] sm:$0xf]
    %v3318 = vld [vmem:[%s3311 + $0x18] sm:$0xf]
    %v3319 = vld [vmem:[%s3311 + $0x1c] sm:$0xf]
    %v3320 = vld [vmem:[%s3311 + $0x20] sm:$0xf]
    %v3321 = vld [vmem:[%s3311 + $0x24] sm:$0xf]
    %v3322 = vld [vmem:[%s3311 + $0x28] sm:$0xf]
    %v3323 = vld [vmem:[%s3311 + $0x2c] sm:$0xf]
    %v3324 = vld [vmem:[%s3311 + $0x30] sm:$0xf]
    %v3325 = vld [vmem:[%s3311 + $0x34] sm:$0xf]
    %v3326 = vld [vmem:[%s3311 + $0x38] sm:$0xf]
    %v3327 = vld [vmem:[%s3311 + $0x3c] sm:$0xf]
    %v3328 = vld [vmem:[%s3311 + $0x40] sm:$0xf]
    %v3329 = vld [vmem:[%s3311 + $0x44] sm:$0xf]
    %v3330 = vld [vmem:[%s3311 + $0x48] sm:$0xf]
    %v3331 = vld [vmem:[%s3311 + $0x4c] sm:$0xf]
    %v3332 = vld [vmem:[%s3311 + $0x50] sm:$0xf]
    %v3354 = vunpack.c.l.b16 %v3312
    %v3355 = vunpack.c.l.b16 %v3313
    %v3356 = vunpack.c.l.b16 %v3314
    %v3357 = vunpack.c.l.b16 %v3315
    %v3358 = vunpack.c.l.b16 %v3316
    %v3359 = vunpack.c.l.b16 %v3317
    %v3360 = vunpack.c.l.b16 %v3318
    %v3361 = vunpack.c.l.b16 %v3319
    %v3362 = vunpack.c.l.b16 %v3320
    %v3363 = vunpack.c.l.b16 %v3321
    %v3364 = vunpack.c.l.b16 %v3322
    %v3365 = vunpack.c.l.b16 %v3323
    %v3366 = vunpack.c.l.b16 %v3324
    %v3367 = vunpack.c.l.b16 %v3325
    %v3368 = vunpack.c.l.b16 %v3326
    %v3369 = vunpack.c.l.b16 %v3327
    %v3370 = vunpack.c.l.b16 %v3328
    %v3371 = vunpack.c.l.b16 %v3329
    %v3372 = vunpack.c.l.b16 %v3330
    %v3373 = vunpack.c.l.b16 %v3331
    %v3374 = vunpack.c.l.b16 %v3332
    %v3375 = vpack.c.b16 %v3355, %v3354
    %v3376 = vpack.c.b16 %v3357, %v3356
    %v3377 = vpack.c.b16 %v3359, %v3358
    %v3378 = vpack.c.b16 %v3361, %v3360
    %v3379 = vpack.c.b16 %v3363, %v3362
    %v3380 = vpack.c.b16 %v3365, %v3364
    %v3381 = vpack.c.b16 %v3367, %v3366
    %v3382 = vpack.c.b16 %v3369, %v3368
    %v3383 = vpack.c.b16 %v3371, %v3370
    %v3384 = vpack.c.b16 %v3373, %v3372
    %v3385 = vpack.c.b16 %v3374, %v3374
    %v3397 = vsel %vm580, %v3385, 0
    %3399 = vmatprep.subr.bf16.mxu0 0
    %3400 = vmatpush1.bf16.msra.mxu0 %v3375
    %3401 = vmatprep.subr.bf16.mxu0 0
    %3402 = vmatpush1.bf16.msra.mxu0 %v3376
    %3403 = vmatprep.subr.bf16.mxu0 0
    %3404 = vmatpush1.bf16.msra.mxu0 %v3377
    %3405 = vmatprep.subr.bf16.mxu0 0
    %3406 = vmatpush1.bf16.msra.mxu0 %v3378
    %3407 = vmatprep.subr.bf16.mxu0 0
    %3408 = vmatpush1.bf16.msra.mxu0 %v3379
    %3409 = vmatprep.subr.bf16.mxu0 0
    %3410 = vmatpush1.bf16.msra.mxu0 %v3380
    %3411 = vmatprep.subr.bf16.mxu0 0
    %3412 = vmatpush1.bf16.msra.mxu0 %v3381
    %3413 = vmatprep.subr.bf16.mxu0 0
    %3414 = vmatpush1.bf16.msra.mxu0 %v3382
    %3415 = vmatprep.subr.bf16.mxu0 0
    %3416 = vmatpush1.bf16.msra.mxu0 %v3383
    %3417 = vmatprep.subr.bf16.mxu0 0
    %3418 = vmatpush1.bf16.msra.mxu0 %v3384
    %3419 = vmatprep.subr.bf16.mxu0 0
    %3420 = vmatpush1.bf16.msra.mxu0 %v3397
    %3421 = vmatprep.subr.bf16.mxu0 0
    %3422 = vmatpush1.bf16.msra.mxu0 0
    %3423 = vmatprep.subr.bf16.mxu0 0
    %3424 = vmatpush1.bf16.msra.mxu0 0
    %3425 = vmatprep.subr.bf16.mxu0 0
    %3426 = vmatpush1.bf16.msra.mxu0 0
    %3427 = vmatprep.subr.bf16.mxu0 0
    %3428 = vmatpush1.bf16.msra.mxu0 0
    %3429 = vmatprep.subr.bf16.mxu0 0
    %3430 = vmatpush1.bf16.msra.mxu0 0
    %3431 = vmatprep.mubr.bf16.mxu0 %v3254
    %3432 = vmatmul.mubr.bf16.gmra.mrb[0].mxu0 %v3165
    %v3433 = vpop.f32.mrb[0].mxu0
    %v3434 = vadd.f32 0.0, %v3433
    %v3435 = vpop.f32.mrb[0].mxu0
    %v3436 = vpop.f32.mrb[0].mxu0
    %v3437 = vadd.f32 0.0, %v3436
    %v3438 = vpop.f32.mrb[0].mxu0
    %3439 = vmatprep.mubr.bf16.mxu0 %v3257
    %3440 = vmatmul.mubr.bf16.gmra.mrb[0].mxu0 %v3167
    %v3441 = vpop.f32.mrb[0].mxu0
    %v3442 = vadd.f32 0.0, %v3441
    %v3443 = vpop.f32.mrb[0].mxu0
    %v3444 = vpop.f32.mrb[0].mxu0
    %v3445 = vadd.f32 0.0, %v3444
    %v3446 = vpop.f32.mrb[0].mxu0
    %3447 = vdwg.mxu0
    %v3448 = vmax.f32 %v3297, %v3434
    %v3449 = vmax.f32 %v3300, %v3437
    %v3450 = vmax.f32 %v3305, %v3442
    %v3451 = vmax.f32 %v3308, %v3445
    %v3452 = vpack.c.bf16 %v3449, %v3448
    %v3453 = vpack.c.bf16 %v3451, %v3450
    %v3454 = vld [vmem:[%s7] sm:$0xf]
    %v3455 = vld [vmem:[%s7 + $0x4] sm:$0x7]
    %v3458 = vunpack.c.l.b16 %v3454
    %v3459 = vunpack.c.l.b16 %v3455
    %v3460 = vpack.c.b16 %v3459, %v3458
    %v3462 = vsel %vm1989, %v3460, 0
    %v3465 = vsel %vm1996, %v3453, 0
    %3467 = vmatprep.subr.bf16.mxu0 0
    %3468 = vmatpush1.bf16.msra.mxu0 %v3452
    %3469 = vmatprep.subr.bf16.mxu0 0
    %3470 = vmatpush1.bf16.msra.mxu0 %v3465
    %3471 = vmatprep.subr.bf16.mxu0 0
    %3472 = vmatpush1.bf16.msra.mxu0 0
    %3473 = vmatprep.subr.bf16.mxu0 0
    %3474 = vmatpush1.bf16.msra.mxu0 0
    %3475 = vmatprep.subr.bf16.mxu0 0
    %3476 = vmatpush1.bf16.msra.mxu0 0
    %3477 = vmatprep.subr.bf16.mxu0 0
    %3478 = vmatpush1.bf16.msra.mxu0 0
    %3479 = vmatprep.subr.bf16.mxu0 0
    %3480 = vmatpush1.bf16.msra.mxu0 0
    %3481 = vmatprep.subr.bf16.mxu0 0
    %3482 = vmatpush1.bf16.msra.mxu0 0
    %3483 = vmatprep.subr.bf16.mxu0 0
    %3484 = vmatpush1.bf16.msra.mxu0 0
    %3485 = vmatprep.subr.bf16.mxu0 0
    %3486 = vmatpush1.bf16.msra.mxu0 0
    %3487 = vmatprep.subr.bf16.mxu0 0
    %3488 = vmatpush1.bf16.msra.mxu0 0
    %3489 = vmatprep.subr.bf16.mxu0 0
    %3490 = vmatpush1.bf16.msra.mxu0 0
    %3491 = vmatprep.subr.bf16.mxu0 0
    %3492 = vmatpush1.bf16.msra.mxu0 0
    %3493 = vmatprep.subr.bf16.mxu0 0
    %3494 = vmatpush1.bf16.msra.mxu0 0
    %3495 = vmatprep.subr.bf16.mxu0 0
    %3496 = vmatpush1.bf16.msra.mxu0 0
    %3497 = vmatprep.subr.bf16.mxu0 0
    %3498 = vmatpush1.bf16.msra.mxu0 0
    %3499 = vmatprep.mubr.bf16.mxu0 0
    %3500 = vmatmul.mubr.bf16.gmra.mrb[0].mxu0 %v3462
    %v3501 = vpop.f32.mrb[0].mxu0
    %v3502 = vadd.f32 0.0, %v3501
    %v3503 = vpop.f32.mrb[0].mxu0
    %v3504 = vpop.f32.mrb[0].mxu0
    %v3505 = vadd.f32 0.0, %v3504
    %v3506 = vpop.f32.mrb[0].mxu0
    %3507 = vdwg.mxu0
    %s3508 = scalar_lea.vmem %s7, 8
    %v3509 = vld [vmem:[%s3508] sm:$0xf]
    %v3510 = vld [vmem:[%s3508 + $0x4] sm:$0x7]
    %v3513 = vunpack.c.l.b16 %v3509
    %v3514 = vunpack.c.l.b16 %v3510
    %v3515 = vpack.c.b16 %v3514, %v3513
    %v3517 = vsel %vm1989, %v3515, 0
    %3519 = vmatprep.subr.bf16.mxu0 0
    %3520 = vmatpush1.bf16.msra.mxu0 %v3452
    %3521 = vmatprep.subr.bf16.mxu0 0
    %3522 = vmatpush1.bf16.msra.mxu0 %v3465
    %3523 = vmatprep.subr.bf16.mxu0 0
    %3524 = vmatpush1.bf16.msra.mxu0 0
    %3525 = vmatprep.subr.bf16.mxu0 0
    %3526 = vmatpush1.bf16.msra.mxu0 0
    %3527 = vmatprep.subr.bf16.mxu0 0
    %3528 = vmatpush1.bf16.msra.mxu0 0
    %3529 = vmatprep.subr.bf16.mxu0 0
    %3530 = vmatpush1.bf16.msra.mxu0 0
    %3531 = vmatprep.subr.bf16.mxu0 0
    %3532 = vmatpush1.bf16.msra.mxu0 0
    %3533 = vmatprep.subr.bf16.mxu0 0
    %3534 = vmatpush1.bf16.msra.mxu0 0
    %3535 = vmatprep.subr.bf16.mxu0 0
    %3536 = vmatpush1.bf16.msra.mxu0 0
    %3537 = vmatprep.subr.bf16.mxu0 0
    %3538 = vmatpush1.bf16.msra.mxu0 0
    %3539 = vmatprep.subr.bf16.mxu0 0
    %3540 = vmatpush1.bf16.msra.mxu0 0
    %3541 = vmatprep.subr.bf16.mxu0 0
    %3542 = vmatpush1.bf16.msra.mxu0 0
    %3543 = vmatprep.subr.bf16.mxu0 0
    %3544 = vmatpush1.bf16.msra.mxu0 0
    %3545 = vmatprep.subr.bf16.mxu0 0
    %3546 = vmatpush1.bf16.msra.mxu0 0
    %3547 = vmatprep.subr.bf16.mxu0 0
    %3548 = vmatpush1.bf16.msra.mxu0 0
    %3549 = vmatprep.subr.bf16.mxu0 0
    %3550 = vmatpush1.bf16.msra.mxu0 0
    %3551 = vmatprep.mubr.bf16.mxu0 0
    %3552 = vmatmul.mubr.bf16.gmra.mrb[0].mxu0 %v3517
    %v3553 = vpop.f32.mrb[0].mxu0
    %v3554 = vadd.f32 0.0, %v3553
    %v3555 = vpop.f32.mrb[0].mxu0
    %v3556 = vpop.f32.mrb[0].mxu0
    %v3557 = vadd.f32 0.0, %v3556
    %v3558 = vpop.f32.mrb[0].mxu0
    %3559 = vdwg.mxu0
    %v3560 = vmax.f32 %v3502, %v3554
    %v3561 = vmax.f32 %v3505, %v3557
    %s3562 = scalar_lea.vmem %s16, 3
    %v3563 = vld [vmem:[%s3562] ss:$8 sm:$0x3]
    %s3564 = scalar_lea.vmem %s16, 4
    %v3565 = vld [vmem:[%s3564] ss:$8 sm:$0x3]
    %s3566 = scalar_lea.vmem %s16, 5
    %v3567 = vld [vmem:[%s3566] ss:$8 sm:$0x3]
    %v3568 = vpack.c.bf16 %v3561, %v3560
    %v3569 = vld [vmem:[%s8] sm:$0xf]
    %v3570 = vld [vmem:[%s8 + $0x4] sm:$0x7]
    %v3573 = vunpack.c.l.b16 %v3569
    %v3574 = vunpack.c.l.b16 %v3570
    %v3575 = vpack.c.b16 %v3574, %v3573
    %vm3576 = vcmask 113664
    %v3578 = vsel %vm3576, %v3575, 0
    %vm3580 = vcmask 1046528
    %v3582 = vsel %vm3580, %v3568, 0
    %3584 = vmatprep.subr.bf16.mxu0 0
    %3585 = vmatpush1.bf16.msra.mxu0 %v3582
    %3586 = vmatprep.subr.bf16.mxu0 0
    %3587 = vmatpush1.bf16.msra.mxu0 0
    %3588 = vmatprep.subr.bf16.mxu0 0
    %3589 = vmatpush1.bf16.msra.mxu0 0
    %3590 = vmatprep.subr.bf16.mxu0 0
    %3591 = vmatpush1.bf16.msra.mxu0 0
    %3592 = vmatprep.subr.bf16.mxu0 0
    %3593 = vmatpush1.bf16.msra.mxu0 0
    %3594 = vmatprep.subr.bf16.mxu0 0
    %3595 = vmatpush1.bf16.msra.mxu0 0
    %3596 = vmatprep.subr.bf16.mxu0 0
    %3597 = vmatpush1.bf16.msra.mxu0 0
    %3598 = vmatprep.subr.bf16.mxu0 0
    %3599 = vmatpush1.bf16.msra.mxu0 0
    %3600 = vmatprep.subr.bf16.mxu0 0
    %3601 = vmatpush1.bf16.msra.mxu0 0
    %3602 = vmatprep.subr.bf16.mxu0 0
    %3603 = vmatpush1.bf16.msra.mxu0 0
    %3604 = vmatprep.subr.bf16.mxu0 0
    %3605 = vmatpush1.bf16.msra.mxu0 0
    %3606 = vmatprep.subr.bf16.mxu0 0
    %3607 = vmatpush1.bf16.msra.mxu0 0
    %3608 = vmatprep.subr.bf16.mxu0 0
    %3609 = vmatpush1.bf16.msra.mxu0 0
    %3610 = vmatprep.subr.bf16.mxu0 0
    %3611 = vmatpush1.bf16.msra.mxu0 0
    %3612 = vmatprep.subr.bf16.mxu0 0
    %3613 = vmatpush1.bf16.msra.mxu0 0
    %3614 = vmatprep.subr.bf16.mxu0 0
    %3615 = vmatpush1.bf16.msra.mxu0 0
    %3616 = vmatprep.mubr.bf16.mxu0 0
    %3617 = vmatmul.mubr.bf16.gmra.mrb[0].mxu0 %v3578
    %v3618 = vpop.f32.mrb[0].mxu0
    %v3619 = vadd.f32 0.0, %v3618
    %v3620 = vpop.f32.mrb[0].mxu0
    %v3621 = vpop.f32.mrb[0].mxu0
    %v3622 = vadd.f32 0.0, %v3621
    %v3623 = vpop.f32.mrb[0].mxu0
    %3624 = vdwg.mxu0
    %v3625 = vpack.c.bf16 %v3622, %v3619
    %v3626 = vld [vmem:[%s9] sm:$0xff]
    %v3627 = vld [vmem:[%s9 + $0x8] sm:$0xff]
    %v3628 = vld [vmem:[%s9 + $0x10] sm:$0xff]
    %v3629 = vld [vmem:[%s9 + $0x18] sm:$0xff]
    %v3630 = vld [vmem:[%s9 + $0x20] sm:$0xff]
    %v3631 = vld [vmem:[%s9 + $0x28] sm:$0xff]
    %v3632 = vld [vmem:[%s9 + $0x30] sm:$0xff]
    %v3633 = vld [vmem:[%s9 + $0x38] sm:$0xff]
    %v3634 = vld [vmem:[%s9 + $0x40] sm:$0xff]
    %v3635 = vld [vmem:[%s9 + $0x48] sm:$0xff]
    %v3636 = vld [vmem:[%s9 + $0x50] sm:$0x33]
    %s3637 = scalar_lea.vmem %s8, 8
    %v3638 = vld [vmem:[%s3637] sm:$0xf]
    %v3639 = vld [vmem:[%s3637 + $0x4] sm:$0x7]
    %v3642 = vunpack.c.l.b16 %v3638
    %v3643 = vunpack.c.l.b16 %v3639
    %v3644 = vpack.c.b16 %v3643, %v3642
    %v3646 = vsel %vm3576, %v3644, 0
    %3648 = vmatprep.subr.bf16.mxu0 0
    %3649 = vmatpush1.bf16.msra.mxu0 %v3582
    %3650 = vmatprep.subr.bf16.mxu0 0
    %3651 = vmatpush1.bf16.msra.mxu0 0
    %3652 = vmatprep.subr.bf16.mxu0 0
    %3653 = vmatpush1.bf16.msra.mxu0 0
    %3654 = vmatprep.subr.bf16.mxu0 0
    %3655 = vmatpush1.bf16.msra.mxu0 0
    %3656 = vmatprep.subr.bf16.mxu0 0
    %3657 = vmatpush1.bf16.msra.mxu0 0
    %3658 = vmatprep.subr.bf16.mxu0 0
    %3659 = vmatpush1.bf16.msra.mxu0 0
    %3660 = vmatprep.subr.bf16.mxu0 0
    %3661 = vmatpush1.bf16.msra.mxu0 0
    %3662 = vmatprep.subr.bf16.mxu0 0
    %3663 = vmatpush1.bf16.msra.mxu0 0
    %3664 = vmatprep.subr.bf16.mxu0 0
    %3665 = vmatpush1.bf16.msra.mxu0 0
    %3666 = vmatprep.subr.bf16.mxu0 0
    %3667 = vmatpush1.bf16.msra.mxu0 0
    %3668 = vmatprep.subr.bf16.mxu0 0
    %3669 = vmatpush1.bf16.msra.mxu0 0
    %3670 = vmatprep.subr.bf16.mxu0 0
    %3671 = vmatpush1.bf16.msra.mxu0 0
    %3672 = vmatprep.subr.bf16.mxu0 0
    %3673 = vmatpush1.bf16.msra.mxu0 0
    %3674 = vmatprep.subr.bf16.mxu0 0
    %3675 = vmatpush1.bf16.msra.mxu0 0
    %3676 = vmatprep.subr.bf16.mxu0 0
    %3677 = vmatpush1.bf16.msra.mxu0 0
    %3678 = vmatprep.subr.bf16.mxu0 0
    %3679 = vmatpush1.bf16.msra.mxu0 0
    %3680 = vmatprep.mubr.bf16.mxu0 0
    %3681 = vmatmul.mubr.bf16.gmra.mrb[0].mxu0 %v3646
    %v3682 = vpop.f32.mrb[0].mxu0
    %v3683 = vadd.f32 0.0, %v3682
    %v3684 = vpop.f32.mrb[0].mxu0
    %v3685 = vpop.f32.mrb[0].mxu0
    %v3686 = vadd.f32 0.0, %v3685
    %v3687 = vpop.f32.mrb[0].mxu0
    %3688 = vdwg.mxu0
    %v3689 = vpack.c.bf16 %v3686, %v3683
    %s3690 = scalar_lea.vmem %s9, 88
    %v3691 = vld [vmem:[%s3690] sm:$0xff]
    %v3692 = vld [vmem:[%s3690 + $0x8] sm:$0xff]
    %v3693 = vld [vmem:[%s3690 + $0x10] sm:$0xff]
    %v3694 = vld [vmem:[%s3690 + $0x18] sm:$0xff]
    %v3695 = vld [vmem:[%s3690 + $0x20] sm:$0xff]
    %v3696 = vld [vmem:[%s3690 + $0x28] sm:$0xff]
    %v3697 = vld [vmem:[%s3690 + $0x30] sm:$0xff]
    %v3698 = vld [vmem:[%s3690 + $0x38] sm:$0xff]
    %v3699 = vld [vmem:[%s3690 + $0x40] sm:$0xff]
    %v3700 = vld [vmem:[%s3690 + $0x48] sm:$0xff]
    %v3701 = vld [vmem:[%s3690 + $0x50] sm:$0x33]
    %v3713 = vunpack.c.l.b16 %v3691
    %v3714 = vunpack.c.h.b16 %v3691
    %v3715 = vunpack.c.l.b16 %v3692
    %v3716 = vunpack.c.h.b16 %v3692
    %v3717 = vunpack.c.l.b16 %v3693
    %v3718 = vunpack.c.h.b16 %v3693
    %v3719 = vunpack.c.l.b16 %v3694
    %v3720 = vunpack.c.h.b16 %v3694
    %v3721 = vunpack.c.l.b16 %v3695
    %v3722 = vunpack.c.h.b16 %v3695
    %v3723 = vunpack.c.l.b16 %v3696
    %v3724 = vunpack.c.h.b16 %v3696
    %v3725 = vunpack.c.l.b16 %v3697
    %v3726 = vunpack.c.h.b16 %v3697
    %v3727 = vunpack.c.l.b16 %v3698
    %v3728 = vunpack.c.h.b16 %v3698
    %v3729 = vunpack.c.l.b16 %v3699
    %v3730 = vunpack.c.h.b16 %v3699
    %v3731 = vunpack.c.l.b16 %v3700
    %v3732 = vunpack.c.h.b16 %v3700
    %v3733 = vunpack.c.l.b16 %v3701
    %v3734 = vunpack.c.h.b16 %v3701
    %v3735 = vpack.c.b16 %v3715, %v3713
    %v3736 = vpack.c.b16 %v3716, %v3714
    %v3737 = vpack.c.b16 %v3719, %v3717
    %v3738 = vpack.c.b16 %v3720, %v3718
    %v3739 = vpack.c.b16 %v3723, %v3721
    %v3740 = vpack.c.b16 %v3724, %v3722
    %v3741 = vpack.c.b16 %v3727, %v3725
    %v3742 = vpack.c.b16 %v3728, %v3726
    %v3743 = vpack.c.b16 %v3731, %v3729
    %v3744 = vpack.c.b16 %v3732, %v3730
    %v3745 = vpack.c.b16 %v3733, %v3733
    %v3746 = vpack.c.b16 %v3734, %v3734
    %vm3757 = vcmask 687104
    %v3759 = vsel %vm3757, %v3689, 0
    %vm3761 = vcmask 1041408
    %v3763 = vsel %vm3761, %v3745, 0
    %v3766 = vsel %vm3761, %v3746, 0
    %3768 = vmatprep.subr.bf16.mxu0 %v3736
    %3769 = vmatpush1.bf16.msra.mxu0 %v3735
    %3770 = vmatprep.subr.bf16.mxu0 %v3738
    %3771 = vmatpush1.bf16.msra.mxu0 %v3737
    %3772 = vmatprep.subr.bf16.mxu0 %v3740
    %3773 = vmatpush1.bf16.msra.mxu0 %v3739
    %3774 = vmatprep.subr.bf16.mxu0 %v3742
    %3775 = vmatpush1.bf16.msra.mxu0 %v3741
    %3776 = vmatprep.subr.bf16.mxu0 %v3744
    %3777 = vmatpush1.bf16.msra.mxu0 %v3743
    %3778 = vmatprep.subr.bf16.mxu0 %v3766
    %3779 = vmatpush1.bf16.msra.mxu0 %v3763
    %3780 = vmatprep.subr.bf16.mxu0 0
    %3781 = vmatpush1.bf16.msra.mxu0 0
    %3782 = vmatprep.subr.bf16.mxu0 0
    %3783 = vmatpush1.bf16.msra.mxu0 0
    %3784 = vmatprep.subr.bf16.mxu0 0
    %3785 = vmatpush1.bf16.msra.mxu0 0
    %3786 = vmatprep.subr.bf16.mxu0 0
    %3787 = vmatpush1.bf16.msra.mxu0 0
    %3788 = vmatprep.subr.bf16.mxu0 0
    %3789 = vmatpush1.bf16.msra.mxu0 0
    %3790 = vmatprep.subr.bf16.mxu0 0
    %3791 = vmatpush1.bf16.msra.mxu0 0
    %3792 = vmatprep.subr.bf16.mxu0 0
    %3793 = vmatpush1.bf16.msra.mxu0 0
    %3794 = vmatprep.subr.bf16.mxu0 0
    %3795 = vmatpush1.bf16.msra.mxu0 0
    %3796 = vmatprep.subr.bf16.mxu0 0
    %3797 = vmatpush1.bf16.msra.mxu0 0
    %3798 = vmatprep.subr.bf16.mxu0 0
    %3799 = vmatpush1.bf16.msra.mxu0 0
    %3800 = vmatprep.mubr.bf16.mxu0 0
    %3801 = vmatmul.mubr.bf16.gmra.mrb[0].mxu0 %v3759
    %v3802 = vpop.f32.mrb[0].mxu0
    %v3803 = vadd.f32 0.0, %v3802
    %v3804 = vpop.f32.mrb[0].mxu0
    %v3805 = vadd.f32 0.0, %v3804
    %v3806 = vpop.f32.mrb[0].mxu0
    %v3807 = vadd.f32 0.0, %v3806
    %v3808 = vpop.f32.mrb[0].mxu0
    %v3809 = vadd.f32 0.0, %v3808
    %3810 = vdwg.mxu0
    %v3822 = vunpack.c.l.b16 %v3626
    %v3823 = vunpack.c.h.b16 %v3626
    %v3824 = vunpack.c.l.b16 %v3627
    %v3825 = vunpack.c.h.b16 %v3627
    %v3826 = vunpack.c.l.b16 %v3628
    %v3827 = vunpack.c.h.b16 %v3628
    %v3828 = vunpack.c.l.b16 %v3629
    %v3829 = vunpack.c.h.b16 %v3629
    %v3830 = vunpack.c.l.b16 %v3630
    %v3831 = vunpack.c.h.b16 %v3630
    %v3832 = vunpack.c.l.b16 %v3631
    %v3833 = vunpack.c.h.b16 %v3631
    %v3834 = vunpack.c.l.b16 %v3632
    %v3835 = vunpack.c.h.b16 %v3632
    %v3836 = vunpack.c.l.b16 %v3633
    %v3837 = vunpack.c.h.b16 %v3633
    %v3838 = vunpack.c.l.b16 %v3634
    %v3839 = vunpack.c.h.b16 %v3634
    %v3840 = vunpack.c.l.b16 %v3635
    %v3841 = vunpack.c.h.b16 %v3635
    %v3842 = vunpack.c.l.b16 %v3636
    %v3843 = vunpack.c.h.b16 %v3636
    %v3844 = vpack.c.b16 %v3824, %v3822
    %v3845 = vpack.c.b16 %v3825, %v3823
    %v3846 = vpack.c.b16 %v3828, %v3826
    %v3847 = vpack.c.b16 %v3829, %v3827
    %v3848 = vpack.c.b16 %v3832, %v3830
    %v3849 = vpack.c.b16 %v3833, %v3831
    %v3850 = vpack.c.b16 %v3836, %v3834
    %v3851 = vpack.c.b16 %v3837, %v3835
    %v3852 = vpack.c.b16 %v3840, %v3838
    %v3853 = vpack.c.b16 %v3841, %v3839
    %v3854 = vpack.c.b16 %v3842, %v3842
    %v3855 = vpack.c.b16 %v3843, %v3843
    %v3867 = vsel %vm3757, %v3625, 0
    %v3870 = vsel %vm3761, %v3854, 0
    %v3873 = vsel %vm3761, %v3855, 0
    %3875 = vmatprep.subr.bf16.mxu0 %v3845
    %3876 = vmatpush1.bf16.msra.mxu0 %v3844
    %3877 = vmatprep.subr.bf16.mxu0 %v3847
    %3878 = vmatpush1.bf16.msra.mxu0 %v3846
    %3879 = vmatprep.subr.bf16.mxu0 %v3849
    %3880 = vmatpush1.bf16.msra.mxu0 %v3848
    %3881 = vmatprep.subr.bf16.mxu0 %v3851
    %3882 = vmatpush1.bf16.msra.mxu0 %v3850
    %3883 = vmatprep.subr.bf16.mxu0 %v3853
    %3884 = vmatpush1.bf16.msra.mxu0 %v3852
    %3885 = vmatprep.subr.bf16.mxu0 %v3873
    %3886 = vmatpush1.bf16.msra.mxu0 %v3870
    %3887 = vmatprep.subr.bf16.mxu0 0
    %3888 = vmatpush1.bf16.msra.mxu0 0
    %3889 = vmatprep.subr.bf16.mxu0 0
    %3890 = vmatpush1.bf16.msra.mxu0 0
    %3891 = vmatprep.subr.bf16.mxu0 0
    %3892 = vmatpush1.bf16.msra.mxu0 0
    %3893 = vmatprep.subr.bf16.mxu0 0
    %3894 = vmatpush1.bf16.msra.mxu0 0
    %3895 = vmatprep.subr.bf16.mxu0 0
    %3896 = vmatpush1.bf16.msra.mxu0 0
    %3897 = vmatprep.subr.bf16.mxu0 0
    %3898 = vmatpush1.bf16.msra.mxu0 0
    %3899 = vmatprep.subr.bf16.mxu0 0
    %3900 = vmatpush1.bf16.msra.mxu0 0
    %3901 = vmatprep.subr.bf16.mxu0 0
    %3902 = vmatpush1.bf16.msra.mxu0 0
    %3903 = vmatprep.subr.bf16.mxu0 0
    %3904 = vmatpush1.bf16.msra.mxu0 0
    %3905 = vmatprep.subr.bf16.mxu0 0
    %3906 = vmatpush1.bf16.msra.mxu0 0
    %3907 = vmatprep.mubr.bf16.mxu0 0
    %3908 = vmatmul.mubr.bf16.gmra.mrb[0].mxu0 %v3867
    %v3909 = vpop.f32.mrb[0].mxu0
    %v3910 = vadd.f32 %v3803, %v3909
    %v3911 = vpop.f32.mrb[0].mxu0
    %v3912 = vadd.f32 %v3805, %v3911
    %v3913 = vpop.f32.mrb[0].mxu0
    %v3914 = vadd.f32 %v3807, %v3913
    %v3915 = vpop.f32.mrb[0].mxu0
    %v3916 = vadd.f32 %v3809, %v3915
    %3917 = vdwg.mxu0
    %s3918 = scalar_lea.vmem %s8, 16
    %v3919 = vld [vmem:[%s3918] sm:$0xf]
    %v3920 = vld [vmem:[%s3918 + $0x4] sm:$0x7]
    %v3923 = vunpack.c.l.b16 %v3919
    %v3924 = vunpack.c.l.b16 %v3920
    %v3925 = vpack.c.b16 %v3924, %v3923
    %v3927 = vsel %vm3576, %v3925, 0
    %3929 = vmatprep.subr.bf16.mxu0 0
    %3930 = vmatpush1.bf16.msra.mxu0 %v3582
    %3931 = vmatprep.subr.bf16.mxu0 0
    %3932 = vmatpush1.bf16.msra.mxu0 0
    %3933 = vmatprep.subr.bf16.mxu0 0
    %3934 = vmatpush1.bf16.msra.mxu0 0
    %3935 = vmatprep.subr.bf16.mxu0 0
    %3936 = vmatpush1.bf16.msra.mxu0 0
    %3937 = vmatprep.subr.bf16.mxu0 0
    %3938 = vmatpush1.bf16.msra.mxu0 0
    %3939 = vmatprep.subr.bf16.mxu0 0
    %3940 = vmatpush1.bf16.msra.mxu0 0
    %3941 = vmatprep.subr.bf16.mxu0 0
    %3942 = vmatpush1.bf16.msra.mxu0 0
    %3943 = vmatprep.subr.bf16.mxu0 0
    %3944 = vmatpush1.bf16.msra.mxu0 0
    %3945 = vmatprep.subr.bf16.mxu0 0
    %3946 = vmatpush1.bf16.msra.mxu0 0
    %3947 = vmatprep.subr.bf16.mxu0 0
    %3948 = vmatpush1.bf16.msra.mxu0 0
    %3949 = vmatprep.subr.bf16.mxu0 0
    %3950 = vmatpush1.bf16.msra.mxu0 0
    %3951 = vmatprep.subr.bf16.mxu0 0
    %3952 = vmatpush1.bf16.msra.mxu0 0
    %3953 = vmatprep.subr.bf16.mxu0 0
    %3954 = vmatpush1.bf16.msra.mxu0 0
    %3955 = vmatprep.subr.bf16.mxu0 0
    %3956 = vmatpush1.bf16.msra.mxu0 0
    %3957 = vmatprep.subr.bf16.mxu0 0
    %3958 = vmatpush1.bf16.msra.mxu0 0
    %3959 = vmatprep.subr.bf16.mxu0 0
    %3960 = vmatpush1.bf16.msra.mxu0 0
    %3961 = vmatprep.mubr.bf16.mxu0 0
    %3962 = vmatmul.mubr.bf16.gmra.mrb[0].mxu0 %v3927
    %v3963 = vpop.f32.mrb[0].mxu0
    %v3964 = vadd.f32 0.0, %v3963
    %v3965 = vpop.f32.mrb[0].mxu0
    %v3966 = vpop.f32.mrb[0].mxu0
    %v3967 = vadd.f32 0.0, %v3966
    %v3968 = vpop.f32.mrb[0].mxu0
    %3969 = vdwg.mxu0
    %v3970 = vpack.c.bf16 %v3967, %v3964
    %s3971 = scalar_lea.vmem %s9, 176
    %v3972 = vld [vmem:[%s3971] sm:$0xff]
    %v3973 = vld [vmem:[%s3971 + $0x8] sm:$0xff]
    %v3974 = vld [vmem:[%s3971 + $0x10] sm:$0xff]
    %v3975 = vld [vmem:[%s3971 + $0x18] sm:$0xff]
    %v3976 = vld [vmem:[%s3971 + $0x20] sm:$0xff]
    %v3977 = vld [vmem:[%s3971 + $0x28] sm:$0xff]
    %v3978 = vld [vmem:[%s3971 + $0x30] sm:$0xff]
    %v3979 = vld [vmem:[%s3971 + $0x38] sm:$0xff]
    %v3980 = vld [vmem:[%s3971 + $0x40] sm:$0xff]
    %v3981 = vld [vmem:[%s3971 + $0x48] sm:$0xff]
    %v3982 = vld [vmem:[%s3971 + $0x50] sm:$0x33]
    %v3994 = vunpack.c.l.b16 %v3972
    %v3995 = vunpack.c.h.b16 %v3972
    %v3996 = vunpack.c.l.b16 %v3973
    %v3997 = vunpack.c.h.b16 %v3973
    %v3998 = vunpack.c.l.b16 %v3974
    %v3999 = vunpack.c.h.b16 %v3974
    %v4000 = vunpack.c.l.b16 %v3975
    %v4001 = vunpack.c.h.b16 %v3975
    %v4002 = vunpack.c.l.b16 %v3976
    %v4003 = vunpack.c.h.b16 %v3976
    %v4004 = vunpack.c.l.b16 %v3977
    %v4005 = vunpack.c.h.b16 %v3977
    %v4006 = vunpack.c.l.b16 %v3978
    %v4007 = vunpack.c.h.b16 %v3978
    %v4008 = vunpack.c.l.b16 %v3979
    %v4009 = vunpack.c.h.b16 %v3979
    %v4010 = vunpack.c.l.b16 %v3980
    %v4011 = vunpack.c.h.b16 %v3980
    %v4012 = vunpack.c.l.b16 %v3981
    %v4013 = vunpack.c.h.b16 %v3981
    %v4014 = vunpack.c.l.b16 %v3982
    %v4015 = vunpack.c.h.b16 %v3982
    %v4016 = vpack.c.b16 %v3996, %v3994
    %v4017 = vpack.c.b16 %v3997, %v3995
    %v4018 = vpack.c.b16 %v4000, %v3998
    %v4019 = vpack.c.b16 %v4001, %v3999
    %v4020 = vpack.c.b16 %v4004, %v4002
    %v4021 = vpack.c.b16 %v4005, %v4003
    %v4022 = vpack.c.b16 %v4008, %v4006
    %v4023 = vpack.c.b16 %v4009, %v4007
    %v4024 = vpack.c.b16 %v4012, %v4010
    %v4025 = vpack.c.b16 %v4013, %v4011
    %v4026 = vpack.c.b16 %v4014, %v4014
    %v4027 = vpack.c.b16 %v4015, %v4015
    %v4039 = vsel %vm3757, %v3970, 0
    %v4042 = vsel %vm3761, %v4026, 0
    %v4045 = vsel %vm3761, %v4027, 0
    %4047 = vmatprep.subr.bf16.mxu0 %v4017
    %4048 = vmatpush1.bf16.msra.mxu0 %v4016
    %4049 = vmatprep.subr.bf16.mxu0 %v4019
    %4050 = vmatpush1.bf16.msra.mxu0 %v4018
    %4051 = vmatprep.subr.bf16.mxu0 %v4021
    %4052 = vmatpush1.bf16.msra.mxu0 %v4020
    %4053 = vmatprep.subr.bf16.mxu0 %v4023
    %4054 = vmatpush1.bf16.msra.mxu0 %v4022
    %4055 = vmatprep.subr.bf16.mxu0 %v4025
    %4056 = vmatpush1.bf16.msra.mxu0 %v4024
    %4057 = vmatprep.subr.bf16.mxu0 %v4045
    %4058 = vmatpush1.bf16.msra.mxu0 %v4042
    %4059 = vmatprep.subr.bf16.mxu0 0
    %4060 = vmatpush1.bf16.msra.mxu0 0
    %4061 = vmatprep.subr.bf16.mxu0 0
    %4062 = vmatpush1.bf16.msra.mxu0 0
    %4063 = vmatprep.subr.bf16.mxu0 0
    %4064 = vmatpush1.bf16.msra.mxu0 0
    %4065 = vmatprep.subr.bf16.mxu0 0
    %4066 = vmatpush1.bf16.msra.mxu0 0
    %4067 = vmatprep.subr.bf16.mxu0 0
    %4068 = vmatpush1.bf16.msra.mxu0 0
    %4069 = vmatprep.subr.bf16.mxu0 0
    %4070 = vmatpush1.bf16.msra.mxu0 0
    %4071 = vmatprep.subr.bf16.mxu0 0
    %4072 = vmatpush1.bf16.msra.mxu0 0
    %4073 = vmatprep.subr.bf16.mxu0 0
    %4074 = vmatpush1.bf16.msra.mxu0 0
    %4075 = vmatprep.subr.bf16.mxu0 0
    %4076 = vmatpush1.bf16.msra.mxu0 0
    %4077 = vmatprep.subr.bf16.mxu0 0
    %4078 = vmatpush1.bf16.msra.mxu0 0
    %4079 = vmatprep.mubr.bf16.mxu0 0
    %4080 = vmatmul.mubr.bf16.gmra.mrb[0].mxu0 %v4039
    %v4081 = vpop.f32.mrb[0].mxu0
    %v4082 = vadd.f32 0.0, %v4081
    %v4083 = vpop.f32.mrb[0].mxu0
    %v4084 = vadd.f32 0.0, %v4083
    %v4085 = vpop.f32.mrb[0].mxu0
    %v4086 = vadd.f32 0.0, %v4085
    %v4087 = vpop.f32.mrb[0].mxu0
    %v4088 = vadd.f32 0.0, %v4087
    %4089 = vdwg.mxu0
    %v4090 = vadd.f32 %v3910, %v4082
    %v4091 = vadd.f32 %v3912, %v4084
    %v4092 = vadd.f32 %v3914, %v4086
    %v4093 = vadd.f32 %v3916, %v4088
    %s4094 = scalar_lea.vmem %s8, 24
    %v4095 = vld [vmem:[%s4094] sm:$0xf]
    %v4096 = vld [vmem:[%s4094 + $0x4] sm:$0x7]
    %v4099 = vunpack.c.l.b16 %v4095
    %v4100 = vunpack.c.l.b16 %v4096
    %v4101 = vpack.c.b16 %v4100, %v4099
    %v4103 = vsel %vm3576, %v4101, 0
    %4105 = vmatprep.subr.bf16.mxu0 0
    %4106 = vmatpush1.bf16.msra.mxu0 %v3582
    %4107 = vmatprep.subr.bf16.mxu0 0
    %4108 = vmatpush1.bf16.msra.mxu0 0
    %4109 = vmatprep.subr.bf16.mxu0 0
    %4110 = vmatpush1.bf16.msra.mxu0 0
    %4111 = vmatprep.subr.bf16.mxu0 0
    %4112 = vmatpush1.bf16.msra.mxu0 0
    %4113 = vmatprep.subr.bf16.mxu0 0
    %4114 = vmatpush1.bf16.msra.mxu0 0
    %4115 = vmatprep.subr.bf16.mxu0 0
    %4116 = vmatpush1.bf16.msra.mxu0 0
    %4117 = vmatprep.subr.bf16.mxu0 0
    %4118 = vmatpush1.bf16.msra.mxu0 0
    %4119 = vmatprep.subr.bf16.mxu0 0
    %4120 = vmatpush1.bf16.msra.mxu0 0
    %4121 = vmatprep.subr.bf16.mxu0 0
    %4122 = vmatpush1.bf16.msra.mxu0 0
    %4123 = vmatprep.subr.bf16.mxu0 0
    %4124 = vmatpush1.bf16.msra.mxu0 0
    %4125 = vmatprep.subr.bf16.mxu0 0
    %4126 = vmatpush1.bf16.msra.mxu0 0
    %4127 = vmatprep.subr.bf16.mxu0 0
    %4128 = vmatpush1.bf16.msra.mxu0 0
    %4129 = vmatprep.subr.bf16.mxu0 0
    %4130 = vmatpush1.bf16.msra.mxu0 0
    %4131 = vmatprep.subr.bf16.mxu0 0
    %4132 = vmatpush1.bf16.msra.mxu0 0
    %4133 = vmatprep.subr.bf16.mxu0 0
    %4134 = vmatpush1.bf16.msra.mxu0 0
    %4135 = vmatprep.subr.bf16.mxu0 0
    %4136 = vmatpush1.bf16.msra.mxu0 0
    %4137 = vmatprep.mubr.bf16.mxu0 0
    %4138 = vmatmul.mubr.bf16.gmra.mrb[0].mxu0 %v4103
    %v4139 = vpop.f32.mrb[0].mxu0
    %v4140 = vadd.f32 0.0, %v4139
    %v4141 = vpop.f32.mrb[0].mxu0
    %v4142 = vpop.f32.mrb[0].mxu0
    %v4143 = vadd.f32 0.0, %v4142
    %v4144 = vpop.f32.mrb[0].mxu0
    %4145 = vdwg.mxu0
    %v4146 = vpack.c.bf16 %v4143, %v4140
    %s4147 = scalar_lea.vmem %s9, 264
    %v4148 = vld [vmem:[%s4147] sm:$0xff]
    %v4149 = vld [vmem:[%s4147 + $0x8] sm:$0xff]
    %v4150 = vld [vmem:[%s4147 + $0x10] sm:$0xff]
    %v4151 = vld [vmem:[%s4147 + $0x18] sm:$0xff]
    %v4152 = vld [vmem:[%s4147 + $0x20] sm:$0xff]
    %v4153 = vld [vmem:[%s4147 + $0x28] sm:$0xff]
    %v4154 = vld [vmem:[%s4147 + $0x30] sm:$0xff]
    %v4155 = vld [vmem:[%s4147 + $0x38] sm:$0xff]
    %v4156 = vld [vmem:[%s4147 + $0x40] sm:$0xff]
    %v4157 = vld [vmem:[%s4147 + $0x48] sm:$0xff]
    %v4158 = vld [vmem:[%s4147 + $0x50] sm:$0x33]
    %v4170 = vunpack.c.l.b16 %v4148
    %v4171 = vunpack.c.h.b16 %v4148
    %v4172 = vunpack.c.l.b16 %v4149
    %v4173 = vunpack.c.h.b16 %v4149
    %v4174 = vunpack.c.l.b16 %v4150
    %v4175 = vunpack.c.h.b16 %v4150
    %v4176 = vunpack.c.l.b16 %v4151
    %v4177 = vunpack.c.h.b16 %v4151
    %v4178 = vunpack.c.l.b16 %v4152
    %v4179 = vunpack.c.h.b16 %v4152
    %v4180 = vunpack.c.l.b16 %v4153
    %v4181 = vunpack.c.h.b16 %v4153
    %v4182 = vunpack.c.l.b16 %v4154
    %v4183 = vunpack.c.h.b16 %v4154
    %v4184 = vunpack.c.l.b16 %v4155
    %v4185 = vunpack.c.h.b16 %v4155
    %v4186 = vunpack.c.l.b16 %v4156
    %v4187 = vunpack.c.h.b16 %v4156
    %v4188 = vunpack.c.l.b16 %v4157
    %v4189 = vunpack.c.h.b16 %v4157
    %v4190 = vunpack.c.l.b16 %v4158
    %v4191 = vunpack.c.h.b16 %v4158
    %v4192 = vpack.c.b16 %v4172, %v4170
    %v4193 = vpack.c.b16 %v4173, %v4171
    %v4194 = vpack.c.b16 %v4176, %v4174
    %v4195 = vpack.c.b16 %v4177, %v4175
    %v4196 = vpack.c.b16 %v4180, %v4178
    %v4197 = vpack.c.b16 %v4181, %v4179
    %v4198 = vpack.c.b16 %v4184, %v4182
    %v4199 = vpack.c.b16 %v4185, %v4183
    %v4200 = vpack.c.b16 %v4188, %v4186
    %v4201 = vpack.c.b16 %v4189, %v4187
    %v4202 = vpack.c.b16 %v4190, %v4190
    %v4203 = vpack.c.b16 %v4191, %v4191
    %v4215 = vsel %vm3757, %v4146, 0
    %v4218 = vsel %vm3761, %v4202, 0
    %v4221 = vsel %vm3761, %v4203, 0
    %4223 = vmatprep.subr.bf16.mxu0 %v4193
    %4224 = vmatpush1.bf16.msra.mxu0 %v4192
    %4225 = vmatprep.subr.bf16.mxu0 %v4195
    %4226 = vmatpush1.bf16.msra.mxu0 %v4194
    %4227 = vmatprep.subr.bf16.mxu0 %v4197
    %4228 = vmatpush1.bf16.msra.mxu0 %v4196
    %4229 = vmatprep.subr.bf16.mxu0 %v4199
    %4230 = vmatpush1.bf16.msra.mxu0 %v4198
    %4231 = vmatprep.subr.bf16.mxu0 %v4201
    %4232 = vmatpush1.bf16.msra.mxu0 %v4200
    %4233 = vmatprep.subr.bf16.mxu0 %v4221
    %4234 = vmatpush1.bf16.msra.mxu0 %v4218
    %4235 = vmatprep.subr.bf16.mxu0 0
    %4236 = vmatpush1.bf16.msra.mxu0 0
    %4237 = vmatprep.subr.bf16.mxu0 0
    %4238 = vmatpush1.bf16.msra.mxu0 0
    %4239 = vmatprep.subr.bf16.mxu0 0
    %4240 = vmatpush1.bf16.msra.mxu0 0
    %4241 = vmatprep.subr.bf16.mxu0 0
    %4242 = vmatpush1.bf16.msra.mxu0 0
    %4243 = vmatprep.subr.bf16.mxu0 0
    %4244 = vmatpush1.bf16.msra.mxu0 0
    %4245 = vmatprep.subr.bf16.mxu0 0
    %4246 = vmatpush1.bf16.msra.mxu0 0
    %4247 = vmatprep.subr.bf16.mxu0 0
    %4248 = vmatpush1.bf16.msra.mxu0 0
    %4249 = vmatprep.subr.bf16.mxu0 0
    %4250 = vmatpush1.bf16.msra.mxu0 0
    %4251 = vmatprep.subr.bf16.mxu0 0
    %4252 = vmatpush1.bf16.msra.mxu0 0
    %4253 = vmatprep.subr.bf16.mxu0 0
    %4254 = vmatpush1.bf16.msra.mxu0 0
    %4255 = vmatprep.mubr.bf16.mxu0 0
    %4256 = vmatmul.mubr.bf16.gmra.mrb[0].mxu0 %v4215
    %v4257 = vpop.f32.mrb[0].mxu0
    %v4258 = vadd.f32 0.0, %v4257
    %v4259 = vpop.f32.mrb[0].mxu0
    %v4260 = vadd.f32 0.0, %v4259
    %v4261 = vpop.f32.mrb[0].mxu0
    %v4262 = vadd.f32 0.0, %v4261
    %v4263 = vpop.f32.mrb[0].mxu0
    %v4264 = vadd.f32 0.0, %v4263
    %4265 = vdwg.mxu0
    %v4266 = vadd.f32 %v4090, %v4258
    %v4267 = vadd.f32 %v4091, %v4260
    %v4268 = vadd.f32 %v4092, %v4262
    %v4269 = vadd.f32 %v4093, %v4264
    %s4270 = scalar_lea.vmem %s8, 32
    %v4271 = vld [vmem:[%s4270] sm:$0xf]
    %v4272 = vld [vmem:[%s4270 + $0x4] sm:$0x7]
    %v4275 = vunpack.c.l.b16 %v4271
    %v4276 = vunpack.c.l.b16 %v4272
    %v4277 = vpack.c.b16 %v4276, %v4275
    %v4279 = vsel %vm3576, %v4277, 0
    %4281 = vmatprep.subr.bf16.mxu0 0
    %4282 = vmatpush1.bf16.msra.mxu0 %v3582
    %4283 = vmatprep.subr.bf16.mxu0 0
    %4284 = vmatpush1.bf16.msra.mxu0 0
    %4285 = vmatprep.subr.bf16.mxu0 0
    %4286 = vmatpush1.bf16.msra.mxu0 0
    %4287 = vmatprep.subr.bf16.mxu0 0
    %4288 = vmatpush1.bf16.msra.mxu0 0
    %4289 = vmatprep.subr.bf16.mxu0 0
    %4290 = vmatpush1.bf16.msra.mxu0 0
    %4291 = vmatprep.subr.bf16.mxu0 0
    %4292 = vmatpush1.bf16.msra.mxu0 0
    %4293 = vmatprep.subr.bf16.mxu0 0
    %4294 = vmatpush1.bf16.msra.mxu0 0
    %4295 = vmatprep.subr.bf16.mxu0 0
    %4296 = vmatpush1.bf16.msra.mxu0 0
    %4297 = vmatprep.subr.bf16.mxu0 0
    %4298 = vmatpush1.bf16.msra.mxu0 0
    %4299 = vmatprep.subr.bf16.mxu0 0
    %4300 = vmatpush1.bf16.msra.mxu0 0
    %4301 = vmatprep.subr.bf16.mxu0 0
    %4302 = vmatpush1.bf16.msra.mxu0 0
    %4303 = vmatprep.subr.bf16.mxu0 0
    %4304 = vmatpush1.bf16.msra.mxu0 0
    %4305 = vmatprep.subr.bf16.mxu0 0
    %4306 = vmatpush1.bf16.msra.mxu0 0
    %4307 = vmatprep.subr.bf16.mxu0 0
    %4308 = vmatpush1.bf16.msra.mxu0 0
    %4309 = vmatprep.subr.bf16.mxu0 0
    %4310 = vmatpush1.bf16.msra.mxu0 0
    %4311 = vmatprep.subr.bf16.mxu0 0
    %4312 = vmatpush1.bf16.msra.mxu0 0
    %4313 = vmatprep.mubr.bf16.mxu0 0
    %4314 = vmatmul.mubr.bf16.gmra.mrb[0].mxu0 %v4279
    %v4315 = vpop.f32.mrb[0].mxu0
    %v4316 = vadd.f32 0.0, %v4315
    %v4317 = vpop.f32.mrb[0].mxu0
    %v4318 = vpop.f32.mrb[0].mxu0
    %v4319 = vadd.f32 0.0, %v4318
    %v4320 = vpop.f32.mrb[0].mxu0
    %4321 = vdwg.mxu0
    %v4322 = vpack.c.bf16 %v4319, %v4316
    %s4323 = scalar_lea.vmem %s9, 352
    %v4324 = vld [vmem:[%s4323] sm:$0xff]
    %v4325 = vld [vmem:[%s4323 + $0x8] sm:$0xff]
    %v4326 = vld [vmem:[%s4323 + $0x10] sm:$0xff]
    %v4327 = vld [vmem:[%s4323 + $0x18] sm:$0xff]
    %v4328 = vld [vmem:[%s4323 + $0x20] sm:$0xff]
    %v4329 = vld [vmem:[%s4323 + $0x28] sm:$0xff]
    %v4330 = vld [vmem:[%s4323 + $0x30] sm:$0xff]
    %v4331 = vld [vmem:[%s4323 + $0x38] sm:$0xff]
    %v4332 = vld [vmem:[%s4323 + $0x40] sm:$0xff]
    %v4333 = vld [vmem:[%s4323 + $0x48] sm:$0xff]
    %v4334 = vld [vmem:[%s4323 + $0x50] sm:$0x33]
    %v4346 = vunpack.c.l.b16 %v4324
    %v4347 = vunpack.c.h.b16 %v4324
    %v4348 = vunpack.c.l.b16 %v4325
    %v4349 = vunpack.c.h.b16 %v4325
    %v4350 = vunpack.c.l.b16 %v4326
    %v4351 = vunpack.c.h.b16 %v4326
    %v4352 = vunpack.c.l.b16 %v4327
    %v4353 = vunpack.c.h.b16 %v4327
    %v4354 = vunpack.c.l.b16 %v4328
    %v4355 = vunpack.c.h.b16 %v4328
    %v4356 = vunpack.c.l.b16 %v4329
    %v4357 = vunpack.c.h.b16 %v4329
    %v4358 = vunpack.c.l.b16 %v4330
    %v4359 = vunpack.c.h.b16 %v4330
    %v4360 = vunpack.c.l.b16 %v4331
    %v4361 = vunpack.c.h.b16 %v4331
    %v4362 = vunpack.c.l.b16 %v4332
    %v4363 = vunpack.c.h.b16 %v4332
    %v4364 = vunpack.c.l.b16 %v4333
    %v4365 = vunpack.c.h.b16 %v4333
    %v4366 = vunpack.c.l.b16 %v4334
    %v4367 = vunpack.c.h.b16 %v4334
    %v4368 = vpack.c.b16 %v4348, %v4346
    %v4369 = vpack.c.b16 %v4349, %v4347
    %v4370 = vpack.c.b16 %v4352, %v4350
    %v4371 = vpack.c.b16 %v4353, %v4351
    %v4372 = vpack.c.b16 %v4356, %v4354
    %v4373 = vpack.c.b16 %v4357, %v4355
    %v4374 = vpack.c.b16 %v4360, %v4358
    %v4375 = vpack.c.b16 %v4361, %v4359
    %v4376 = vpack.c.b16 %v4364, %v4362
    %v4377 = vpack.c.b16 %v4365, %v4363
    %v4378 = vpack.c.b16 %v4366, %v4366
    %v4379 = vpack.c.b16 %v4367, %v4367
    %v4391 = vsel %vm3757, %v4322, 0
    %v4394 = vsel %vm3761, %v4378, 0
    %v4397 = vsel %vm3761, %v4379, 0
    %4399 = vmatprep.subr.bf16.mxu0 %v4369
    %4400 = vmatpush1.bf16.msra.mxu0 %v4368
    %4401 = vmatprep.subr.bf16.mxu0 %v4371
    %4402 = vmatpush1.bf16.msra.mxu0 %v4370
    %4403 = vmatprep.subr.bf16.mxu0 %v4373
    %4404 = vmatpush1.bf16.msra.mxu0 %v4372
    %4405 = vmatprep.subr.bf16.mxu0 %v4375
    %4406 = vmatpush1.bf16.msra.mxu0 %v4374
    %4407 = vmatprep.subr.bf16.mxu0 %v4377
    %4408 = vmatpush1.bf16.msra.mxu0 %v4376
    %4409 = vmatprep.subr.bf16.mxu0 %v4397
    %4410 = vmatpush1.bf16.msra.mxu0 %v4394
    %4411 = vmatprep.subr.bf16.mxu0 0
    %4412 = vmatpush1.bf16.msra.mxu0 0
    %4413 = vmatprep.subr.bf16.mxu0 0
    %4414 = vmatpush1.bf16.msra.mxu0 0
    %4415 = vmatprep.subr.bf16.mxu0 0
    %4416 = vmatpush1.bf16.msra.mxu0 0
    %4417 = vmatprep.subr.bf16.mxu0 0
    %4418 = vmatpush1.bf16.msra.mxu0 0
    %4419 = vmatprep.subr.bf16.mxu0 0
    %4420 = vmatpush1.bf16.msra.mxu0 0
    %4421 = vmatprep.subr.bf16.mxu0 0
    %4422 = vmatpush1.bf16.msra.mxu0 0
    %4423 = vmatprep.subr.bf16.mxu0 0
    %4424 = vmatpush1.bf16.msra.mxu0 0
    %4425 = vmatprep.subr.bf16.mxu0 0
    %4426 = vmatpush1.bf16.msra.mxu0 0
    %4427 = vmatprep.subr.bf16.mxu0 0
    %4428 = vmatpush1.bf16.msra.mxu0 0
    %4429 = vmatprep.subr.bf16.mxu0 0
    %4430 = vmatpush1.bf16.msra.mxu0 0
    %4431 = vmatprep.mubr.bf16.mxu0 0
    %4432 = vmatmul.mubr.bf16.gmra.mrb[0].mxu0 %v4391
    %v4433 = vpop.f32.mrb[0].mxu0
    %v4434 = vadd.f32 0.0, %v4433
    %v4435 = vpop.f32.mrb[0].mxu0
    %v4436 = vadd.f32 0.0, %v4435
    %v4437 = vpop.f32.mrb[0].mxu0
    %v4438 = vadd.f32 0.0, %v4437
    %v4439 = vpop.f32.mrb[0].mxu0
    %v4440 = vadd.f32 0.0, %v4439
    %4441 = vdwg.mxu0
    %v4442 = vadd.f32 %v4266, %v4434
    %v4443 = vadd.f32 %v4267, %v4436
    %v4444 = vadd.f32 %v4268, %v4438
    %v4445 = vadd.f32 %v4269, %v4440
    %v4447 = vlaneseq
    %v4448 = vshrl.u32 %v4447, 7
    %v4449 = vsub.s32 0, %v4448
    %v4450 = vrot.slane %v3563, %v4449
    %v4451 = vlaneseq
    %v4452 = vshrl.u32 %v4451, 7
    %v4453 = vsub.s32 1, %v4452
    %v4454 = vrot.slane %v3563, %v4453
    %v4457 = vadd.f32 %v4442, %v4450
    %v4458 = vadd.f32 %v4443, %v4454
    %v4459 = vadd.f32 %v4444, %v4450
    %v4460 = vadd.f32 %v4445, %v4454
    %v4461 = vsel %vm1996, %v4459, 0.0
    %v4462 = vadd.f32 %v4457, %v4461
    %v4463 = vrot.slane %v4462, 4
    %v4464 = vadd.f32 %v4462, %v4463
    %v4465 = vrot.slane %v4464, 2
    %v4466 = vadd.f32 %v4464, %v4465
    %v4467 = vrot.slane %v4466, 1
    %v4468 = vadd.f32 %v4466, %v4467
    %v4469 = vsel %vm1708, %v4458, 0.0
    %vm4470 = vcmask 783360
    %v4471 = vsel %vm4470, %v4460, 0.0
    %v4472 = vadd.f32 %v4469, %v4471
    %v4473 = vrot.slane %v4472, 4
    %v4474 = vadd.f32 %v4472, %v4473
    %v4475 = vrot.slane %v4474, 2
    %v4476 = vadd.f32 %v4474, %v4475
    %v4477 = vrot.slane %v4476, 1
    %v4478 = vadd.f32 %v4476, %v4477
    %v4479 = vmul.f32 %v4457, %v4457
    %v4480 = vmul.f32 %v4458, %v4458
    %v4481 = vmul.f32 %v4459, %v4459
    %v4482 = vmul.f32 %v4460, %v4460
    %v4483 = vsel %vm1996, %v4481, 0.0
    %v4484 = vadd.f32 %v4479, %v4483
    %v4485 = vrot.slane %v4484, 4
    %v4486 = vadd.f32 %v4484, %v4485
    %v4487 = vrot.slane %v4486, 2
    %v4488 = vadd.f32 %v4486, %v4487
    %v4489 = vrot.slane %v4488, 1
    %v4490 = vadd.f32 %v4488, %v4489
    %v4491 = vsel %vm1708, %v4480, 0.0
    %v4492 = vsel %vm4470, %v4482, 0.0
    %v4493 = vadd.f32 %v4491, %v4492
    %v4494 = vrot.slane %v4493, 4
    %v4495 = vadd.f32 %v4493, %v4494
    %v4496 = vrot.slane %v4495, 2
    %v4497 = vadd.f32 %v4495, %v4496
    %v4498 = vrot.slane %v4497, 1
    %v4499 = vadd.f32 %v4497, %v4498
    %v4500 = vld [vmem:[%s10] sm:$0xff]
    %v4501 = vld [vmem:[%s10 + $0x8] sm:$0xff]
    %v4502 = vld [vmem:[%s10 + $0x10] sm:$0xff]
    %v4503 = vld [vmem:[%s10 + $0x18] sm:$0xff]
    %v4504 = vld [vmem:[%s10 + $0x20] sm:$0xff]
    %v4505 = vld [vmem:[%s10 + $0x28] sm:$0xff]
    %v4506 = vld [vmem:[%s10 + $0x30] sm:$0xff]
    %v4507 = vld [vmem:[%s10 + $0x38] sm:$0xff]
    %v4508 = vld [vmem:[%s10 + $0x40] sm:$0xff]
    %v4509 = vld [vmem:[%s10 + $0x48] sm:$0xff]
    %v4510 = vld [vmem:[%s10 + $0x50] sm:$0xff]
    %v4511 = vld [vmem:[%s10 + $0x58] sm:$0xff]
    %v4512 = vld [vmem:[%s10 + $0x60] sm:$0xff]
    %v4513 = vld [vmem:[%s10 + $0x68] sm:$0xff]
    %v4514 = vld [vmem:[%s10 + $0x70] sm:$0xff]
    %v4515 = vld [vmem:[%s10 + $0x78] sm:$0xff]
    %v4516 = vld [vmem:[%s10 + $0x80] sm:$0xff]
    %v4517 = vld [vmem:[%s10 + $0x88] sm:$0xff]
    %v4518 = vld [vmem:[%s10 + $0x90] sm:$0xff]
    %v4519 = vld [vmem:[%s10 + $0x98] sm:$0xff]
    %v4520 = vld [vmem:[%s10 + $0xa0] sm:$0xff]
    %v4521 = vld [vmem:[%s10 + $0xa8] sm:$0xff]
    %v4522 = vld [vmem:[%s10 + $0xb0] sm:$0xff]
    %v4523 = vld [vmem:[%s10 + $0xb8] sm:$0xff]
    %v4524 = vld [vmem:[%s10 + $0xc0] sm:$0xff]
    %v4525 = vld [vmem:[%s10 + $0xc8] sm:$0xff]
    %v4526 = vld [vmem:[%s10 + $0xd0] sm:$0xff]
    %v4527 = vld [vmem:[%s10 + $0xd8] sm:$0xff]
    %v4528 = vld [vmem:[%s10 + $0xe0] sm:$0xff]
    %v4529 = vld [vmem:[%s10 + $0xe8] sm:$0xff]
    %v4530 = vld [vmem:[%s10 + $0xf0] sm:$0xff]
    %v4531 = vld [vmem:[%s10 + $0xf8] sm:$0xff]
    %v4532 = vld [vmem:[%s10 + $0x100] sm:$0xff]
    %v4533 = vld [vmem:[%s10 + $0x108] sm:$0xff]
    %v4534 = vld [vmem:[%s10 + $0x110] sm:$0xff]
    %v4535 = vld [vmem:[%s10 + $0x118] sm:$0xff]
    %v4536 = vld [vmem:[%s10 + $0x120] sm:$0xff]
    %v4537 = vld [vmem:[%s10 + $0x128] sm:$0xff]
    %v4538 = vld [vmem:[%s10 + $0x130] sm:$0xff]
    %v4539 = vld [vmem:[%s10 + $0x138] sm:$0xff]
    %v4540 = vld [vmem:[%s10 + $0x140] sm:$0xff]
    %v4541 = vld [vmem:[%s10 + $0x148] sm:$0xff]
    %v4542 = vld [vmem:[%s10 + $0x150] sm:$0xff]
    %v4543 = vld [vmem:[%s10 + $0x158] sm:$0xff]
    %v4544 = vld [vmem:[%s10 + $0x160] sm:$0xff]
    %v4545 = vld [vmem:[%s10 + $0x168] sm:$0xff]
    %v4546 = vld [vmem:[%s10 + $0x170] sm:$0xff]
    %v4547 = vld [vmem:[%s10 + $0x178] sm:$0xff]
    %v4548 = vld [vmem:[%s10 + $0x180] sm:$0xff]
    %v4549 = vld [vmem:[%s10 + $0x188] sm:$0xff]
    %v4550 = vld [vmem:[%s10 + $0x190] sm:$0xff]
    %v4551 = vld [vmem:[%s10 + $0x198] sm:$0xff]
    %v4552 = vld [vmem:[%s10 + $0x1a0] sm:$0xff]
    %v4553 = vld [vmem:[%s10 + $0x1a8] sm:$0xff]
    %v4554 = vld [vmem:[%s10 + $0x1b0] sm:$0xff]
    %v4555 = vld [vmem:[%s10 + $0x1b8] sm:$0xff]
    %v4557 = vsel %vm1708, %v4478, 0
    %4559 = vmatprep.subr.mxu0 %v4501
    %4560 = vmatpush1.msra.mxu0 %v4500
    %4561 = vmatprep.subr.mxu0 %v4503
    %4562 = vmatpush1.msra.mxu0 %v4502
    %4563 = vmatprep.subr.mxu0 %v4505
    %4564 = vmatpush1.msra.mxu0 %v4504
    %4565 = vmatprep.subr.mxu0 %v4507
    %4566 = vmatpush1.msra.mxu0 %v4506
    %4567 = vmatprep.subr.mxu0 %v4509
    %4568 = vmatpush1.msra.mxu0 %v4508
    %4569 = vmatprep.subr.mxu0 %v4511
    %4570 = vmatpush1.msra.mxu0 %v4510
    %4571 = vmatprep.subr.mxu0 %v4513
    %4572 = vmatpush1.msra.mxu0 %v4512
    %4573 = vmatprep.subr.mxu0 %v4515
    %4574 = vmatpush1.msra.mxu0 %v4514
    %4575 = vmatprep.subr.mxu0 %v4517
    %4576 = vmatpush1.msra.mxu0 %v4516
    %4577 = vmatprep.subr.mxu0 %v4519
    %4578 = vmatpush1.msra.mxu0 %v4518
    %4579 = vmatprep.subr.mxu0 %v4521
    %4580 = vmatpush1.msra.mxu0 %v4520
    %4581 = vmatprep.subr.mxu0 %v4523
    %4582 = vmatpush1.msra.mxu0 %v4522
    %4583 = vmatprep.subr.mxu0 %v4525
    %4584 = vmatpush1.msra.mxu0 %v4524
    %4585 = vmatprep.subr.mxu0 %v4527
    %4586 = vmatpush1.msra.mxu0 %v4526
    %4587 = vmatprep.subr.mxu0 %v4529
    %4588 = vmatpush1.msra.mxu0 %v4528
    %4589 = vmatprep.subr.mxu0 %v4531
    %4590 = vmatpush1.msra.mxu0 %v4530
    %4591 = vmatprep.subr.mxu0 %v4533
    %4592 = vmatpush1.msra.mxu0 %v4532
    %4593 = vmatprep.subr.mxu0 %v4535
    %4594 = vmatpush1.msra.mxu0 %v4534
    %4595 = vmatprep.subr.mxu0 %v4537
    %4596 = vmatpush1.msra.mxu0 %v4536
    %4597 = vmatprep.subr.mxu0 %v4539
    %4598 = vmatpush1.msra.mxu0 %v4538
    %4599 = vmatprep.subr.mxu0 %v4541
    %4600 = vmatpush1.msra.mxu0 %v4540
    %4601 = vmatprep.subr.mxu0 %v4543
    %4602 = vmatpush1.msra.mxu0 %v4542
    %4603 = vmatprep.subr.mxu0 %v4545
    %4604 = vmatpush1.msra.mxu0 %v4544
    %4605 = vmatprep.subr.mxu0 %v4547
    %4606 = vmatpush1.msra.mxu0 %v4546
    %4607 = vmatprep.subr.mxu0 %v4549
    %4608 = vmatpush1.msra.mxu0 %v4548
    %4609 = vmatprep.subr.mxu0 %v4551
    %4610 = vmatpush1.msra.mxu0 %v4550
    %4611 = vmatprep.subr.mxu0 %v4553
    %4612 = vmatpush1.msra.mxu0 %v4552
    %4613 = vmatprep.subr.mxu0 %v4555
    %4614 = vmatpush1.msra.mxu0 %v4554
    %4615 = vmatprep.subr.mxu0 0.0
    %4616 = vmatpush1.msra.mxu0 0.0
    %4617 = vmatprep.subr.mxu0 0.0
    %4618 = vmatpush1.msra.mxu0 0.0
    %4619 = vmatprep.subr.mxu0 0.0
    %4620 = vmatpush1.msra.mxu0 0.0
    %4621 = vmatprep.subr.mxu0 0.0
    %4622 = vmatpush1.msra.mxu0 0.0
    %4623 = vmatprep.mubr.f32.mxu0 %v4557
    %4624 = vmatmul.mubr.f32.gmra.mrb[0].mxu0 %v4468
    %v4625 = vpop.f32.mrb[0].mxu0
    %v4626 = vadd.f32 0.0, %v4625
    %v4627 = vpop.f32.mrb[0].mxu0
    %v4628 = vadd.f32 0.0, %v4627
    %4629 = vdwg.mxu0
    %v4631 = vsel %vm1708, %v4499, 0
    %4633 = vmatprep.subr.mxu0 %v4501
    %4634 = vmatpush1.msra.mxu0 %v4500
    %4635 = vmatprep.subr.mxu0 %v4503
    %4636 = vmatpush1.msra.mxu0 %v4502
    %4637 = vmatprep.subr.mxu0 %v4505
    %4638 = vmatpush1.msra.mxu0 %v4504
    %4639 = vmatprep.subr.mxu0 %v4507
    %4640 = vmatpush1.msra.mxu0 %v4506
    %4641 = vmatprep.subr.mxu0 %v4509
    %4642 = vmatpush1.msra.mxu0 %v4508
    %4643 = vmatprep.subr.mxu0 %v4511
    %4644 = vmatpush1.msra.mxu0 %v4510
    %4645 = vmatprep.subr.mxu0 %v4513
    %4646 = vmatpush1.msra.mxu0 %v4512
    %4647 = vmatprep.subr.mxu0 %v4515
    %4648 = vmatpush1.msra.mxu0 %v4514
    %4649 = vmatprep.subr.mxu0 %v4517
    %4650 = vmatpush1.msra.mxu0 %v4516
    %4651 = vmatprep.subr.mxu0 %v4519
    %4652 = vmatpush1.msra.mxu0 %v4518
    %4653 = vmatprep.subr.mxu0 %v4521
    %4654 = vmatpush1.msra.mxu0 %v4520
    %4655 = vmatprep.subr.mxu0 %v4523
    %4656 = vmatpush1.msra.mxu0 %v4522
    %4657 = vmatprep.subr.mxu0 %v4525
    %4658 = vmatpush1.msra.mxu0 %v4524
    %4659 = vmatprep.subr.mxu0 %v4527
    %4660 = vmatpush1.msra.mxu0 %v4526
    %4661 = vmatprep.subr.mxu0 %v4529
    %4662 = vmatpush1.msra.mxu0 %v4528
    %4663 = vmatprep.subr.mxu0 %v4531
    %4664 = vmatpush1.msra.mxu0 %v4530
    %4665 = vmatprep.subr.mxu0 %v4533
    %4666 = vmatpush1.msra.mxu0 %v4532
    %4667 = vmatprep.subr.mxu0 %v4535
    %4668 = vmatpush1.msra.mxu0 %v4534
    %4669 = vmatprep.subr.mxu0 %v4537
    %4670 = vmatpush1.msra.mxu0 %v4536
    %4671 = vmatprep.subr.mxu0 %v4539
    %4672 = vmatpush1.msra.mxu0 %v4538
    %4673 = vmatprep.subr.mxu0 %v4541
    %4674 = vmatpush1.msra.mxu0 %v4540
    %4675 = vmatprep.subr.mxu0 %v4543
    %4676 = vmatpush1.msra.mxu0 %v4542
    %4677 = vmatprep.subr.mxu0 %v4545
    %4678 = vmatpush1.msra.mxu0 %v4544
    %4679 = vmatprep.subr.mxu0 %v4547
    %4680 = vmatpush1.msra.mxu0 %v4546
    %4681 = vmatprep.subr.mxu0 %v4549
    %4682 = vmatpush1.msra.mxu0 %v4548
    %4683 = vmatprep.subr.mxu0 %v4551
    %4684 = vmatpush1.msra.mxu0 %v4550
    %4685 = vmatprep.subr.mxu0 %v4553
    %4686 = vmatpush1.msra.mxu0 %v4552
    %4687 = vmatprep.subr.mxu0 %v4555
    %4688 = vmatpush1.msra.mxu0 %v4554
    %4689 = vmatprep.subr.mxu0 0.0
    %4690 = vmatpush1.msra.mxu0 0.0
    %4691 = vmatprep.subr.mxu0 0.0
    %4692 = vmatpush1.msra.mxu0 0.0
    %4693 = vmatprep.subr.mxu0 0.0
    %4694 = vmatpush1.msra.mxu0 0.0
    %4695 = vmatprep.subr.mxu0 0.0
    %4696 = vmatpush1.msra.mxu0 0.0
    %4697 = vmatprep.mubr.f32.mxu0 %v4631
    %4698 = vmatmul.mubr.f32.gmra.mrb[0].mxu0 %v4490
    %v4699 = vpop.f32.mrb[0].mxu0
    %v4700 = vadd.f32 0.0, %v4699
    %v4701 = vpop.f32.mrb[0].mxu0
    %v4702 = vadd.f32 0.0, %v4701
    %4703 = vdwg.mxu0
    %v4704 = vmul.f32 %v4626, 0.0051020407
    %v4705 = vmul.f32 %v4628, 0.0051020407
    %v4706 = vmul.f32 %v4700, 0.0051020407
    %v4707 = vmul.f32 %v4702, 0.0051020407
    %v4708 = vmul.f32 %v4704, %v4704
    %v4709 = vmul.f32 %v4705, %v4705
    %v4710 = vsub.f32 %v4706, %v4708
    %v4711 = vsub.f32 %v4707, %v4709
    %v4712 = vadd.f32 %v4710, 1e-05
    %v4713 = vadd.f32 %v4711, 1e-05
    %v4714 = vrsqrt.pop %v4712
    %v4715 = vrsqrt.pop %v4713
    %v4718 = vcombine.low %v4714, %v4715
    %v4720 = vunpack.c.l.s4 1966171168
    %v4721 = vunpack.c.0.s8 %v4720
    %v4722 = vlaneseq
    %v4723 = vshrl.u32 %v4722, 7
    %v4724 = vsub.s32 %v4721, %v4723
    %v4725 = vrot.slane %v4718, %v4724
    %v4727 = vunpack.c.l.s4 1966171168
    %v4728 = vunpack.c.0.s8 %v4727
    %v4729 = vlaneseq
    %v4730 = vshrl.u32 %v4729, 7
    %v4731 = vsub.s32 %v4728, %v4730
    %v4732 = vrot.slane %v4725, %v4731
    %v4734 = vmul.f32 %v3565, %v4732
    %v4736 = vlaneseq
    %v4737 = vshrl.u32 %v4736, 7
    %v4738 = vsub.s32 0, %v4737
    %v4739 = vrot.slane %v4734, %v4738
    %v4740 = vlaneseq
    %v4741 = vshrl.u32 %v4740, 7
    %v4742 = vsub.s32 1, %v4741
    %v4743 = vrot.slane %v4734, %v4742
    %v4746 = vmul.f32 %v4704, %v4739
    %v4747 = vmul.f32 %v4705, %v4743
    %v4750 = vcombine.low %v4746, %v4747
    %v4752 = vunpack.c.l.s4 1966171168
    %v4753 = vunpack.c.0.s8 %v4752
    %v4754 = vlaneseq
    %v4755 = vshrl.u32 %v4754, 7
    %v4756 = vsub.s32 %v4753, %v4755
    %v4757 = vrot.slane %v4750, %v4756
    %v4759 = vunpack.c.l.s4 1966171168
    %v4760 = vunpack.c.0.s8 %v4759
    %v4761 = vlaneseq
    %v4762 = vshrl.u32 %v4761, 7
    %v4763 = vsub.s32 %v4760, %v4762
    %v4764 = vrot.slane %v4757, %v4763
    %v4766 = vsub.f32 %v3567, %v4764
    %v4767 = vmul.f32 %v4457, %v4739
    %v4768 = vmul.f32 %v4458, %v4743
    %v4769 = vmul.f32 %v4459, %v4739
    %v4770 = vmul.f32 %v4460, %v4743
    %v4772 = vlaneseq
    %v4773 = vshrl.u32 %v4772, 7
    %v4774 = vsub.s32 0, %v4773
    %v4775 = vrot.slane %v4766, %v4774
    %v4776 = vlaneseq
    %v4777 = vshrl.u32 %v4776, 7
    %v4778 = vsub.s32 1, %v4777
    %v4779 = vrot.slane %v4766, %v4778
    %v4782 = vadd.f32 %v4767, %v4775
    %v4783 = vadd.f32 %v4768, %v4779
    %v4784 = vadd.f32 %v4769, %v4775
    %v4785 = vadd.f32 %v4770, %v4779
    %v4786 = vmax.f32 %v4782, 0.0
    %v4787 = vmax.f32 %v4783, 0.0
    %v4788 = vmax.f32 %v4784, 0.0
    %v4789 = vmax.f32 %v4785, 0.0
    %v4790 = vpack.c.bf16 %v4788, %v4786
    %v4791 = vpack.c.bf16 %v4789, %v4787
    %v4792 = vld [vmem:[%s11] sm:$0xf]
    %v4793 = vld [vmem:[%s11 + $0x4] sm:$0xf]
    %v4794 = vld [vmem:[%s11 + $0x8] sm:$0xf]
    %v4795 = vld [vmem:[%s11 + $0xc] sm:$0xf]
    %v4796 = vld [vmem:[%s11 + $0x10] sm:$0xf]
    %v4797 = vld [vmem:[%s11 + $0x14] sm:$0xf]
    %v4798 = vld [vmem:[%s11 + $0x18] sm:$0xf]
    %v4799 = vld [vmem:[%s11 + $0x1c] sm:$0xf]
    %v4800 = vld [vmem:[%s11 + $0x20] sm:$0xf]
    %v4801 = vld [vmem:[%s11 + $0x24] sm:$0xf]
    %v4802 = vld [vmem:[%s11 + $0x28] sm:$0xf]
    %v4803 = vld [vmem:[%s11 + $0x2c] sm:$0xf]
    %v4804 = vld [vmem:[%s11 + $0x30] sm:$0xf]
    %v4805 = vld [vmem:[%s11 + $0x34] sm:$0xf]
    %v4806 = vld [vmem:[%s11 + $0x38] sm:$0xf]
    %v4807 = vld [vmem:[%s11 + $0x3c] sm:$0xf]
    %v4808 = vld [vmem:[%s11 + $0x40] sm:$0xf]
    %v4809 = vld [vmem:[%s11 + $0x44] sm:$0xf]
    %v4810 = vld [vmem:[%s11 + $0x48] sm:$0xf]
    %v4811 = vld [vmem:[%s11 + $0x4c] sm:$0xf]
    %v4812 = vld [vmem:[%s11 + $0x50] sm:$0xf]
    %v4813 = vld [vmem:[%s11 + $0x54] sm:$0xf]
    %v4814 = vld [vmem:[%s11 + $0x58] sm:$0xf]
    %v4815 = vld [vmem:[%s11 + $0x5c] sm:$0xf]
    %v4816 = vld [vmem:[%s11 + $0x60] sm:$0xf]
    %v4817 = vld [vmem:[%s11 + $0x64] sm:$0xf]
    %v4818 = vld [vmem:[%s11 + $0x68] sm:$0xf]
    %v4819 = vld [vmem:[%s11 + $0x6c] sm:$0xf]
    %v4848 = vunpack.c.l.b16 %v4792
    %v4849 = vunpack.c.l.b16 %v4793
    %v4850 = vunpack.c.l.b16 %v4794
    %v4851 = vunpack.c.l.b16 %v4795
    %v4852 = vunpack.c.l.b16 %v4796
    %v4853 = vunpack.c.l.b16 %v4797
    %v4854 = vunpack.c.l.b16 %v4798
    %v4855 = vunpack.c.l.b16 %v4799
    %v4856 = vunpack.c.l.b16 %v4800
    %v4857 = vunpack.c.l.b16 %v4801
    %v4858 = vunpack.c.l.b16 %v4802
    %v4859 = vunpack.c.l.b16 %v4803
    %v4860 = vunpack.c.l.b16 %v4804
    %v4861 = vunpack.c.l.b16 %v4805
    %v4862 = vunpack.c.l.b16 %v4806
    %v4863 = vunpack.c.l.b16 %v4807
    %v4864 = vunpack.c.l.b16 %v4808
    %v4865 = vunpack.c.l.b16 %v4809
    %v4866 = vunpack.c.l.b16 %v4810
    %v4867 = vunpack.c.l.b16 %v4811
    %v4868 = vunpack.c.l.b16 %v4812
    %v4869 = vunpack.c.l.b16 %v4813
    %v4870 = vunpack.c.l.b16 %v4814
    %v4871 = vunpack.c.l.b16 %v4815
    %v4872 = vunpack.c.l.b16 %v4816
    %v4873 = vunpack.c.l.b16 %v4817
    %v4874 = vunpack.c.l.b16 %v4818
    %v4875 = vunpack.c.l.b16 %v4819
    %v4876 = vpack.c.b16 %v4849, %v4848
    %v4877 = vpack.c.b16 %v4851, %v4850
    %v4878 = vpack.c.b16 %v4853, %v4852
    %v4879 = vpack.c.b16 %v4855, %v4854
    %v4880 = vpack.c.b16 %v4857, %v4856
    %v4881 = vpack.c.b16 %v4859, %v4858
    %v4882 = vpack.c.b16 %v4861, %v4860
    %v4883 = vpack.c.b16 %v4863, %v4862
    %v4884 = vpack.c.b16 %v4865, %v4864
    %v4885 = vpack.c.b16 %v4867, %v4866
    %v4886 = vpack.c.b16 %v4869, %v4868
    %v4887 = vpack.c.b16 %v4871, %v4870
    %v4888 = vpack.c.b16 %v4873, %v4872
    %v4889 = vpack.c.b16 %v4875, %v4874
    %v4905 = vsel %vm1708, %v4791, 0
    %4907 = vmatprep.subr.bf16.mxu0 0
    %4908 = vmatpush1.bf16.msra.mxu0 %v4876
    %4909 = vmatprep.subr.bf16.mxu0 0
    %4910 = vmatpush1.bf16.msra.mxu0 %v4877
    %4911 = vmatprep.subr.bf16.mxu0 0
    %4912 = vmatpush1.bf16.msra.mxu0 %v4878
    %4913 = vmatprep.subr.bf16.mxu0 0
    %4914 = vmatpush1.bf16.msra.mxu0 %v4879
    %4915 = vmatprep.subr.bf16.mxu0 0
    %4916 = vmatpush1.bf16.msra.mxu0 %v4880
    %4917 = vmatprep.subr.bf16.mxu0 0
    %4918 = vmatpush1.bf16.msra.mxu0 %v4881
    %4919 = vmatprep.subr.bf16.mxu0 0
    %4920 = vmatpush1.bf16.msra.mxu0 %v4882
    %4921 = vmatprep.subr.bf16.mxu0 0
    %4922 = vmatpush1.bf16.msra.mxu0 %v4883
    %4923 = vmatprep.subr.bf16.mxu0 0
    %4924 = vmatpush1.bf16.msra.mxu0 %v4884
    %4925 = vmatprep.subr.bf16.mxu0 0
    %4926 = vmatpush1.bf16.msra.mxu0 %v4885
    %4927 = vmatprep.subr.bf16.mxu0 0
    %4928 = vmatpush1.bf16.msra.mxu0 %v4886
    %4929 = vmatprep.subr.bf16.mxu0 0
    %4930 = vmatpush1.bf16.msra.mxu0 %v4887
    %4931 = vmatprep.subr.bf16.mxu0 0
    %4932 = vmatpush1.bf16.msra.mxu0 %v4888
    %4933 = vmatprep.subr.bf16.mxu0 0
    %4934 = vmatpush1.bf16.msra.mxu0 %v4889
    %4935 = vmatprep.subr.bf16.mxu0 0
    %4936 = vmatpush1.bf16.msra.mxu0 0
    %4937 = vmatprep.subr.bf16.mxu0 0
    %4938 = vmatpush1.bf16.msra.mxu0 0
    %4939 = vmatprep.mubr.bf16.mxu0 %v4905
    %4940 = vmatmul.mubr.bf16.gmra.mrb[0].mxu0 %v4790
    %v4941 = vpop.f32.mrb[0].mxu0
    %v4942 = vadd.f32 0.0, %v4941
    %v4943 = vpop.f32.mrb[0].mxu0
    %v4944 = vpop.f32.mrb[0].mxu0
    %v4945 = vadd.f32 0.0, %v4944
    %v4946 = vpop.f32.mrb[0].mxu0
    %4947 = vdwg.mxu0
    %s4948 = scalar_lea.vmem %s11, 112
    %v4949 = vld [vmem:[%s4948] sm:$0xf]
    %v4950 = vld [vmem:[%s4948 + $0x4] sm:$0xf]
    %v4951 = vld [vmem:[%s4948 + $0x8] sm:$0xf]
    %v4952 = vld [vmem:[%s4948 + $0xc] sm:$0xf]
    %v4953 = vld [vmem:[%s4948 + $0x10] sm:$0xf]
    %v4954 = vld [vmem:[%s4948 + $0x14] sm:$0xf]
    %v4955 = vld [vmem:[%s4948 + $0x18] sm:$0xf]
    %v4956 = vld [vmem:[%s4948 + $0x1c] sm:$0xf]
    %v4957 = vld [vmem:[%s4948 + $0x20] sm:$0xf]
    %v4958 = vld [vmem:[%s4948 + $0x24] sm:$0xf]
    %v4959 = vld [vmem:[%s4948 + $0x28] sm:$0xf]
    %v4960 = vld [vmem:[%s4948 + $0x2c] sm:$0xf]
    %v4961 = vld [vmem:[%s4948 + $0x30] sm:$0xf]
    %v4962 = vld [vmem:[%s4948 + $0x34] sm:$0xf]
    %v4963 = vld [vmem:[%s4948 + $0x38] sm:$0xf]
    %v4964 = vld [vmem:[%s4948 + $0x3c] sm:$0xf]
    %v4965 = vld [vmem:[%s4948 + $0x40] sm:$0xf]
    %v4966 = vld [vmem:[%s4948 + $0x44] sm:$0xf]
    %v4967 = vld [vmem:[%s4948 + $0x48] sm:$0xf]
    %v4968 = vld [vmem:[%s4948 + $0x4c] sm:$0xf]
    %v4969 = vld [vmem:[%s4948 + $0x50] sm:$0xf]
    %v4970 = vld [vmem:[%s4948 + $0x54] sm:$0xf]
    %v4971 = vld [vmem:[%s4948 + $0x58] sm:$0xf]
    %v4972 = vld [vmem:[%s4948 + $0x5c] sm:$0xf]
    %v4973 = vld [vmem:[%s4948 + $0x60] sm:$0xf]
    %v4974 = vld [vmem:[%s4948 + $0x64] sm:$0xf]
    %v4975 = vld [vmem:[%s4948 + $0x68] sm:$0xf]
    %v4976 = vld [vmem:[%s4948 + $0x6c] sm:$0xf]
    %v5005 = vunpack.c.l.b16 %v4949
    %v5006 = vunpack.c.l.b16 %v4950
    %v5007 = vunpack.c.l.b16 %v4951
    %v5008 = vunpack.c.l.b16 %v4952
    %v5009 = vunpack.c.l.b16 %v4953
    %v5010 = vunpack.c.l.b16 %v4954
    %v5011 = vunpack.c.l.b16 %v4955
    %v5012 = vunpack.c.l.b16 %v4956
    %v5013 = vunpack.c.l.b16 %v4957
    %v5014 = vunpack.c.l.b16 %v4958
    %v5015 = vunpack.c.l.b16 %v4959
    %v5016 = vunpack.c.l.b16 %v4960
    %v5017 = vunpack.c.l.b16 %v4961
    %v5018 = vunpack.c.l.b16 %v4962
    %v5019 = vunpack.c.l.b16 %v4963
    %v5020 = vunpack.c.l.b16 %v4964
    %v5021 = vunpack.c.l.b16 %v4965
    %v5022 = vunpack.c.l.b16 %v4966
    %v5023 = vunpack.c.l.b16 %v4967
    %v5024 = vunpack.c.l.b16 %v4968
    %v5025 = vunpack.c.l.b16 %v4969
    %v5026 = vunpack.c.l.b16 %v4970
    %v5027 = vunpack.c.l.b16 %v4971
    %v5028 = vunpack.c.l.b16 %v4972
    %v5029 = vunpack.c.l.b16 %v4973
    %v5030 = vunpack.c.l.b16 %v4974
    %v5031 = vunpack.c.l.b16 %v4975
    %v5032 = vunpack.c.l.b16 %v4976
    %v5033 = vpack.c.b16 %v5006, %v5005
    %v5034 = vpack.c.b16 %v5008, %v5007
    %v5035 = vpack.c.b16 %v5010, %v5009
    %v5036 = vpack.c.b16 %v5012, %v5011
    %v5037 = vpack.c.b16 %v5014, %v5013
    %v5038 = vpack.c.b16 %v5016, %v5015
    %v5039 = vpack.c.b16 %v5018, %v5017
    %v5040 = vpack.c.b16 %v5020, %v5019
    %v5041 = vpack.c.b16 %v5022, %v5021
    %v5042 = vpack.c.b16 %v5024, %v5023
    %v5043 = vpack.c.b16 %v5026, %v5025
    %v5044 = vpack.c.b16 %v5028, %v5027
    %v5045 = vpack.c.b16 %v5030, %v5029
    %v5046 = vpack.c.b16 %v5032, %v5031
    %5061 = vmatprep.subr.bf16.mxu0 0
    %5062 = vmatpush1.bf16.msra.mxu0 %v5033
    %5063 = vmatprep.subr.bf16.mxu0 0
    %5064 = vmatpush1.bf16.msra.mxu0 %v5034
    %5065 = vmatprep.subr.bf16.mxu0 0
    %5066 = vmatpush1.bf16.msra.mxu0 %v5035
    %5067 = vmatprep.subr.bf16.mxu0 0
    %5068 = vmatpush1.bf16.msra.mxu0 %v5036
    %5069 = vmatprep.subr.bf16.mxu0 0
    %5070 = vmatpush1.bf16.msra.mxu0 %v5037
    %5071 = vmatprep.subr.bf16.mxu0 0
    %5072 = vmatpush1.bf16.msra.mxu0 %v5038
    %5073 = vmatprep.subr.bf16.mxu0 0
    %5074 = vmatpush1.bf16.msra.mxu0 %v5039
    %5075 = vmatprep.subr.bf16.mxu0 0
    %5076 = vmatpush1.bf16.msra.mxu0 %v5040
    %5077 = vmatprep.subr.bf16.mxu0 0
    %5078 = vmatpush1.bf16.msra.mxu0 %v5041
    %5079 = vmatprep.subr.bf16.mxu0 0
    %5080 = vmatpush1.bf16.msra.mxu0 %v5042
    %5081 = vmatprep.subr.bf16.mxu0 0
    %5082 = vmatpush1.bf16.msra.mxu0 %v5043
    %5083 = vmatprep.subr.bf16.mxu0 0
    %5084 = vmatpush1.bf16.msra.mxu0 %v5044
    %5085 = vmatprep.subr.bf16.mxu0 0
    %5086 = vmatpush1.bf16.msra.mxu0 %v5045
    %5087 = vmatprep.subr.bf16.mxu0 0
    %5088 = vmatpush1.bf16.msra.mxu0 %v5046
    %5089 = vmatprep.subr.bf16.mxu0 0
    %5090 = vmatpush1.bf16.msra.mxu0 0
    %5091 = vmatprep.subr.bf16.mxu0 0
    %5092 = vmatpush1.bf16.msra.mxu0 0
    %5093 = vmatprep.mubr.bf16.mxu0 %v4905
    %5094 = vmatmul.mubr.bf16.gmra.mrb[0].mxu0 %v4790
    %v5095 = vpop.f32.mrb[0].mxu0
    %v5096 = vadd.f32 0.0, %v5095
    %v5097 = vpop.f32.mrb[0].mxu0
    %v5098 = vpop.f32.mrb[0].mxu0
    %v5099 = vadd.f32 0.0, %v5098
    %v5100 = vpop.f32.mrb[0].mxu0
    %5101 = vdwg.mxu0
    %v5102 = vmax.f32 %v4942, %v5096
    %v5103 = vmax.f32 %v4945, %v5099
    %v5104 = vpack.c.bf16 %v5103, %v5102
    %v5105 = vld [vmem:[%s12] sm:$0xf]
    %v5107 = vsel %vm3576, %v5105, 0
    %v5110 = vsel %vm3580, %v5104, 0
    %5112 = vmatprep.subr.bf16.mxu0 0
    %5113 = vmatpush1.bf16.msra.mxu0 %v5110
    %5114 = vmatprep.subr.bf16.mxu0 0
    %5115 = vmatpush1.bf16.msra.mxu0 0
    %5116 = vmatprep.subr.bf16.mxu0 0
    %5117 = vmatpush1.bf16.msra.mxu0 0
    %5118 = vmatprep.subr.bf16.mxu0 0
    %5119 = vmatpush1.bf16.msra.mxu0 0
    %5120 = vmatprep.subr.bf16.mxu0 0
    %5121 = vmatpush1.bf16.msra.mxu0 0
    %5122 = vmatprep.subr.bf16.mxu0 0
    %5123 = vmatpush1.bf16.msra.mxu0 0
    %5124 = vmatprep.subr.bf16.mxu0 0
    %5125 = vmatpush1.bf16.msra.mxu0 0
    %5126 = vmatprep.subr.bf16.mxu0 0
    %5127 = vmatpush1.bf16.msra.mxu0 0
    %5128 = vmatprep.subr.bf16.mxu0 0
    %5129 = vmatpush1.bf16.msra.mxu0 0
    %5130 = vmatprep.subr.bf16.mxu0 0
    %5131 = vmatpush1.bf16.msra.mxu0 0
    %5132 = vmatprep.subr.bf16.mxu0 0
    %5133 = vmatpush1.bf16.msra.mxu0 0
    %5134 = vmatprep.subr.bf16.mxu0 0
    %5135 = vmatpush1.bf16.msra.mxu0 0
    %5136 = vmatprep.subr.bf16.mxu0 0
    %5137 = vmatpush1.bf16.msra.mxu0 0
    %5138 = vmatprep.subr.bf16.mxu0 0
    %5139 = vmatpush1.bf16.msra.mxu0 0
    %5140 = vmatprep.subr.bf16.mxu0 0
    %5141 = vmatpush1.bf16.msra.mxu0 0
    %5142 = vmatprep.subr.bf16.mxu0 0
    %5143 = vmatpush1.bf16.msra.mxu0 0
    %5144 = vmatprep.mubr.bf16.mxu0 0
    %5145 = vmatmul.mubr.bf16.gmra.mrb[0].mxu0 %v5107
    %v5146 = vpop.f32.mrb[0].mxu0
    %v5147 = vadd.f32 0.0, %v5146
    %v5148 = vpop.f32.mrb[0].mxu0
    %v5149 = vpop.f32.mrb[0].mxu0
    %v5150 = vpop.f32.mrb[0].mxu0
    %5151 = vdwg.mxu0
    %s5152 = scalar_lea.vmem %s12, 4
    %v5153 = vld [vmem:[%s5152] sm:$0xf]
    %v5155 = vsel %vm3576, %v5153, 0
    %5157 = vmatprep.subr.bf16.mxu0 0
    %5158 = vmatpush1.bf16.msra.mxu0 %v5110
    %5159 = vmatprep.subr.bf16.mxu0 0
    %5160 = vmatpush1.bf16.msra.mxu0 0
    %5161 = vmatprep.subr.bf16.mxu0 0
    %5162 = vmatpush1.bf16.msra.mxu0 0
    %5163 = vmatprep.subr.bf16.mxu0 0
    %5164 = vmatpush1.bf16.msra.mxu0 0
    %5165 = vmatprep.subr.bf16.mxu0 0
    %5166 = vmatpush1.bf16.msra.mxu0 0
    %5167 = vmatprep.subr.bf16.mxu0 0
    %5168 = vmatpush1.bf16.msra.mxu0 0
    %5169 = vmatprep.subr.bf16.mxu0 0
    %5170 = vmatpush1.bf16.msra.mxu0 0
    %5171 = vmatprep.subr.bf16.mxu0 0
    %5172 = vmatpush1.bf16.msra.mxu0 0
    %5173 = vmatprep.subr.bf16.mxu0 0
    %5174 = vmatpush1.bf16.msra.mxu0 0
    %5175 = vmatprep.subr.bf16.mxu0 0
    %5176 = vmatpush1.bf16.msra.mxu0 0
    %5177 = vmatprep.subr.bf16.mxu0 0
    %5178 = vmatpush1.bf16.msra.mxu0 0
    %5179 = vmatprep.subr.bf16.mxu0 0
    %5180 = vmatpush1.bf16.msra.mxu0 0
    %5181 = vmatprep.subr.bf16.mxu0 0
    %5182 = vmatpush1.bf16.msra.mxu0 0
    %5183 = vmatprep.subr.bf16.mxu0 0
    %5184 = vmatpush1.bf16.msra.mxu0 0
    %5185 = vmatprep.subr.bf16.mxu0 0
    %5186 = vmatpush1.bf16.msra.mxu0 0
    %5187 = vmatprep.subr.bf16.mxu0 0
    %5188 = vmatpush1.bf16.msra.mxu0 0
    %5189 = vmatprep.mubr.bf16.mxu0 0
    %5190 = vmatmul.mubr.bf16.gmra.mrb[0].mxu0 %v5155
    %v5191 = vpop.f32.mrb[0].mxu0
    %v5192 = vadd.f32 0.0, %v5191
    %v5193 = vpop.f32.mrb[0].mxu0
    %v5194 = vpop.f32.mrb[0].mxu0
    %v5195 = vpop.f32.mrb[0].mxu0
    %5196 = vdwg.mxu0
    %v5197 = vmax.f32 %v5147, %v5192
    %v5198 = vpack.c.bf16 %v5197, %v5197
    %v5199 = vld [vmem:[%s16 + $0x6] ss:$0 sm:$0xff]
    %v5200 = vld [vmem:[%s13] sm:$0xf]
    %v5201 = vld [vmem:[%s13 + $0x4] sm:$0xf]
    %v5202 = vld [vmem:[%s13 + $0x8] sm:$0xf]
    %v5203 = vld [vmem:[%s13 + $0xc] sm:$0xf]
    %v5204 = vld [vmem:[%s13 + $0x10] sm:$0xf]
    %v5205 = vld [vmem:[%s13 + $0x14] sm:$0xf]
    %v5206 = vld [vmem:[%s13 + $0x18] sm:$0xf]
    %v5207 = vld [vmem:[%s13 + $0x1c] sm:$0xf]
    %v5208 = vld [vmem:[%s13 + $0x20] sm:$0xf]
    %v5209 = vld [vmem:[%s13 + $0x24] sm:$0xf]
    %v5210 = vld [vmem:[%s13 + $0x28] sm:$0xf]
    %v5211 = vld [vmem:[%s13 + $0x2c] sm:$0xf]
    %v5212 = vld [vmem:[%s13 + $0x30] sm:$0xf]
    %v5213 = vld [vmem:[%s13 + $0x34] sm:$0xf]
    %v5228 = vunpack.c.l.b16 %v5200
    %v5229 = vunpack.c.l.b16 %v5201
    %v5230 = vunpack.c.l.b16 %v5202
    %v5231 = vunpack.c.l.b16 %v5203
    %v5232 = vunpack.c.l.b16 %v5204
    %v5233 = vunpack.c.l.b16 %v5205
    %v5234 = vunpack.c.l.b16 %v5206
    %v5235 = vunpack.c.l.b16 %v5207
    %v5236 = vunpack.c.l.b16 %v5208
    %v5237 = vunpack.c.l.b16 %v5209
    %v5238 = vunpack.c.l.b16 %v5210
    %v5239 = vunpack.c.l.b16 %v5211
    %v5240 = vunpack.c.l.b16 %v5212
    %v5241 = vunpack.c.l.b16 %v5213
    %v5242 = vpack.c.b16 %v5229, %v5228
    %v5243 = vpack.c.b16 %v5231, %v5230
    %v5244 = vpack.c.b16 %v5233, %v5232
    %v5245 = vpack.c.b16 %v5235, %v5234
    %v5246 = vpack.c.b16 %v5237, %v5236
    %v5247 = vpack.c.b16 %v5239, %v5238
    %v5248 = vpack.c.b16 %v5241, %v5240
    %vm5256 = vcmask 916480
    %v5258 = vsel %vm5256, %v5198, 0
    %5260 = vmatprep.subr.bf16.mxu0 0
    %5261 = vmatpush1.bf16.msra.mxu0 %v5242
    %5262 = vmatprep.subr.bf16.mxu0 0
    %5263 = vmatpush1.bf16.msra.mxu0 %v5243
    %5264 = vmatprep.subr.bf16.mxu0 0
    %5265 = vmatpush1.bf16.msra.mxu0 %v5244
    %5266 = vmatprep.subr.bf16.mxu0 0
    %5267 = vmatpush1.bf16.msra.mxu0 %v5245
    %5268 = vmatprep.subr.bf16.mxu0 0
    %5269 = vmatpush1.bf16.msra.mxu0 %v5246
    %5270 = vmatprep.subr.bf16.mxu0 0
    %5271 = vmatpush1.bf16.msra.mxu0 %v5247
    %5272 = vmatprep.subr.bf16.mxu0 0
    %5273 = vmatpush1.bf16.msra.mxu0 %v5248
    %5274 = vmatprep.subr.bf16.mxu0 0
    %5275 = vmatpush1.bf16.msra.mxu0 0
    %5276 = vmatprep.subr.bf16.mxu0 0
    %5277 = vmatpush1.bf16.msra.mxu0 0
    %5278 = vmatprep.subr.bf16.mxu0 0
    %5279 = vmatpush1.bf16.msra.mxu0 0
    %5280 = vmatprep.subr.bf16.mxu0 0
    %5281 = vmatpush1.bf16.msra.mxu0 0
    %5282 = vmatprep.subr.bf16.mxu0 0
    %5283 = vmatpush1.bf16.msra.mxu0 0
    %5284 = vmatprep.subr.bf16.mxu0 0
    %5285 = vmatpush1.bf16.msra.mxu0 0
    %5286 = vmatprep.subr.bf16.mxu0 0
    %5287 = vmatpush1.bf16.msra.mxu0 0
    %5288 = vmatprep.subr.bf16.mxu0 0
    %5289 = vmatpush1.bf16.msra.mxu0 0
    %5290 = vmatprep.subr.bf16.mxu0 0
    %5291 = vmatpush1.bf16.msra.mxu0 0
    %5292 = vmatprep.mubr.bf16.mxu0 0
    %5293 = vmatmul.mubr.bf16.gmra.mrb[0].mxu0 %v5258
    %v5294 = vpop.f32.mrb[0].mxu0
    %v5295 = vadd.f32 0.0, %v5294
    %v5296 = vpop.f32.mrb[0].mxu0
    %v5297 = vpop.f32.mrb[0].mxu0
    %v5298 = vpop.f32.mrb[0].mxu0
    %5299 = vdwg.mxu0
    %v5300 = vadd.f32 %v5199, %v5295
    %s5301 = scalar_lea.vmem %s13, 56
    %v5302 = vld [vmem:[%s5301] sm:$0xf]
    %v5303 = vld [vmem:[%s5301 + $0x4] sm:$0xf]
    %v5304 = vld [vmem:[%s5301 + $0x8] sm:$0xf]
    %v5305 = vld [vmem:[%s5301 + $0xc] sm:$0xf]
    %v5306 = vld [vmem:[%s5301 + $0x10] sm:$0xf]
    %v5307 = vld [vmem:[%s5301 + $0x14] sm:$0xf]
    %v5308 = vld [vmem:[%s5301 + $0x18] sm:$0xf]
    %v5309 = vld [vmem:[%s5301 + $0x1c] sm:$0xf]
    %v5310 = vld [vmem:[%s5301 + $0x20] sm:$0xf]
    %v5311 = vld [vmem:[%s5301 + $0x24] sm:$0xf]
    %v5312 = vld [vmem:[%s5301 + $0x28] sm:$0xf]
    %v5313 = vld [vmem:[%s5301 + $0x2c] sm:$0xf]
    %v5314 = vld [vmem:[%s5301 + $0x30] sm:$0xf]
    %v5315 = vld [vmem:[%s5301 + $0x34] sm:$0xf]
    %v5316 = vshrl.u32 %v5198, 16
    %v5332 = vunpack.c.l.b16 %v5302
    %v5333 = vunpack.c.l.b16 %v5303
    %v5334 = vunpack.c.l.b16 %v5304
    %v5335 = vunpack.c.l.b16 %v5305
    %v5336 = vunpack.c.l.b16 %v5306
    %v5337 = vunpack.c.l.b16 %v5307
    %v5338 = vunpack.c.l.b16 %v5308
    %v5339 = vunpack.c.l.b16 %v5309
    %v5340 = vunpack.c.l.b16 %v5310
    %v5341 = vunpack.c.l.b16 %v5311
    %v5342 = vunpack.c.l.b16 %v5312
    %v5343 = vunpack.c.l.b16 %v5313
    %v5344 = vunpack.c.l.b16 %v5314
    %v5345 = vunpack.c.l.b16 %v5315
    %v5346 = vpack.c.b16 %v5333, %v5332
    %v5347 = vpack.c.b16 %v5335, %v5334
    %v5348 = vpack.c.b16 %v5337, %v5336
    %v5349 = vpack.c.b16 %v5339, %v5338
    %v5350 = vpack.c.b16 %v5341, %v5340
    %v5351 = vpack.c.b16 %v5343, %v5342
    %v5352 = vpack.c.b16 %v5345, %v5344
    %v5361 = vsel %vm5256, %v5316, 0
    %5363 = vmatprep.subr.bf16.mxu0 0
    %5364 = vmatpush1.bf16.msra.mxu0 %v5346
    %5365 = vmatprep.subr.bf16.mxu0 0
    %5366 = vmatpush1.bf16.msra.mxu0 %v5347
    %5367 = vmatprep.subr.bf16.mxu0 0
    %5368 = vmatpush1.bf16.msra.mxu0 %v5348
    %5369 = vmatprep.subr.bf16.mxu0 0
    %5370 = vmatpush1.bf16.msra.mxu0 %v5349
    %5371 = vmatprep.subr.bf16.mxu0 0
    %5372 = vmatpush1.bf16.msra.mxu0 %v5350
    %5373 = vmatprep.subr.bf16.mxu0 0
    %5374 = vmatpush1.bf16.msra.mxu0 %v5351
    %5375 = vmatprep.subr.bf16.mxu0 0
    %5376 = vmatpush1.bf16.msra.mxu0 %v5352
    %5377 = vmatprep.subr.bf16.mxu0 0
    %5378 = vmatpush1.bf16.msra.mxu0 0
    %5379 = vmatprep.subr.bf16.mxu0 0
    %5380 = vmatpush1.bf16.msra.mxu0 0
    %5381 = vmatprep.subr.bf16.mxu0 0
    %5382 = vmatpush1.bf16.msra.mxu0 0
    %5383 = vmatprep.subr.bf16.mxu0 0
    %5384 = vmatpush1.bf16.msra.mxu0 0
    %5385 = vmatprep.subr.bf16.mxu0 0
    %5386 = vmatpush1.bf16.msra.mxu0 0
    %5387 = vmatprep.subr.bf16.mxu0 0
    %5388 = vmatpush1.bf16.msra.mxu0 0
    %5389 = vmatprep.subr.bf16.mxu0 0
    %5390 = vmatpush1.bf16.msra.mxu0 0
    %5391 = vmatprep.subr.bf16.mxu0 0
    %5392 = vmatpush1.bf16.msra.mxu0 0
    %5393 = vmatprep.subr.bf16.mxu0 0
    %5394 = vmatpush1.bf16.msra.mxu0 0
    %5395 = vmatprep.mubr.bf16.mxu0 0
    %5396 = vmatmul.mubr.bf16.gmra.mrb[0].mxu0 %v5361
    %v5397 = vpop.f32.mrb[0].mxu0
    %v5398 = vadd.f32 0.0, %v5397
    %v5399 = vpop.f32.mrb[0].mxu0
    %v5400 = vpop.f32.mrb[0].mxu0
    %v5401 = vpop.f32.mrb[0].mxu0
    %5402 = vdwg.mxu0
    %v5403 = vadd.f32 %v5300, %v5398
    %s5404 = scalar_lea.vmem %s13, 112
    %v5405 = vld [vmem:[%s5404] sm:$0xf]
    %v5406 = vld [vmem:[%s5404 + $0x4] sm:$0xf]
    %v5407 = vld [vmem:[%s5404 + $0x8] sm:$0xf]
    %v5408 = vld [vmem:[%s5404 + $0xc] sm:$0xf]
    %v5409 = vld [vmem:[%s5404 + $0x10] sm:$0xf]
    %v5410 = vld [vmem:[%s5404 + $0x14] sm:$0xf]
    %v5411 = vld [vmem:[%s5404 + $0x18] sm:$0xf]
    %v5412 = vld [vmem:[%s5404 + $0x1c] sm:$0xf]
    %v5413 = vld [vmem:[%s5404 + $0x20] sm:$0xf]
    %v5414 = vld [vmem:[%s5404 + $0x24] sm:$0xf]
    %v5415 = vld [vmem:[%s5404 + $0x28] sm:$0xf]
    %v5416 = vld [vmem:[%s5404 + $0x2c] sm:$0xf]
    %v5417 = vld [vmem:[%s5404 + $0x30] sm:$0xf]
    %v5418 = vld [vmem:[%s5404 + $0x34] sm:$0xf]
    %v5420 = vrot.slane %v5198, 1
    %v5435 = vunpack.c.l.b16 %v5405
    %v5436 = vunpack.c.l.b16 %v5406
    %v5437 = vunpack.c.l.b16 %v5407
    %v5438 = vunpack.c.l.b16 %v5408
    %v5439 = vunpack.c.l.b16 %v5409
    %v5440 = vunpack.c.l.b16 %v5410
    %v5441 = vunpack.c.l.b16 %v5411
    %v5442 = vunpack.c.l.b16 %v5412
    %v5443 = vunpack.c.l.b16 %v5413
    %v5444 = vunpack.c.l.b16 %v5414
    %v5445 = vunpack.c.l.b16 %v5415
    %v5446 = vunpack.c.l.b16 %v5416
    %v5447 = vunpack.c.l.b16 %v5417
    %v5448 = vunpack.c.l.b16 %v5418
    %v5449 = vpack.c.b16 %v5436, %v5435
    %v5450 = vpack.c.b16 %v5438, %v5437
    %v5451 = vpack.c.b16 %v5440, %v5439
    %v5452 = vpack.c.b16 %v5442, %v5441
    %v5453 = vpack.c.b16 %v5444, %v5443
    %v5454 = vpack.c.b16 %v5446, %v5445
    %v5455 = vpack.c.b16 %v5448, %v5447
    %v5464 = vsel %vm5256, %v5420, 0
    %5466 = vmatprep.subr.bf16.mxu0 0
    %5467 = vmatpush1.bf16.msra.mxu0 %v5449
    %5468 = vmatprep.subr.bf16.mxu0 0
    %5469 = vmatpush1.bf16.msra.mxu0 %v5450
    %5470 = vmatprep.subr.bf16.mxu0 0
    %5471 = vmatpush1.bf16.msra.mxu0 %v5451
    %5472 = vmatprep.subr.bf16.mxu0 0
    %5473 = vmatpush1.bf16.msra.mxu0 %v5452
    %5474 = vmatprep.subr.bf16.mxu0 0
    %5475 = vmatpush1.bf16.msra.mxu0 %v5453
    %5476 = vmatprep.subr.bf16.mxu0 0
    %5477 = vmatpush1.bf16.msra.mxu0 %v5454
    %5478 = vmatprep.subr.bf16.mxu0 0
    %5479 = vmatpush1.bf16.msra.mxu0 %v5455
    %5480 = vmatprep.subr.bf16.mxu0 0
    %5481 = vmatpush1.bf16.msra.mxu0 0
    %5482 = vmatprep.subr.bf16.mxu0 0
    %5483 = vmatpush1.bf16.msra.mxu0 0
    %5484 = vmatprep.subr.bf16.mxu0 0
    %5485 = vmatpush1.bf16.msra.mxu0 0
    %5486 = vmatprep.subr.bf16.mxu0 0
    %5487 = vmatpush1.bf16.msra.mxu0 0
    %5488 = vmatprep.subr.bf16.mxu0 0
    %5489 = vmatpush1.bf16.msra.mxu0 0
    %5490 = vmatprep.subr.bf16.mxu0 0
    %5491 = vmatpush1.bf16.msra.mxu0 0
    %5492 = vmatprep.subr.bf16.mxu0 0
    %5493 = vmatpush1.bf16.msra.mxu0 0
    %5494 = vmatprep.subr.bf16.mxu0 0
    %5495 = vmatpush1.bf16.msra.mxu0 0
    %5496 = vmatprep.subr.bf16.mxu0 0
    %5497 = vmatpush1.bf16.msra.mxu0 0
    %5498 = vmatprep.mubr.bf16.mxu0 0
    %5499 = vmatmul.mubr.bf16.gmra.mrb[0].mxu0 %v5464
    %v5500 = vpop.f32.mrb[0].mxu0
    %v5501 = vadd.f32 0.0, %v5500
    %v5502 = vpop.f32.mrb[0].mxu0
    %v5503 = vpop.f32.mrb[0].mxu0
    %v5504 = vpop.f32.mrb[0].mxu0
    %5505 = vdwg.mxu0
    %v5506 = vadd.f32 %v5403, %v5501
    %s5507 = scalar_lea.vmem %s13, 168
    %v5508 = vld [vmem:[%s5507] sm:$0xf]
    %v5509 = vld [vmem:[%s5507 + $0x4] sm:$0xf]
    %v5510 = vld [vmem:[%s5507 + $0x8] sm:$0xf]
    %v5511 = vld [vmem:[%s5507 + $0xc] sm:$0xf]
    %v5512 = vld [vmem:[%s5507 + $0x10] sm:$0xf]
    %v5513 = vld [vmem:[%s5507 + $0x14] sm:$0xf]
    %v5514 = vld [vmem:[%s5507 + $0x18] sm:$0xf]
    %v5515 = vld [vmem:[%s5507 + $0x1c] sm:$0xf]
    %v5516 = vld [vmem:[%s5507 + $0x20] sm:$0xf]
    %v5517 = vld [vmem:[%s5507 + $0x24] sm:$0xf]
    %v5518 = vld [vmem:[%s5507 + $0x28] sm:$0xf]
    %v5519 = vld [vmem:[%s5507 + $0x2c] sm:$0xf]
    %v5520 = vld [vmem:[%s5507 + $0x30] sm:$0xf]
    %v5521 = vld [vmem:[%s5507 + $0x34] sm:$0xf]
    %v5522 = vrot.slane %v5316, 1
    %v5537 = vunpack.c.l.b16 %v5508
    %v5538 = vunpack.c.l.b16 %v5509
    %v5539 = vunpack.c.l.b16 %v5510
    %v5540 = vunpack.c.l.b16 %v5511
    %v5541 = vunpack.c.l.b16 %v5512
    %v5542 = vunpack.c.l.b16 %v5513
    %v5543 = vunpack.c.l.b16 %v5514
    %v5544 = vunpack.c.l.b16 %v5515
    %v5545 = vunpack.c.l.b16 %v5516
    %v5546 = vunpack.c.l.b16 %v5517
    %v5547 = vunpack.c.l.b16 %v5518
    %v5548 = vunpack.c.l.b16 %v5519
    %v5549 = vunpack.c.l.b16 %v5520
    %v5550 = vunpack.c.l.b16 %v5521
    %v5551 = vpack.c.b16 %v5538, %v5537
    %v5552 = vpack.c.b16 %v5540, %v5539
    %v5553 = vpack.c.b16 %v5542, %v5541
    %v5554 = vpack.c.b16 %v5544, %v5543
    %v5555 = vpack.c.b16 %v5546, %v5545
    %v5556 = vpack.c.b16 %v5548, %v5547
    %v5557 = vpack.c.b16 %v5550, %v5549
    %v5566 = vsel %vm5256, %v5522, 0
    %5568 = vmatprep.subr.bf16.mxu0 0
    %5569 = vmatpush1.bf16.msra.mxu0 %v5551
    %5570 = vmatprep.subr.bf16.mxu0 0
    %5571 = vmatpush1.bf16.msra.mxu0 %v5552
    %5572 = vmatprep.subr.bf16.mxu0 0
    %5573 = vmatpush1.bf16.msra.mxu0 %v5553
    %5574 = vmatprep.subr.bf16.mxu0 0
    %5575 = vmatpush1.bf16.msra.mxu0 %v5554
    %5576 = vmatprep.subr.bf16.mxu0 0
    %5577 = vmatpush1.bf16.msra.mxu0 %v5555
    %5578 = vmatprep.subr.bf16.mxu0 0
    %5579 = vmatpush1.bf16.msra.mxu0 %v5556
    %5580 = vmatprep.subr.bf16.mxu0 0
    %5581 = vmatpush1.bf16.msra.mxu0 %v5557
    %5582 = vmatprep.subr.bf16.mxu0 0
    %5583 = vmatpush1.bf16.msra.mxu0 0
    %5584 = vmatprep.subr.bf16.mxu0 0
    %5585 = vmatpush1.bf16.msra.mxu0 0
    %5586 = vmatprep.subr.bf16.mxu0 0
    %5587 = vmatpush1.bf16.msra.mxu0 0
    %5588 = vmatprep.subr.bf16.mxu0 0
    %5589 = vmatpush1.bf16.msra.mxu0 0
    %5590 = vmatprep.subr.bf16.mxu0 0
    %5591 = vmatpush1.bf16.msra.mxu0 0
    %5592 = vmatprep.subr.bf16.mxu0 0
    %5593 = vmatpush1.bf16.msra.mxu0 0
    %5594 = vmatprep.subr.bf16.mxu0 0
    %5595 = vmatpush1.bf16.msra.mxu0 0
    %5596 = vmatprep.subr.bf16.mxu0 0
    %5597 = vmatpush1.bf16.msra.mxu0 0
    %5598 = vmatprep.subr.bf16.mxu0 0
    %5599 = vmatpush1.bf16.msra.mxu0 0
    %5600 = vmatprep.mubr.bf16.mxu0 0
    %5601 = vmatmul.mubr.bf16.gmra.mrb[0].mxu0 %v5566
    %v5602 = vpop.f32.mrb[0].mxu0
    %v5603 = vadd.f32 0.0, %v5602
    %v5604 = vpop.f32.mrb[0].mxu0
    %v5605 = vpop.f32.mrb[0].mxu0
    %v5606 = vpop.f32.mrb[0].mxu0
    %5607 = vdwg.mxu0
    %v5608 = vadd.f32 %v5506, %v5603
    %s5609 = scalar_lea.vmem %s13, 224
    %v5610 = vld [vmem:[%s5609] sm:$0xf]
    %v5611 = vld [vmem:[%s5609 + $0x4] sm:$0xf]
    %v5612 = vld [vmem:[%s5609 + $0x8] sm:$0xf]
    %v5613 = vld [vmem:[%s5609 + $0xc] sm:$0xf]
    %v5614 = vld [vmem:[%s5609 + $0x10] sm:$0xf]
    %v5615 = vld [vmem:[%s5609 + $0x14] sm:$0xf]
    %v5616 = vld [vmem:[%s5609 + $0x18] sm:$0xf]
    %v5617 = vld [vmem:[%s5609 + $0x1c] sm:$0xf]
    %v5618 = vld [vmem:[%s5609 + $0x20] sm:$0xf]
    %v5619 = vld [vmem:[%s5609 + $0x24] sm:$0xf]
    %v5620 = vld [vmem:[%s5609 + $0x28] sm:$0xf]
    %v5621 = vld [vmem:[%s5609 + $0x2c] sm:$0xf]
    %v5622 = vld [vmem:[%s5609 + $0x30] sm:$0xf]
    %v5623 = vld [vmem:[%s5609 + $0x34] sm:$0xf]
    %v5624 = vrot.slane %v5198, 2
    %v5639 = vunpack.c.l.b16 %v5610
    %v5640 = vunpack.c.l.b16 %v5611
    %v5641 = vunpack.c.l.b16 %v5612
    %v5642 = vunpack.c.l.b16 %v5613
    %v5643 = vunpack.c.l.b16 %v5614
    %v5644 = vunpack.c.l.b16 %v5615
    %v5645 = vunpack.c.l.b16 %v5616
    %v5646 = vunpack.c.l.b16 %v5617
    %v5647 = vunpack.c.l.b16 %v5618
    %v5648 = vunpack.c.l.b16 %v5619
    %v5649 = vunpack.c.l.b16 %v5620
    %v5650 = vunpack.c.l.b16 %v5621
    %v5651 = vunpack.c.l.b16 %v5622
    %v5652 = vunpack.c.l.b16 %v5623
    %v5653 = vpack.c.b16 %v5640, %v5639
    %v5654 = vpack.c.b16 %v5642, %v5641
    %v5655 = vpack.c.b16 %v5644, %v5643
    %v5656 = vpack.c.b16 %v5646, %v5645
    %v5657 = vpack.c.b16 %v5648, %v5647
    %v5658 = vpack.c.b16 %v5650, %v5649
    %v5659 = vpack.c.b16 %v5652, %v5651
    %v5668 = vsel %vm5256, %v5624, 0
    %5670 = vmatprep.subr.bf16.mxu0 0
    %5671 = vmatpush1.bf16.msra.mxu0 %v5653
    %5672 = vmatprep.subr.bf16.mxu0 0
    %5673 = vmatpush1.bf16.msra.mxu0 %v5654
    %5674 = vmatprep.subr.bf16.mxu0 0
    %5675 = vmatpush1.bf16.msra.mxu0 %v5655
    %5676 = vmatprep.subr.bf16.mxu0 0
    %5677 = vmatpush1.bf16.msra.mxu0 %v5656
    %5678 = vmatprep.subr.bf16.mxu0 0
    %5679 = vmatpush1.bf16.msra.mxu0 %v5657
    %5680 = vmatprep.subr.bf16.mxu0 0
    %5681 = vmatpush1.bf16.msra.mxu0 %v5658
    %5682 = vmatprep.subr.bf16.mxu0 0
    %5683 = vmatpush1.bf16.msra.mxu0 %v5659
    %5684 = vmatprep.subr.bf16.mxu0 0
    %5685 = vmatpush1.bf16.msra.mxu0 0
    %5686 = vmatprep.subr.bf16.mxu0 0
    %5687 = vmatpush1.bf16.msra.mxu0 0
    %5688 = vmatprep.subr.bf16.mxu0 0
    %5689 = vmatpush1.bf16.msra.mxu0 0
    %5690 = vmatprep.subr.bf16.mxu0 0
    %5691 = vmatpush1.bf16.msra.mxu0 0
    %5692 = vmatprep.subr.bf16.mxu0 0
    %5693 = vmatpush1.bf16.msra.mxu0 0
    %5694 = vmatprep.subr.bf16.mxu0 0
    %5695 = vmatpush1.bf16.msra.mxu0 0
    %5696 = vmatprep.subr.bf16.mxu0 0
    %5697 = vmatpush1.bf16.msra.mxu0 0
    %5698 = vmatprep.subr.bf16.mxu0 0
    %5699 = vmatpush1.bf16.msra.mxu0 0
    %5700 = vmatprep.subr.bf16.mxu0 0
    %5701 = vmatpush1.bf16.msra.mxu0 0
    %5702 = vmatprep.mubr.bf16.mxu0 0
    %5703 = vmatmul.mubr.bf16.gmra.mrb[0].mxu0 %v5668
    %v5704 = vpop.f32.mrb[0].mxu0
    %v5705 = vadd.f32 0.0, %v5704
    %v5706 = vpop.f32.mrb[0].mxu0
    %v5707 = vpop.f32.mrb[0].mxu0
    %v5708 = vpop.f32.mrb[0].mxu0
    %5709 = vdwg.mxu0
    %v5710 = vadd.f32 %v5608, %v5705
    %s5711 = scalar_lea.vmem %s13, 280
    %v5712 = vld [vmem:[%s5711] sm:$0xf]
    %v5713 = vld [vmem:[%s5711 + $0x4] sm:$0xf]
    %v5714 = vld [vmem:[%s5711 + $0x8] sm:$0xf]
    %v5715 = vld [vmem:[%s5711 + $0xc] sm:$0xf]
    %v5716 = vld [vmem:[%s5711 + $0x10] sm:$0xf]
    %v5717 = vld [vmem:[%s5711 + $0x14] sm:$0xf]
    %v5718 = vld [vmem:[%s5711 + $0x18] sm:$0xf]
    %v5719 = vld [vmem:[%s5711 + $0x1c] sm:$0xf]
    %v5720 = vld [vmem:[%s5711 + $0x20] sm:$0xf]
    %v5721 = vld [vmem:[%s5711 + $0x24] sm:$0xf]
    %v5722 = vld [vmem:[%s5711 + $0x28] sm:$0xf]
    %v5723 = vld [vmem:[%s5711 + $0x2c] sm:$0xf]
    %v5724 = vld [vmem:[%s5711 + $0x30] sm:$0xf]
    %v5725 = vld [vmem:[%s5711 + $0x34] sm:$0xf]
    %v5726 = vrot.slane %v5316, 2
    %v5741 = vunpack.c.l.b16 %v5712
    %v5742 = vunpack.c.l.b16 %v5713
    %v5743 = vunpack.c.l.b16 %v5714
    %v5744 = vunpack.c.l.b16 %v5715
    %v5745 = vunpack.c.l.b16 %v5716
    %v5746 = vunpack.c.l.b16 %v5717
    %v5747 = vunpack.c.l.b16 %v5718
    %v5748 = vunpack.c.l.b16 %v5719
    %v5749 = vunpack.c.l.b16 %v5720
    %v5750 = vunpack.c.l.b16 %v5721
    %v5751 = vunpack.c.l.b16 %v5722
    %v5752 = vunpack.c.l.b16 %v5723
    %v5753 = vunpack.c.l.b16 %v5724
    %v5754 = vunpack.c.l.b16 %v5725
    %v5755 = vpack.c.b16 %v5742, %v5741
    %v5756 = vpack.c.b16 %v5744, %v5743
    %v5757 = vpack.c.b16 %v5746, %v5745
    %v5758 = vpack.c.b16 %v5748, %v5747
    %v5759 = vpack.c.b16 %v5750, %v5749
    %v5760 = vpack.c.b16 %v5752, %v5751
    %v5761 = vpack.c.b16 %v5754, %v5753
    %v5770 = vsel %vm5256, %v5726, 0
    %5772 = vmatprep.subr.bf16.mxu0 0
    %5773 = vmatpush1.bf16.msra.mxu0 %v5755
    %5774 = vmatprep.subr.bf16.mxu0 0
    %5775 = vmatpush1.bf16.msra.mxu0 %v5756
    %5776 = vmatprep.subr.bf16.mxu0 0
    %5777 = vmatpush1.bf16.msra.mxu0 %v5757
    %5778 = vmatprep.subr.bf16.mxu0 0
    %5779 = vmatpush1.bf16.msra.mxu0 %v5758
    %5780 = vmatprep.subr.bf16.mxu0 0
    %5781 = vmatpush1.bf16.msra.mxu0 %v5759
    %5782 = vmatprep.subr.bf16.mxu0 0
    %5783 = vmatpush1.bf16.msra.mxu0 %v5760
    %5784 = vmatprep.subr.bf16.mxu0 0
    %5785 = vmatpush1.bf16.msra.mxu0 %v5761
    %5786 = vmatprep.subr.bf16.mxu0 0
    %5787 = vmatpush1.bf16.msra.mxu0 0
    %5788 = vmatprep.subr.bf16.mxu0 0
    %5789 = vmatpush1.bf16.msra.mxu0 0
    %5790 = vmatprep.subr.bf16.mxu0 0
    %5791 = vmatpush1.bf16.msra.mxu0 0
    %5792 = vmatprep.subr.bf16.mxu0 0
    %5793 = vmatpush1.bf16.msra.mxu0 0
    %5794 = vmatprep.subr.bf16.mxu0 0
    %5795 = vmatpush1.bf16.msra.mxu0 0
    %5796 = vmatprep.subr.bf16.mxu0 0
    %5797 = vmatpush1.bf16.msra.mxu0 0
    %5798 = vmatprep.subr.bf16.mxu0 0
    %5799 = vmatpush1.bf16.msra.mxu0 0
    %5800 = vmatprep.subr.bf16.mxu0 0
    %5801 = vmatpush1.bf16.msra.mxu0 0
    %5802 = vmatprep.subr.bf16.mxu0 0
    %5803 = vmatpush1.bf16.msra.mxu0 0
    %5804 = vmatprep.mubr.bf16.mxu0 0
    %5805 = vmatmul.mubr.bf16.gmra.mrb[0].mxu0 %v5770
    %v5806 = vpop.f32.mrb[0].mxu0
    %v5807 = vadd.f32 0.0, %v5806
    %v5808 = vpop.f32.mrb[0].mxu0
    %v5809 = vpop.f32.mrb[0].mxu0
    %v5810 = vpop.f32.mrb[0].mxu0
    %5811 = vdwg.mxu0
    %v5812 = vadd.f32 %v5710, %v5807
    %s5813 = scalar_lea.vmem %s13, 336
    %v5814 = vld [vmem:[%s5813] sm:$0xf]
    %v5815 = vld [vmem:[%s5813 + $0x4] sm:$0xf]
    %v5816 = vld [vmem:[%s5813 + $0x8] sm:$0xf]
    %v5817 = vld [vmem:[%s5813 + $0xc] sm:$0xf]
    %v5818 = vld [vmem:[%s5813 + $0x10] sm:$0xf]
    %v5819 = vld [vmem:[%s5813 + $0x14] sm:$0xf]
    %v5820 = vld [vmem:[%s5813 + $0x18] sm:$0xf]
    %v5821 = vld [vmem:[%s5813 + $0x1c] sm:$0xf]
    %v5822 = vld [vmem:[%s5813 + $0x20] sm:$0xf]
    %v5823 = vld [vmem:[%s5813 + $0x24] sm:$0xf]
    %v5824 = vld [vmem:[%s5813 + $0x28] sm:$0xf]
    %v5825 = vld [vmem:[%s5813 + $0x2c] sm:$0xf]
    %v5826 = vld [vmem:[%s5813 + $0x30] sm:$0xf]
    %v5827 = vld [vmem:[%s5813 + $0x34] sm:$0xf]
    %v5828 = vrot.slane %v5198, 3
    %v5843 = vunpack.c.l.b16 %v5814
    %v5844 = vunpack.c.l.b16 %v5815
    %v5845 = vunpack.c.l.b16 %v5816
    %v5846 = vunpack.c.l.b16 %v5817
    %v5847 = vunpack.c.l.b16 %v5818
    %v5848 = vunpack.c.l.b16 %v5819
    %v5849 = vunpack.c.l.b16 %v5820
    %v5850 = vunpack.c.l.b16 %v5821
    %v5851 = vunpack.c.l.b16 %v5822
    %v5852 = vunpack.c.l.b16 %v5823
    %v5853 = vunpack.c.l.b16 %v5824
    %v5854 = vunpack.c.l.b16 %v5825
    %v5855 = vunpack.c.l.b16 %v5826
    %v5856 = vunpack.c.l.b16 %v5827
    %v5857 = vpack.c.b16 %v5844, %v5843
    %v5858 = vpack.c.b16 %v5846, %v5845
    %v5859 = vpack.c.b16 %v5848, %v5847
    %v5860 = vpack.c.b16 %v5850, %v5849
    %v5861 = vpack.c.b16 %v5852, %v5851
    %v5862 = vpack.c.b16 %v5854, %v5853
    %v5863 = vpack.c.b16 %v5856, %v5855
    %v5872 = vsel %vm5256, %v5828, 0
    %5874 = vmatprep.subr.bf16.mxu0 0
    %5875 = vmatpush1.bf16.msra.mxu0 %v5857
    %5876 = vmatprep.subr.bf16.mxu0 0
    %5877 = vmatpush1.bf16.msra.mxu0 %v5858
    %5878 = vmatprep.subr.bf16.mxu0 0
    %5879 = vmatpush1.bf16.msra.mxu0 %v5859
    %5880 = vmatprep.subr.bf16.mxu0 0
    %5881 = vmatpush1.bf16.msra.mxu0 %v5860
    %5882 = vmatprep.subr.bf16.mxu0 0
    %5883 = vmatpush1.bf16.msra.mxu0 %v5861
    %5884 = vmatprep.subr.bf16.mxu0 0
    %5885 = vmatpush1.bf16.msra.mxu0 %v5862
    %5886 = vmatprep.subr.bf16.mxu0 0
    %5887 = vmatpush1.bf16.msra.mxu0 %v5863
    %5888 = vmatprep.subr.bf16.mxu0 0
    %5889 = vmatpush1.bf16.msra.mxu0 0
    %5890 = vmatprep.subr.bf16.mxu0 0
    %5891 = vmatpush1.bf16.msra.mxu0 0
    %5892 = vmatprep.subr.bf16.mxu0 0
    %5893 = vmatpush1.bf16.msra.mxu0 0
    %5894 = vmatprep.subr.bf16.mxu0 0
    %5895 = vmatpush1.bf16.msra.mxu0 0
    %5896 = vmatprep.subr.bf16.mxu0 0
    %5897 = vmatpush1.bf16.msra.mxu0 0
    %5898 = vmatprep.subr.bf16.mxu0 0
    %5899 = vmatpush1.bf16.msra.mxu0 0
    %5900 = vmatprep.subr.bf16.mxu0 0
    %5901 = vmatpush1.bf16.msra.mxu0 0
    %5902 = vmatprep.subr.bf16.mxu0 0
    %5903 = vmatpush1.bf16.msra.mxu0 0
    %5904 = vmatprep.subr.bf16.mxu0 0
    %5905 = vmatpush1.bf16.msra.mxu0 0
    %5906 = vmatprep.mubr.bf16.mxu0 0
    %5907 = vmatmul.mubr.bf16.gmra.mrb[0].mxu0 %v5872
    %v5908 = vpop.f32.mrb[0].mxu0
    %v5909 = vadd.f32 0.0, %v5908
    %v5910 = vpop.f32.mrb[0].mxu0
    %v5911 = vpop.f32.mrb[0].mxu0
    %v5912 = vpop.f32.mrb[0].mxu0
    %5913 = vdwg.mxu0
    %v5914 = vadd.f32 %v5812, %v5909
    %v5915 = vmax.f32 %v5914, 0.0
    %v5916 = vld [vmem:[%s14] sm:$0xff]
    %v5917 = vld [vmem:[%s14 + $0x8] sm:$0xff]
    %v5918 = vld [vmem:[%s14 + $0x10] sm:$0xff]
    %v5919 = vld [vmem:[%s14 + $0x18] sm:$0xff]
    %v5920 = vld [vmem:[%s14 + $0x20] sm:$0xff]
    %v5921 = vld [vmem:[%s14 + $0x28] sm:$0xff]
    %v5922 = vld [vmem:[%s14 + $0x30] sm:$0xff]
    %v5923 = vld [vmem:[%s14 + $0x38] sm:$0xff]
    %v5924 = vld [vmem:[%s14 + $0x40] sm:$0xff]
    %v5925 = vld [vmem:[%s14 + $0x48] sm:$0xff]
    %v5926 = vld [vmem:[%s14 + $0x50] sm:$0xff]
    %v5927 = vld [vmem:[%s14 + $0x58] sm:$0xff]
    %v5928 = vld [vmem:[%s14 + $0x60] sm:$0xff]
    %v5929 = vld [vmem:[%s14 + $0x68] sm:$0xff]
    %v5930 = vld [vmem:[%s14 + $0x70] sm:$0xff]
    %v5931 = vld [vmem:[%s16 + $0x7] ss:$0 sm:$0xff]
    %vm5932 = vcmask 982016
    %v5934 = vsel %vm5932, %v5915, 0
    %5936 = vmatprep.subr.mxu0 0.0
    %5937 = vmatpush1.msra.mxu0 %v5916
    %5938 = vmatprep.subr.mxu0 0.0
    %5939 = vmatpush1.msra.mxu0 %v5917
    %5940 = vmatprep.subr.mxu0 0.0
    %5941 = vmatpush1.msra.mxu0 %v5918
    %5942 = vmatprep.subr.mxu0 0.0
    %5943 = vmatpush1.msra.mxu0 %v5919
    %5944 = vmatprep.subr.mxu0 0.0
    %5945 = vmatpush1.msra.mxu0 %v5920
    %5946 = vmatprep.subr.mxu0 0.0
    %5947 = vmatpush1.msra.mxu0 %v5921
    %5948 = vmatprep.subr.mxu0 0.0
    %5949 = vmatpush1.msra.mxu0 %v5922
    %5950 = vmatprep.subr.mxu0 0.0
    %5951 = vmatpush1.msra.mxu0 %v5923
    %5952 = vmatprep.subr.mxu0 0.0
    %5953 = vmatpush1.msra.mxu0 %v5924
    %5954 = vmatprep.subr.mxu0 0.0
    %5955 = vmatpush1.msra.mxu0 %v5925
    %5956 = vmatprep.subr.mxu0 0.0
    %5957 = vmatpush1.msra.mxu0 %v5926
    %5958 = vmatprep.subr.mxu0 0.0
    %5959 = vmatpush1.msra.mxu0 %v5927
    %5960 = vmatprep.subr.mxu0 0.0
    %5961 = vmatpush1.msra.mxu0 %v5928
    %5962 = vmatprep.subr.mxu0 0.0
    %5963 = vmatpush1.msra.mxu0 %v5929
    %5964 = vmatprep.subr.mxu0 0.0
    %5965 = vmatpush1.msra.mxu0 %v5930
    %5966 = vmatprep.subr.mxu0 0.0
    %5967 = vmatpush1.msra.mxu0 0.0
    %5968 = vmatprep.subr.mxu0 0.0
    %5969 = vmatpush1.msra.mxu0 0.0
    %5970 = vmatprep.subr.mxu0 0.0
    %5971 = vmatpush1.msra.mxu0 0.0
    %5972 = vmatprep.subr.mxu0 0.0
    %5973 = vmatpush1.msra.mxu0 0.0
    %5974 = vmatprep.subr.mxu0 0.0
    %5975 = vmatpush1.msra.mxu0 0.0
    %5976 = vmatprep.subr.mxu0 0.0
    %5977 = vmatpush1.msra.mxu0 0.0
    %5978 = vmatprep.subr.mxu0 0.0
    %5979 = vmatpush1.msra.mxu0 0.0
    %5980 = vmatprep.subr.mxu0 0.0
    %5981 = vmatpush1.msra.mxu0 0.0
    %5982 = vmatprep.subr.mxu0 0.0
    %5983 = vmatpush1.msra.mxu0 0.0
    %5984 = vmatprep.subr.mxu0 0.0
    %5985 = vmatpush1.msra.mxu0 0.0
    %5986 = vmatprep.subr.mxu0 0.0
    %5987 = vmatpush1.msra.mxu0 0.0
    %5988 = vmatprep.subr.mxu0 0.0
    %5989 = vmatpush1.msra.mxu0 0.0
    %5990 = vmatprep.subr.mxu0 0.0
    %5991 = vmatpush1.msra.mxu0 0.0
    %5992 = vmatprep.subr.mxu0 0.0
    %5993 = vmatpush1.msra.mxu0 0.0
    %5994 = vmatprep.subr.mxu0 0.0
    %5995 = vmatpush1.msra.mxu0 0.0
    %5996 = vmatprep.subr.mxu0 0.0
    %5997 = vmatpush1.msra.mxu0 0.0
    %5998 = vmatprep.subr.mxu0 0.0
    %5999 = vmatpush1.msra.mxu0 0.0
    %6000 = vmatprep.mubr.f32.mxu0 0.0
    %6001 = vmatmul.mubr.f32.gmra.mrb[0].mxu0 %v5934
    %v6002 = vpop.f32.mrb[0].mxu0
    %v6003 = vadd.f32 %v5931, %v6002
    %v6004 = vpop.f32.mrb[0].mxu0
    %6005 = vdwg.mxu0
    %v6006 = vmax.f32 %v6003, 0.0
    %v6007 = vld [vmem:[%s15] sm:$0xff]
    %v6008 = vld [vmem:[%s15 + $0x8] sm:$0xff]
    %v6009 = vld [vmem:[%s15 + $0x10] sm:$0xff]
    %v6010 = vld [vmem:[%s15 + $0x18] sm:$0xff]
    %v6011 = vld [vmem:[%s15 + $0x20] sm:$0xff]
    %v6012 = vld [vmem:[%s15 + $0x28] sm:$0xff]
    %v6013 = vld [vmem:[%s15 + $0x30] sm:$0xff]
    %v6014 = vld [vmem:[%s15 + $0x38] sm:$0xff]
    %v6015 = vld [vmem:[%s15 + $0x40] sm:$0xff]
    %v6016 = vld [vmem:[%s15 + $0x48] sm:$0xff]
    %v6017 = vld [vmem:[%s15 + $0x50] sm:$0xf]
    %v6018 = vld [vmem:[%s16 + $0x10] ss:$0 sm:$0xff]
    %v6020 = vsel %vm3757, %v6006, 0
    %v6023 = vsel %vm580, %v6017, 0
    %6025 = vmatprep.subr.mxu0 0.0
    %6026 = vmatpush1.msra.mxu0 %v6007
    %6027 = vmatprep.subr.mxu0 0.0
    %6028 = vmatpush1.msra.mxu0 %v6008
    %6029 = vmatprep.subr.mxu0 0.0
    %6030 = vmatpush1.msra.mxu0 %v6009
    %6031 = vmatprep.subr.mxu0 0.0
    %6032 = vmatpush1.msra.mxu0 %v6010
    %6033 = vmatprep.subr.mxu0 0.0
    %6034 = vmatpush1.msra.mxu0 %v6011
    %6035 = vmatprep.subr.mxu0 0.0
    %6036 = vmatpush1.msra.mxu0 %v6012
    %6037 = vmatprep.subr.mxu0 0.0
    %6038 = vmatpush1.msra.mxu0 %v6013
    %6039 = vmatprep.subr.mxu0 0.0
    %6040 = vmatpush1.msra.mxu0 %v6014
    %6041 = vmatprep.subr.mxu0 0.0
    %6042 = vmatpush1.msra.mxu0 %v6015
    %6043 = vmatprep.subr.mxu0 0.0
    %6044 = vmatpush1.msra.mxu0 %v6016
    %6045 = vmatprep.subr.mxu0 0.0
    %6046 = vmatpush1.msra.mxu0 %v6023
    %6047 = vmatprep.subr.mxu0 0.0
    %6048 = vmatpush1.msra.mxu0 0.0
    %6049 = vmatprep.subr.mxu0 0.0
    %6050 = vmatpush1.msra.mxu0 0.0
    %6051 = vmatprep.subr.mxu0 0.0
    %6052 = vmatpush1.msra.mxu0 0.0
    %6053 = vmatprep.subr.mxu0 0.0
    %6054 = vmatpush1.msra.mxu0 0.0
    %6055 = vmatprep.subr.mxu0 0.0
    %6056 = vmatpush1.msra.mxu0 0.0
    %6057 = vmatprep.subr.mxu0 0.0
    %6058 = vmatpush1.msra.mxu0 0.0
    %6059 = vmatprep.subr.mxu0 0.0
    %6060 = vmatpush1.msra.mxu0 0.0
    %6061 = vmatprep.subr.mxu0 0.0
    %6062 = vmatpush1.msra.mxu0 0.0
    %6063 = vmatprep.subr.mxu0 0.0
    %6064 = vmatpush1.msra.mxu0 0.0
    %6065 = vmatprep.subr.mxu0 0.0
    %6066 = vmatpush1.msra.mxu0 0.0
    %6067 = vmatprep.subr.mxu0 0.0
    %6068 = vmatpush1.msra.mxu0 0.0
    %6069 = vmatprep.subr.mxu0 0.0
    %6070 = vmatpush1.msra.mxu0 0.0
    %6071 = vmatprep.subr.mxu0 0.0
    %6072 = vmatpush1.msra.mxu0 0.0
    %6073 = vmatprep.subr.mxu0 0.0
    %6074 = vmatpush1.msra.mxu0 0.0
    %6075 = vmatprep.subr.mxu0 0.0
    %6076 = vmatpush1.msra.mxu0 0.0
    %6077 = vmatprep.subr.mxu0 0.0
    %6078 = vmatpush1.msra.mxu0 0.0
    %6079 = vmatprep.subr.mxu0 0.0
    %6080 = vmatpush1.msra.mxu0 0.0
    %6081 = vmatprep.subr.mxu0 0.0
    %6082 = vmatpush1.msra.mxu0 0.0
    %6083 = vmatprep.subr.mxu0 0.0
    %6084 = vmatpush1.msra.mxu0 0.0
    %6085 = vmatprep.subr.mxu0 0.0
    %6086 = vmatpush1.msra.mxu0 0.0
    %6087 = vmatprep.subr.mxu0 0.0
    %6088 = vmatpush1.msra.mxu0 0.0
    %6089 = vmatprep.mubr.f32.mxu0 0.0
    %6090 = vmatmul.mubr.f32.gmra.mrb[0].mxu0 %v6020
    %v6091 = vpop.f32.mrb[0].mxu0
    %v6092 = vadd.f32 %v6018, %v6091
    %v6093 = vpop.f32.mrb[0].mxu0
    %6094 = vdwg.mxu0
    %vm6095 = vcmask 73728
    %v6096 = vsel %vm6095, %v6092, -inf
    %6097 = vmax.xlane.f32.xlu0 %v6096
    %v6098 = vpop.xlane.xlu0 %6097
    %v6099 = vsub.f32 %v6092, %v6098
    %v6100 = vmul.f32 %v6099, 1.442695
    %v6101 = vpow.pop %v6100
    %v6102 = vsel %vm6095, %v6101, 0.0
    %6103 = vadd.xlane.f32.xlu0 %v6102
    %v6104 = vpop.xlane.xlu0 %6103
    %v6105 = vrcp.pop %v6104
    %v6106 = vmul.f32 %v6101, %v6105
    %6107 = vst.msk [vmem:[#allocation2] sm:$0x1] %vm6095, %v6106
    // Predicated region
    $region70: #{cnn_forward.1} parent=1 // pred_check
      _
    $region71: #{cnn_forward.1} parent=1 // pred_check_branch
      %6109 = sbr.rel (0) target = $region73
    $region72: #{cnn_forward.1} parent=1 // pred_region
      %s6111 = ssub.s32 16, 16
      %6112 = vsyncadd [#allocation3], %s6111
      %s6114 = sshll.u32 [#allocation2], 4
      %s6115 = int_to_ptr.vmem [resolvable:$true] %s6114
      %6117 = dma.vmem_to_hbm [thread:$0]  %s6115, 16, %s17, [#allocation3]
    $region73: #{cnn_forward.1} parent=1 // pred_fallthru
      _
    // Predicated region
    $region74: #{cnn_forward.1} parent=1 // pred_check
      _
    $region75: #{cnn_forward.1} parent=1 // pred_check_branch
      %6119 = sbr.rel (0) target = $region77
    $region76: #{cnn_forward.1} parent=1 // pred_region
      %6120 = dma.done [#allocation3], 16
    $region77: #{cnn_forward.1} parent=1 // pred_fallthru
      _
    %6121 = vsyncpa [#allocation3], 1

</llo_original>
